<compile_context>
chip_gen: v7x
topology: tpu7x:2x2x1
jax: 0.10.0
libtpu: 0.0.40
codegen_flags: <defaults>
</compile_context>

<pallas_src>
import functools

import jax
import jax.numpy as jnp
from jax.experimental import pallas as pl
from jax.experimental.pallas import tpu as pltpu

# ---- static problem sizes (Linear(768,2) forces the final spatial length to 3) ----
B = 2              # batch
L_IN = 31          # input length (PyTorch NCL: (B, 1, 31))
L1, P1 = 30, 15    # after conv1 (k=2) / maxpool(2)
L2, P2 = 14, 7     # after conv2 / maxpool
L3, P3 = 6, 3      # after conv3 / maxpool
C1, C2, C3, C_OUT = 32, 128, 256, 2
NUM_STEPS = 5

BETAS = (0.9, 0.85, 0.8, 0.75)
THRESHOLDS = (0.5, 0.5, 0.5, 0.5)


# ------------------------------ kernel helpers ------------------------------ #
def _pool_sel(n_out):
    """(n_out, 2*n_out-1) 0/1 matrix: sel[p, 2p] = 1 (row selection via MXU)."""
    r = jax.lax.broadcasted_iota(jnp.int32, (n_out, 2 * n_out - 1), 0)
    c = jax.lax.broadcasted_iota(jnp.int32, (n_out, 2 * n_out - 1), 1)
    return (c == 2 * r).astype(jnp.float32)


def _maxpool2(x, sel):
    """x: (2n, C) batch-major rows -> (n, C); window 2, stride 2 (per-batch lengths
    are even, so pairs never cross a batch boundary)."""
    two_n = sel.shape[1] + 1
    m = jnp.maximum(x[0:two_n - 1, :], x[1:two_n, :])          # m[j] = max(x[j], x[j+1])
    return jnp.dot(sel, m, preferred_element_type=jnp.float32)  # picks rows 0,2,4,...


def _lif(cur, mem_prev, beta, thr):
    reset = (mem_prev > thr).astype(jnp.float32)
    mem_new = beta * mem_prev + cur - reset * thr
    spk = (mem_new > thr).astype(jnp.float32)
    return spk, mem_new


# --------------------------------- kernel ----------------------------------- #
def csnn_kernel(params_ref,                 # SMEM (8,): betas[0:4], thresholds[4:8]
                x_ref,                      # (B, 31, 1)   static input, channels-last
                w1_ref, b1_ref,             # (2, 32), (1, 32)
                w2_ref, b2_ref,             # (64, 128), (1, 128)
                w3_ref, b3_ref,             # (256, 256), (1, 256)
                w4_ref, b4_ref,             # (3, 256, 2), (1, 2)
                cur_out_ref, spk_out_ref, mem_out_ref,   # (num_steps, B, 2) each
                *, num_steps):
    beta1, beta2, beta3, beta4 = (params_ref[0], params_ref[1],
                                  params_ref[2], params_ref[3])
    thr1, thr2, thr3, thr4 = (params_ref[4], params_ref[5],
                              params_ref[6], params_ref[7])

    # Pooling row-selection matrices (constants, built once, hoisted out of the loop).
    sel1 = _pool_sel(B * P1)   # (30, 59)
    sel2 = _pool_sel(B * P2)   # (14, 27)
    sel3 = _pool_sel(B * P3)   # (6, 11)

    # Weights loaded once into register values.
    w2a, w2b = w2_ref[0:C1, :], w2_ref[C1:2 * C1, :]
    w3a, w3b = w3_ref[0:C2, :], w3_ref[C2:2 * C2, :]
    bias2, bias3, bias4 = b2_ref[...], b3_ref[...], b4_ref[...]

    # ---- conv1 (1 -> 32, k=2) + maxpool(2): step-invariant, computed ONCE ----
    pre1_parts = []
    for b in range(B):
        xa = x_ref[b, 0:L1, :]            # (30, 1)
        xb = x_ref[b, 1:L1 + 1, :]        # (30, 1)
        pre1_parts.append(xa * w1_ref[0:1, :] + xb * w1_ref[1:2, :] + b1_ref[...])
    pre1 = jnp.concatenate(pre1_parts, axis=0)   # (60, 32), row = b*30 + l
    cur1 = _maxpool2(pre1, sel1)                 # (30, 32), row = b*15 + p

    # ---- LIF membrane states: loop-carried register values (init_leaky -> zeros) ----
    mem1 = jnp.zeros((B * P1, C1), jnp.float32)
    mem2 = jnp.zeros((B * P2, C2), jnp.float32)
    mem3 = jnp.zeros((B * P3, C3), jnp.float32)
    mem4 = jnp.zeros((B, C_OUT), jnp.float32)

    # ---- time loop, fully unrolled inside the kernel ----
    for t in range(num_steps):
        # LIF1 on the hoisted conv1+pool1 current
        spk1, mem1 = _lif(cur1, mem1, beta1, thr1)                       # (30, 32)

        # conv2 (32 -> 128, k=2): batch-fused im2col, split-K matmuls
        a2 = jnp.concatenate([spk1[0:L2, :], spk1[P1:P1 + L2, :]], axis=0)          # (28, 32)
        c2 = jnp.concatenate([spk1[1:L2 + 1, :], spk1[P1 + 1:P1 + L2 + 1, :]], axis=0)
        pre2 = (jnp.dot(a2, w2a, preferred_element_type=jnp.float32)
                + jnp.dot(c2, w2b, preferred_element_type=jnp.float32)
                + bias2)                                                  # (28, 128)
        cur2 = _maxpool2(pre2, sel2)                                      # (14, 128)
        spk2, mem2 = _lif(cur2, mem2, beta2, thr2)

        # conv3 (128 -> 256, k=2)
        a3 = jnp.concatenate([spk2[0:L3, :], spk2[P2:P2 + L3, :]], axis=0)           # (12, 128)
        c3 = jnp.concatenate([spk2[1:L3 + 1, :], spk2[P2 + 1:P2 + L3 + 1, :]], axis=0)
        pre3 = (jnp.dot(a3, w3a, preferred_element_type=jnp.float32)
                + jnp.dot(c3, w3b, preferred_element_type=jnp.float32)
                + bias3)                                                  # (12, 256)
        cur3 = _maxpool2(pre3, sel3)                                      # (6, 256)
        spk3, mem3 = _lif(cur3, mem3, beta3, thr3)

        # fc1 (768 -> 2) on channel-major flatten, both batches per dot
        cur4 = bias4                                                      # (1, 2), broadcasts
        for tt in range(P3):
            rows = jnp.concatenate([spk3[tt:tt + 1, :],
                                    spk3[P3 + tt:P3 + tt + 1, :]], axis=0)   # (2, 256)
            cur4 = cur4 + jnp.dot(rows, w4_ref[tt],
                                  preferred_element_type=jnp.float32)        # (2, 2)
        spk4, mem4 = _lif(cur4, mem4, beta4, thr4)

        # static-index per-step stores (tiny)
        cur_out_ref[t, :, :] = cur4
        spk_out_ref[t, :, :] = spk4
        mem_out_ref[t, :, :] = mem4


# ------------------------------ wrapper (glue) ------------------------------ #
def net2_csnn_forward(x_ncl, params_smem, weights, num_steps=NUM_STEPS):
    """x_ncl: (B, 1, L_IN) like PyTorch. Returns (cur_rec, spk_rec, mem_rec),
    each of shape (num_steps, B, 2)."""
    w1, b1, w2, b2, w3, b3, w4, b4 = weights
    x_nlc = jnp.transpose(x_ncl, (0, 2, 1)).astype(jnp.float32)  # (B, 31, 1)
    num_steps = int(num_steps)

    kernel = functools.partial(csnn_kernel, num_steps=num_steps)

    out_shape = tuple(jax.ShapeDtypeStruct((num_steps, B, C_OUT), jnp.float32)
                      for _ in range(3))
    out_spec = pl.BlockSpec((num_steps, B, C_OUT), lambda i: (0, 0, 0))

    # TODO(synk): on v7x (2 TensorCores) a batch-parallel leading grid axis could give
    # ~2x; intentionally not applied here since it only adds serial overhead on v5e/v6e.
    return pl.pallas_call(
        kernel,
        out_shape=out_shape,
        grid=(1,),   # single invocation: the time loop lives inside the kernel
        in_specs=[
            pl.BlockSpec(memory_space=pltpu.MemorySpace.SMEM),          # params
            pl.BlockSpec((B, L_IN, 1), lambda i: (0, 0, 0)),            # x
            pl.BlockSpec((2, C1), lambda i: (0, 0)),                    # w1
            pl.BlockSpec((1, C1), lambda i: (0, 0)),                    # b1
            pl.BlockSpec((2 * C1, C2), lambda i: (0, 0)),               # w2
            pl.BlockSpec((1, C2), lambda i: (0, 0)),                    # b2
            pl.BlockSpec((2 * C2, C3), lambda i: (0, 0)),               # w3
            pl.BlockSpec((1, C3), lambda i: (0, 0)),                    # b3
            pl.BlockSpec((P3, C3, C_OUT), lambda i: (0, 0, 0)),         # w4
            pl.BlockSpec((1, C_OUT), lambda i: (0, 0)),                 # b4
        ],
        out_specs=(out_spec, out_spec, out_spec),
        compiler_params=pltpu.CompilerParams(
            dimension_semantics=("arbitrary",)),
    )(params_smem, x_nlc, w1, b1, w2, b2, w3, b3, w4, b4)


def init_weights(key):
    """Deterministic, PyTorch-shaped params, converted to kernel layout."""
    ks = jax.random.split(key, 8)

    def u(k, shape, fan_in):
        bound = 1.0 / float(fan_in) ** 0.5
        return jax.random.uniform(k, shape, jnp.float32, -bound, bound)

    # PyTorch-layout parameters
    conv1_w = u(ks[0], (C1, 1, 2), 2)        # (Cout, Cin, K)
    conv1_b = u(ks[1], (C1,), 2)
    conv2_w = u(ks[2], (C2, C1, 2), 2 * C1)
    conv2_b = u(ks[3], (C2,), 2 * C1)
    conv3_w = u(ks[4], (C3, C2, 2), 2 * C2)
    conv3_b = u(ks[5], (C3,), 2 * C2)
    fc_w = u(ks[6], (C_OUT, C3 * P3), C3 * P3)   # (2, 768), feature index = c*3 + t
    fc_b = u(ks[7], (C_OUT,), C3 * P3)

    # Kernel (im2col / channels-last) layout
    w1 = jnp.transpose(conv1_w[:, 0, :], (1, 0))                       # (2, 32)
    w2 = jnp.transpose(conv2_w, (2, 1, 0)).reshape(2 * C1, C2)         # (64, 128)
    w3 = jnp.transpose(conv3_w, (2, 1, 0)).reshape(2 * C2, C3)         # (256, 256)
    w4 = jnp.transpose(fc_w.reshape(C_OUT, C3, P3), (2, 1, 0))         # (3, 256, 2)
    b1 = conv1_b.reshape(1, C1)
    b2 = conv2_b.reshape(1, C2)
    b3 = conv3_b.reshape(1, C3)
    b4 = fc_b.reshape(1, C_OUT)
    return (w1, b1, w2, b2, w3, b3, w4, b4)


if __name__ == "__main__":
    key = jax.random.PRNGKey(0)
    k_x, k_w = jax.random.split(key)

    x = jax.random.normal(k_x, (B, 1, L_IN), dtype=jnp.float32)   # PyTorch NCL input
    weights = init_weights(k_w)
    params_smem = jnp.array(list(BETAS) + list(THRESHOLDS), dtype=jnp.float32)

    cur_rec, spk_rec, mem_rec = net2_csnn_forward(x, params_smem, weights, NUM_STEPS)
    jax.block_until_ready((cur_rec, spk_rec, mem_rec))

    assert cur_rec.shape == (NUM_STEPS, B, C_OUT)
    assert spk_rec.shape == (NUM_STEPS, B, C_OUT)
    assert mem_rec.shape == (NUM_STEPS, B, C_OUT)
    assert bool(jnp.all(jnp.isfinite(cur_rec)))
    assert bool(jnp.all(jnp.isfinite(mem_rec)))
    # spikes must be binary
    assert bool(jnp.all((spk_rec == 0.0) | (spk_rec == 1.0)))

    print("KERNEL_OK")
</pallas_src>

<mosaic_0001>
module attributes {stable_mosaic.version = 11 : i64} {
  func.func @csnn_kernel(%arg0: i32, %arg1: memref<8xf32, #tpu.memory_space<smem>>, %arg2: memref<2x31x1xf32, #tpu.memory_space<vmem>>, %arg3: memref<2x32xf32, #tpu.memory_space<vmem>>, %arg4: memref<1x32xf32, #tpu.memory_space<vmem>>, %arg5: memref<64x128xf32, #tpu.memory_space<vmem>>, %arg6: memref<1x128xf32, #tpu.memory_space<vmem>>, %arg7: memref<256x256xf32, #tpu.memory_space<vmem>>, %arg8: memref<1x256xf32, #tpu.memory_space<vmem>>, %arg9: memref<3x256x2xf32, #tpu.memory_space<vmem>>, %arg10: memref<1x2xf32, #tpu.memory_space<vmem>>, %arg11: memref<5x2x2xf32, #tpu.memory_space<vmem>>, %arg12: memref<5x2x2xf32, #tpu.memory_space<vmem>>, %arg13: memref<5x2x2xf32, #tpu.memory_space<vmem>>) attributes {dimension_semantics = [#tpu.dimension_semantics<arbitrary>], iteration_bounds = array<i64: 1>, scalar_prefetch = 0 : i64, scratch_operands = 0 : i64, tpu.core_type = #tpu.core_type<tc>, window_params = [{transform_indices = @transform_0, window_bounds = array<i64: 8>}, {pipeline_mode = #tpu.pipeline_mode<synchronous>, transform_indices = @transform_1, window_bounds = array<i64: 2, 31, 1>}, {pipeline_mode = #tpu.pipeline_mode<synchronous>, transform_indices = @transform_2, window_bounds = array<i64: 2, 32>}, {pipeline_mode = #tpu.pipeline_mode<synchronous>, transform_indices = @transform_3, window_bounds = array<i64: 1, 32>}, {pipeline_mode = #tpu.pipeline_mode<synchronous>, transform_indices = @transform_4, window_bounds = array<i64: 64, 128>}, {pipeline_mode = #tpu.pipeline_mode<synchronous>, transform_indices = @transform_5, window_bounds = array<i64: 1, 128>}, {pipeline_mode = #tpu.pipeline_mode<synchronous>, transform_indices = @transform_6, window_bounds = array<i64: 256, 256>}, {pipeline_mode = #tpu.pipeline_mode<synchronous>, transform_indices = @transform_7, window_bounds = array<i64: 1, 256>}, {pipeline_mode = #tpu.pipeline_mode<synchronous>, transform_indices = @transform_8, window_bounds = array<i64: 3, 256, 2>}, {pipeline_mode = #tpu.pipeline_mode<synchronous>, transform_indices = @transform_9, window_bounds = array<i64: 1, 2>}, {pipeline_mode = #tpu.pipeline_mode<synchronous>, transform_indices = @transform_10, window_bounds = array<i64: 5, 2, 2>}, {pipeline_mode = #tpu.pipeline_mode<synchronous>, transform_indices = @transform_11, window_bounds = array<i64: 5, 2, 2>}, {pipeline_mode = #tpu.pipeline_mode<synchronous>, transform_indices = @transform_12, window_bounds = array<i64: 5, 2, 2>}]} {
    %c0 = arith.constant 0 : index
    %0 = memref.load %arg1[%c0] : memref<8xf32, #tpu.memory_space<smem>>
    %c1 = arith.constant 1 : index
    %1 = memref.load %arg1[%c1] : memref<8xf32, #tpu.memory_space<smem>>
    %c2 = arith.constant 2 : index
    %2 = memref.load %arg1[%c2] : memref<8xf32, #tpu.memory_space<smem>>
    %c3 = arith.constant 3 : index
    %3 = memref.load %arg1[%c3] : memref<8xf32, #tpu.memory_space<smem>>
    %c4 = arith.constant 4 : index
    %4 = memref.load %arg1[%c4] : memref<8xf32, #tpu.memory_space<smem>>
    %c5 = arith.constant 5 : index
    %5 = memref.load %arg1[%c5] : memref<8xf32, #tpu.memory_space<smem>>
    %c6 = arith.constant 6 : index
    %6 = memref.load %arg1[%c6] : memref<8xf32, #tpu.memory_space<smem>>
    %c7 = arith.constant 7 : index
    %7 = memref.load %arg1[%c7] : memref<8xf32, #tpu.memory_space<smem>>
    %8 = tpu.iota {dimensions = array<i32: 0>} : vector<30x59xi32>
    %9 = tpu.iota {dimensions = array<i32: 1>} : vector<30x59xi32>
    %c2_i32 = arith.constant 2 : i32
    %10 = vector.broadcast %c2_i32 : i32 to vector<30x59xi32>
    %11 = arith.muli %10, %8 : vector<30x59xi32>
    %12 = arith.cmpi eq, %9, %11 : vector<30x59xi32>
    %13 = arith.extui %12 : vector<30x59xi1> to vector<30x59xi32>
    %14 = arith.sitofp %13 : vector<30x59xi32> to vector<30x59xf32>
    %15 = tpu.iota {dimensions = array<i32: 0>} : vector<14x27xi32>
    %16 = tpu.iota {dimensions = array<i32: 1>} : vector<14x27xi32>
    %c2_i32_0 = arith.constant 2 : i32
    %17 = vector.broadcast %c2_i32_0 : i32 to vector<14x27xi32>
    %18 = arith.muli %17, %15 : vector<14x27xi32>
    %19 = arith.cmpi eq, %16, %18 : vector<14x27xi32>
    %20 = arith.extui %19 : vector<14x27xi1> to vector<14x27xi32>
    %21 = arith.sitofp %20 : vector<14x27xi32> to vector<14x27xf32>
    %22 = tpu.iota {dimensions = array<i32: 0>} : vector<6x11xi32>
    %23 = tpu.iota {dimensions = array<i32: 1>} : vector<6x11xi32>
    %c2_i32_1 = arith.constant 2 : i32
    %24 = vector.broadcast %c2_i32_1 : i32 to vector<6x11xi32>
    %25 = arith.muli %24, %22 : vector<6x11xi32>
    %26 = arith.cmpi eq, %23, %25 : vector<6x11xi32>
    %27 = arith.extui %26 : vector<6x11xi1> to vector<6x11xi32>
    %28 = arith.sitofp %27 : vector<6x11xi32> to vector<6x11xf32>
    %c0_2 = arith.constant 0 : index
    %c0_3 = arith.constant 0 : index
    %29 = vector.load %arg5[%c0_2, %c0_3] : memref<64x128xf32, #tpu.memory_space<vmem>>, vector<32x128xf32>
    %c32 = arith.constant 32 : index
    %c0_4 = arith.constant 0 : index
    %30 = vector.load %arg5[%c32, %c0_4] : memref<64x128xf32, #tpu.memory_space<vmem>>, vector<32x128xf32>
    %c0_5 = arith.constant 0 : index
    %c0_6 = arith.constant 0 : index
    %31 = vector.load %arg7[%c0_5, %c0_6] : memref<256x256xf32, #tpu.memory_space<vmem>>, vector<128x256xf32>
    %c128 = arith.constant 128 : index
    %c0_7 = arith.constant 0 : index
    %32 = vector.load %arg7[%c128, %c0_7] : memref<256x256xf32, #tpu.memory_space<vmem>>, vector<128x256xf32>
    %c0_8 = arith.constant 0 : index
    %c0_9 = arith.constant 0 : index
    %33 = vector.load %arg6[%c0_8, %c0_9] : memref<1x128xf32, #tpu.memory_space<vmem>>, vector<1x128xf32>
    %c0_10 = arith.constant 0 : index
    %c0_11 = arith.constant 0 : index
    %34 = vector.load %arg8[%c0_10, %c0_11] : memref<1x256xf32, #tpu.memory_space<vmem>>, vector<1x256xf32>
    %c0_12 = arith.constant 0 : index
    %c0_13 = arith.constant 0 : index
    %35 = vector.load %arg10[%c0_12, %c0_13] : memref<1x2xf32, #tpu.memory_space<vmem>>, vector<1x2xf32>
    %c0_14 = arith.constant 0 : index
    %c0_15 = arith.constant 0 : index
    %c0_16 = arith.constant 0 : index
    %36 = vector.load %arg2[%c0_14, %c0_15, %c0_16] : memref<2x31x1xf32, #tpu.memory_space<vmem>>, vector<1x30x1xf32>
    %37 = vector.shape_cast %36 : vector<1x30x1xf32> to vector<30x1xf32>
    %c0_17 = arith.constant 0 : index
    %c1_18 = arith.constant 1 : index
    %c0_19 = arith.constant 0 : index
    %38 = vector.load %arg2[%c0_17, %c1_18, %c0_19] : memref<2x31x1xf32, #tpu.memory_space<vmem>>, vector<1x30x1xf32>
    %39 = vector.shape_cast %38 : vector<1x30x1xf32> to vector<30x1xf32>
    %c0_20 = arith.constant 0 : index
    %c0_21 = arith.constant 0 : index
    %40 = vector.load %arg3[%c0_20, %c0_21] : memref<2x32xf32, #tpu.memory_space<vmem>>, vector<1x32xf32>
    %41 = vector.broadcast %37 : vector<30x1xf32> to vector<30x32xf32>
    %42 = vector.broadcast %40 : vector<1x32xf32> to vector<30x32xf32>
    %43 = arith.mulf %41, %42 : vector<30x32xf32>
    %c1_22 = arith.constant 1 : index
    %c0_23 = arith.constant 0 : index
    %44 = vector.load %arg3[%c1_22, %c0_23] : memref<2x32xf32, #tpu.memory_space<vmem>>, vector<1x32xf32>
    %45 = vector.broadcast %39 : vector<30x1xf32> to vector<30x32xf32>
    %46 = vector.broadcast %44 : vector<1x32xf32> to vector<30x32xf32>
    %47 = arith.mulf %45, %46 : vector<30x32xf32>
    %48 = arith.addf %43, %47 : vector<30x32xf32>
    %c0_24 = arith.constant 0 : index
    %c0_25 = arith.constant 0 : index
    %49 = vector.load %arg4[%c0_24, %c0_25] : memref<1x32xf32, #tpu.memory_space<vmem>>, vector<1x32xf32>
    %50 = vector.broadcast %49 : vector<1x32xf32> to vector<30x32xf32>
    %51 = arith.addf %48, %50 : vector<30x32xf32>
    %c1_26 = arith.constant 1 : index
    %c0_27 = arith.constant 0 : index
    %c0_28 = arith.constant 0 : index
    %52 = vector.load %arg2[%c1_26, %c0_27, %c0_28] : memref<2x31x1xf32, #tpu.memory_space<vmem>>, vector<1x30x1xf32>
    %53 = vector.shape_cast %52 : vector<1x30x1xf32> to vector<30x1xf32>
    %c1_29 = arith.constant 1 : index
    %c1_30 = arith.constant 1 : index
    %c0_31 = arith.constant 0 : index
    %54 = vector.load %arg2[%c1_29, %c1_30, %c0_31] : memref<2x31x1xf32, #tpu.memory_space<vmem>>, vector<1x30x1xf32>
    %55 = vector.shape_cast %54 : vector<1x30x1xf32> to vector<30x1xf32>
    %c0_32 = arith.constant 0 : index
    %c0_33 = arith.constant 0 : index
    %56 = vector.load %arg3[%c0_32, %c0_33] : memref<2x32xf32, #tpu.memory_space<vmem>>, vector<1x32xf32>
    %57 = vector.broadcast %53 : vector<30x1xf32> to vector<30x32xf32>
    %58 = vector.broadcast %56 : vector<1x32xf32> to vector<30x32xf32>
    %59 = arith.mulf %57, %58 : vector<30x32xf32>
    %c1_34 = arith.constant 1 : index
    %c0_35 = arith.constant 0 : index
    %60 = vector.load %arg3[%c1_34, %c0_35] : memref<2x32xf32, #tpu.memory_space<vmem>>, vector<1x32xf32>
    %61 = vector.broadcast %55 : vector<30x1xf32> to vector<30x32xf32>
    %62 = vector.broadcast %60 : vector<1x32xf32> to vector<30x32xf32>
    %63 = arith.mulf %61, %62 : vector<30x32xf32>
    %64 = arith.addf %59, %63 : vector<30x32xf32>
    %c0_36 = arith.constant 0 : index
    %c0_37 = arith.constant 0 : index
    %65 = vector.load %arg4[%c0_36, %c0_37] : memref<1x32xf32, #tpu.memory_space<vmem>>, vector<1x32xf32>
    %66 = vector.broadcast %65 : vector<1x32xf32> to vector<30x32xf32>
    %67 = arith.addf %64, %66 : vector<30x32xf32>
    %68 = tpu.concatenate %51, %67 in 0 : vector<30x32xf32>, vector<30x32xf32> -> vector<60x32xf32>
    %69 = vector.extract_strided_slice %68 {offsets = [0, 0], sizes = [59, 32], strides = [1, 1]} : vector<60x32xf32> to vector<59x32xf32>
    %70 = vector.extract_strided_slice %68 {offsets = [1, 0], sizes = [59, 32], strides = [1, 1]} : vector<60x32xf32> to vector<59x32xf32>
    %71 = arith.maximumf %69, %70 : vector<59x32xf32>
    %cst = arith.constant dense<0.000000e+00> : vector<30x32xf32>
    %72 = tpu.matmul %14, %71, %cst {dimension_numbers = #tpu.dot_dimension_numbers<[1], [0], [0], [1], [0, 0, 1, 1], [], []>} : vector<30x59xf32>, vector<59x32xf32>, vector<30x32xf32> -> vector<30x32xf32>
    %cst_38 = arith.constant 0.000000e+00 : f32
    %73 = vector.broadcast %cst_38 : f32 to vector<30x32xf32>
    %cst_39 = arith.constant 0.000000e+00 : f32
    %74 = vector.broadcast %cst_39 : f32 to vector<14x128xf32>
    %cst_40 = arith.constant 0.000000e+00 : f32
    %75 = vector.broadcast %cst_40 : f32 to vector<6x256xf32>
    %cst_41 = arith.constant 0.000000e+00 : f32
    %76 = vector.broadcast %cst_41 : f32 to vector<2x2xf32>
    %77 = vector.broadcast %4 : f32 to vector<30x32xf32>
    %78 = arith.cmpf ogt, %73, %77 : vector<30x32xf32>
    %79 = arith.extui %78 : vector<30x32xi1> to vector<30x32xi32>
    %80 = arith.sitofp %79 : vector<30x32xi32> to vector<30x32xf32>
    %81 = vector.broadcast %0 : f32 to vector<30x32xf32>
    %82 = arith.mulf %81, %73 : vector<30x32xf32>
    %83 = arith.addf %82, %72 : vector<30x32xf32>
    %84 = vector.broadcast %4 : f32 to vector<30x32xf32>
    %85 = arith.mulf %80, %84 : vector<30x32xf32>
    %86 = arith.subf %83, %85 : vector<30x32xf32>
    %87 = vector.broadcast %4 : f32 to vector<30x32xf32>
    %88 = arith.cmpf ogt, %86, %87 : vector<30x32xf32>
    %89 = arith.extui %88 : vector<30x32xi1> to vector<30x32xi32>
    %90 = arith.sitofp %89 : vector<30x32xi32> to vector<30x32xf32>
    %91 = vector.extract_strided_slice %90 {offsets = [0, 0], sizes = [14, 32], strides = [1, 1]} : vector<30x32xf32> to vector<14x32xf32>
    %92 = vector.extract_strided_slice %90 {offsets = [15, 0], sizes = [14, 32], strides = [1, 1]} : vector<30x32xf32> to vector<14x32xf32>
    %93 = tpu.concatenate %91, %92 in 0 : vector<14x32xf32>, vector<14x32xf32> -> vector<28x32xf32>
    %94 = vector.extract_strided_slice %90 {offsets = [1, 0], sizes = [14, 32], strides = [1, 1]} : vector<30x32xf32> to vector<14x32xf32>
    %95 = vector.extract_strided_slice %90 {offsets = [16, 0], sizes = [14, 32], strides = [1, 1]} : vector<30x32xf32> to vector<14x32xf32>
    %96 = tpu.concatenate %94, %95 in 0 : vector<14x32xf32>, vector<14x32xf32> -> vector<28x32xf32>
    %cst_42 = arith.constant dense<0.000000e+00> : vector<28x128xf32>
    %97 = tpu.matmul %93, %29, %cst_42 {dimension_numbers = #tpu.dot_dimension_numbers<[1], [0], [0], [1], [0, 0, 1, 1], [], []>} : vector<28x32xf32>, vector<32x128xf32>, vector<28x128xf32> -> vector<28x128xf32>
    %cst_43 = arith.constant dense<0.000000e+00> : vector<28x128xf32>
    %98 = tpu.matmul %96, %30, %cst_43 {dimension_numbers = #tpu.dot_dimension_numbers<[1], [0], [0], [1], [0, 0, 1, 1], [], []>} : vector<28x32xf32>, vector<32x128xf32>, vector<28x128xf32> -> vector<28x128xf32>
    %99 = arith.addf %97, %98 : vector<28x128xf32>
    %100 = vector.broadcast %33 : vector<1x128xf32> to vector<28x128xf32>
    %101 = arith.addf %99, %100 : vector<28x128xf32>
    %102 = vector.extract_strided_slice %101 {offsets = [0, 0], sizes = [27, 128], strides = [1, 1]} : vector<28x128xf32> to vector<27x128xf32>
    %103 = vector.extract_strided_slice %101 {offsets = [1, 0], sizes = [27, 128], strides = [1, 1]} : vector<28x128xf32> to vector<27x128xf32>
    %104 = arith.maximumf %102, %103 : vector<27x128xf32>
    %cst_44 = arith.constant dense<0.000000e+00> : vector<14x128xf32>
    %105 = tpu.matmul %21, %104, %cst_44 {dimension_numbers = #tpu.dot_dimension_numbers<[1], [0], [0], [1], [0, 0, 1, 1], [], []>} : vector<14x27xf32>, vector<27x128xf32>, vector<14x128xf32> -> vector<14x128xf32>
    %106 = vector.broadcast %5 : f32 to vector<14x128xf32>
    %107 = arith.cmpf ogt, %74, %106 : vector<14x128xf32>
    %108 = arith.extui %107 : vector<14x128xi1> to vector<14x128xi32>
    %109 = arith.sitofp %108 : vector<14x128xi32> to vector<14x128xf32>
    %110 = vector.broadcast %1 : f32 to vector<14x128xf32>
    %111 = arith.mulf %110, %74 : vector<14x128xf32>
    %112 = arith.addf %111, %105 : vector<14x128xf32>
    %113 = vector.broadcast %5 : f32 to vector<14x128xf32>
    %114 = arith.mulf %109, %113 : vector<14x128xf32>
    %115 = arith.subf %112, %114 : vector<14x128xf32>
    %116 = vector.broadcast %5 : f32 to vector<14x128xf32>
    %117 = arith.cmpf ogt, %115, %116 : vector<14x128xf32>
    %118 = arith.extui %117 : vector<14x128xi1> to vector<14x128xi32>
    %119 = arith.sitofp %118 : vector<14x128xi32> to vector<14x128xf32>
    %120 = vector.extract_strided_slice %119 {offsets = [0, 0], sizes = [6, 128], strides = [1, 1]} : vector<14x128xf32> to vector<6x128xf32>
    %121 = vector.extract_strided_slice %119 {offsets = [7, 0], sizes = [6, 128], strides = [1, 1]} : vector<14x128xf32> to vector<6x128xf32>
    %122 = tpu.concatenate %120, %121 in 0 : vector<6x128xf32>, vector<6x128xf32> -> vector<12x128xf32>
    %123 = vector.extract_strided_slice %119 {offsets = [1, 0], sizes = [6, 128], strides = [1, 1]} : vector<14x128xf32> to vector<6x128xf32>
    %124 = vector.extract_strided_slice %119 {offsets = [8, 0], sizes = [6, 128], strides = [1, 1]} : vector<14x128xf32> to vector<6x128xf32>
    %125 = tpu.concatenate %123, %124 in 0 : vector<6x128xf32>, vector<6x128xf32> -> vector<12x128xf32>
    %cst_45 = arith.constant dense<0.000000e+00> : vector<12x256xf32>
    %126 = tpu.matmul %122, %31, %cst_45 {dimension_numbers = #tpu.dot_dimension_numbers<[1], [0], [0], [1], [0, 0, 1, 1], [], []>} : vector<12x128xf32>, vector<128x256xf32>, vector<12x256xf32> -> vector<12x256xf32>
    %cst_46 = arith.constant dense<0.000000e+00> : vector<12x256xf32>
    %127 = tpu.matmul %125, %32, %cst_46 {dimension_numbers = #tpu.dot_dimension_numbers<[1], [0], [0], [1], [0, 0, 1, 1], [], []>} : vector<12x128xf32>, vector<128x256xf32>, vector<12x256xf32> -> vector<12x256xf32>
    %128 = arith.addf %126, %127 : vector<12x256xf32>
    %129 = vector.broadcast %34 : vector<1x256xf32> to vector<12x256xf32>
    %130 = arith.addf %128, %129 : vector<12x256xf32>
    %131 = vector.extract_strided_slice %130 {offsets = [0, 0], sizes = [11, 256], strides = [1, 1]} : vector<12x256xf32> to vector<11x256xf32>
    %132 = vector.extract_strided_slice %130 {offsets = [1, 0], sizes = [11, 256], strides = [1, 1]} : vector<12x256xf32> to vector<11x256xf32>
    %133 = arith.maximumf %131, %132 : vector<11x256xf32>
    %cst_47 = arith.constant dense<0.000000e+00> : vector<6x256xf32>
    %134 = tpu.matmul %28, %133, %cst_47 {dimension_numbers = #tpu.dot_dimension_numbers<[1], [0], [0], [1], [0, 0, 1, 1], [], []>} : vector<6x11xf32>, vector<11x256xf32>, vector<6x256xf32> -> vector<6x256xf32>
    %135 = vector.broadcast %6 : f32 to vector<6x256xf32>
    %136 = arith.cmpf ogt, %75, %135 : vector<6x256xf32>
    %137 = arith.extui %136 : vector<6x256xi1> to vector<6x256xi32>
    %138 = arith.sitofp %137 : vector<6x256xi32> to vector<6x256xf32>
    %139 = vector.broadcast %2 : f32 to vector<6x256xf32>
    %140 = arith.mulf %139, %75 : vector<6x256xf32>
    %141 = arith.addf %140, %134 : vector<6x256xf32>
    %142 = vector.broadcast %6 : f32 to vector<6x256xf32>
    %143 = arith.mulf %138, %142 : vector<6x256xf32>
    %144 = arith.subf %141, %143 : vector<6x256xf32>
    %145 = vector.broadcast %6 : f32 to vector<6x256xf32>
    %146 = arith.cmpf ogt, %144, %145 : vector<6x256xf32>
    %147 = arith.extui %146 : vector<6x256xi1> to vector<6x256xi32>
    %148 = arith.sitofp %147 : vector<6x256xi32> to vector<6x256xf32>
    %149 = vector.extract_strided_slice %148 {offsets = [0, 0], sizes = [1, 256], strides = [1, 1]} : vector<6x256xf32> to vector<1x256xf32>
    %150 = vector.extract_strided_slice %148 {offsets = [3, 0], sizes = [1, 256], strides = [1, 1]} : vector<6x256xf32> to vector<1x256xf32>
    %151 = tpu.concatenate %149, %150 in 0 : vector<1x256xf32>, vector<1x256xf32> -> vector<2x256xf32>
    %c0_48 = arith.constant 0 : index
    %c0_49 = arith.constant 0 : index
    %c0_50 = arith.constant 0 : index
    %152 = vector.load %arg9[%c0_48, %c0_49, %c0_50] : memref<3x256x2xf32, #tpu.memory_space<vmem>>, vector<1x256x2xf32>
    %153 = vector.shape_cast %152 : vector<1x256x2xf32> to vector<256x2xf32>
    %cst_51 = arith.constant dense<0.000000e+00> : vector<2x2xf32>
    %154 = tpu.matmul %151, %153, %cst_51 {dimension_numbers = #tpu.dot_dimension_numbers<[1], [0], [0], [1], [0, 0, 1, 1], [], []>} : vector<2x256xf32>, vector<256x2xf32>, vector<2x2xf32> -> vector<2x2xf32>
    %155 = vector.broadcast %35 : vector<1x2xf32> to vector<2x2xf32>
    %156 = arith.addf %155, %154 : vector<2x2xf32>
    %157 = vector.extract_strided_slice %148 {offsets = [1, 0], sizes = [1, 256], strides = [1, 1]} : vector<6x256xf32> to vector<1x256xf32>
    %158 = vector.extract_strided_slice %148 {offsets = [4, 0], sizes = [1, 256], strides = [1, 1]} : vector<6x256xf32> to vector<1x256xf32>
    %159 = tpu.concatenate %157, %158 in 0 : vector<1x256xf32>, vector<1x256xf32> -> vector<2x256xf32>
    %c1_52 = arith.constant 1 : index
    %c0_53 = arith.constant 0 : index
    %c0_54 = arith.constant 0 : index
    %160 = vector.load %arg9[%c1_52, %c0_53, %c0_54] : memref<3x256x2xf32, #tpu.memory_space<vmem>>, vector<1x256x2xf32>
    %161 = vector.shape_cast %160 : vector<1x256x2xf32> to vector<256x2xf32>
    %cst_55 = arith.constant dense<0.000000e+00> : vector<2x2xf32>
    %162 = tpu.matmul %159, %161, %cst_55 {dimension_numbers = #tpu.dot_dimension_numbers<[1], [0], [0], [1], [0, 0, 1, 1], [], []>} : vector<2x256xf32>, vector<256x2xf32>, vector<2x2xf32> -> vector<2x2xf32>
    %163 = arith.addf %156, %162 : vector<2x2xf32>
    %164 = vector.extract_strided_slice %148 {offsets = [2, 0], sizes = [1, 256], strides = [1, 1]} : vector<6x256xf32> to vector<1x256xf32>
    %165 = vector.extract_strided_slice %148 {offsets = [5, 0], sizes = [1, 256], strides = [1, 1]} : vector<6x256xf32> to vector<1x256xf32>
    %166 = tpu.concatenate %164, %165 in 0 : vector<1x256xf32>, vector<1x256xf32> -> vector<2x256xf32>
    %c2_56 = arith.constant 2 : index
    %c0_57 = arith.constant 0 : index
    %c0_58 = arith.constant 0 : index
    %167 = vector.load %arg9[%c2_56, %c0_57, %c0_58] : memref<3x256x2xf32, #tpu.memory_space<vmem>>, vector<1x256x2xf32>
    %168 = vector.shape_cast %167 : vector<1x256x2xf32> to vector<256x2xf32>
    %cst_59 = arith.constant dense<0.000000e+00> : vector<2x2xf32>
    %169 = tpu.matmul %166, %168, %cst_59 {dimension_numbers = #tpu.dot_dimension_numbers<[1], [0], [0], [1], [0, 0, 1, 1], [], []>} : vector<2x256xf32>, vector<256x2xf32>, vector<2x2xf32> -> vector<2x2xf32>
    %170 = arith.addf %163, %169 : vector<2x2xf32>
    %171 = vector.broadcast %7 : f32 to vector<2x2xf32>
    %172 = arith.cmpf ogt, %76, %171 : vector<2x2xf32>
    %173 = arith.extui %172 : vector<2x2xi1> to vector<2x2xi32>
    %174 = arith.sitofp %173 : vector<2x2xi32> to vector<2x2xf32>
    %175 = vector.broadcast %3 : f32 to vector<2x2xf32>
    %176 = arith.mulf %175, %76 : vector<2x2xf32>
    %177 = arith.addf %176, %170 : vector<2x2xf32>
    %178 = vector.broadcast %7 : f32 to vector<2x2xf32>
    %179 = arith.mulf %174, %178 : vector<2x2xf32>
    %180 = arith.subf %177, %179 : vector<2x2xf32>
    %181 = vector.broadcast %7 : f32 to vector<2x2xf32>
    %182 = arith.cmpf ogt, %180, %181 : vector<2x2xf32>
    %183 = arith.extui %182 : vector<2x2xi1> to vector<2x2xi32>
    %184 = arith.sitofp %183 : vector<2x2xi32> to vector<2x2xf32>
    %c0_60 = arith.constant 0 : index
    %c0_61 = arith.constant 0 : index
    %c0_62 = arith.constant 0 : index
    %185 = vector.load %arg11[%c0_60, %c0_61, %c0_62] : memref<5x2x2xf32, #tpu.memory_space<vmem>>, vector<1x2x2xf32>
    %186 = vector.shape_cast %185 : vector<1x2x2xf32> to vector<2x2xf32>
    %187 = vector.shape_cast %170 : vector<2x2xf32> to vector<1x2x2xf32>
    tpu.vector_store %arg11[%c0_60, %c0_61, %c0_62], %187 {strides = array<i32>} : memref<5x2x2xf32, #tpu.memory_space<vmem>>, vector<1x2x2xf32>,
    %c0_63 = arith.constant 0 : index
    %c0_64 = arith.constant 0 : index
    %c0_65 = arith.constant 0 : index
    %188 = vector.load %arg12[%c0_63, %c0_64, %c0_65] : memref<5x2x2xf32, #tpu.memory_space<vmem>>, vector<1x2x2xf32>
    %189 = vector.shape_cast %188 : vector<1x2x2xf32> to vector<2x2xf32>
    %190 = vector.shape_cast %184 : vector<2x2xf32> to vector<1x2x2xf32>
    tpu.vector_store %arg12[%c0_63, %c0_64, %c0_65], %190 {strides = array<i32>} : memref<5x2x2xf32, #tpu.memory_space<vmem>>, vector<1x2x2xf32>,
    %c0_66 = arith.constant 0 : index
    %c0_67 = arith.constant 0 : index
    %c0_68 = arith.constant 0 : index
    %191 = vector.load %arg13[%c0_66, %c0_67, %c0_68] : memref<5x2x2xf32, #tpu.memory_space<vmem>>, vector<1x2x2xf32>
    %192 = vector.shape_cast %191 : vector<1x2x2xf32> to vector<2x2xf32>
    %193 = vector.shape_cast %180 : vector<2x2xf32> to vector<1x2x2xf32>
    tpu.vector_store %arg13[%c0_66, %c0_67, %c0_68], %193 {strides = array<i32>} : memref<5x2x2xf32, #tpu.memory_space<vmem>>, vector<1x2x2xf32>,
    %194 = vector.broadcast %4 : f32 to vector<30x32xf32>
    %195 = arith.cmpf ogt, %86, %194 : vector<30x32xf32>
    %196 = arith.extui %195 : vector<30x32xi1> to vector<30x32xi32>
    %197 = arith.sitofp %196 : vector<30x32xi32> to vector<30x32xf32>
    %198 = vector.broadcast %0 : f32 to vector<30x32xf32>
    %199 = arith.mulf %198, %86 : vector<30x32xf32>
    %200 = arith.addf %199, %72 : vector<30x32xf32>
    %201 = vector.broadcast %4 : f32 to vector<30x32xf32>
    %202 = arith.mulf %197, %201 : vector<30x32xf32>
    %203 = arith.subf %200, %202 : vector<30x32xf32>
    %204 = vector.broadcast %4 : f32 to vector<30x32xf32>
    %205 = arith.cmpf ogt, %203, %204 : vector<30x32xf32>
    %206 = arith.extui %205 : vector<30x32xi1> to vector<30x32xi32>
    %207 = arith.sitofp %206 : vector<30x32xi32> to vector<30x32xf32>
    %208 = vector.extract_strided_slice %207 {offsets = [0, 0], sizes = [14, 32], strides = [1, 1]} : vector<30x32xf32> to vector<14x32xf32>
    %209 = vector.extract_strided_slice %207 {offsets = [15, 0], sizes = [14, 32], strides = [1, 1]} : vector<30x32xf32> to vector<14x32xf32>
    %210 = tpu.concatenate %208, %209 in 0 : vector<14x32xf32>, vector<14x32xf32> -> vector<28x32xf32>
    %211 = vector.extract_strided_slice %207 {offsets = [1, 0], sizes = [14, 32], strides = [1, 1]} : vector<30x32xf32> to vector<14x32xf32>
    %212 = vector.extract_strided_slice %207 {offsets = [16, 0], sizes = [14, 32], strides = [1, 1]} : vector<30x32xf32> to vector<14x32xf32>
    %213 = tpu.concatenate %211, %212 in 0 : vector<14x32xf32>, vector<14x32xf32> -> vector<28x32xf32>
    %cst_69 = arith.constant dense<0.000000e+00> : vector<28x128xf32>
    %214 = tpu.matmul %210, %29, %cst_69 {dimension_numbers = #tpu.dot_dimension_numbers<[1], [0], [0], [1], [0, 0, 1, 1], [], []>} : vector<28x32xf32>, vector<32x128xf32>, vector<28x128xf32> -> vector<28x128xf32>
    %cst_70 = arith.constant dense<0.000000e+00> : vector<28x128xf32>
    %215 = tpu.matmul %213, %30, %cst_70 {dimension_numbers = #tpu.dot_dimension_numbers<[1], [0], [0], [1], [0, 0, 1, 1], [], []>} : vector<28x32xf32>, vector<32x128xf32>, vector<28x128xf32> -> vector<28x128xf32>
    %216 = arith.addf %214, %215 : vector<28x128xf32>
    %217 = vector.broadcast %33 : vector<1x128xf32> to vector<28x128xf32>
    %218 = arith.addf %216, %217 : vector<28x128xf32>
    %219 = vector.extract_strided_slice %218 {offsets = [0, 0], sizes = [27, 128], strides = [1, 1]} : vector<28x128xf32> to vector<27x128xf32>
    %220 = vector.extract_strided_slice %218 {offsets = [1, 0], sizes = [27, 128], strides = [1, 1]} : vector<28x128xf32> to vector<27x128xf32>
    %221 = arith.maximumf %219, %220 : vector<27x128xf32>
    %cst_71 = arith.constant dense<0.000000e+00> : vector<14x128xf32>
    %222 = tpu.matmul %21, %221, %cst_71 {dimension_numbers = #tpu.dot_dimension_numbers<[1], [0], [0], [1], [0, 0, 1, 1], [], []>} : vector<14x27xf32>, vector<27x128xf32>, vector<14x128xf32> -> vector<14x128xf32>
    %223 = vector.broadcast %5 : f32 to vector<14x128xf32>
    %224 = arith.cmpf ogt, %115, %223 : vector<14x128xf32>
    %225 = arith.extui %224 : vector<14x128xi1> to vector<14x128xi32>
    %226 = arith.sitofp %225 : vector<14x128xi32> to vector<14x128xf32>
    %227 = vector.broadcast %1 : f32 to vector<14x128xf32>
    %228 = arith.mulf %227, %115 : vector<14x128xf32>
    %229 = arith.addf %228, %222 : vector<14x128xf32>
    %230 = vector.broadcast %5 : f32 to vector<14x128xf32>
    %231 = arith.mulf %226, %230 : vector<14x128xf32>
    %232 = arith.subf %229, %231 : vector<14x128xf32>
    %233 = vector.broadcast %5 : f32 to vector<14x128xf32>
    %234 = arith.cmpf ogt, %232, %233 : vector<14x128xf32>
    %235 = arith.extui %234 : vector<14x128xi1> to vector<14x128xi32>
    %236 = arith.sitofp %235 : vector<14x128xi32> to vector<14x128xf32>
    %237 = vector.extract_strided_slice %236 {offsets = [0, 0], sizes = [6, 128], strides = [1, 1]} : vector<14x128xf32> to vector<6x128xf32>
    %238 = vector.extract_strided_slice %236 {offsets = [7, 0], sizes = [6, 128], strides = [1, 1]} : vector<14x128xf32> to vector<6x128xf32>
    %239 = tpu.concatenate %237, %238 in 0 : vector<6x128xf32>, vector<6x128xf32> -> vector<12x128xf32>
    %240 = vector.extract_strided_slice %236 {offsets = [1, 0], sizes = [6, 128], strides = [1, 1]} : vector<14x128xf32> to vector<6x128xf32>
    %241 = vector.extract_strided_slice %236 {offsets = [8, 0], sizes = [6, 128], strides = [1, 1]} : vector<14x128xf32> to vector<6x128xf32>
    %242 = tpu.concatenate %240, %241 in 0 : vector<6x128xf32>, vector<6x128xf32> -> vector<12x128xf32>
    %cst_72 = arith.constant dense<0.000000e+00> : vector<12x256xf32>
    %243 = tpu.matmul %239, %31, %cst_72 {dimension_numbers = #tpu.dot_dimension_numbers<[1], [0], [0], [1], [0, 0, 1, 1], [], []>} : vector<12x128xf32>, vector<128x256xf32>, vector<12x256xf32> -> vector<12x256xf32>
    %cst_73 = arith.constant dense<0.000000e+00> : vector<12x256xf32>
    %244 = tpu.matmul %242, %32, %cst_73 {dimension_numbers = #tpu.dot_dimension_numbers<[1], [0], [0], [1], [0, 0, 1, 1], [], []>} : vector<12x128xf32>, vector<128x256xf32>, vector<12x256xf32> -> vector<12x256xf32>
    %245 = arith.addf %243, %244 : vector<12x256xf32>
    %246 = vector.broadcast %34 : vector<1x256xf32> to vector<12x256xf32>
    %247 = arith.addf %245, %246 : vector<12x256xf32>
    %248 = vector.extract_strided_slice %247 {offsets = [0, 0], sizes = [11, 256], strides = [1, 1]} : vector<12x256xf32> to vector<11x256xf32>
    %249 = vector.extract_strided_slice %247 {offsets = [1, 0], sizes = [11, 256], strides = [1, 1]} : vector<12x256xf32> to vector<11x256xf32>
    %250 = arith.maximumf %248, %249 : vector<11x256xf32>
    %cst_74 = arith.constant dense<0.000000e+00> : vector<6x256xf32>
    %251 = tpu.matmul %28, %250, %cst_74 {dimension_numbers = #tpu.dot_dimension_numbers<[1], [0], [0], [1], [0, 0, 1, 1], [], []>} : vector<6x11xf32>, vector<11x256xf32>, vector<6x256xf32> -> vector<6x256xf32>
    %252 = vector.broadcast %6 : f32 to vector<6x256xf32>
    %253 = arith.cmpf ogt, %144, %252 : vector<6x256xf32>
    %254 = arith.extui %253 : vector<6x256xi1> to vector<6x256xi32>
    %255 = arith.sitofp %254 : vector<6x256xi32> to vector<6x256xf32>
    %256 = vector.broadcast %2 : f32 to vector<6x256xf32>
    %257 = arith.mulf %256, %144 : vector<6x256xf32>
    %258 = arith.addf %257, %251 : vector<6x256xf32>
    %259 = vector.broadcast %6 : f32 to vector<6x256xf32>
    %260 = arith.mulf %255, %259 : vector<6x256xf32>
    %261 = arith.subf %258, %260 : vector<6x256xf32>
    %262 = vector.broadcast %6 : f32 to vector<6x256xf32>
    %263 = arith.cmpf ogt, %261, %262 : vector<6x256xf32>
    %264 = arith.extui %263 : vector<6x256xi1> to vector<6x256xi32>
    %265 = arith.sitofp %264 : vector<6x256xi32> to vector<6x256xf32>
    %266 = vector.extract_strided_slice %265 {offsets = [0, 0], sizes = [1, 256], strides = [1, 1]} : vector<6x256xf32> to vector<1x256xf32>
    %267 = vector.extract_strided_slice %265 {offsets = [3, 0], sizes = [1, 256], strides = [1, 1]} : vector<6x256xf32> to vector<1x256xf32>
    %268 = tpu.concatenate %266, %267 in 0 : vector<1x256xf32>, vector<1x256xf32> -> vector<2x256xf32>
    %c0_75 = arith.constant 0 : index
    %c0_76 = arith.constant 0 : index
    %c0_77 = arith.constant 0 : index
    %269 = vector.load %arg9[%c0_75, %c0_76, %c0_77] : memref<3x256x2xf32, #tpu.memory_space<vmem>>, vector<1x256x2xf32>
    %270 = vector.shape_cast %269 : vector<1x256x2xf32> to vector<256x2xf32>
    %cst_78 = arith.constant dense<0.000000e+00> : vector<2x2xf32>
    %271 = tpu.matmul %268, %270, %cst_78 {dimension_numbers = #tpu.dot_dimension_numbers<[1], [0], [0], [1], [0, 0, 1, 1], [], []>} : vector<2x256xf32>, vector<256x2xf32>, vector<2x2xf32> -> vector<2x2xf32>
    %272 = vector.broadcast %35 : vector<1x2xf32> to vector<2x2xf32>
    %273 = arith.addf %272, %271 : vector<2x2xf32>
    %274 = vector.extract_strided_slice %265 {offsets = [1, 0], sizes = [1, 256], strides = [1, 1]} : vector<6x256xf32> to vector<1x256xf32>
    %275 = vector.extract_strided_slice %265 {offsets = [4, 0], sizes = [1, 256], strides = [1, 1]} : vector<6x256xf32> to vector<1x256xf32>
    %276 = tpu.concatenate %274, %275 in 0 : vector<1x256xf32>, vector<1x256xf32> -> vector<2x256xf32>
    %c1_79 = arith.constant 1 : index
    %c0_80 = arith.constant 0 : index
    %c0_81 = arith.constant 0 : index
    %277 = vector.load %arg9[%c1_79, %c0_80, %c0_81] : memref<3x256x2xf32, #tpu.memory_space<vmem>>, vector<1x256x2xf32>
    %278 = vector.shape_cast %277 : vector<1x256x2xf32> to vector<256x2xf32>
    %cst_82 = arith.constant dense<0.000000e+00> : vector<2x2xf32>
    %279 = tpu.matmul %276, %278, %cst_82 {dimension_numbers = #tpu.dot_dimension_numbers<[1], [0], [0], [1], [0, 0, 1, 1], [], []>} : vector<2x256xf32>, vector<256x2xf32>, vector<2x2xf32> -> vector<2x2xf32>
    %280 = arith.addf %273, %279 : vector<2x2xf32>
    %281 = vector.extract_strided_slice %265 {offsets = [2, 0], sizes = [1, 256], strides = [1, 1]} : vector<6x256xf32> to vector<1x256xf32>
    %282 = vector.extract_strided_slice %265 {offsets = [5, 0], sizes = [1, 256], strides = [1, 1]} : vector<6x256xf32> to vector<1x256xf32>
    %283 = tpu.concatenate %281, %282 in 0 : vector<1x256xf32>, vector<1x256xf32> -> vector<2x256xf32>
    %c2_83 = arith.constant 2 : index
    %c0_84 = arith.constant 0 : index
    %c0_85 = arith.constant 0 : index
    %284 = vector.load %arg9[%c2_83, %c0_84, %c0_85] : memref<3x256x2xf32, #tpu.memory_space<vmem>>, vector<1x256x2xf32>
    %285 = vector.shape_cast %284 : vector<1x256x2xf32> to vector<256x2xf32>
    %cst_86 = arith.constant dense<0.000000e+00> : vector<2x2xf32>
    %286 = tpu.matmul %283, %285, %cst_86 {dimension_numbers = #tpu.dot_dimension_numbers<[1], [0], [0], [1], [0, 0, 1, 1], [], []>} : vector<2x256xf32>, vector<256x2xf32>, vector<2x2xf32> -> vector<2x2xf32>
    %287 = arith.addf %280, %286 : vector<2x2xf32>
    %288 = vector.broadcast %7 : f32 to vector<2x2xf32>
    %289 = arith.cmpf ogt, %180, %288 : vector<2x2xf32>
    %290 = arith.extui %289 : vector<2x2xi1> to vector<2x2xi32>
    %291 = arith.sitofp %290 : vector<2x2xi32> to vector<2x2xf32>
    %292 = vector.broadcast %3 : f32 to vector<2x2xf32>
    %293 = arith.mulf %292, %180 : vector<2x2xf32>
    %294 = arith.addf %293, %287 : vector<2x2xf32>
    %295 = vector.broadcast %7 : f32 to vector<2x2xf32>
    %296 = arith.mulf %291, %295 : vector<2x2xf32>
    %297 = arith.subf %294, %296 : vector<2x2xf32>
    %298 = vector.broadcast %7 : f32 to vector<2x2xf32>
    %299 = arith.cmpf ogt, %297, %298 : vector<2x2xf32>
    %300 = arith.extui %299 : vector<2x2xi1> to vector<2x2xi32>
    %301 = arith.sitofp %300 : vector<2x2xi32> to vector<2x2xf32>
    %c1_87 = arith.constant 1 : index
    %c0_88 = arith.constant 0 : index
    %c0_89 = arith.constant 0 : index
    %302 = vector.load %arg11[%c1_87, %c0_88, %c0_89] : memref<5x2x2xf32, #tpu.memory_space<vmem>>, vector<1x2x2xf32>
    %303 = vector.shape_cast %302 : vector<1x2x2xf32> to vector<2x2xf32>
    %304 = vector.shape_cast %287 : vector<2x2xf32> to vector<1x2x2xf32>
    tpu.vector_store %arg11[%c1_87, %c0_88, %c0_89], %304 {strides = array<i32>} : memref<5x2x2xf32, #tpu.memory_space<vmem>>, vector<1x2x2xf32>,
    %c1_90 = arith.constant 1 : index
    %c0_91 = arith.constant 0 : index
    %c0_92 = arith.constant 0 : index
    %305 = vector.load %arg12[%c1_90, %c0_91, %c0_92] : memref<5x2x2xf32, #tpu.memory_space<vmem>>, vector<1x2x2xf32>
    %306 = vector.shape_cast %305 : vector<1x2x2xf32> to vector<2x2xf32>
    %307 = vector.shape_cast %301 : vector<2x2xf32> to vector<1x2x2xf32>
    tpu.vector_store %arg12[%c1_90, %c0_91, %c0_92], %307 {strides = array<i32>} : memref<5x2x2xf32, #tpu.memory_space<vmem>>, vector<1x2x2xf32>,
    %c1_93 = arith.constant 1 : index
    %c0_94 = arith.constant 0 : index
    %c0_95 = arith.constant 0 : index
    %308 = vector.load %arg13[%c1_93, %c0_94, %c0_95] : memref<5x2x2xf32, #tpu.memory_space<vmem>>, vector<1x2x2xf32>
    %309 = vector.shape_cast %308 : vector<1x2x2xf32> to vector<2x2xf32>
    %310 = vector.shape_cast %297 : vector<2x2xf32> to vector<1x2x2xf32>
    tpu.vector_store %arg13[%c1_93, %c0_94, %c0_95], %310 {strides = array<i32>} : memref<5x2x2xf32, #tpu.memory_space<vmem>>, vector<1x2x2xf32>,
    %311 = vector.broadcast %4 : f32 to vector<30x32xf32>
    %312 = arith.cmpf ogt, %203, %311 : vector<30x32xf32>
    %313 = arith.extui %312 : vector<30x32xi1> to vector<30x32xi32>
    %314 = arith.sitofp %313 : vector<30x32xi32> to vector<30x32xf32>
    %315 = vector.broadcast %0 : f32 to vector<30x32xf32>
    %316 = arith.mulf %315, %203 : vector<30x32xf32>
    %317 = arith.addf %316, %72 : vector<30x32xf32>
    %318 = vector.broadcast %4 : f32 to vector<30x32xf32>
    %319 = arith.mulf %314, %318 : vector<30x32xf32>
    %320 = arith.subf %317, %319 : vector<30x32xf32>
    %321 = vector.broadcast %4 : f32 to vector<30x32xf32>
    %322 = arith.cmpf ogt, %320, %321 : vector<30x32xf32>
    %323 = arith.extui %322 : vector<30x32xi1> to vector<30x32xi32>
    %324 = arith.sitofp %323 : vector<30x32xi32> to vector<30x32xf32>
    %325 = vector.extract_strided_slice %324 {offsets = [0, 0], sizes = [14, 32], strides = [1, 1]} : vector<30x32xf32> to vector<14x32xf32>
    %326 = vector.extract_strided_slice %324 {offsets = [15, 0], sizes = [14, 32], strides = [1, 1]} : vector<30x32xf32> to vector<14x32xf32>
    %327 = tpu.concatenate %325, %326 in 0 : vector<14x32xf32>, vector<14x32xf32> -> vector<28x32xf32>
    %328 = vector.extract_strided_slice %324 {offsets = [1, 0], sizes = [14, 32], strides = [1, 1]} : vector<30x32xf32> to vector<14x32xf32>
    %329 = vector.extract_strided_slice %324 {offsets = [16, 0], sizes = [14, 32], strides = [1, 1]} : vector<30x32xf32> to vector<14x32xf32>
    %330 = tpu.concatenate %328, %329 in 0 : vector<14x32xf32>, vector<14x32xf32> -> vector<28x32xf32>
    %cst_96 = arith.constant dense<0.000000e+00> : vector<28x128xf32>
    %331 = tpu.matmul %327, %29, %cst_96 {dimension_numbers = #tpu.dot_dimension_numbers<[1], [0], [0], [1], [0, 0, 1, 1], [], []>} : vector<28x32xf32>, vector<32x128xf32>, vector<28x128xf32> -> vector<28x128xf32>
    %cst_97 = arith.constant dense<0.000000e+00> : vector<28x128xf32>
    %332 = tpu.matmul %330, %30, %cst_97 {dimension_numbers = #tpu.dot_dimension_numbers<[1], [0], [0], [1], [0, 0, 1, 1], [], []>} : vector<28x32xf32>, vector<32x128xf32>, vector<28x128xf32> -> vector<28x128xf32>
    %333 = arith.addf %331, %332 : vector<28x128xf32>
    %334 = vector.broadcast %33 : vector<1x128xf32> to vector<28x128xf32>
    %335 = arith.addf %333, %334 : vector<28x128xf32>
    %336 = vector.extract_strided_slice %335 {offsets = [0, 0], sizes = [27, 128], strides = [1, 1]} : vector<28x128xf32> to vector<27x128xf32>
    %337 = vector.extract_strided_slice %335 {offsets = [1, 0], sizes = [27, 128], strides = [1, 1]} : vector<28x128xf32> to vector<27x128xf32>
    %338 = arith.maximumf %336, %337 : vector<27x128xf32>
    %cst_98 = arith.constant dense<0.000000e+00> : vector<14x128xf32>
    %339 = tpu.matmul %21, %338, %cst_98 {dimension_numbers = #tpu.dot_dimension_numbers<[1], [0], [0], [1], [0, 0, 1, 1], [], []>} : vector<14x27xf32>, vector<27x128xf32>, vector<14x128xf32> -> vector<14x128xf32>
    %340 = vector.broadcast %5 : f32 to vector<14x128xf32>
    %341 = arith.cmpf ogt, %232, %340 : vector<14x128xf32>
    %342 = arith.extui %341 : vector<14x128xi1> to vector<14x128xi32>
    %343 = arith.sitofp %342 : vector<14x128xi32> to vector<14x128xf32>
    %344 = vector.broadcast %1 : f32 to vector<14x128xf32>
    %345 = arith.mulf %344, %232 : vector<14x128xf32>
    %346 = arith.addf %345, %339 : vector<14x128xf32>
    %347 = vector.broadcast %5 : f32 to vector<14x128xf32>
    %348 = arith.mulf %343, %347 : vector<14x128xf32>
    %349 = arith.subf %346, %348 : vector<14x128xf32>
    %350 = vector.broadcast %5 : f32 to vector<14x128xf32>
    %351 = arith.cmpf ogt, %349, %350 : vector<14x128xf32>
    %352 = arith.extui %351 : vector<14x128xi1> to vector<14x128xi32>
    %353 = arith.sitofp %352 : vector<14x128xi32> to vector<14x128xf32>
    %354 = vector.extract_strided_slice %353 {offsets = [0, 0], sizes = [6, 128], strides = [1, 1]} : vector<14x128xf32> to vector<6x128xf32>
    %355 = vector.extract_strided_slice %353 {offsets = [7, 0], sizes = [6, 128], strides = [1, 1]} : vector<14x128xf32> to vector<6x128xf32>
    %356 = tpu.concatenate %354, %355 in 0 : vector<6x128xf32>, vector<6x128xf32> -> vector<12x128xf32>
    %357 = vector.extract_strided_slice %353 {offsets = [1, 0], sizes = [6, 128], strides = [1, 1]} : vector<14x128xf32> to vector<6x128xf32>
    %358 = vector.extract_strided_slice %353 {offsets = [8, 0], sizes = [6, 128], strides = [1, 1]} : vector<14x128xf32> to vector<6x128xf32>
    %359 = tpu.concatenate %357, %358 in 0 : vector<6x128xf32>, vector<6x128xf32> -> vector<12x128xf32>
    %cst_99 = arith.constant dense<0.000000e+00> : vector<12x256xf32>
    %360 = tpu.matmul %356, %31, %cst_99 {dimension_numbers = #tpu.dot_dimension_numbers<[1], [0], [0], [1], [0, 0, 1, 1], [], []>} : vector<12x128xf32>, vector<128x256xf32>, vector<12x256xf32> -> vector<12x256xf32>
    %cst_100 = arith.constant dense<0.000000e+00> : vector<12x256xf32>
    %361 = tpu.matmul %359, %32, %cst_100 {dimension_numbers = #tpu.dot_dimension_numbers<[1], [0], [0], [1], [0, 0, 1, 1], [], []>} : vector<12x128xf32>, vector<128x256xf32>, vector<12x256xf32> -> vector<12x256xf32>
    %362 = arith.addf %360, %361 : vector<12x256xf32>
    %363 = vector.broadcast %34 : vector<1x256xf32> to vector<12x256xf32>
    %364 = arith.addf %362, %363 : vector<12x256xf32>
    %365 = vector.extract_strided_slice %364 {offsets = [0, 0], sizes = [11, 256], strides = [1, 1]} : vector<12x256xf32> to vector<11x256xf32>
    %366 = vector.extract_strided_slice %364 {offsets = [1, 0], sizes = [11, 256], strides = [1, 1]} : vector<12x256xf32> to vector<11x256xf32>
    %367 = arith.maximumf %365, %366 : vector<11x256xf32>
    %cst_101 = arith.constant dense<0.000000e+00> : vector<6x256xf32>
    %368 = tpu.matmul %28, %367, %cst_101 {dimension_numbers = #tpu.dot_dimension_numbers<[1], [0], [0], [1], [0, 0, 1, 1], [], []>} : vector<6x11xf32>, vector<11x256xf32>, vector<6x256xf32> -> vector<6x256xf32>
    %369 = vector.broadcast %6 : f32 to vector<6x256xf32>
    %370 = arith.cmpf ogt, %261, %369 : vector<6x256xf32>
    %371 = arith.extui %370 : vector<6x256xi1> to vector<6x256xi32>
    %372 = arith.sitofp %371 : vector<6x256xi32> to vector<6x256xf32>
    %373 = vector.broadcast %2 : f32 to vector<6x256xf32>
    %374 = arith.mulf %373, %261 : vector<6x256xf32>
    %375 = arith.addf %374, %368 : vector<6x256xf32>
    %376 = vector.broadcast %6 : f32 to vector<6x256xf32>
    %377 = arith.mulf %372, %376 : vector<6x256xf32>
    %378 = arith.subf %375, %377 : vector<6x256xf32>
    %379 = vector.broadcast %6 : f32 to vector<6x256xf32>
    %380 = arith.cmpf ogt, %378, %379 : vector<6x256xf32>
    %381 = arith.extui %380 : vector<6x256xi1> to vector<6x256xi32>
    %382 = arith.sitofp %381 : vector<6x256xi32> to vector<6x256xf32>
    %383 = vector.extract_strided_slice %382 {offsets = [0, 0], sizes = [1, 256], strides = [1, 1]} : vector<6x256xf32> to vector<1x256xf32>
    %384 = vector.extract_strided_slice %382 {offsets = [3, 0], sizes = [1, 256], strides = [1, 1]} : vector<6x256xf32> to vector<1x256xf32>
    %385 = tpu.concatenate %383, %384 in 0 : vector<1x256xf32>, vector<1x256xf32> -> vector<2x256xf32>
    %c0_102 = arith.constant 0 : index
    %c0_103 = arith.constant 0 : index
    %c0_104 = arith.constant 0 : index
    %386 = vector.load %arg9[%c0_102, %c0_103, %c0_104] : memref<3x256x2xf32, #tpu.memory_space<vmem>>, vector<1x256x2xf32>
    %387 = vector.shape_cast %386 : vector<1x256x2xf32> to vector<256x2xf32>
    %cst_105 = arith.constant dense<0.000000e+00> : vector<2x2xf32>
    %388 = tpu.matmul %385, %387, %cst_105 {dimension_numbers = #tpu.dot_dimension_numbers<[1], [0], [0], [1], [0, 0, 1, 1], [], []>} : vector<2x256xf32>, vector<256x2xf32>, vector<2x2xf32> -> vector<2x2xf32>
    %389 = vector.broadcast %35 : vector<1x2xf32> to vector<2x2xf32>
    %390 = arith.addf %389, %388 : vector<2x2xf32>
    %391 = vector.extract_strided_slice %382 {offsets = [1, 0], sizes = [1, 256], strides = [1, 1]} : vector<6x256xf32> to vector<1x256xf32>
    %392 = vector.extract_strided_slice %382 {offsets = [4, 0], sizes = [1, 256], strides = [1, 1]} : vector<6x256xf32> to vector<1x256xf32>
    %393 = tpu.concatenate %391, %392 in 0 : vector<1x256xf32>, vector<1x256xf32> -> vector<2x256xf32>
    %c1_106 = arith.constant 1 : index
    %c0_107 = arith.constant 0 : index
    %c0_108 = arith.constant 0 : index
    %394 = vector.load %arg9[%c1_106, %c0_107, %c0_108] : memref<3x256x2xf32, #tpu.memory_space<vmem>>, vector<1x256x2xf32>
    %395 = vector.shape_cast %394 : vector<1x256x2xf32> to vector<256x2xf32>
    %cst_109 = arith.constant dense<0.000000e+00> : vector<2x2xf32>
    %396 = tpu.matmul %393, %395, %cst_109 {dimension_numbers = #tpu.dot_dimension_numbers<[1], [0], [0], [1], [0, 0, 1, 1], [], []>} : vector<2x256xf32>, vector<256x2xf32>, vector<2x2xf32> -> vector<2x2xf32>
    %397 = arith.addf %390, %396 : vector<2x2xf32>
    %398 = vector.extract_strided_slice %382 {offsets = [2, 0], sizes = [1, 256], strides = [1, 1]} : vector<6x256xf32> to vector<1x256xf32>
    %399 = vector.extract_strided_slice %382 {offsets = [5, 0], sizes = [1, 256], strides = [1, 1]} : vector<6x256xf32> to vector<1x256xf32>
    %400 = tpu.concatenate %398, %399 in 0 : vector<1x256xf32>, vector<1x256xf32> -> vector<2x256xf32>
    %c2_110 = arith.constant 2 : index
    %c0_111 = arith.constant 0 : index
    %c0_112 = arith.constant 0 : index
    %401 = vector.load %arg9[%c2_110, %c0_111, %c0_112] : memref<3x256x2xf32, #tpu.memory_space<vmem>>, vector<1x256x2xf32>
    %402 = vector.shape_cast %401 : vector<1x256x2xf32> to vector<256x2xf32>
    %cst_113 = arith.constant dense<0.000000e+00> : vector<2x2xf32>
    %403 = tpu.matmul %400, %402, %cst_113 {dimension_numbers = #tpu.dot_dimension_numbers<[1], [0], [0], [1], [0, 0, 1, 1], [], []>} : vector<2x256xf32>, vector<256x2xf32>, vector<2x2xf32> -> vector<2x2xf32>
    %404 = arith.addf %397, %403 : vector<2x2xf32>
    %405 = vector.broadcast %7 : f32 to vector<2x2xf32>
    %406 = arith.cmpf ogt, %297, %405 : vector<2x2xf32>
    %407 = arith.extui %406 : vector<2x2xi1> to vector<2x2xi32>
    %408 = arith.sitofp %407 : vector<2x2xi32> to vector<2x2xf32>
    %409 = vector.broadcast %3 : f32 to vector<2x2xf32>
    %410 = arith.mulf %409, %297 : vector<2x2xf32>
    %411 = arith.addf %410, %404 : vector<2x2xf32>
    %412 = vector.broadcast %7 : f32 to vector<2x2xf32>
    %413 = arith.mulf %408, %412 : vector<2x2xf32>
    %414 = arith.subf %411, %413 : vector<2x2xf32>
    %415 = vector.broadcast %7 : f32 to vector<2x2xf32>
    %416 = arith.cmpf ogt, %414, %415 : vector<2x2xf32>
    %417 = arith.extui %416 : vector<2x2xi1> to vector<2x2xi32>
    %418 = arith.sitofp %417 : vector<2x2xi32> to vector<2x2xf32>
    %c2_114 = arith.constant 2 : index
    %c0_115 = arith.constant 0 : index
    %c0_116 = arith.constant 0 : index
    %419 = vector.load %arg11[%c2_114, %c0_115, %c0_116] : memref<5x2x2xf32, #tpu.memory_space<vmem>>, vector<1x2x2xf32>
    %420 = vector.shape_cast %419 : vector<1x2x2xf32> to vector<2x2xf32>
    %421 = vector.shape_cast %404 : vector<2x2xf32> to vector<1x2x2xf32>
    tpu.vector_store %arg11[%c2_114, %c0_115, %c0_116], %421 {strides = array<i32>} : memref<5x2x2xf32, #tpu.memory_space<vmem>>, vector<1x2x2xf32>,
    %c2_117 = arith.constant 2 : index
    %c0_118 = arith.constant 0 : index
    %c0_119 = arith.constant 0 : index
    %422 = vector.load %arg12[%c2_117, %c0_118, %c0_119] : memref<5x2x2xf32, #tpu.memory_space<vmem>>, vector<1x2x2xf32>
    %423 = vector.shape_cast %422 : vector<1x2x2xf32> to vector<2x2xf32>
    %424 = vector.shape_cast %418 : vector<2x2xf32> to vector<1x2x2xf32>
    tpu.vector_store %arg12[%c2_117, %c0_118, %c0_119], %424 {strides = array<i32>} : memref<5x2x2xf32, #tpu.memory_space<vmem>>, vector<1x2x2xf32>,
    %c2_120 = arith.constant 2 : index
    %c0_121 = arith.constant 0 : index
    %c0_122 = arith.constant 0 : index
    %425 = vector.load %arg13[%c2_120, %c0_121, %c0_122] : memref<5x2x2xf32, #tpu.memory_space<vmem>>, vector<1x2x2xf32>
    %426 = vector.shape_cast %425 : vector<1x2x2xf32> to vector<2x2xf32>
    %427 = vector.shape_cast %414 : vector<2x2xf32> to vector<1x2x2xf32>
    tpu.vector_store %arg13[%c2_120, %c0_121, %c0_122], %427 {strides = array<i32>} : memref<5x2x2xf32, #tpu.memory_space<vmem>>, vector<1x2x2xf32>,
    %428 = vector.broadcast %4 : f32 to vector<30x32xf32>
    %429 = arith.cmpf ogt, %320, %428 : vector<30x32xf32>
    %430 = arith.extui %429 : vector<30x32xi1> to vector<30x32xi32>
    %431 = arith.sitofp %430 : vector<30x32xi32> to vector<30x32xf32>
    %432 = vector.broadcast %0 : f32 to vector<30x32xf32>
    %433 = arith.mulf %432, %320 : vector<30x32xf32>
    %434 = arith.addf %433, %72 : vector<30x32xf32>
    %435 = vector.broadcast %4 : f32 to vector<30x32xf32>
    %436 = arith.mulf %431, %435 : vector<30x32xf32>
    %437 = arith.subf %434, %436 : vector<30x32xf32>
    %438 = vector.broadcast %4 : f32 to vector<30x32xf32>
    %439 = arith.cmpf ogt, %437, %438 : vector<30x32xf32>
    %440 = arith.extui %439 : vector<30x32xi1> to vector<30x32xi32>
    %441 = arith.sitofp %440 : vector<30x32xi32> to vector<30x32xf32>
    %442 = vector.extract_strided_slice %441 {offsets = [0, 0], sizes = [14, 32], strides = [1, 1]} : vector<30x32xf32> to vector<14x32xf32>
    %443 = vector.extract_strided_slice %441 {offsets = [15, 0], sizes = [14, 32], strides = [1, 1]} : vector<30x32xf32> to vector<14x32xf32>
    %444 = tpu.concatenate %442, %443 in 0 : vector<14x32xf32>, vector<14x32xf32> -> vector<28x32xf32>
    %445 = vector.extract_strided_slice %441 {offsets = [1, 0], sizes = [14, 32], strides = [1, 1]} : vector<30x32xf32> to vector<14x32xf32>
    %446 = vector.extract_strided_slice %441 {offsets = [16, 0], sizes = [14, 32], strides = [1, 1]} : vector<30x32xf32> to vector<14x32xf32>
    %447 = tpu.concatenate %445, %446 in 0 : vector<14x32xf32>, vector<14x32xf32> -> vector<28x32xf32>
    %cst_123 = arith.constant dense<0.000000e+00> : vector<28x128xf32>
    %448 = tpu.matmul %444, %29, %cst_123 {dimension_numbers = #tpu.dot_dimension_numbers<[1], [0], [0], [1], [0, 0, 1, 1], [], []>} : vector<28x32xf32>, vector<32x128xf32>, vector<28x128xf32> -> vector<28x128xf32>
    %cst_124 = arith.constant dense<0.000000e+00> : vector<28x128xf32>
    %449 = tpu.matmul %447, %30, %cst_124 {dimension_numbers = #tpu.dot_dimension_numbers<[1], [0], [0], [1], [0, 0, 1, 1], [], []>} : vector<28x32xf32>, vector<32x128xf32>, vector<28x128xf32> -> vector<28x128xf32>
    %450 = arith.addf %448, %449 : vector<28x128xf32>
    %451 = vector.broadcast %33 : vector<1x128xf32> to vector<28x128xf32>
    %452 = arith.addf %450, %451 : vector<28x128xf32>
    %453 = vector.extract_strided_slice %452 {offsets = [0, 0], sizes = [27, 128], strides = [1, 1]} : vector<28x128xf32> to vector<27x128xf32>
    %454 = vector.extract_strided_slice %452 {offsets = [1, 0], sizes = [27, 128], strides = [1, 1]} : vector<28x128xf32> to vector<27x128xf32>
    %455 = arith.maximumf %453, %454 : vector<27x128xf32>
    %cst_125 = arith.constant dense<0.000000e+00> : vector<14x128xf32>
    %456 = tpu.matmul %21, %455, %cst_125 {dimension_numbers = #tpu.dot_dimension_numbers<[1], [0], [0], [1], [0, 0, 1, 1], [], []>} : vector<14x27xf32>, vector<27x128xf32>, vector<14x128xf32> -> vector<14x128xf32>
    %457 = vector.broadcast %5 : f32 to vector<14x128xf32>
    %458 = arith.cmpf ogt, %349, %457 : vector<14x128xf32>
    %459 = arith.extui %458 : vector<14x128xi1> to vector<14x128xi32>
    %460 = arith.sitofp %459 : vector<14x128xi32> to vector<14x128xf32>
    %461 = vector.broadcast %1 : f32 to vector<14x128xf32>
    %462 = arith.mulf %461, %349 : vector<14x128xf32>
    %463 = arith.addf %462, %456 : vector<14x128xf32>
    %464 = vector.broadcast %5 : f32 to vector<14x128xf32>
    %465 = arith.mulf %460, %464 : vector<14x128xf32>
    %466 = arith.subf %463, %465 : vector<14x128xf32>
    %467 = vector.broadcast %5 : f32 to vector<14x128xf32>
    %468 = arith.cmpf ogt, %466, %467 : vector<14x128xf32>
    %469 = arith.extui %468 : vector<14x128xi1> to vector<14x128xi32>
    %470 = arith.sitofp %469 : vector<14x128xi32> to vector<14x128xf32>
    %471 = vector.extract_strided_slice %470 {offsets = [0, 0], sizes = [6, 128], strides = [1, 1]} : vector<14x128xf32> to vector<6x128xf32>
    %472 = vector.extract_strided_slice %470 {offsets = [7, 0], sizes = [6, 128], strides = [1, 1]} : vector<14x128xf32> to vector<6x128xf32>
    %473 = tpu.concatenate %471, %472 in 0 : vector<6x128xf32>, vector<6x128xf32> -> vector<12x128xf32>
    %474 = vector.extract_strided_slice %470 {offsets = [1, 0], sizes = [6, 128], strides = [1, 1]} : vector<14x128xf32> to vector<6x128xf32>
    %475 = vector.extract_strided_slice %470 {offsets = [8, 0], sizes = [6, 128], strides = [1, 1]} : vector<14x128xf32> to vector<6x128xf32>
    %476 = tpu.concatenate %474, %475 in 0 : vector<6x128xf32>, vector<6x128xf32> -> vector<12x128xf32>
    %cst_126 = arith.constant dense<0.000000e+00> : vector<12x256xf32>
    %477 = tpu.matmul %473, %31, %cst_126 {dimension_numbers = #tpu.dot_dimension_numbers<[1], [0], [0], [1], [0, 0, 1, 1], [], []>} : vector<12x128xf32>, vector<128x256xf32>, vector<12x256xf32> -> vector<12x256xf32>
    %cst_127 = arith.constant dense<0.000000e+00> : vector<12x256xf32>
    %478 = tpu.matmul %476, %32, %cst_127 {dimension_numbers = #tpu.dot_dimension_numbers<[1], [0], [0], [1], [0, 0, 1, 1], [], []>} : vector<12x128xf32>, vector<128x256xf32>, vector<12x256xf32> -> vector<12x256xf32>
    %479 = arith.addf %477, %478 : vector<12x256xf32>
    %480 = vector.broadcast %34 : vector<1x256xf32> to vector<12x256xf32>
    %481 = arith.addf %479, %480 : vector<12x256xf32>
    %482 = vector.extract_strided_slice %481 {offsets = [0, 0], sizes = [11, 256], strides = [1, 1]} : vector<12x256xf32> to vector<11x256xf32>
    %483 = vector.extract_strided_slice %481 {offsets = [1, 0], sizes = [11, 256], strides = [1, 1]} : vector<12x256xf32> to vector<11x256xf32>
    %484 = arith.maximumf %482, %483 : vector<11x256xf32>
    %cst_128 = arith.constant dense<0.000000e+00> : vector<6x256xf32>
    %485 = tpu.matmul %28, %484, %cst_128 {dimension_numbers = #tpu.dot_dimension_numbers<[1], [0], [0], [1], [0, 0, 1, 1], [], []>} : vector<6x11xf32>, vector<11x256xf32>, vector<6x256xf32> -> vector<6x256xf32>
    %486 = vector.broadcast %6 : f32 to vector<6x256xf32>
    %487 = arith.cmpf ogt, %378, %486 : vector<6x256xf32>
    %488 = arith.extui %487 : vector<6x256xi1> to vector<6x256xi32>
    %489 = arith.sitofp %488 : vector<6x256xi32> to vector<6x256xf32>
    %490 = vector.broadcast %2 : f32 to vector<6x256xf32>
    %491 = arith.mulf %490, %378 : vector<6x256xf32>
    %492 = arith.addf %491, %485 : vector<6x256xf32>
    %493 = vector.broadcast %6 : f32 to vector<6x256xf32>
    %494 = arith.mulf %489, %493 : vector<6x256xf32>
    %495 = arith.subf %492, %494 : vector<6x256xf32>
    %496 = vector.broadcast %6 : f32 to vector<6x256xf32>
    %497 = arith.cmpf ogt, %495, %496 : vector<6x256xf32>
    %498 = arith.extui %497 : vector<6x256xi1> to vector<6x256xi32>
    %499 = arith.sitofp %498 : vector<6x256xi32> to vector<6x256xf32>
    %500 = vector.extract_strided_slice %499 {offsets = [0, 0], sizes = [1, 256], strides = [1, 1]} : vector<6x256xf32> to vector<1x256xf32>
    %501 = vector.extract_strided_slice %499 {offsets = [3, 0], sizes = [1, 256], strides = [1, 1]} : vector<6x256xf32> to vector<1x256xf32>
    %502 = tpu.concatenate %500, %501 in 0 : vector<1x256xf32>, vector<1x256xf32> -> vector<2x256xf32>
    %c0_129 = arith.constant 0 : index
    %c0_130 = arith.constant 0 : index
    %c0_131 = arith.constant 0 : index
    %503 = vector.load %arg9[%c0_129, %c0_130, %c0_131] : memref<3x256x2xf32, #tpu.memory_space<vmem>>, vector<1x256x2xf32>
    %504 = vector.shape_cast %503 : vector<1x256x2xf32> to vector<256x2xf32>
    %cst_132 = arith.constant dense<0.000000e+00> : vector<2x2xf32>
    %505 = tpu.matmul %502, %504, %cst_132 {dimension_numbers = #tpu.dot_dimension_numbers<[1], [0], [0], [1], [0, 0, 1, 1], [], []>} : vector<2x256xf32>, vector<256x2xf32>, vector<2x2xf32> -> vector<2x2xf32>
    %506 = vector.broadcast %35 : vector<1x2xf32> to vector<2x2xf32>
    %507 = arith.addf %506, %505 : vector<2x2xf32>
    %508 = vector.extract_strided_slice %499 {offsets = [1, 0], sizes = [1, 256], strides = [1, 1]} : vector<6x256xf32> to vector<1x256xf32>
    %509 = vector.extract_strided_slice %499 {offsets = [4, 0], sizes = [1, 256], strides = [1, 1]} : vector<6x256xf32> to vector<1x256xf32>
    %510 = tpu.concatenate %508, %509 in 0 : vector<1x256xf32>, vector<1x256xf32> -> vector<2x256xf32>
    %c1_133 = arith.constant 1 : index
    %c0_134 = arith.constant 0 : index
    %c0_135 = arith.constant 0 : index
    %511 = vector.load %arg9[%c1_133, %c0_134, %c0_135] : memref<3x256x2xf32, #tpu.memory_space<vmem>>, vector<1x256x2xf32>
    %512 = vector.shape_cast %511 : vector<1x256x2xf32> to vector<256x2xf32>
    %cst_136 = arith.constant dense<0.000000e+00> : vector<2x2xf32>
    %513 = tpu.matmul %510, %512, %cst_136 {dimension_numbers = #tpu.dot_dimension_numbers<[1], [0], [0], [1], [0, 0, 1, 1], [], []>} : vector<2x256xf32>, vector<256x2xf32>, vector<2x2xf32> -> vector<2x2xf32>
    %514 = arith.addf %507, %513 : vector<2x2xf32>
    %515 = vector.extract_strided_slice %499 {offsets = [2, 0], sizes = [1, 256], strides = [1, 1]} : vector<6x256xf32> to vector<1x256xf32>
    %516 = vector.extract_strided_slice %499 {offsets = [5, 0], sizes = [1, 256], strides = [1, 1]} : vector<6x256xf32> to vector<1x256xf32>
    %517 = tpu.concatenate %515, %516 in 0 : vector<1x256xf32>, vector<1x256xf32> -> vector<2x256xf32>
    %c2_137 = arith.constant 2 : index
    %c0_138 = arith.constant 0 : index
    %c0_139 = arith.constant 0 : index
    %518 = vector.load %arg9[%c2_137, %c0_138, %c0_139] : memref<3x256x2xf32, #tpu.memory_space<vmem>>, vector<1x256x2xf32>
    %519 = vector.shape_cast %518 : vector<1x256x2xf32> to vector<256x2xf32>
    %cst_140 = arith.constant dense<0.000000e+00> : vector<2x2xf32>
    %520 = tpu.matmul %517, %519, %cst_140 {dimension_numbers = #tpu.dot_dimension_numbers<[1], [0], [0], [1], [0, 0, 1, 1], [], []>} : vector<2x256xf32>, vector<256x2xf32>, vector<2x2xf32> -> vector<2x2xf32>
    %521 = arith.addf %514, %520 : vector<2x2xf32>
    %522 = vector.broadcast %7 : f32 to vector<2x2xf32>
    %523 = arith.cmpf ogt, %414, %522 : vector<2x2xf32>
    %524 = arith.extui %523 : vector<2x2xi1> to vector<2x2xi32>
    %525 = arith.sitofp %524 : vector<2x2xi32> to vector<2x2xf32>
    %526 = vector.broadcast %3 : f32 to vector<2x2xf32>
    %527 = arith.mulf %526, %414 : vector<2x2xf32>
    %528 = arith.addf %527, %521 : vector<2x2xf32>
    %529 = vector.broadcast %7 : f32 to vector<2x2xf32>
    %530 = arith.mulf %525, %529 : vector<2x2xf32>
    %531 = arith.subf %528, %530 : vector<2x2xf32>
    %532 = vector.broadcast %7 : f32 to vector<2x2xf32>
    %533 = arith.cmpf ogt, %531, %532 : vector<2x2xf32>
    %534 = arith.extui %533 : vector<2x2xi1> to vector<2x2xi32>
    %535 = arith.sitofp %534 : vector<2x2xi32> to vector<2x2xf32>
    %c3_141 = arith.constant 3 : index
    %c0_142 = arith.constant 0 : index
    %c0_143 = arith.constant 0 : index
    %536 = vector.load %arg11[%c3_141, %c0_142, %c0_143] : memref<5x2x2xf32, #tpu.memory_space<vmem>>, vector<1x2x2xf32>
    %537 = vector.shape_cast %536 : vector<1x2x2xf32> to vector<2x2xf32>
    %538 = vector.shape_cast %521 : vector<2x2xf32> to vector<1x2x2xf32>
    tpu.vector_store %arg11[%c3_141, %c0_142, %c0_143], %538 {strides = array<i32>} : memref<5x2x2xf32, #tpu.memory_space<vmem>>, vector<1x2x2xf32>,
    %c3_144 = arith.constant 3 : index
    %c0_145 = arith.constant 0 : index
    %c0_146 = arith.constant 0 : index
    %539 = vector.load %arg12[%c3_144, %c0_145, %c0_146] : memref<5x2x2xf32, #tpu.memory_space<vmem>>, vector<1x2x2xf32>
    %540 = vector.shape_cast %539 : vector<1x2x2xf32> to vector<2x2xf32>
    %541 = vector.shape_cast %535 : vector<2x2xf32> to vector<1x2x2xf32>
    tpu.vector_store %arg12[%c3_144, %c0_145, %c0_146], %541 {strides = array<i32>} : memref<5x2x2xf32, #tpu.memory_space<vmem>>, vector<1x2x2xf32>,
    %c3_147 = arith.constant 3 : index
    %c0_148 = arith.constant 0 : index
    %c0_149 = arith.constant 0 : index
    %542 = vector.load %arg13[%c3_147, %c0_148, %c0_149] : memref<5x2x2xf32, #tpu.memory_space<vmem>>, vector<1x2x2xf32>
    %543 = vector.shape_cast %542 : vector<1x2x2xf32> to vector<2x2xf32>
    %544 = vector.shape_cast %531 : vector<2x2xf32> to vector<1x2x2xf32>
    tpu.vector_store %arg13[%c3_147, %c0_148, %c0_149], %544 {strides = array<i32>} : memref<5x2x2xf32, #tpu.memory_space<vmem>>, vector<1x2x2xf32>,
    %545 = vector.broadcast %4 : f32 to vector<30x32xf32>
    %546 = arith.cmpf ogt, %437, %545 : vector<30x32xf32>
    %547 = arith.extui %546 : vector<30x32xi1> to vector<30x32xi32>
    %548 = arith.sitofp %547 : vector<30x32xi32> to vector<30x32xf32>
    %549 = vector.broadcast %0 : f32 to vector<30x32xf32>
    %550 = arith.mulf %549, %437 : vector<30x32xf32>
    %551 = arith.addf %550, %72 : vector<30x32xf32>
    %552 = vector.broadcast %4 : f32 to vector<30x32xf32>
    %553 = arith.mulf %548, %552 : vector<30x32xf32>
    %554 = arith.subf %551, %553 : vector<30x32xf32>
    %555 = vector.broadcast %4 : f32 to vector<30x32xf32>
    %556 = arith.cmpf ogt, %554, %555 : vector<30x32xf32>
    %557 = arith.extui %556 : vector<30x32xi1> to vector<30x32xi32>
    %558 = arith.sitofp %557 : vector<30x32xi32> to vector<30x32xf32>
    %559 = vector.extract_strided_slice %558 {offsets = [0, 0], sizes = [14, 32], strides = [1, 1]} : vector<30x32xf32> to vector<14x32xf32>
    %560 = vector.extract_strided_slice %558 {offsets = [15, 0], sizes = [14, 32], strides = [1, 1]} : vector<30x32xf32> to vector<14x32xf32>
    %561 = tpu.concatenate %559, %560 in 0 : vector<14x32xf32>, vector<14x32xf32> -> vector<28x32xf32>
    %562 = vector.extract_strided_slice %558 {offsets = [1, 0], sizes = [14, 32], strides = [1, 1]} : vector<30x32xf32> to vector<14x32xf32>
    %563 = vector.extract_strided_slice %558 {offsets = [16, 0], sizes = [14, 32], strides = [1, 1]} : vector<30x32xf32> to vector<14x32xf32>
    %564 = tpu.concatenate %562, %563 in 0 : vector<14x32xf32>, vector<14x32xf32> -> vector<28x32xf32>
    %cst_150 = arith.constant dense<0.000000e+00> : vector<28x128xf32>
    %565 = tpu.matmul %561, %29, %cst_150 {dimension_numbers = #tpu.dot_dimension_numbers<[1], [0], [0], [1], [0, 0, 1, 1], [], []>} : vector<28x32xf32>, vector<32x128xf32>, vector<28x128xf32> -> vector<28x128xf32>
    %cst_151 = arith.constant dense<0.000000e+00> : vector<28x128xf32>
    %566 = tpu.matmul %564, %30, %cst_151 {dimension_numbers = #tpu.dot_dimension_numbers<[1], [0], [0], [1], [0, 0, 1, 1], [], []>} : vector<28x32xf32>, vector<32x128xf32>, vector<28x128xf32> -> vector<28x128xf32>
    %567 = arith.addf %565, %566 : vector<28x128xf32>
    %568 = vector.broadcast %33 : vector<1x128xf32> to vector<28x128xf32>
    %569 = arith.addf %567, %568 : vector<28x128xf32>
    %570 = vector.extract_strided_slice %569 {offsets = [0, 0], sizes = [27, 128], strides = [1, 1]} : vector<28x128xf32> to vector<27x128xf32>
    %571 = vector.extract_strided_slice %569 {offsets = [1, 0], sizes = [27, 128], strides = [1, 1]} : vector<28x128xf32> to vector<27x128xf32>
    %572 = arith.maximumf %570, %571 : vector<27x128xf32>
    %cst_152 = arith.constant dense<0.000000e+00> : vector<14x128xf32>
    %573 = tpu.matmul %21, %572, %cst_152 {dimension_numbers = #tpu.dot_dimension_numbers<[1], [0], [0], [1], [0, 0, 1, 1], [], []>} : vector<14x27xf32>, vector<27x128xf32>, vector<14x128xf32> -> vector<14x128xf32>
    %574 = vector.broadcast %5 : f32 to vector<14x128xf32>
    %575 = arith.cmpf ogt, %466, %574 : vector<14x128xf32>
    %576 = arith.extui %575 : vector<14x128xi1> to vector<14x128xi32>
    %577 = arith.sitofp %576 : vector<14x128xi32> to vector<14x128xf32>
    %578 = vector.broadcast %1 : f32 to vector<14x128xf32>
    %579 = arith.mulf %578, %466 : vector<14x128xf32>
    %580 = arith.addf %579, %573 : vector<14x128xf32>
    %581 = vector.broadcast %5 : f32 to vector<14x128xf32>
    %582 = arith.mulf %577, %581 : vector<14x128xf32>
    %583 = arith.subf %580, %582 : vector<14x128xf32>
    %584 = vector.broadcast %5 : f32 to vector<14x128xf32>
    %585 = arith.cmpf ogt, %583, %584 : vector<14x128xf32>
    %586 = arith.extui %585 : vector<14x128xi1> to vector<14x128xi32>
    %587 = arith.sitofp %586 : vector<14x128xi32> to vector<14x128xf32>
    %588 = vector.extract_strided_slice %587 {offsets = [0, 0], sizes = [6, 128], strides = [1, 1]} : vector<14x128xf32> to vector<6x128xf32>
    %589 = vector.extract_strided_slice %587 {offsets = [7, 0], sizes = [6, 128], strides = [1, 1]} : vector<14x128xf32> to vector<6x128xf32>
    %590 = tpu.concatenate %588, %589 in 0 : vector<6x128xf32>, vector<6x128xf32> -> vector<12x128xf32>
    %591 = vector.extract_strided_slice %587 {offsets = [1, 0], sizes = [6, 128], strides = [1, 1]} : vector<14x128xf32> to vector<6x128xf32>
    %592 = vector.extract_strided_slice %587 {offsets = [8, 0], sizes = [6, 128], strides = [1, 1]} : vector<14x128xf32> to vector<6x128xf32>
    %593 = tpu.concatenate %591, %592 in 0 : vector<6x128xf32>, vector<6x128xf32> -> vector<12x128xf32>
    %cst_153 = arith.constant dense<0.000000e+00> : vector<12x256xf32>
    %594 = tpu.matmul %590, %31, %cst_153 {dimension_numbers = #tpu.dot_dimension_numbers<[1], [0], [0], [1], [0, 0, 1, 1], [], []>} : vector<12x128xf32>, vector<128x256xf32>, vector<12x256xf32> -> vector<12x256xf32>
    %cst_154 = arith.constant dense<0.000000e+00> : vector<12x256xf32>
    %595 = tpu.matmul %593, %32, %cst_154 {dimension_numbers = #tpu.dot_dimension_numbers<[1], [0], [0], [1], [0, 0, 1, 1], [], []>} : vector<12x128xf32>, vector<128x256xf32>, vector<12x256xf32> -> vector<12x256xf32>
    %596 = arith.addf %594, %595 : vector<12x256xf32>
    %597 = vector.broadcast %34 : vector<1x256xf32> to vector<12x256xf32>
    %598 = arith.addf %596, %597 : vector<12x256xf32>
    %599 = vector.extract_strided_slice %598 {offsets = [0, 0], sizes = [11, 256], strides = [1, 1]} : vector<12x256xf32> to vector<11x256xf32>
    %600 = vector.extract_strided_slice %598 {offsets = [1, 0], sizes = [11, 256], strides = [1, 1]} : vector<12x256xf32> to vector<11x256xf32>
    %601 = arith.maximumf %599, %600 : vector<11x256xf32>
    %cst_155 = arith.constant dense<0.000000e+00> : vector<6x256xf32>
    %602 = tpu.matmul %28, %601, %cst_155 {dimension_numbers = #tpu.dot_dimension_numbers<[1], [0], [0], [1], [0, 0, 1, 1], [], []>} : vector<6x11xf32>, vector<11x256xf32>, vector<6x256xf32> -> vector<6x256xf32>
    %603 = vector.broadcast %6 : f32 to vector<6x256xf32>
    %604 = arith.cmpf ogt, %495, %603 : vector<6x256xf32>
    %605 = arith.extui %604 : vector<6x256xi1> to vector<6x256xi32>
    %606 = arith.sitofp %605 : vector<6x256xi32> to vector<6x256xf32>
    %607 = vector.broadcast %2 : f32 to vector<6x256xf32>
    %608 = arith.mulf %607, %495 : vector<6x256xf32>
    %609 = arith.addf %608, %602 : vector<6x256xf32>
    %610 = vector.broadcast %6 : f32 to vector<6x256xf32>
    %611 = arith.mulf %606, %610 : vector<6x256xf32>
    %612 = arith.subf %609, %611 : vector<6x256xf32>
    %613 = vector.broadcast %6 : f32 to vector<6x256xf32>
    %614 = arith.cmpf ogt, %612, %613 : vector<6x256xf32>
    %615 = arith.extui %614 : vector<6x256xi1> to vector<6x256xi32>
    %616 = arith.sitofp %615 : vector<6x256xi32> to vector<6x256xf32>
    %617 = vector.extract_strided_slice %616 {offsets = [0, 0], sizes = [1, 256], strides = [1, 1]} : vector<6x256xf32> to vector<1x256xf32>
    %618 = vector.extract_strided_slice %616 {offsets = [3, 0], sizes = [1, 256], strides = [1, 1]} : vector<6x256xf32> to vector<1x256xf32>
    %619 = tpu.concatenate %617, %618 in 0 : vector<1x256xf32>, vector<1x256xf32> -> vector<2x256xf32>
    %c0_156 = arith.constant 0 : index
    %c0_157 = arith.constant 0 : index
    %c0_158 = arith.constant 0 : index
    %620 = vector.load %arg9[%c0_156, %c0_157, %c0_158] : memref<3x256x2xf32, #tpu.memory_space<vmem>>, vector<1x256x2xf32>
    %621 = vector.shape_cast %620 : vector<1x256x2xf32> to vector<256x2xf32>
    %cst_159 = arith.constant dense<0.000000e+00> : vector<2x2xf32>
    %622 = tpu.matmul %619, %621, %cst_159 {dimension_numbers = #tpu.dot_dimension_numbers<[1], [0], [0], [1], [0, 0, 1, 1], [], []>} : vector<2x256xf32>, vector<256x2xf32>, vector<2x2xf32> -> vector<2x2xf32>
    %623 = vector.broadcast %35 : vector<1x2xf32> to vector<2x2xf32>
    %624 = arith.addf %623, %622 : vector<2x2xf32>
    %625 = vector.extract_strided_slice %616 {offsets = [1, 0], sizes = [1, 256], strides = [1, 1]} : vector<6x256xf32> to vector<1x256xf32>
    %626 = vector.extract_strided_slice %616 {offsets = [4, 0], sizes = [1, 256], strides = [1, 1]} : vector<6x256xf32> to vector<1x256xf32>
    %627 = tpu.concatenate %625, %626 in 0 : vector<1x256xf32>, vector<1x256xf32> -> vector<2x256xf32>
    %c1_160 = arith.constant 1 : index
    %c0_161 = arith.constant 0 : index
    %c0_162 = arith.constant 0 : index
    %628 = vector.load %arg9[%c1_160, %c0_161, %c0_162] : memref<3x256x2xf32, #tpu.memory_space<vmem>>, vector<1x256x2xf32>
    %629 = vector.shape_cast %628 : vector<1x256x2xf32> to vector<256x2xf32>
    %cst_163 = arith.constant dense<0.000000e+00> : vector<2x2xf32>
    %630 = tpu.matmul %627, %629, %cst_163 {dimension_numbers = #tpu.dot_dimension_numbers<[1], [0], [0], [1], [0, 0, 1, 1], [], []>} : vector<2x256xf32>, vector<256x2xf32>, vector<2x2xf32> -> vector<2x2xf32>
    %631 = arith.addf %624, %630 : vector<2x2xf32>
    %632 = vector.extract_strided_slice %616 {offsets = [2, 0], sizes = [1, 256], strides = [1, 1]} : vector<6x256xf32> to vector<1x256xf32>
    %633 = vector.extract_strided_slice %616 {offsets = [5, 0], sizes = [1, 256], strides = [1, 1]} : vector<6x256xf32> to vector<1x256xf32>
    %634 = tpu.concatenate %632, %633 in 0 : vector<1x256xf32>, vector<1x256xf32> -> vector<2x256xf32>
    %c2_164 = arith.constant 2 : index
    %c0_165 = arith.constant 0 : index
    %c0_166 = arith.constant 0 : index
    %635 = vector.load %arg9[%c2_164, %c0_165, %c0_166] : memref<3x256x2xf32, #tpu.memory_space<vmem>>, vector<1x256x2xf32>
    %636 = vector.shape_cast %635 : vector<1x256x2xf32> to vector<256x2xf32>
    %cst_167 = arith.constant dense<0.000000e+00> : vector<2x2xf32>
    %637 = tpu.matmul %634, %636, %cst_167 {dimension_numbers = #tpu.dot_dimension_numbers<[1], [0], [0], [1], [0, 0, 1, 1], [], []>} : vector<2x256xf32>, vector<256x2xf32>, vector<2x2xf32> -> vector<2x2xf32>
    %638 = arith.addf %631, %637 : vector<2x2xf32>
    %639 = vector.broadcast %7 : f32 to vector<2x2xf32>
    %640 = arith.cmpf ogt, %531, %639 : vector<2x2xf32>
    %641 = arith.extui %640 : vector<2x2xi1> to vector<2x2xi32>
    %642 = arith.sitofp %641 : vector<2x2xi32> to vector<2x2xf32>
    %643 = vector.broadcast %3 : f32 to vector<2x2xf32>
    %644 = arith.mulf %643, %531 : vector<2x2xf32>
    %645 = arith.addf %644, %638 : vector<2x2xf32>
    %646 = vector.broadcast %7 : f32 to vector<2x2xf32>
    %647 = arith.mulf %642, %646 : vector<2x2xf32>
    %648 = arith.subf %645, %647 : vector<2x2xf32>
    %649 = vector.broadcast %7 : f32 to vector<2x2xf32>
    %650 = arith.cmpf ogt, %648, %649 : vector<2x2xf32>
    %651 = arith.extui %650 : vector<2x2xi1> to vector<2x2xi32>
    %652 = arith.sitofp %651 : vector<2x2xi32> to vector<2x2xf32>
    %c4_168 = arith.constant 4 : index
    %c0_169 = arith.constant 0 : index
    %c0_170 = arith.constant 0 : index
    %653 = vector.load %arg11[%c4_168, %c0_169, %c0_170] : memref<5x2x2xf32, #tpu.memory_space<vmem>>, vector<1x2x2xf32>
    %654 = vector.shape_cast %653 : vector<1x2x2xf32> to vector<2x2xf32>
    %655 = vector.shape_cast %638 : vector<2x2xf32> to vector<1x2x2xf32>
    tpu.vector_store %arg11[%c4_168, %c0_169, %c0_170], %655 {strides = array<i32>} : memref<5x2x2xf32, #tpu.memory_space<vmem>>, vector<1x2x2xf32>,
    %c4_171 = arith.constant 4 : index
    %c0_172 = arith.constant 0 : index
    %c0_173 = arith.constant 0 : index
    %656 = vector.load %arg12[%c4_171, %c0_172, %c0_173] : memref<5x2x2xf32, #tpu.memory_space<vmem>>, vector<1x2x2xf32>
    %657 = vector.shape_cast %656 : vector<1x2x2xf32> to vector<2x2xf32>
    %658 = vector.shape_cast %652 : vector<2x2xf32> to vector<1x2x2xf32>
    tpu.vector_store %arg12[%c4_171, %c0_172, %c0_173], %658 {strides = array<i32>} : memref<5x2x2xf32, #tpu.memory_space<vmem>>, vector<1x2x2xf32>,
    %c4_174 = arith.constant 4 : index
    %c0_175 = arith.constant 0 : index
    %c0_176 = arith.constant 0 : index
    %659 = vector.load %arg13[%c4_174, %c0_175, %c0_176] : memref<5x2x2xf32, #tpu.memory_space<vmem>>, vector<1x2x2xf32>
    %660 = vector.shape_cast %659 : vector<1x2x2xf32> to vector<2x2xf32>
    %661 = vector.shape_cast %648 : vector<2x2xf32> to vector<1x2x2xf32>
    tpu.vector_store %arg13[%c4_174, %c0_175, %c0_176], %661 {strides = array<i32>} : memref<5x2x2xf32, #tpu.memory_space<vmem>>, vector<1x2x2xf32>,
    return
  }
  func.func @transform_0(%arg0: i32) -> i32 {
    %c0_i32 = arith.constant 0 : i32
    %c0_i32_0 = arith.constant 0 : i32
    return %c0_i32 : i32
  }
  func.func @transform_1(%arg0: i32) -> (i32, i32, i32) {
    %c0_i32 = arith.constant 0 : i32
    %c0_i32_0 = arith.constant 0 : i32
    %c0_i32_1 = arith.constant 0 : i32
    %c0_i32_2 = arith.constant 0 : i32
    return %c0_i32, %c0_i32_0, %c0_i32_1 : i32, i32, i32
  }
  func.func @transform_2(%arg0: i32) -> (i32, i32) {
    %c0_i32 = arith.constant 0 : i32
    %c0_i32_0 = arith.constant 0 : i32
    %c0_i32_1 = arith.constant 0 : i32
    return %c0_i32, %c0_i32_0 : i32, i32
  }
  func.func @transform_3(%arg0: i32) -> (i32, i32) {
    %c0_i32 = arith.constant 0 : i32
    %c0_i32_0 = arith.constant 0 : i32
    %c0_i32_1 = arith.constant 0 : i32
    return %c0_i32, %c0_i32_0 : i32, i32
  }
  func.func @transform_4(%arg0: i32) -> (i32, i32) {
    %c0_i32 = arith.constant 0 : i32
    %c0_i32_0 = arith.constant 0 : i32
    %c0_i32_1 = arith.constant 0 : i32
    return %c0_i32, %c0_i32_0 : i32, i32
  }
  func.func @transform_5(%arg0: i32) -> (i32, i32) {
    %c0_i32 = arith.constant 0 : i32
    %c0_i32_0 = arith.constant 0 : i32
    %c0_i32_1 = arith.constant 0 : i32
    return %c0_i32, %c0_i32_0 : i32, i32
  }
  func.func @transform_6(%arg0: i32) -> (i32, i32) {
    %c0_i32 = arith.constant 0 : i32
    %c0_i32_0 = arith.constant 0 : i32
    %c0_i32_1 = arith.constant 0 : i32
    return %c0_i32, %c0_i32_0 : i32, i32
  }
  func.func @transform_7(%arg0: i32) -> (i32, i32) {
    %c0_i32 = arith.constant 0 : i32
    %c0_i32_0 = arith.constant 0 : i32
    %c0_i32_1 = arith.constant 0 : i32
    return %c0_i32, %c0_i32_0 : i32, i32
  }
  func.func @transform_8(%arg0: i32) -> (i32, i32, i32) {
    %c0_i32 = arith.constant 0 : i32
    %c0_i32_0 = arith.constant 0 : i32
    %c0_i32_1 = arith.constant 0 : i32
    %c0_i32_2 = arith.constant 0 : i32
    return %c0_i32, %c0_i32_0, %c0_i32_1 : i32, i32, i32
  }
  func.func @transform_9(%arg0: i32) -> (i32, i32) {
    %c0_i32 = arith.constant 0 : i32
    %c0_i32_0 = arith.constant 0 : i32
    %c0_i32_1 = arith.constant 0 : i32
    return %c0_i32, %c0_i32_0 : i32, i32
  }
  func.func @transform_10(%arg0: i32) -> (i32, i32, i32) {
    %c0_i32 = arith.constant 0 : i32
    %c0_i32_0 = arith.constant 0 : i32
    %c0_i32_1 = arith.constant 0 : i32
    %c0_i32_2 = arith.constant 0 : i32
    return %c0_i32, %c0_i32_0, %c0_i32_1 : i32, i32, i32
  }
  func.func @transform_11(%arg0: i32) -> (i32, i32, i32) {
    %c0_i32 = arith.constant 0 : i32
    %c0_i32_0 = arith.constant 0 : i32
    %c0_i32_1 = arith.constant 0 : i32
    %c0_i32_2 = arith.constant 0 : i32
    return %c0_i32, %c0_i32_0, %c0_i32_1 : i32, i32, i32
  }
  func.func @transform_12(%arg0: i32) -> (i32, i32, i32) {
    %c0_i32 = arith.constant 0 : i32
    %c0_i32_0 = arith.constant 0 : i32
    %c0_i32_1 = arith.constant 0 : i32
    %c0_i32_2 = arith.constant 0 : i32
    return %c0_i32, %c0_i32_0, %c0_i32_1 : i32, i32, i32
  }
}

</mosaic_0001>

<llo_original>
// kernel: tpu_custom_call.1
$region0: #{tpu_custom_call.1}
  #allocation0 [shape = 'u32[]', space=smem, size = 0x4, offset = 0x4, fixed_abs, tag = 'smem constant byte address 0x4 - core index']
  #allocation1 [shape = 'u32[144,128]{1,0:T(1,128)}', space=vmem, size = 0x12000, scoped, tag = 'internal scratch']
  %s0 = inlined_call_operand.vmem [shape: f32[8], index: 0, kind: input, shape index: {}]
  %s1 = inlined_call_operand.vmem [shape: f32[2,31,1], index: 1, kind: input, shape index: {}]
  %s2 = inlined_call_operand.vmem [shape: f32[2,32], index: 2, kind: input, shape index: {}]
  %s3 = inlined_call_operand.vmem [shape: f32[1,32], index: 3, kind: input, shape index: {}]
  %s4 = inlined_call_operand.vmem [shape: f32[64,128], index: 4, kind: input, shape index: {}]
  %s5 = inlined_call_operand.vmem [shape: f32[1,128], index: 5, kind: input, shape index: {}]
  %s6 = inlined_call_operand.vmem [shape: f32[256,256], index: 6, kind: input, shape index: {}]
  %s7 = inlined_call_operand.vmem [shape: f32[1,256], index: 7, kind: input, shape index: {}]
  %s8 = inlined_call_operand.vmem [shape: f32[3,256,2], index: 8, kind: input, shape index: {}]
  %s9 = inlined_call_operand.vmem [shape: f32[1,2], index: 9, kind: input, shape index: {}]
  %s10 = inlined_call_operand.vmem [shape: f32[5,2,2], index: 10, kind: output, shape index: {0}]
  %s11 = inlined_call_operand.vmem [shape: f32[5,2,2], index: 11, kind: output, shape index: {1}]
  %s12 = inlined_call_operand.vmem [shape: f32[5,2,2], index: 12, kind: output, shape index: {2}]
  %13 = xla_tuple %s10, %s11, %s12
  %s14 = sld [smem:[#allocation0]]
  $region70: #{tpu_custom_call.1} parent=0
    _
  %s16 = ssub.s32 1, %s14
  %s17 = scalar_select 0, %s16, %s14
  $region1: #{tpu_custom_call.1} parent=0
    #allocation2 [shape = 'u8[512]{0}', space=smem, size = 0x200, scoped, tag = 'input window, operand 0, single buffered']
    #allocation3 [shape = 's32[1]{0}', space=sflag, size = 0x4, scoped, tag = 'scoped memory for tpu_custom_call.1']
    %18 = vsyncpa [#allocation3], 0
    // Predicated region
    $region2: #{tpu_custom_call.1} parent=1 // pred_check
      _
    $region3: #{tpu_custom_call.1} parent=1 // pred_check_branch
      %20 = sbr.rel (0) target = $region5
    $region4: #{tpu_custom_call.1} parent=1 // pred_region
      %s22 = ssub.s32 16, 16
      %23 = vsyncadd [#allocation3], %s22
      %s25 = sshll.u32 %s0, 4
      %s26 = int_to_ptr.vmem [resolvable:$true] %s25
      %28 = dma.vmem_to_smem %s26, 16, [#allocation2], [#allocation3]
    $region5: #{tpu_custom_call.1} parent=1 // pred_fallthru
      _
    // Predicated region
    $region6: #{tpu_custom_call.1} parent=1 // pred_check
      _
    $region7: #{tpu_custom_call.1} parent=1 // pred_check_branch
      %30 = sbr.rel (0) target = $region9
    $region8: #{tpu_custom_call.1} parent=1 // pred_region
      _
    $region9: #{tpu_custom_call.1} parent=1 // pred_fallthru
      _
    // Predicated region
    $region10: #{tpu_custom_call.1} parent=1 // pred_check
      _
    $region11: #{tpu_custom_call.1} parent=1 // pred_check_branch
      %32 = sbr.rel (0) target = $region13
    $region12: #{tpu_custom_call.1} parent=1 // pred_region
      _
    $region13: #{tpu_custom_call.1} parent=1 // pred_fallthru
      _
    // Predicated region
    $region14: #{tpu_custom_call.1} parent=1 // pred_check
      _
    $region15: #{tpu_custom_call.1} parent=1 // pred_check_branch
      %34 = sbr.rel (0) target = $region17
    $region16: #{tpu_custom_call.1} parent=1 // pred_region
      _
    $region17: #{tpu_custom_call.1} parent=1 // pred_fallthru
      _
    // Predicated region
    $region18: #{tpu_custom_call.1} parent=1 // pred_check
      _
    $region19: #{tpu_custom_call.1} parent=1 // pred_check_branch
      %36 = sbr.rel (0) target = $region21
    $region20: #{tpu_custom_call.1} parent=1 // pred_region
      _
    $region21: #{tpu_custom_call.1} parent=1 // pred_fallthru
      _
    // Predicated region
    $region22: #{tpu_custom_call.1} parent=1 // pred_check
      _
    $region23: #{tpu_custom_call.1} parent=1 // pred_check_branch
      %38 = sbr.rel (0) target = $region25
    $region24: #{tpu_custom_call.1} parent=1 // pred_region
      _
    $region25: #{tpu_custom_call.1} parent=1 // pred_fallthru
      _
    // Predicated region
    $region26: #{tpu_custom_call.1} parent=1 // pred_check
      _
    $region27: #{tpu_custom_call.1} parent=1 // pred_check_branch
      %40 = sbr.rel (0) target = $region29
    $region28: #{tpu_custom_call.1} parent=1 // pred_region
      _
    $region29: #{tpu_custom_call.1} parent=1 // pred_fallthru
      _
    // Predicated region
    $region30: #{tpu_custom_call.1} parent=1 // pred_check
      _
    $region31: #{tpu_custom_call.1} parent=1 // pred_check_branch
      %42 = sbr.rel (0) target = $region33
    $region32: #{tpu_custom_call.1} parent=1 // pred_region
      _
    $region33: #{tpu_custom_call.1} parent=1 // pred_fallthru
      _
    // Predicated region
    $region34: #{tpu_custom_call.1} parent=1 // pred_check
      _
    $region35: #{tpu_custom_call.1} parent=1 // pred_check_branch
      %44 = sbr.rel (0) target = $region37
    $region36: #{tpu_custom_call.1} parent=1 // pred_region
      _
    $region37: #{tpu_custom_call.1} parent=1 // pred_fallthru
      _
    // Predicated region
    $region38: #{tpu_custom_call.1} parent=1 // pred_check
      _
    $region39: #{tpu_custom_call.1} parent=1 // pred_check_branch
      %46 = sbr.rel (0) target = $region41
    $region40: #{tpu_custom_call.1} parent=1 // pred_region
      _
    $region41: #{tpu_custom_call.1} parent=1 // pred_fallthru
      _
    // Predicated region
    $region42: #{tpu_custom_call.1} parent=1 // pred_check
      _
    $region43: #{tpu_custom_call.1} parent=1 // pred_check_branch
      %48 = sbr.rel (0) target = $region45
    $region44: #{tpu_custom_call.1} parent=1 // pred_region
      %49 = dma.done [#allocation3], 16
    $region45: #{tpu_custom_call.1} parent=1 // pred_fallthru
      _
    %50 = sfence
    %s51 = sld [smem:[#allocation2]]
    %s52 = sld [smem:[#allocation2 + $0x1]]
    %s53 = sld [smem:[#allocation2 + $0x2]]
    %s54 = sld [smem:[#allocation2 + $0x3]]
    %s55 = sld [smem:[#allocation2 + $0x4]]
    %s56 = sld [smem:[#allocation2 + $0x5]]
    %s57 = sld [smem:[#allocation2 + $0x6]]
    %s58 = sld [smem:[#allocation2 + $0x7]]
    %v59 = vlaneseq
    %v60 = vshrl.u32 %v59, 7
    %v61 = vadd.s32 %v60, 8
    %v62 = vadd.s32 %v60, 16
    %v63 = vadd.s32 %v60, 24
    %v64 = vlaneseq
    %v65 = vand.u32 %v64, 127
    %v66 = vmul.u32 %v60, 2
    %v67 = vmul.u32 %v61, 2
    %v68 = vmul.u32 %v62, 2
    %v69 = vmul.u32 %v63, 2
    %vm70 = vcmp.eq.s32.totalorder %v65, %v66
    %vm71 = vcmp.eq.s32.totalorder %v65, %v67
    %vm72 = vcmp.eq.s32.totalorder %v65, %v68
    %vm73 = vcmp.eq.s32.totalorder %v65, %v69
    %v74 = vsel %vm70, 1, 0
    %v75 = vsel %vm71, 1, 0
    %v76 = vsel %vm72, 1, 0
    %v77 = vsel %vm73, 1, 0
    %v78 = vcvt.s32.f32 %v74
    %v79 = vcvt.s32.f32 %v75
    %v80 = vcvt.s32.f32 %v76
    %v81 = vcvt.s32.f32 %v77
    %v82 = vld [vmem:[%s4] sm:$0xff]
    %v83 = vld [vmem:[%s4 + $0x8] sm:$0xff]
    %v84 = vld [vmem:[%s4 + $0x10] sm:$0xff]
    %v85 = vld [vmem:[%s4 + $0x18] sm:$0xff]
    %v86 = vld [vmem:[%s4 + $0x20] sm:$0xff]
    %v87 = vld [vmem:[%s4 + $0x28] sm:$0xff]
    %v88 = vld [vmem:[%s4 + $0x30] sm:$0xff]
    %v89 = vld [vmem:[%s4 + $0x38] sm:$0xff]
    %v90 = vld [vmem:[%s6] sm:$0xff]
    %v91 = vld [vmem:[%s6 + $0x8] sm:$0xff]
    %v92 = vld [vmem:[%s6 + $0x10] sm:$0xff]
    %v93 = vld [vmem:[%s6 + $0x18] sm:$0xff]
    %v94 = vld [vmem:[%s6 + $0x20] sm:$0xff]
    %v95 = vld [vmem:[%s6 + $0x28] sm:$0xff]
    %v96 = vld [vmem:[%s6 + $0x30] sm:$0xff]
    %v97 = vld [vmem:[%s6 + $0x38] sm:$0xff]
    %v98 = vld [vmem:[%s6 + $0x40] sm:$0xff]
    %v99 = vld [vmem:[%s6 + $0x48] sm:$0xff]
    %v100 = vld [vmem:[%s6 + $0x50] sm:$0xff]
    %v101 = vld [vmem:[%s6 + $0x58] sm:$0xff]
    %v102 = vld [vmem:[%s6 + $0x60] sm:$0xff]
    %v103 = vld [vmem:[%s6 + $0x68] sm:$0xff]
    %v104 = vld [vmem:[%s6 + $0x70] sm:$0xff]
    %v105 = vld [vmem:[%s6 + $0x78] sm:$0xff]
    %v106 = vld [vmem:[%s6 + $0x80] sm:$0xff]
    %v107 = vld [vmem:[%s6 + $0x88] sm:$0xff]
    %v108 = vld [vmem:[%s6 + $0x90] sm:$0xff]
    %v109 = vld [vmem:[%s6 + $0x98] sm:$0xff]
    %v110 = vld [vmem:[%s6 + $0xa0] sm:$0xff]
    %v111 = vld [vmem:[%s6 + $0xa8] sm:$0xff]
    %v112 = vld [vmem:[%s6 + $0xb0] sm:$0xff]
    %v113 = vld [vmem:[%s6 + $0xb8] sm:$0xff]
    %v114 = vld [vmem:[%s6 + $0xc0] sm:$0xff]
    %v115 = vld [vmem:[%s6 + $0xc8] sm:$0xff]
    %v116 = vld [vmem:[%s6 + $0xd0] sm:$0xff]
    %v117 = vld [vmem:[%s6 + $0xd8] sm:$0xff]
    %v118 = vld [vmem:[%s6 + $0xe0] sm:$0xff]
    %v119 = vld [vmem:[%s6 + $0xe8] sm:$0xff]
    %v120 = vld [vmem:[%s6 + $0xf0] sm:$0xff]
    %v121 = vld [vmem:[%s6 + $0xf8] sm:$0xff]
    %v122 = vld [vmem:[%s6 + $0x100] sm:$0xff]
    %v123 = vld [vmem:[%s6 + $0x108] sm:$0xff]
    %v124 = vld [vmem:[%s6 + $0x110] sm:$0xff]
    %v125 = vld [vmem:[%s6 + $0x118] sm:$0xff]
    %v126 = vld [vmem:[%s6 + $0x120] sm:$0xff]
    %v127 = vld [vmem:[%s6 + $0x128] sm:$0xff]
    %v128 = vld [vmem:[%s6 + $0x130] sm:$0xff]
    %v129 = vld [vmem:[%s6 + $0x138] sm:$0xff]
    %v130 = vld [vmem:[%s6 + $0x140] sm:$0xff]
    %v131 = vld [vmem:[%s6 + $0x148] sm:$0xff]
    %v132 = vld [vmem:[%s6 + $0x150] sm:$0xff]
    %v133 = vld [vmem:[%s6 + $0x158] sm:$0xff]
    %v134 = vld [vmem:[%s6 + $0x160] sm:$0xff]
    %v135 = vld [vmem:[%s6 + $0x168] sm:$0xff]
    %v136 = vld [vmem:[%s6 + $0x170] sm:$0xff]
    %v137 = vld [vmem:[%s6 + $0x178] sm:$0xff]
    %v138 = vld [vmem:[%s6 + $0x180] sm:$0xff]
    %v139 = vld [vmem:[%s6 + $0x188] sm:$0xff]
    %v140 = vld [vmem:[%s6 + $0x190] sm:$0xff]
    %v141 = vld [vmem:[%s6 + $0x198] sm:$0xff]
    %v142 = vld [vmem:[%s6 + $0x1a0] sm:$0xff]
    %v143 = vld [vmem:[%s6 + $0x1a8] sm:$0xff]
    %v144 = vld [vmem:[%s6 + $0x1b0] sm:$0xff]
    %v145 = vld [vmem:[%s6 + $0x1b8] sm:$0xff]
    %v146 = vld [vmem:[%s6 + $0x1c0] sm:$0xff]
    %v147 = vld [vmem:[%s6 + $0x1c8] sm:$0xff]
    %v148 = vld [vmem:[%s6 + $0x1d0] sm:$0xff]
    %v149 = vld [vmem:[%s6 + $0x1d8] sm:$0xff]
    %v150 = vld [vmem:[%s6 + $0x1e0] sm:$0xff]
    %v151 = vld [vmem:[%s6 + $0x1e8] sm:$0xff]
    %v152 = vld [vmem:[%s6 + $0x1f0] sm:$0xff]
    %v153 = vld [vmem:[%s6 + $0x1f8] sm:$0xff]
    %v154 = vld [vmem:[%s5] sm:$0x1]
    %v155 = vld [vmem:[%s7] sm:$0x3]
    %v156 = vld [vmem:[%s9] sm:$0x1]
    %v157 = vld [vmem:[%s1] sm:$0xff]
    %v158 = vld [vmem:[%s1 + $0x8] sm:$0xff]
    %v159 = vld [vmem:[%s1 + $0x10] sm:$0xff]
    %v160 = vld [vmem:[%s1 + $0x18] sm:$0x3f]
    %v161 = vld [vmem:[%s1 + $0x1] sm:$0xff]
    %v162 = vld [vmem:[%s1 + $0x9] sm:$0xff]
    %v163 = vld [vmem:[%s1 + $0x11] sm:$0xff]
    %v164 = vld [vmem:[%s1 + $0x19] sm:$0x3f]
    %v165 = vld [vmem:[%s2] sm:$0x1]
    %167 = vset.pattern.permute.xlu0 0
    %168 = vperm.xlu0 %167, %v157
    %v169 = vpop.permute.xlu0 %168
    %172 = vset.pattern.permute.xlu0 0
    %173 = vperm.xlu0 %172, %v158
    %v174 = vpop.permute.xlu0 %173
    %177 = vset.pattern.permute.xlu0 0
    %178 = vperm.xlu0 %177, %v159
    %v179 = vpop.permute.xlu0 %178
    %182 = vset.pattern.permute.xlu0 0
    %183 = vperm.xlu0 %182, %v160
    %v184 = vpop.permute.xlu0 %183
    %v186 = vlaneseq
    %v187 = vshrl.u32 %v186, 7
    %v188 = vsub.s32 0, %v187
    %v189 = vrot.slane %v165, %v188
    %v190 = vmul.f32 %v169, %v189
    %v191 = vmul.f32 %v174, %v189
    %v192 = vmul.f32 %v179, %v189
    %v193 = vmul.f32 %v184, %v189
    %v194 = vld [vmem:[%s2 + $0x1] sm:$0x1]
    %196 = vset.pattern.permute.xlu0 0
    %197 = vperm.xlu0 %196, %v161
    %v198 = vpop.permute.xlu0 %197
    %201 = vset.pattern.permute.xlu0 0
    %202 = vperm.xlu0 %201, %v162
    %v203 = vpop.permute.xlu0 %202
    %206 = vset.pattern.permute.xlu0 0
    %207 = vperm.xlu0 %206, %v163
    %v208 = vpop.permute.xlu0 %207
    %211 = vset.pattern.permute.xlu0 0
    %212 = vperm.xlu0 %211, %v164
    %v213 = vpop.permute.xlu0 %212
    %v215 = vlaneseq
    %v216 = vshrl.u32 %v215, 7
    %v217 = vsub.s32 0, %v216
    %v218 = vrot.slane %v194, %v217
    %v219 = vmul.f32 %v198, %v218
    %v220 = vmul.f32 %v203, %v218
    %v221 = vmul.f32 %v208, %v218
    %v222 = vmul.f32 %v213, %v218
    %v223 = vadd.f32 %v190, %v219
    %v224 = vadd.f32 %v191, %v220
    %v225 = vadd.f32 %v192, %v221
    %v226 = vadd.f32 %v193, %v222
    %v227 = vld [vmem:[%s3] sm:$0x1]
    %v229 = vlaneseq
    %v230 = vshrl.u32 %v229, 7
    %v231 = vsub.s32 0, %v230
    %v232 = vrot.slane %v227, %v231
    %v234 = vadd.f32 %v223, %v232
    %v235 = vadd.f32 %v224, %v232
    %v236 = vadd.f32 %v225, %v232
    %v237 = vadd.f32 %v226, %v232
    %s238 = scalar_lea.vmem %s1, 32
    %v239 = vld [vmem:[%s238] sm:$0xff]
    %v240 = vld [vmem:[%s238 + $0x8] sm:$0xff]
    %v241 = vld [vmem:[%s238 + $0x10] sm:$0xff]
    %v242 = vld [vmem:[%s238 + $0x18] sm:$0x3f]
    %v243 = vld [vmem:[%s238 + $0x1] sm:$0xff]
    %v244 = vld [vmem:[%s238 + $0x9] sm:$0xff]
    %v245 = vld [vmem:[%s238 + $0x11] sm:$0xff]
    %v246 = vld [vmem:[%s238 + $0x19] sm:$0x3f]
    %248 = vset.pattern.permute.xlu0 0
    %249 = vperm.xlu0 %248, %v239
    %v250 = vpop.permute.xlu0 %249
    %253 = vset.pattern.permute.xlu0 0
    %254 = vperm.xlu0 %253, %v240
    %v255 = vpop.permute.xlu0 %254
    %258 = vset.pattern.permute.xlu0 0
    %259 = vperm.xlu0 %258, %v241
    %v260 = vpop.permute.xlu0 %259
    %263 = vset.pattern.permute.xlu0 0
    %264 = vperm.xlu0 %263, %v242
    %v265 = vpop.permute.xlu0 %264
    %v267 = vmul.f32 %v250, %v189
    %v268 = vmul.f32 %v255, %v189
    %v269 = vmul.f32 %v260, %v189
    %v270 = vmul.f32 %v265, %v189
    %272 = vset.pattern.permute.xlu0 0
    %273 = vperm.xlu0 %272, %v243
    %v274 = vpop.permute.xlu0 %273
    %277 = vset.pattern.permute.xlu0 0
    %278 = vperm.xlu0 %277, %v244
    %v279 = vpop.permute.xlu0 %278
    %282 = vset.pattern.permute.xlu0 0
    %283 = vperm.xlu0 %282, %v245
    %v284 = vpop.permute.xlu0 %283
    %287 = vset.pattern.permute.xlu0 0
    %288 = vperm.xlu0 %287, %v246
    %v289 = vpop.permute.xlu0 %288
    %v291 = vmul.f32 %v274, %v218
    %v292 = vmul.f32 %v279, %v218
    %v293 = vmul.f32 %v284, %v218
    %v294 = vmul.f32 %v289, %v218
    %v295 = vadd.f32 %v267, %v291
    %v296 = vadd.f32 %v268, %v292
    %v297 = vadd.f32 %v269, %v293
    %v298 = vadd.f32 %v270, %v294
    %v299 = vadd.f32 %v295, %v232
    %v300 = vadd.f32 %v296, %v232
    %v301 = vadd.f32 %v297, %v232
    %v302 = vadd.f32 %v298, %v232
    %vm307 = vcmask 1045504
    %v308 = vrot.slane %v299, 2
    %v309 = vrot.slane %v300, 2
    %v310 = vsel %vm307, %v308, %v309
    %v311 = vrot.slane %v301, 2
    %v312 = vsel %vm307, %v309, %v311
    %v313 = vrot.slane %v302, 2
    %v314 = vsel %vm307, %v311, %v313
    %v320 = vsel %vm307, %v237, %v308
    %vm325 = vcmask 1046528
    %v326 = vrot.slane %v234, 1
    %v327 = vrot.slane %v235, 1
    %v328 = vsel %vm325, %v326, %v327
    %v329 = vrot.slane %v236, 1
    %v330 = vsel %vm325, %v327, %v329
    %v331 = vrot.slane %v320, 1
    %v332 = vsel %vm325, %v329, %v331
    %v333 = vrot.slane %v310, 1
    %v334 = vsel %vm325, %v331, %v333
    %v335 = vrot.slane %v312, 1
    %v336 = vsel %vm325, %v333, %v335
    %v337 = vrot.slane %v314, 1
    %v338 = vsel %vm325, %v335, %v337
    %v339 = vrot.slane %v313, 1
    %v340 = vsel %vm325, %v337, %v339
    %v349 = vmax.f32 %v234, %v328
    %v350 = vmax.f32 %v235, %v330
    %v351 = vmax.f32 %v236, %v332
    %v352 = vmax.f32 %v320, %v334
    %v353 = vmax.f32 %v310, %v336
    %v354 = vmax.f32 %v312, %v338
    %v355 = vmax.f32 %v314, %v340
    %v356 = vmax.f32 %v313, %v339
    %vm357 = vcmask 482304
    %v359 = vsel %vm357, %v78, 0
    %v362 = vsel %vm357, %v79, 0
    %v365 = vsel %vm357, %v80, 0
    %v368 = vsel %vm357, %v81, 0
    %vm370 = vcmask 1042432
    %v372 = vsel %vm370, %v356, 0
    %374 = vmatprep.subr.mxu0 0.0
    %375 = vmatpush1.msra.mxu0 %v349
    %376 = vmatprep.subr.mxu0 0.0
    %377 = vmatpush1.msra.mxu0 %v350
    %378 = vmatprep.subr.mxu0 0.0
    %379 = vmatpush1.msra.mxu0 %v351
    %380 = vmatprep.subr.mxu0 0.0
    %381 = vmatpush1.msra.mxu0 %v352
    %382 = vmatprep.subr.mxu0 0.0
    %383 = vmatpush1.msra.mxu0 %v353
    %384 = vmatprep.subr.mxu0 0.0
    %385 = vmatpush1.msra.mxu0 %v354
    %386 = vmatprep.subr.mxu0 0.0
    %387 = vmatpush1.msra.mxu0 %v355
    %388 = vmatprep.subr.mxu0 0.0
    %389 = vmatpush1.msra.mxu0 %v372
    %390 = vmatprep.subr.mxu0 0.0
    %391 = vmatpush1.msra.mxu0 0.0
    %392 = vmatprep.subr.mxu0 0.0
    %393 = vmatpush1.msra.mxu0 0.0
    %394 = vmatprep.subr.mxu0 0.0
    %395 = vmatpush1.msra.mxu0 0.0
    %396 = vmatprep.subr.mxu0 0.0
    %397 = vmatpush1.msra.mxu0 0.0
    %398 = vmatprep.subr.mxu0 0.0
    %399 = vmatpush1.msra.mxu0 0.0
    %400 = vmatprep.subr.mxu0 0.0
    %401 = vmatpush1.msra.mxu0 0.0
    %402 = vmatprep.subr.mxu0 0.0
    %403 = vmatpush1.msra.mxu0 0.0
    %404 = vmatprep.subr.mxu0 0.0
    %405 = vmatpush1.msra.mxu0 0.0
    %406 = vmatprep.subr.mxu0 0.0
    %407 = vmatpush1.msra.mxu0 0.0
    %408 = vmatprep.subr.mxu0 0.0
    %409 = vmatpush1.msra.mxu0 0.0
    %410 = vmatprep.subr.mxu0 0.0
    %411 = vmatpush1.msra.mxu0 0.0
    %412 = vmatprep.subr.mxu0 0.0
    %413 = vmatpush1.msra.mxu0 0.0
    %414 = vmatprep.subr.mxu0 0.0
    %415 = vmatpush1.msra.mxu0 0.0
    %416 = vmatprep.subr.mxu0 0.0
    %417 = vmatpush1.msra.mxu0 0.0
    %418 = vmatprep.subr.mxu0 0.0
    %419 = vmatpush1.msra.mxu0 0.0
    %420 = vmatprep.subr.mxu0 0.0
    %421 = vmatpush1.msra.mxu0 0.0
    %422 = vmatprep.subr.mxu0 0.0
    %423 = vmatpush1.msra.mxu0 0.0
    %424 = vmatprep.subr.mxu0 0.0
    %425 = vmatpush1.msra.mxu0 0.0
    %426 = vmatprep.subr.mxu0 0.0
    %427 = vmatpush1.msra.mxu0 0.0
    %428 = vmatprep.subr.mxu0 0.0
    %429 = vmatpush1.msra.mxu0 0.0
    %430 = vmatprep.subr.mxu0 0.0
    %431 = vmatpush1.msra.mxu0 0.0
    %432 = vmatprep.subr.mxu0 0.0
    %433 = vmatpush1.msra.mxu0 0.0
    %434 = vmatprep.subr.mxu0 0.0
    %435 = vmatpush1.msra.mxu0 0.0
    %436 = vmatprep.subr.mxu0 0.0
    %437 = vmatpush1.msra.mxu0 0.0
    %438 = vmatprep.mubr.f32.mxu0 0.0
    %439 = vmatmul.mubr.f32.gmra.mrb[0].mxu0 %v359
    %v440 = vpop.f32.mrb[0].mxu0
    %v441 = vadd.f32 0.0, %v440
    %v442 = vpop.f32.mrb[0].mxu0
    %443 = vmatprep.mubr.f32.mxu0 0.0
    %444 = vmatmul.mubr.f32.gmra.mrb[0].mxu0 %v362
    %v445 = vpop.f32.mrb[0].mxu0
    %v446 = vadd.f32 0.0, %v445
    %v447 = vpop.f32.mrb[0].mxu0
    %448 = vmatprep.mubr.f32.mxu0 0.0
    %449 = vmatmul.mubr.f32.gmra.mrb[0].mxu0 %v365
    %v450 = vpop.f32.mrb[0].mxu0
    %v451 = vadd.f32 0.0, %v450
    %v452 = vpop.f32.mrb[0].mxu0
    %453 = vmatprep.mubr.f32.mxu0 0.0
    %454 = vmatmul.mubr.f32.gmra.mrb[0].mxu0 %v368
    %v455 = vpop.f32.mrb[0].mxu0
    %v456 = vadd.f32 0.0, %v455
    %v457 = vpop.f32.mrb[0].mxu0
    %458 = vdwg.mxu0
    %v459 = vstv %s55
    %vm460 = vcmp.gt.f32.partialorder 0.0, %v459
    %v461 = vsel %vm460, 1, 0
    %v462 = vcvt.s32.f32 %v461
    %v463 = vstv %s51
    %v464 = vmul.f32 %v463, 0.0
    %v465 = vadd.f32 %v464, %v441
    %v466 = vadd.f32 %v464, %v446
    %v467 = vadd.f32 %v464, %v451
    %v468 = vadd.f32 %v464, %v456
    %v469 = vmul.f32 %v462, %v459
    %v470 = vsub.f32 %v465, %v469
    %v471 = vsub.f32 %v466, %v469
    %v472 = vsub.f32 %v467, %v469
    %v473 = vsub.f32 %v468, %v469
    %vm474 = vcmp.gt.f32.partialorder %v470, %v459
    %vm475 = vcmp.gt.f32.partialorder %v471, %v459
    %vm476 = vcmp.gt.f32.partialorder %v472, %v459
    %vm477 = vcmp.gt.f32.partialorder %v473, %v459
    %v478 = vsel %vm474, 1, 0
    %v479 = vsel %vm475, 1, 0
    %v480 = vsel %vm476, 1, 0
    %v481 = vsel %vm477, 1, 0
    %v482 = vcvt.s32.f32 %v478
    %v483 = vcvt.s32.f32 %v479
    %v484 = vcvt.s32.f32 %v480
    %v485 = vcvt.s32.f32 %v481
    %v489 = vrot.slane %v483, 1
    %v490 = vrot.slane %v484, 1
    %v491 = vsel %vm325, %v489, %v490
    %v492 = vrot.slane %v485, 1
    %v493 = vsel %vm325, %v490, %v492
    %v495 = vsel %vm307, %v483, %v491
    %v497 = vrot.slane %v482, 1
    %v498 = vsel %vm325, %v497, %v489
    %v500 = vrot.slane %v484, 2
    %v501 = vrot.slane %v485, 2
    %v502 = vsel %vm307, %v500, %v501
    %v504 = vsel %vm307, %v489, %v500
    %vm505 = vcmask 261120
    %v506 = vsel %vm505, %v498, 0
    %v509 = vsel %vm505, %v504, 0
    %v511 = vsel %vm505, %v502, 0
    %v513 = vsel %vm505, %v501, 0
    %515 = vmatprep.subr.mxu0 0.0
    %516 = vmatpush1.msra.mxu0 %v86
    %517 = vmatprep.subr.mxu0 0.0
    %518 = vmatpush1.msra.mxu0 %v87
    %519 = vmatprep.subr.mxu0 0.0
    %520 = vmatpush1.msra.mxu0 %v88
    %521 = vmatprep.subr.mxu0 0.0
    %522 = vmatpush1.msra.mxu0 %v89
    %523 = vmatprep.subr.mxu0 0.0
    %524 = vmatpush1.msra.mxu0 0.0
    %525 = vmatprep.subr.mxu0 0.0
    %526 = vmatpush1.msra.mxu0 0.0
    %527 = vmatprep.subr.mxu0 0.0
    %528 = vmatpush1.msra.mxu0 0.0
    %529 = vmatprep.subr.mxu0 0.0
    %530 = vmatpush1.msra.mxu0 0.0
    %531 = vmatprep.subr.mxu0 0.0
    %532 = vmatpush1.msra.mxu0 0.0
    %533 = vmatprep.subr.mxu0 0.0
    %534 = vmatpush1.msra.mxu0 0.0
    %535 = vmatprep.subr.mxu0 0.0
    %536 = vmatpush1.msra.mxu0 0.0
    %537 = vmatprep.subr.mxu0 0.0
    %538 = vmatpush1.msra.mxu0 0.0
    %539 = vmatprep.subr.mxu0 0.0
    %540 = vmatpush1.msra.mxu0 0.0
    %541 = vmatprep.subr.mxu0 0.0
    %542 = vmatpush1.msra.mxu0 0.0
    %543 = vmatprep.subr.mxu0 0.0
    %544 = vmatpush1.msra.mxu0 0.0
    %545 = vmatprep.subr.mxu0 0.0
    %546 = vmatpush1.msra.mxu0 0.0
    %547 = vmatprep.subr.mxu0 0.0
    %548 = vmatpush1.msra.mxu0 0.0
    %549 = vmatprep.subr.mxu0 0.0
    %550 = vmatpush1.msra.mxu0 0.0
    %551 = vmatprep.subr.mxu0 0.0
    %552 = vmatpush1.msra.mxu0 0.0
    %553 = vmatprep.subr.mxu0 0.0
    %554 = vmatpush1.msra.mxu0 0.0
    %555 = vmatprep.subr.mxu0 0.0
    %556 = vmatpush1.msra.mxu0 0.0
    %557 = vmatprep.subr.mxu0 0.0
    %558 = vmatpush1.msra.mxu0 0.0
    %559 = vmatprep.subr.mxu0 0.0
    %560 = vmatpush1.msra.mxu0 0.0
    %561 = vmatprep.subr.mxu0 0.0
    %562 = vmatpush1.msra.mxu0 0.0
    %563 = vmatprep.subr.mxu0 0.0
    %564 = vmatpush1.msra.mxu0 0.0
    %565 = vmatprep.subr.mxu0 0.0
    %566 = vmatpush1.msra.mxu0 0.0
    %567 = vmatprep.subr.mxu0 0.0
    %568 = vmatpush1.msra.mxu0 0.0
    %569 = vmatprep.subr.mxu0 0.0
    %570 = vmatpush1.msra.mxu0 0.0
    %571 = vmatprep.subr.mxu0 0.0
    %572 = vmatpush1.msra.mxu0 0.0
    %573 = vmatprep.subr.mxu0 0.0
    %574 = vmatpush1.msra.mxu0 0.0
    %575 = vmatprep.subr.mxu0 0.0
    %576 = vmatpush1.msra.mxu0 0.0
    %577 = vmatprep.subr.mxu0 0.0
    %578 = vmatpush1.msra.mxu0 0.0
    %579 = vmatprep.mubr.f32.mxu0 0.0
    %580 = vmatmul.mubr.f32.gmra.mrb[0].mxu0 %v506
    %v581 = vpop.f32.mrb[0].mxu0
    %v582 = vadd.f32 0.0, %v581
    %v583 = vpop.f32.mrb[0].mxu0
    %584 = vmatprep.mubr.f32.mxu0 0.0
    %585 = vmatmul.mubr.f32.gmra.mrb[0].mxu0 %v509
    %v586 = vpop.f32.mrb[0].mxu0
    %v587 = vadd.f32 0.0, %v586
    %v588 = vpop.f32.mrb[0].mxu0
    %589 = vmatprep.mubr.f32.mxu0 0.0
    %590 = vmatmul.mubr.f32.gmra.mrb[0].mxu0 %v511
    %v591 = vpop.f32.mrb[0].mxu0
    %v592 = vadd.f32 0.0, %v591
    %v593 = vpop.f32.mrb[0].mxu0
    %594 = vmatprep.mubr.f32.mxu0 0.0
    %595 = vmatmul.mubr.f32.gmra.mrb[0].mxu0 %v513
    %v596 = vpop.f32.mrb[0].mxu0
    %v597 = vadd.f32 0.0, %v596
    %v598 = vpop.f32.mrb[0].mxu0
    %599 = vdwg.mxu0
    %v600 = vsel %vm505, %v482, 0
    %v603 = vsel %vm505, %v495, 0
    %v605 = vsel %vm505, %v493, 0
    %v607 = vsel %vm505, %v492, 0
    %609 = vmatprep.subr.mxu0 0.0
    %610 = vmatpush1.msra.mxu0 %v82
    %611 = vmatprep.subr.mxu0 0.0
    %612 = vmatpush1.msra.mxu0 %v83
    %613 = vmatprep.subr.mxu0 0.0
    %614 = vmatpush1.msra.mxu0 %v84
    %615 = vmatprep.subr.mxu0 0.0
    %616 = vmatpush1.msra.mxu0 %v85
    %617 = vmatprep.subr.mxu0 0.0
    %618 = vmatpush1.msra.mxu0 0.0
    %619 = vmatprep.subr.mxu0 0.0
    %620 = vmatpush1.msra.mxu0 0.0
    %621 = vmatprep.subr.mxu0 0.0
    %622 = vmatpush1.msra.mxu0 0.0
    %623 = vmatprep.subr.mxu0 0.0
    %624 = vmatpush1.msra.mxu0 0.0
    %625 = vmatprep.subr.mxu0 0.0
    %626 = vmatpush1.msra.mxu0 0.0
    %627 = vmatprep.subr.mxu0 0.0
    %628 = vmatpush1.msra.mxu0 0.0
    %629 = vmatprep.subr.mxu0 0.0
    %630 = vmatpush1.msra.mxu0 0.0
    %631 = vmatprep.subr.mxu0 0.0
    %632 = vmatpush1.msra.mxu0 0.0
    %633 = vmatprep.subr.mxu0 0.0
    %634 = vmatpush1.msra.mxu0 0.0
    %635 = vmatprep.subr.mxu0 0.0
    %636 = vmatpush1.msra.mxu0 0.0
    %637 = vmatprep.subr.mxu0 0.0
    %638 = vmatpush1.msra.mxu0 0.0
    %639 = vmatprep.subr.mxu0 0.0
    %640 = vmatpush1.msra.mxu0 0.0
    %641 = vmatprep.subr.mxu0 0.0
    %642 = vmatpush1.msra.mxu0 0.0
    %643 = vmatprep.subr.mxu0 0.0
    %644 = vmatpush1.msra.mxu0 0.0
    %645 = vmatprep.subr.mxu0 0.0
    %646 = vmatpush1.msra.mxu0 0.0
    %647 = vmatprep.subr.mxu0 0.0
    %648 = vmatpush1.msra.mxu0 0.0
    %649 = vmatprep.subr.mxu0 0.0
    %650 = vmatpush1.msra.mxu0 0.0
    %651 = vmatprep.subr.mxu0 0.0
    %652 = vmatpush1.msra.mxu0 0.0
    %653 = vmatprep.subr.mxu0 0.0
    %654 = vmatpush1.msra.mxu0 0.0
    %655 = vmatprep.subr.mxu0 0.0
    %656 = vmatpush1.msra.mxu0 0.0
    %657 = vmatprep.subr.mxu0 0.0
    %658 = vmatpush1.msra.mxu0 0.0
    %659 = vmatprep.subr.mxu0 0.0
    %660 = vmatpush1.msra.mxu0 0.0
    %661 = vmatprep.subr.mxu0 0.0
    %662 = vmatpush1.msra.mxu0 0.0
    %663 = vmatprep.subr.mxu0 0.0
    %664 = vmatpush1.msra.mxu0 0.0
    %665 = vmatprep.subr.mxu0 0.0
    %666 = vmatpush1.msra.mxu0 0.0
    %667 = vmatprep.subr.mxu0 0.0
    %668 = vmatpush1.msra.mxu0 0.0
    %669 = vmatprep.subr.mxu0 0.0
    %670 = vmatpush1.msra.mxu0 0.0
    %671 = vmatprep.subr.mxu0 0.0
    %672 = vmatpush1.msra.mxu0 0.0
    %673 = vmatprep.mubr.f32.mxu0 0.0
    %674 = vmatmul.mubr.f32.gmra.mrb[0].mxu0 %v600
    %v675 = vpop.f32.mrb[0].mxu0
    %v676 = vadd.f32 %v582, %v675
    %v677 = vpop.f32.mrb[0].mxu0
    %678 = vmatprep.mubr.f32.mxu0 0.0
    %679 = vmatmul.mubr.f32.gmra.mrb[0].mxu0 %v603
    %v680 = vpop.f32.mrb[0].mxu0
    %v681 = vadd.f32 %v587, %v680
    %v682 = vpop.f32.mrb[0].mxu0
    %683 = vmatprep.mubr.f32.mxu0 0.0
    %684 = vmatmul.mubr.f32.gmra.mrb[0].mxu0 %v605
    %v685 = vpop.f32.mrb[0].mxu0
    %v686 = vadd.f32 %v592, %v685
    %v687 = vpop.f32.mrb[0].mxu0
    %688 = vmatprep.mubr.f32.mxu0 0.0
    %689 = vmatmul.mubr.f32.gmra.mrb[0].mxu0 %v607
    %v690 = vpop.f32.mrb[0].mxu0
    %v691 = vadd.f32 %v597, %v690
    %v692 = vpop.f32.mrb[0].mxu0
    %693 = vdwg.mxu0
    %v695 = vlaneseq
    %v696 = vshrl.u32 %v695, 7
    %v697 = vsub.s32 0, %v696
    %v698 = vrot.slane %v154, %v697
    %v700 = vadd.f32 %v676, %v698
    %v701 = vadd.f32 %v681, %v698
    %v702 = vadd.f32 %v686, %v698
    %v703 = vadd.f32 %v691, %v698
    %v708 = vrot.slane %v700, 1
    %v709 = vrot.slane %v701, 1
    %v710 = vsel %vm325, %v708, %v709
    %v711 = vrot.slane %v702, 1
    %v712 = vsel %vm325, %v709, %v711
    %v713 = vrot.slane %v703, 1
    %v714 = vsel %vm325, %v711, %v713
    %v719 = vmax.f32 %v700, %v710
    %v720 = vmax.f32 %v701, %v712
    %v721 = vmax.f32 %v702, %v714
    %v722 = vmax.f32 %v703, %v713
    %vm723 = vcmask 220160
    %v724 = vsel %vm723, %v78, 0
    %v726 = vsel %vm723, %v79, 0
    %v729 = vsel %vm370, %v722, 0
    %731 = vmatprep.subr.mxu0 0.0
    %732 = vmatpush1.msra.mxu0 %v719
    %733 = vmatprep.subr.mxu0 0.0
    %734 = vmatpush1.msra.mxu0 %v720
    %735 = vmatprep.subr.mxu0 0.0
    %736 = vmatpush1.msra.mxu0 %v721
    %737 = vmatprep.subr.mxu0 0.0
    %738 = vmatpush1.msra.mxu0 %v729
    %739 = vmatprep.subr.mxu0 0.0
    %740 = vmatpush1.msra.mxu0 0.0
    %741 = vmatprep.subr.mxu0 0.0
    %742 = vmatpush1.msra.mxu0 0.0
    %743 = vmatprep.subr.mxu0 0.0
    %744 = vmatpush1.msra.mxu0 0.0
    %745 = vmatprep.subr.mxu0 0.0
    %746 = vmatpush1.msra.mxu0 0.0
    %747 = vmatprep.subr.mxu0 0.0
    %748 = vmatpush1.msra.mxu0 0.0
    %749 = vmatprep.subr.mxu0 0.0
    %750 = vmatpush1.msra.mxu0 0.0
    %751 = vmatprep.subr.mxu0 0.0
    %752 = vmatpush1.msra.mxu0 0.0
    %753 = vmatprep.subr.mxu0 0.0
    %754 = vmatpush1.msra.mxu0 0.0
    %755 = vmatprep.subr.mxu0 0.0
    %756 = vmatpush1.msra.mxu0 0.0
    %757 = vmatprep.subr.mxu0 0.0
    %758 = vmatpush1.msra.mxu0 0.0
    %759 = vmatprep.subr.mxu0 0.0
    %760 = vmatpush1.msra.mxu0 0.0
    %761 = vmatprep.subr.mxu0 0.0
    %762 = vmatpush1.msra.mxu0 0.0
    %763 = vmatprep.subr.mxu0 0.0
    %764 = vmatpush1.msra.mxu0 0.0
    %765 = vmatprep.subr.mxu0 0.0
    %766 = vmatpush1.msra.mxu0 0.0
    %767 = vmatprep.subr.mxu0 0.0
    %768 = vmatpush1.msra.mxu0 0.0
    %769 = vmatprep.subr.mxu0 0.0
    %770 = vmatpush1.msra.mxu0 0.0
    %771 = vmatprep.subr.mxu0 0.0
    %772 = vmatpush1.msra.mxu0 0.0
    %773 = vmatprep.subr.mxu0 0.0
    %774 = vmatpush1.msra.mxu0 0.0
    %775 = vmatprep.subr.mxu0 0.0
    %776 = vmatpush1.msra.mxu0 0.0
    %777 = vmatprep.subr.mxu0 0.0
    %778 = vmatpush1.msra.mxu0 0.0
    %779 = vmatprep.subr.mxu0 0.0
    %780 = vmatpush1.msra.mxu0 0.0
    %781 = vmatprep.subr.mxu0 0.0
    %782 = vmatpush1.msra.mxu0 0.0
    %783 = vmatprep.subr.mxu0 0.0
    %784 = vmatpush1.msra.mxu0 0.0
    %785 = vmatprep.subr.mxu0 0.0
    %786 = vmatpush1.msra.mxu0 0.0
    %787 = vmatprep.subr.mxu0 0.0
    %788 = vmatpush1.msra.mxu0 0.0
    %789 = vmatprep.subr.mxu0 0.0
    %790 = vmatpush1.msra.mxu0 0.0
    %791 = vmatprep.subr.mxu0 0.0
    %792 = vmatpush1.msra.mxu0 0.0
    %793 = vmatprep.subr.mxu0 0.0
    %794 = vmatpush1.msra.mxu0 0.0
    %795 = vmatprep.mubr.f32.mxu0 0.0
    %796 = vmatmul.mubr.f32.gmra.mrb[0].mxu0 %v724
    %v797 = vpop.f32.mrb[0].mxu0
    %v798 = vadd.f32 0.0, %v797
    %v799 = vpop.f32.mrb[0].mxu0
    %800 = vmatprep.mubr.f32.mxu0 0.0
    %801 = vmatmul.mubr.f32.gmra.mrb[0].mxu0 %v726
    %v802 = vpop.f32.mrb[0].mxu0
    %v803 = vadd.f32 0.0, %v802
    %v804 = vpop.f32.mrb[0].mxu0
    %805 = vdwg.mxu0
    %v806 = vstv %s56
    %vm807 = vcmp.gt.f32.partialorder 0.0, %v806
    %v808 = vsel %vm807, 1, 0
    %v809 = vcvt.s32.f32 %v808
    %v810 = vstv %s52
    %v811 = vmul.f32 %v810, 0.0
    %v812 = vadd.f32 %v811, %v798
    %v813 = vadd.f32 %v811, %v803
    %v814 = vmul.f32 %v809, %v806
    %v815 = vsub.f32 %v812, %v814
    %v816 = vsub.f32 %v813, %v814
    %vm817 = vcmp.gt.f32.partialorder %v815, %v806
    %vm818 = vcmp.gt.f32.partialorder %v816, %v806
    %v819 = vsel %vm817, 1, 0
    %v820 = vsel %vm818, 1, 0
    %v821 = vcvt.s32.f32 %v819
    %v822 = vcvt.s32.f32 %v820
    %v825 = vrot.slane %v821, 1
    %v826 = vrot.slane %v822, 1
    %v827 = vsel %vm325, %v825, %v826
    %v830 = vsel %vm307, %v821, %v827
    %v832 = vrot.slane %v822, 2
    %v834 = vsel %vm307, %v825, %v832
    %835 = vmatprep.subr.mxu0 %v123
    %836 = vmatpush1.msra.mxu0 %v122
    %837 = vmatprep.subr.mxu0 %v125
    %838 = vmatpush1.msra.mxu0 %v124
    %839 = vmatprep.subr.mxu0 %v127
    %840 = vmatpush1.msra.mxu0 %v126
    %841 = vmatprep.subr.mxu0 %v129
    %842 = vmatpush1.msra.mxu0 %v128
    %843 = vmatprep.subr.mxu0 %v131
    %844 = vmatpush1.msra.mxu0 %v130
    %845 = vmatprep.subr.mxu0 %v133
    %846 = vmatpush1.msra.mxu0 %v132
    %847 = vmatprep.subr.mxu0 %v135
    %848 = vmatpush1.msra.mxu0 %v134
    %849 = vmatprep.subr.mxu0 %v137
    %850 = vmatpush1.msra.mxu0 %v136
    %851 = vmatprep.subr.mxu0 %v139
    %852 = vmatpush1.msra.mxu0 %v138
    %853 = vmatprep.subr.mxu0 %v141
    %854 = vmatpush1.msra.mxu0 %v140
    %855 = vmatprep.subr.mxu0 %v143
    %856 = vmatpush1.msra.mxu0 %v142
    %857 = vmatprep.subr.mxu0 %v145
    %858 = vmatpush1.msra.mxu0 %v144
    %859 = vmatprep.subr.mxu0 %v147
    %860 = vmatpush1.msra.mxu0 %v146
    %861 = vmatprep.subr.mxu0 %v149
    %862 = vmatpush1.msra.mxu0 %v148
    %863 = vmatprep.subr.mxu0 %v151
    %864 = vmatpush1.msra.mxu0 %v150
    %865 = vmatprep.subr.mxu0 %v153
    %866 = vmatpush1.msra.mxu0 %v152
    %867 = vmatprep.subr.mxu0 0.0
    %868 = vmatpush1.msra.mxu0 0.0
    %869 = vmatprep.subr.mxu0 0.0
    %870 = vmatpush1.msra.mxu0 0.0
    %871 = vmatprep.subr.mxu0 0.0
    %872 = vmatpush1.msra.mxu0 0.0
    %873 = vmatprep.subr.mxu0 0.0
    %874 = vmatpush1.msra.mxu0 0.0
    %875 = vmatprep.subr.mxu0 0.0
    %876 = vmatpush1.msra.mxu0 0.0
    %877 = vmatprep.subr.mxu0 0.0
    %878 = vmatpush1.msra.mxu0 0.0
    %879 = vmatprep.subr.mxu0 0.0
    %880 = vmatpush1.msra.mxu0 0.0
    %881 = vmatprep.subr.mxu0 0.0
    %882 = vmatpush1.msra.mxu0 0.0
    %883 = vmatprep.subr.mxu0 0.0
    %884 = vmatpush1.msra.mxu0 0.0
    %885 = vmatprep.subr.mxu0 0.0
    %886 = vmatpush1.msra.mxu0 0.0
    %887 = vmatprep.subr.mxu0 0.0
    %888 = vmatpush1.msra.mxu0 0.0
    %889 = vmatprep.subr.mxu0 0.0
    %890 = vmatpush1.msra.mxu0 0.0
    %891 = vmatprep.subr.mxu0 0.0
    %892 = vmatpush1.msra.mxu0 0.0
    %893 = vmatprep.subr.mxu0 0.0
    %894 = vmatpush1.msra.mxu0 0.0
    %895 = vmatprep.subr.mxu0 0.0
    %896 = vmatpush1.msra.mxu0 0.0
    %897 = vmatprep.subr.mxu0 0.0
    %898 = vmatpush1.msra.mxu0 0.0
    %899 = vmatprep.mubr.f32.mxu0 0.0
    %900 = vmatmul.mubr.f32.gmra.mrb[0].mxu0 %v834
    %v901 = vpop.f32.mrb[0].mxu0
    %v902 = vadd.f32 0.0, %v901
    %v903 = vpop.f32.mrb[0].mxu0
    %v904 = vadd.f32 0.0, %v903
    %905 = vmatprep.mubr.f32.mxu0 0.0
    %906 = vmatmul.mubr.f32.gmra.mrb[0].mxu0 %v832
    %v907 = vpop.f32.mrb[0].mxu0
    %v908 = vadd.f32 0.0, %v907
    %v909 = vpop.f32.mrb[0].mxu0
    %v910 = vadd.f32 0.0, %v909
    %911 = vdwg.mxu0
    %912 = vmatprep.subr.mxu0 %v91
    %913 = vmatpush1.msra.mxu0 %v90
    %914 = vmatprep.subr.mxu0 %v93
    %915 = vmatpush1.msra.mxu0 %v92
    %916 = vmatprep.subr.mxu0 %v95
    %917 = vmatpush1.msra.mxu0 %v94
    %918 = vmatprep.subr.mxu0 %v97
    %919 = vmatpush1.msra.mxu0 %v96
    %920 = vmatprep.subr.mxu0 %v99
    %921 = vmatpush1.msra.mxu0 %v98
    %922 = vmatprep.subr.mxu0 %v101
    %923 = vmatpush1.msra.mxu0 %v100
    %924 = vmatprep.subr.mxu0 %v103
    %925 = vmatpush1.msra.mxu0 %v102
    %926 = vmatprep.subr.mxu0 %v105
    %927 = vmatpush1.msra.mxu0 %v104
    %928 = vmatprep.subr.mxu0 %v107
    %929 = vmatpush1.msra.mxu0 %v106
    %930 = vmatprep.subr.mxu0 %v109
    %931 = vmatpush1.msra.mxu0 %v108
    %932 = vmatprep.subr.mxu0 %v111
    %933 = vmatpush1.msra.mxu0 %v110
    %934 = vmatprep.subr.mxu0 %v113
    %935 = vmatpush1.msra.mxu0 %v112
    %936 = vmatprep.subr.mxu0 %v115
    %937 = vmatpush1.msra.mxu0 %v114
    %938 = vmatprep.subr.mxu0 %v117
    %939 = vmatpush1.msra.mxu0 %v116
    %940 = vmatprep.subr.mxu0 %v119
    %941 = vmatpush1.msra.mxu0 %v118
    %942 = vmatprep.subr.mxu0 %v121
    %943 = vmatpush1.msra.mxu0 %v120
    %944 = vmatprep.subr.mxu0 0.0
    %945 = vmatpush1.msra.mxu0 0.0
    %946 = vmatprep.subr.mxu0 0.0
    %947 = vmatpush1.msra.mxu0 0.0
    %948 = vmatprep.subr.mxu0 0.0
    %949 = vmatpush1.msra.mxu0 0.0
    %950 = vmatprep.subr.mxu0 0.0
    %951 = vmatpush1.msra.mxu0 0.0
    %952 = vmatprep.subr.mxu0 0.0
    %953 = vmatpush1.msra.mxu0 0.0
    %954 = vmatprep.subr.mxu0 0.0
    %955 = vmatpush1.msra.mxu0 0.0
    %956 = vmatprep.subr.mxu0 0.0
    %957 = vmatpush1.msra.mxu0 0.0
    %958 = vmatprep.subr.mxu0 0.0
    %959 = vmatpush1.msra.mxu0 0.0
    %960 = vmatprep.subr.mxu0 0.0
    %961 = vmatpush1.msra.mxu0 0.0
    %962 = vmatprep.subr.mxu0 0.0
    %963 = vmatpush1.msra.mxu0 0.0
    %964 = vmatprep.subr.mxu0 0.0
    %965 = vmatpush1.msra.mxu0 0.0
    %966 = vmatprep.subr.mxu0 0.0
    %967 = vmatpush1.msra.mxu0 0.0
    %968 = vmatprep.subr.mxu0 0.0
    %969 = vmatpush1.msra.mxu0 0.0
    %970 = vmatprep.subr.mxu0 0.0
    %971 = vmatpush1.msra.mxu0 0.0
    %972 = vmatprep.subr.mxu0 0.0
    %973 = vmatpush1.msra.mxu0 0.0
    %974 = vmatprep.subr.mxu0 0.0
    %975 = vmatpush1.msra.mxu0 0.0
    %976 = vmatprep.mubr.f32.mxu0 0.0
    %977 = vmatmul.mubr.f32.gmra.mrb[0].mxu0 %v830
    %v978 = vpop.f32.mrb[0].mxu0
    %v979 = vadd.f32 %v902, %v978
    %v980 = vpop.f32.mrb[0].mxu0
    %v981 = vadd.f32 %v904, %v980
    %982 = vmatprep.mubr.f32.mxu0 0.0
    %983 = vmatmul.mubr.f32.gmra.mrb[0].mxu0 %v826
    %v984 = vpop.f32.mrb[0].mxu0
    %v985 = vadd.f32 %v908, %v984
    %v986 = vpop.f32.mrb[0].mxu0
    %v987 = vadd.f32 %v910, %v986
    %988 = vdwg.mxu0
    %v990 = vlaneseq
    %v991 = vshrl.u32 %v990, 7
    %v992 = vsub.s32 0, %v991
    %v993 = vrot.slane %v155, %v992
    %v994 = vlaneseq
    %v995 = vshrl.u32 %v994, 7
    %v996 = vsub.s32 1, %v995
    %v997 = vrot.slane %v155, %v996
    %v1000 = vadd.f32 %v979, %v993
    %v1001 = vadd.f32 %v981, %v997
    %v1002 = vadd.f32 %v985, %v993
    %v1003 = vadd.f32 %v987, %v997
    %v1008 = vrot.slane %v1000, 1
    %v1009 = vrot.slane %v1002, 1
    %v1010 = vsel %vm325, %v1008, %v1009
    %v1011 = vrot.slane %v1001, 1
    %v1012 = vrot.slane %v1003, 1
    %v1013 = vsel %vm325, %v1011, %v1012
    %v1018 = vmax.f32 %v1000, %v1010
    %v1019 = vmax.f32 %v1001, %v1013
    %v1020 = vmax.f32 %v1002, %v1009
    %v1021 = vmax.f32 %v1003, %v1012
    %vm1022 = vcmask 89088
    %v1023 = vsel %vm1022, %v78, 0
    %v1026 = vsel %vm370, %v1020, 0
    %v1029 = vsel %vm370, %v1021, 0
    %1031 = vmatprep.subr.mxu0 %v1019
    %1032 = vmatpush1.msra.mxu0 %v1018
    %1033 = vmatprep.subr.mxu0 %v1029
    %1034 = vmatpush1.msra.mxu0 %v1026
    %1035 = vmatprep.subr.mxu0 0.0
    %1036 = vmatpush1.msra.mxu0 0.0
    %1037 = vmatprep.subr.mxu0 0.0
    %1038 = vmatpush1.msra.mxu0 0.0
    %1039 = vmatprep.subr.mxu0 0.0
    %1040 = vmatpush1.msra.mxu0 0.0
    %1041 = vmatprep.subr.mxu0 0.0
    %1042 = vmatpush1.msra.mxu0 0.0
    %1043 = vmatprep.subr.mxu0 0.0
    %1044 = vmatpush1.msra.mxu0 0.0
    %1045 = vmatprep.subr.mxu0 0.0
    %1046 = vmatpush1.msra.mxu0 0.0
    %1047 = vmatprep.subr.mxu0 0.0
    %1048 = vmatpush1.msra.mxu0 0.0
    %1049 = vmatprep.subr.mxu0 0.0
    %1050 = vmatpush1.msra.mxu0 0.0
    %1051 = vmatprep.subr.mxu0 0.0
    %1052 = vmatpush1.msra.mxu0 0.0
    %1053 = vmatprep.subr.mxu0 0.0
    %1054 = vmatpush1.msra.mxu0 0.0
    %1055 = vmatprep.subr.mxu0 0.0
    %1056 = vmatpush1.msra.mxu0 0.0
    %1057 = vmatprep.subr.mxu0 0.0
    %1058 = vmatpush1.msra.mxu0 0.0
    %1059 = vmatprep.subr.mxu0 0.0
    %1060 = vmatpush1.msra.mxu0 0.0
    %1061 = vmatprep.subr.mxu0 0.0
    %1062 = vmatpush1.msra.mxu0 0.0
    %1063 = vmatprep.subr.mxu0 0.0
    %1064 = vmatpush1.msra.mxu0 0.0
    %1065 = vmatprep.subr.mxu0 0.0
    %1066 = vmatpush1.msra.mxu0 0.0
    %1067 = vmatprep.subr.mxu0 0.0
    %1068 = vmatpush1.msra.mxu0 0.0
    %1069 = vmatprep.subr.mxu0 0.0
    %1070 = vmatpush1.msra.mxu0 0.0
    %1071 = vmatprep.subr.mxu0 0.0
    %1072 = vmatpush1.msra.mxu0 0.0
    %1073 = vmatprep.subr.mxu0 0.0
    %1074 = vmatpush1.msra.mxu0 0.0
    %1075 = vmatprep.subr.mxu0 0.0
    %1076 = vmatpush1.msra.mxu0 0.0
    %1077 = vmatprep.subr.mxu0 0.0
    %1078 = vmatpush1.msra.mxu0 0.0
    %1079 = vmatprep.subr.mxu0 0.0
    %1080 = vmatpush1.msra.mxu0 0.0
    %1081 = vmatprep.subr.mxu0 0.0
    %1082 = vmatpush1.msra.mxu0 0.0
    %1083 = vmatprep.subr.mxu0 0.0
    %1084 = vmatpush1.msra.mxu0 0.0
    %1085 = vmatprep.subr.mxu0 0.0
    %1086 = vmatpush1.msra.mxu0 0.0
    %1087 = vmatprep.subr.mxu0 0.0
    %1088 = vmatpush1.msra.mxu0 0.0
    %1089 = vmatprep.subr.mxu0 0.0
    %1090 = vmatpush1.msra.mxu0 0.0
    %1091 = vmatprep.subr.mxu0 0.0
    %1092 = vmatpush1.msra.mxu0 0.0
    %1093 = vmatprep.subr.mxu0 0.0
    %1094 = vmatpush1.msra.mxu0 0.0
    %1095 = vmatprep.mubr.f32.mxu0 0.0
    %1096 = vmatmul.mubr.f32.gmra.mrb[0].mxu0 %v1023
    %v1097 = vpop.f32.mrb[0].mxu0
    %v1098 = vadd.f32 0.0, %v1097
    %v1099 = vpop.f32.mrb[0].mxu0
    %v1100 = vadd.f32 0.0, %v1099
    %1101 = vdwg.mxu0
    %v1102 = vstv %s57
    %vm1103 = vcmp.gt.f32.partialorder 0.0, %v1102
    %v1104 = vsel %vm1103, 1, 0
    %v1105 = vcvt.s32.f32 %v1104
    %v1106 = vstv %s53
    %v1107 = vmul.f32 %v1106, 0.0
    %v1108 = vadd.f32 %v1107, %v1098
    %v1109 = vadd.f32 %v1107, %v1100
    %v1110 = vmul.f32 %v1105, %v1102
    %v1111 = vsub.f32 %v1108, %v1110
    %v1112 = vsub.f32 %v1109, %v1110
    %vm1113 = vcmp.gt.f32.partialorder %v1111, %v1102
    %vm1114 = vcmp.gt.f32.partialorder %v1112, %v1102
    %v1115 = vsel %vm1113, 1, 0
    %v1116 = vsel %vm1114, 1, 0
    %v1117 = vcvt.s32.f32 %v1115
    %v1118 = vcvt.s32.f32 %v1116
    %v1121 = vrot.slane %v1117, 2
    %v1122 = vrot.slane %v1118, 2
    %vm1125 = vcmask 1040384
    %v1126 = vsel %vm1125, %v1117, %v1121
    %v1127 = vsel %vm1125, %v1118, %v1122
    %v1128 = vld [vmem:[%s8] sm:$0xff]
    %v1129 = vld [vmem:[%s8 + $0x8] sm:$0xff]
    %v1130 = vld [vmem:[%s8 + $0x10] sm:$0xff]
    %v1131 = vld [vmem:[%s8 + $0x18] sm:$0xff]
    %v1132 = vld [vmem:[%s8 + $0x20] sm:$0xff]
    %v1133 = vld [vmem:[%s8 + $0x28] sm:$0xff]
    %v1134 = vld [vmem:[%s8 + $0x30] sm:$0xff]
    %v1135 = vld [vmem:[%s8 + $0x38] sm:$0xff]
    %v1136 = vld [vmem:[%s8 + $0x40] sm:$0xff]
    %v1137 = vld [vmem:[%s8 + $0x48] sm:$0xff]
    %v1138 = vld [vmem:[%s8 + $0x50] sm:$0xff]
    %v1139 = vld [vmem:[%s8 + $0x58] sm:$0xff]
    %v1140 = vld [vmem:[%s8 + $0x60] sm:$0xff]
    %v1141 = vld [vmem:[%s8 + $0x68] sm:$0xff]
    %v1142 = vld [vmem:[%s8 + $0x70] sm:$0xff]
    %v1143 = vld [vmem:[%s8 + $0x78] sm:$0xff]
    %v1144 = vld [vmem:[%s8 + $0x80] sm:$0xff]
    %v1145 = vld [vmem:[%s8 + $0x88] sm:$0xff]
    %v1146 = vld [vmem:[%s8 + $0x90] sm:$0xff]
    %v1147 = vld [vmem:[%s8 + $0x98] sm:$0xff]
    %v1148 = vld [vmem:[%s8 + $0xa0] sm:$0xff]
    %v1149 = vld [vmem:[%s8 + $0xa8] sm:$0xff]
    %v1150 = vld [vmem:[%s8 + $0xb0] sm:$0xff]
    %v1151 = vld [vmem:[%s8 + $0xb8] sm:$0xff]
    %v1152 = vld [vmem:[%s8 + $0xc0] sm:$0xff]
    %v1153 = vld [vmem:[%s8 + $0xc8] sm:$0xff]
    %v1154 = vld [vmem:[%s8 + $0xd0] sm:$0xff]
    %v1155 = vld [vmem:[%s8 + $0xd8] sm:$0xff]
    %v1156 = vld [vmem:[%s8 + $0xe0] sm:$0xff]
    %v1157 = vld [vmem:[%s8 + $0xe8] sm:$0xff]
    %v1158 = vld [vmem:[%s8 + $0xf0] sm:$0xff]
    %v1159 = vld [vmem:[%s8 + $0xf8] sm:$0xff]
    %1160 = vmatprep.subr.mxu0 0.0
    %1161 = vmatpush1.msra.mxu0 %v1128
    %1162 = vmatprep.subr.mxu0 0.0
    %1163 = vmatpush1.msra.mxu0 %v1129
    %1164 = vmatprep.subr.mxu0 0.0
    %1165 = vmatpush1.msra.mxu0 %v1130
    %1166 = vmatprep.subr.mxu0 0.0
    %1167 = vmatpush1.msra.mxu0 %v1131
    %1168 = vmatprep.subr.mxu0 0.0
    %1169 = vmatpush1.msra.mxu0 %v1132
    %1170 = vmatprep.subr.mxu0 0.0
    %1171 = vmatpush1.msra.mxu0 %v1133
    %1172 = vmatprep.subr.mxu0 0.0
    %1173 = vmatpush1.msra.mxu0 %v1134
    %1174 = vmatprep.subr.mxu0 0.0
    %1175 = vmatpush1.msra.mxu0 %v1135
    %1176 = vmatprep.subr.mxu0 0.0
    %1177 = vmatpush1.msra.mxu0 %v1136
    %1178 = vmatprep.subr.mxu0 0.0
    %1179 = vmatpush1.msra.mxu0 %v1137
    %1180 = vmatprep.subr.mxu0 0.0
    %1181 = vmatpush1.msra.mxu0 %v1138
    %1182 = vmatprep.subr.mxu0 0.0
    %1183 = vmatpush1.msra.mxu0 %v1139
    %1184 = vmatprep.subr.mxu0 0.0
    %1185 = vmatpush1.msra.mxu0 %v1140
    %1186 = vmatprep.subr.mxu0 0.0
    %1187 = vmatpush1.msra.mxu0 %v1141
    %1188 = vmatprep.subr.mxu0 0.0
    %1189 = vmatpush1.msra.mxu0 %v1142
    %1190 = vmatprep.subr.mxu0 0.0
    %1191 = vmatpush1.msra.mxu0 %v1143
    %1192 = vmatprep.subr.mxu0 0.0
    %1193 = vmatpush1.msra.mxu0 %v1144
    %1194 = vmatprep.subr.mxu0 0.0
    %1195 = vmatpush1.msra.mxu0 %v1145
    %1196 = vmatprep.subr.mxu0 0.0
    %1197 = vmatpush1.msra.mxu0 %v1146
    %1198 = vmatprep.subr.mxu0 0.0
    %1199 = vmatpush1.msra.mxu0 %v1147
    %1200 = vmatprep.subr.mxu0 0.0
    %1201 = vmatpush1.msra.mxu0 %v1148
    %1202 = vmatprep.subr.mxu0 0.0
    %1203 = vmatpush1.msra.mxu0 %v1149
    %1204 = vmatprep.subr.mxu0 0.0
    %1205 = vmatpush1.msra.mxu0 %v1150
    %1206 = vmatprep.subr.mxu0 0.0
    %1207 = vmatpush1.msra.mxu0 %v1151
    %1208 = vmatprep.subr.mxu0 0.0
    %1209 = vmatpush1.msra.mxu0 %v1152
    %1210 = vmatprep.subr.mxu0 0.0
    %1211 = vmatpush1.msra.mxu0 %v1153
    %1212 = vmatprep.subr.mxu0 0.0
    %1213 = vmatpush1.msra.mxu0 %v1154
    %1214 = vmatprep.subr.mxu0 0.0
    %1215 = vmatpush1.msra.mxu0 %v1155
    %1216 = vmatprep.subr.mxu0 0.0
    %1217 = vmatpush1.msra.mxu0 %v1156
    %1218 = vmatprep.subr.mxu0 0.0
    %1219 = vmatpush1.msra.mxu0 %v1157
    %1220 = vmatprep.subr.mxu0 0.0
    %1221 = vmatpush1.msra.mxu0 %v1158
    %1222 = vmatprep.subr.mxu0 0.0
    %1223 = vmatpush1.msra.mxu0 %v1159
    %1224 = vmatprep.mubr.f32.mxu0 %v1127
    %1225 = vmatmul.mubr.f32.gmra.mrb[0].mxu0 %v1126
    %v1226 = vpop.f32.mrb[0].mxu0
    %v1227 = vadd.f32 0.0, %v1226
    %v1228 = vpop.f32.mrb[0].mxu0
    %1229 = vdwg.mxu0
    %v1231 = vlaneseq
    %v1232 = vshrl.u32 %v1231, 7
    %v1233 = vsub.s32 0, %v1232
    %v1234 = vrot.slane %v156, %v1233
    %v1236 = vadd.f32 %v1234, %v1227
    %v1237 = vrot.slane %v1117, 1
    %v1238 = vrot.slane %v1118, 1
    %v1241 = vrot.slane %v1117, 3
    %v1242 = vrot.slane %v1118, 3
    %v1245 = vsel %vm1125, %v1237, %v1241
    %v1246 = vsel %vm1125, %v1238, %v1242
    %s1247 = scalar_lea.vmem %s8, 256
    %v1248 = vld [vmem:[%s1247] sm:$0xff]
    %v1249 = vld [vmem:[%s1247 + $0x8] sm:$0xff]
    %v1250 = vld [vmem:[%s1247 + $0x10] sm:$0xff]
    %v1251 = vld [vmem:[%s1247 + $0x18] sm:$0xff]
    %v1252 = vld [vmem:[%s1247 + $0x20] sm:$0xff]
    %v1253 = vld [vmem:[%s1247 + $0x28] sm:$0xff]
    %v1254 = vld [vmem:[%s1247 + $0x30] sm:$0xff]
    %v1255 = vld [vmem:[%s1247 + $0x38] sm:$0xff]
    %v1256 = vld [vmem:[%s1247 + $0x40] sm:$0xff]
    %v1257 = vld [vmem:[%s1247 + $0x48] sm:$0xff]
    %v1258 = vld [vmem:[%s1247 + $0x50] sm:$0xff]
    %v1259 = vld [vmem:[%s1247 + $0x58] sm:$0xff]
    %v1260 = vld [vmem:[%s1247 + $0x60] sm:$0xff]
    %v1261 = vld [vmem:[%s1247 + $0x68] sm:$0xff]
    %v1262 = vld [vmem:[%s1247 + $0x70] sm:$0xff]
    %v1263 = vld [vmem:[%s1247 + $0x78] sm:$0xff]
    %v1264 = vld [vmem:[%s1247 + $0x80] sm:$0xff]
    %v1265 = vld [vmem:[%s1247 + $0x88] sm:$0xff]
    %v1266 = vld [vmem:[%s1247 + $0x90] sm:$0xff]
    %v1267 = vld [vmem:[%s1247 + $0x98] sm:$0xff]
    %v1268 = vld [vmem:[%s1247 + $0xa0] sm:$0xff]
    %v1269 = vld [vmem:[%s1247 + $0xa8] sm:$0xff]
    %v1270 = vld [vmem:[%s1247 + $0xb0] sm:$0xff]
    %v1271 = vld [vmem:[%s1247 + $0xb8] sm:$0xff]
    %v1272 = vld [vmem:[%s1247 + $0xc0] sm:$0xff]
    %v1273 = vld [vmem:[%s1247 + $0xc8] sm:$0xff]
    %v1274 = vld [vmem:[%s1247 + $0xd0] sm:$0xff]
    %v1275 = vld [vmem:[%s1247 + $0xd8] sm:$0xff]
    %v1276 = vld [vmem:[%s1247 + $0xe0] sm:$0xff]
    %v1277 = vld [vmem:[%s1247 + $0xe8] sm:$0xff]
    %v1278 = vld [vmem:[%s1247 + $0xf0] sm:$0xff]
    %v1279 = vld [vmem:[%s1247 + $0xf8] sm:$0xff]
    %1280 = vmatprep.subr.mxu0 0.0
    %1281 = vmatpush1.msra.mxu0 %v1248
    %1282 = vmatprep.subr.mxu0 0.0
    %1283 = vmatpush1.msra.mxu0 %v1249
    %1284 = vmatprep.subr.mxu0 0.0
    %1285 = vmatpush1.msra.mxu0 %v1250
    %1286 = vmatprep.subr.mxu0 0.0
    %1287 = vmatpush1.msra.mxu0 %v1251
    %1288 = vmatprep.subr.mxu0 0.0
    %1289 = vmatpush1.msra.mxu0 %v1252
    %1290 = vmatprep.subr.mxu0 0.0
    %1291 = vmatpush1.msra.mxu0 %v1253
    %1292 = vmatprep.subr.mxu0 0.0
    %1293 = vmatpush1.msra.mxu0 %v1254
    %1294 = vmatprep.subr.mxu0 0.0
    %1295 = vmatpush1.msra.mxu0 %v1255
    %1296 = vmatprep.subr.mxu0 0.0
    %1297 = vmatpush1.msra.mxu0 %v1256
    %1298 = vmatprep.subr.mxu0 0.0
    %1299 = vmatpush1.msra.mxu0 %v1257
    %1300 = vmatprep.subr.mxu0 0.0
    %1301 = vmatpush1.msra.mxu0 %v1258
    %1302 = vmatprep.subr.mxu0 0.0
    %1303 = vmatpush1.msra.mxu0 %v1259
    %1304 = vmatprep.subr.mxu0 0.0
    %1305 = vmatpush1.msra.mxu0 %v1260
    %1306 = vmatprep.subr.mxu0 0.0
    %1307 = vmatpush1.msra.mxu0 %v1261
    %1308 = vmatprep.subr.mxu0 0.0
    %1309 = vmatpush1.msra.mxu0 %v1262
    %1310 = vmatprep.subr.mxu0 0.0
    %1311 = vmatpush1.msra.mxu0 %v1263
    %1312 = vmatprep.subr.mxu0 0.0
    %1313 = vmatpush1.msra.mxu0 %v1264
    %1314 = vmatprep.subr.mxu0 0.0
    %1315 = vmatpush1.msra.mxu0 %v1265
    %1316 = vmatprep.subr.mxu0 0.0
    %1317 = vmatpush1.msra.mxu0 %v1266
    %1318 = vmatprep.subr.mxu0 0.0
    %1319 = vmatpush1.msra.mxu0 %v1267
    %1320 = vmatprep.subr.mxu0 0.0
    %1321 = vmatpush1.msra.mxu0 %v1268
    %1322 = vmatprep.subr.mxu0 0.0
    %1323 = vmatpush1.msra.mxu0 %v1269
    %1324 = vmatprep.subr.mxu0 0.0
    %1325 = vmatpush1.msra.mxu0 %v1270
    %1326 = vmatprep.subr.mxu0 0.0
    %1327 = vmatpush1.msra.mxu0 %v1271
    %1328 = vmatprep.subr.mxu0 0.0
    %1329 = vmatpush1.msra.mxu0 %v1272
    %1330 = vmatprep.subr.mxu0 0.0
    %1331 = vmatpush1.msra.mxu0 %v1273
    %1332 = vmatprep.subr.mxu0 0.0
    %1333 = vmatpush1.msra.mxu0 %v1274
    %1334 = vmatprep.subr.mxu0 0.0
    %1335 = vmatpush1.msra.mxu0 %v1275
    %1336 = vmatprep.subr.mxu0 0.0
    %1337 = vmatpush1.msra.mxu0 %v1276
    %1338 = vmatprep.subr.mxu0 0.0
    %1339 = vmatpush1.msra.mxu0 %v1277
    %1340 = vmatprep.subr.mxu0 0.0
    %1341 = vmatpush1.msra.mxu0 %v1278
    %1342 = vmatprep.subr.mxu0 0.0
    %1343 = vmatpush1.msra.mxu0 %v1279
    %1344 = vmatprep.mubr.f32.mxu0 %v1246
    %1345 = vmatmul.mubr.f32.gmra.mrb[0].mxu0 %v1245
    %v1346 = vpop.f32.mrb[0].mxu0
    %v1347 = vadd.f32 0.0, %v1346
    %v1348 = vpop.f32.mrb[0].mxu0
    %1349 = vdwg.mxu0
    %v1350 = vadd.f32 %v1236, %v1347
    %v1351 = vrot.slane %v1117, 4
    %v1352 = vrot.slane %v1118, 4
    %v1355 = vsel %vm1125, %v1121, %v1351
    %v1356 = vsel %vm1125, %v1122, %v1352
    %s1357 = scalar_lea.vmem %s8, 512
    %v1358 = vld [vmem:[%s1357] sm:$0xff]
    %v1359 = vld [vmem:[%s1357 + $0x8] sm:$0xff]
    %v1360 = vld [vmem:[%s1357 + $0x10] sm:$0xff]
    %v1361 = vld [vmem:[%s1357 + $0x18] sm:$0xff]
    %v1362 = vld [vmem:[%s1357 + $0x20] sm:$0xff]
    %v1363 = vld [vmem:[%s1357 + $0x28] sm:$0xff]
    %v1364 = vld [vmem:[%s1357 + $0x30] sm:$0xff]
    %v1365 = vld [vmem:[%s1357 + $0x38] sm:$0xff]
    %v1366 = vld [vmem:[%s1357 + $0x40] sm:$0xff]
    %v1367 = vld [vmem:[%s1357 + $0x48] sm:$0xff]
    %v1368 = vld [vmem:[%s1357 + $0x50] sm:$0xff]
    %v1369 = vld [vmem:[%s1357 + $0x58] sm:$0xff]
    %v1370 = vld [vmem:[%s1357 + $0x60] sm:$0xff]
    %v1371 = vld [vmem:[%s1357 + $0x68] sm:$0xff]
    %v1372 = vld [vmem:[%s1357 + $0x70] sm:$0xff]
    %v1373 = vld [vmem:[%s1357 + $0x78] sm:$0xff]
    %v1374 = vld [vmem:[%s1357 + $0x80] sm:$0xff]
    %v1375 = vld [vmem:[%s1357 + $0x88] sm:$0xff]
    %v1376 = vld [vmem:[%s1357 + $0x90] sm:$0xff]
    %v1377 = vld [vmem:[%s1357 + $0x98] sm:$0xff]
    %v1378 = vld [vmem:[%s1357 + $0xa0] sm:$0xff]
    %v1379 = vld [vmem:[%s1357 + $0xa8] sm:$0xff]
    %v1380 = vld [vmem:[%s1357 + $0xb0] sm:$0xff]
    %v1381 = vld [vmem:[%s1357 + $0xb8] sm:$0xff]
    %v1382 = vld [vmem:[%s1357 + $0xc0] sm:$0xff]
    %v1383 = vld [vmem:[%s1357 + $0xc8] sm:$0xff]
    %v1384 = vld [vmem:[%s1357 + $0xd0] sm:$0xff]
    %v1385 = vld [vmem:[%s1357 + $0xd8] sm:$0xff]
    %v1386 = vld [vmem:[%s1357 + $0xe0] sm:$0xff]
    %v1387 = vld [vmem:[%s1357 + $0xe8] sm:$0xff]
    %v1388 = vld [vmem:[%s1357 + $0xf0] sm:$0xff]
    %v1389 = vld [vmem:[%s1357 + $0xf8] sm:$0xff]
    %1390 = vmatprep.subr.mxu0 0.0
    %1391 = vmatpush1.msra.mxu0 %v1358
    %1392 = vmatprep.subr.mxu0 0.0
    %1393 = vmatpush1.msra.mxu0 %v1359
    %1394 = vmatprep.subr.mxu0 0.0
    %1395 = vmatpush1.msra.mxu0 %v1360
    %1396 = vmatprep.subr.mxu0 0.0
    %1397 = vmatpush1.msra.mxu0 %v1361
    %1398 = vmatprep.subr.mxu0 0.0
    %1399 = vmatpush1.msra.mxu0 %v1362
    %1400 = vmatprep.subr.mxu0 0.0
    %1401 = vmatpush1.msra.mxu0 %v1363
    %1402 = vmatprep.subr.mxu0 0.0
    %1403 = vmatpush1.msra.mxu0 %v1364
    %1404 = vmatprep.subr.mxu0 0.0
    %1405 = vmatpush1.msra.mxu0 %v1365
    %1406 = vmatprep.subr.mxu0 0.0
    %1407 = vmatpush1.msra.mxu0 %v1366
    %1408 = vmatprep.subr.mxu0 0.0
    %1409 = vmatpush1.msra.mxu0 %v1367
    %1410 = vmatprep.subr.mxu0 0.0
    %1411 = vmatpush1.msra.mxu0 %v1368
    %1412 = vmatprep.subr.mxu0 0.0
    %1413 = vmatpush1.msra.mxu0 %v1369
    %1414 = vmatprep.subr.mxu0 0.0
    %1415 = vmatpush1.msra.mxu0 %v1370
    %1416 = vmatprep.subr.mxu0 0.0
    %1417 = vmatpush1.msra.mxu0 %v1371
    %1418 = vmatprep.subr.mxu0 0.0
    %1419 = vmatpush1.msra.mxu0 %v1372
    %1420 = vmatprep.subr.mxu0 0.0
    %1421 = vmatpush1.msra.mxu0 %v1373
    %1422 = vmatprep.subr.mxu0 0.0
    %1423 = vmatpush1.msra.mxu0 %v1374
    %1424 = vmatprep.subr.mxu0 0.0
    %1425 = vmatpush1.msra.mxu0 %v1375
    %1426 = vmatprep.subr.mxu0 0.0
    %1427 = vmatpush1.msra.mxu0 %v1376
    %1428 = vmatprep.subr.mxu0 0.0
    %1429 = vmatpush1.msra.mxu0 %v1377
    %1430 = vmatprep.subr.mxu0 0.0
    %1431 = vmatpush1.msra.mxu0 %v1378
    %1432 = vmatprep.subr.mxu0 0.0
    %1433 = vmatpush1.msra.mxu0 %v1379
    %1434 = vmatprep.subr.mxu0 0.0
    %1435 = vmatpush1.msra.mxu0 %v1380
    %1436 = vmatprep.subr.mxu0 0.0
    %1437 = vmatpush1.msra.mxu0 %v1381
    %1438 = vmatprep.subr.mxu0 0.0
    %1439 = vmatpush1.msra.mxu0 %v1382
    %1440 = vmatprep.subr.mxu0 0.0
    %1441 = vmatpush1.msra.mxu0 %v1383
    %1442 = vmatprep.subr.mxu0 0.0
    %1443 = vmatpush1.msra.mxu0 %v1384
    %1444 = vmatprep.subr.mxu0 0.0
    %1445 = vmatpush1.msra.mxu0 %v1385
    %1446 = vmatprep.subr.mxu0 0.0
    %1447 = vmatpush1.msra.mxu0 %v1386
    %1448 = vmatprep.subr.mxu0 0.0
    %1449 = vmatpush1.msra.mxu0 %v1387
    %1450 = vmatprep.subr.mxu0 0.0
    %1451 = vmatpush1.msra.mxu0 %v1388
    %1452 = vmatprep.subr.mxu0 0.0
    %1453 = vmatpush1.msra.mxu0 %v1389
    %1454 = vmatprep.mubr.f32.mxu0 %v1356
    %1455 = vmatmul.mubr.f32.gmra.mrb[0].mxu0 %v1355
    %v1456 = vpop.f32.mrb[0].mxu0
    %v1457 = vadd.f32 0.0, %v1456
    %v1458 = vpop.f32.mrb[0].mxu0
    %1459 = vdwg.mxu0
    %v1460 = vadd.f32 %v1350, %v1457
    %v1461 = vstv %s58
    %vm1462 = vcmp.gt.f32.partialorder 0.0, %v1461
    %v1463 = vsel %vm1462, 1, 0
    %v1464 = vcvt.s32.f32 %v1463
    %v1465 = vstv %s54
    %v1466 = vmul.f32 %v1465, 0.0
    %v1467 = vadd.f32 %v1466, %v1460
    %v1468 = vmul.f32 %v1464, %v1461
    %v1469 = vsub.f32 %v1467, %v1468
    %vm1470 = vcmp.gt.f32.partialorder %v1469, %v1461
    %v1471 = vsel %vm1470, 1, 0
    %v1472 = vcvt.s32.f32 %v1471
    %vm1473 = vcmask 9216
    %1474 = vst.msk [vmem:[%s10] sm:$0x3] %vm1473, %v1460
    %1475 = vst.msk [vmem:[%s11] sm:$0x3] %vm1473, %v1472
    %1476 = vst.msk [vmem:[%s12] sm:$0x3] %vm1473, %v1469
    %v1477 = vmul.f32 %v463, %v470
    %v1478 = vmul.f32 %v463, %v471
    %v1479 = vmul.f32 %v463, %v472
    %v1480 = vmul.f32 %v463, %v473
    %v1481 = vadd.f32 %v1477, %v441
    %v1482 = vadd.f32 %v1478, %v446
    %v1483 = vadd.f32 %v1479, %v451
    %v1484 = vadd.f32 %v1480, %v456
    %v1485 = vmul.f32 %v482, %v459
    %v1486 = vmul.f32 %v483, %v459
    %v1487 = vmul.f32 %v484, %v459
    %v1488 = vmul.f32 %v485, %v459
    %v1489 = vsub.f32 %v1481, %v1485
    %v1490 = vsub.f32 %v1482, %v1486
    %v1491 = vsub.f32 %v1483, %v1487
    %v1492 = vsub.f32 %v1484, %v1488
    %vm1493 = vcmp.gt.f32.partialorder %v1489, %v459
    %vm1494 = vcmp.gt.f32.partialorder %v1490, %v459
    %vm1495 = vcmp.gt.f32.partialorder %v1491, %v459
    %vm1496 = vcmp.gt.f32.partialorder %v1492, %v459
    %v1497 = vsel %vm1493, 1, 0
    %v1498 = vsel %vm1494, 1, 0
    %v1499 = vsel %vm1495, 1, 0
    %v1500 = vsel %vm1496, 1, 0
    %v1501 = vcvt.s32.f32 %v1497
    %v1502 = vcvt.s32.f32 %v1498
    %v1503 = vcvt.s32.f32 %v1499
    %v1504 = vcvt.s32.f32 %v1500
    %v1508 = vrot.slane %v1502, 1
    %v1509 = vrot.slane %v1503, 1
    %v1510 = vsel %vm325, %v1508, %v1509
    %v1511 = vrot.slane %v1504, 1
    %v1512 = vsel %vm325, %v1509, %v1511
    %v1514 = vsel %vm307, %v1502, %v1510
    %v1516 = vrot.slane %v1501, 1
    %v1517 = vsel %vm325, %v1516, %v1508
    %v1519 = vrot.slane %v1503, 2
    %v1520 = vrot.slane %v1504, 2
    %v1521 = vsel %vm307, %v1519, %v1520
    %v1523 = vsel %vm307, %v1508, %v1519
    %v1524 = vsel %vm505, %v1517, 0
    %v1527 = vsel %vm505, %v1523, 0
    %v1529 = vsel %vm505, %v1521, 0
    %v1531 = vsel %vm505, %v1520, 0
    %1533 = vmatprep.subr.mxu0 0.0
    %1534 = vmatpush1.msra.mxu0 %v86
    %1535 = vmatprep.subr.mxu0 0.0
    %1536 = vmatpush1.msra.mxu0 %v87
    %1537 = vmatprep.subr.mxu0 0.0
    %1538 = vmatpush1.msra.mxu0 %v88
    %1539 = vmatprep.subr.mxu0 0.0
    %1540 = vmatpush1.msra.mxu0 %v89
    %1541 = vmatprep.subr.mxu0 0.0
    %1542 = vmatpush1.msra.mxu0 0.0
    %1543 = vmatprep.subr.mxu0 0.0
    %1544 = vmatpush1.msra.mxu0 0.0
    %1545 = vmatprep.subr.mxu0 0.0
    %1546 = vmatpush1.msra.mxu0 0.0
    %1547 = vmatprep.subr.mxu0 0.0
    %1548 = vmatpush1.msra.mxu0 0.0
    %1549 = vmatprep.subr.mxu0 0.0
    %1550 = vmatpush1.msra.mxu0 0.0
    %1551 = vmatprep.subr.mxu0 0.0
    %1552 = vmatpush1.msra.mxu0 0.0
    %1553 = vmatprep.subr.mxu0 0.0
    %1554 = vmatpush1.msra.mxu0 0.0
    %1555 = vmatprep.subr.mxu0 0.0
    %1556 = vmatpush1.msra.mxu0 0.0
    %1557 = vmatprep.subr.mxu0 0.0
    %1558 = vmatpush1.msra.mxu0 0.0
    %1559 = vmatprep.subr.mxu0 0.0
    %1560 = vmatpush1.msra.mxu0 0.0
    %1561 = vmatprep.subr.mxu0 0.0
    %1562 = vmatpush1.msra.mxu0 0.0
    %1563 = vmatprep.subr.mxu0 0.0
    %1564 = vmatpush1.msra.mxu0 0.0
    %1565 = vmatprep.subr.mxu0 0.0
    %1566 = vmatpush1.msra.mxu0 0.0
    %1567 = vmatprep.subr.mxu0 0.0
    %1568 = vmatpush1.msra.mxu0 0.0
    %1569 = vmatprep.subr.mxu0 0.0
    %1570 = vmatpush1.msra.mxu0 0.0
    %1571 = vmatprep.subr.mxu0 0.0
    %1572 = vmatpush1.msra.mxu0 0.0
    %1573 = vmatprep.subr.mxu0 0.0
    %1574 = vmatpush1.msra.mxu0 0.0
    %1575 = vmatprep.subr.mxu0 0.0
    %1576 = vmatpush1.msra.mxu0 0.0
    %1577 = vmatprep.subr.mxu0 0.0
    %1578 = vmatpush1.msra.mxu0 0.0
    %1579 = vmatprep.subr.mxu0 0.0
    %1580 = vmatpush1.msra.mxu0 0.0
    %1581 = vmatprep.subr.mxu0 0.0
    %1582 = vmatpush1.msra.mxu0 0.0
    %1583 = vmatprep.subr.mxu0 0.0
    %1584 = vmatpush1.msra.mxu0 0.0
    %1585 = vmatprep.subr.mxu0 0.0
    %1586 = vmatpush1.msra.mxu0 0.0
    %1587 = vmatprep.subr.mxu0 0.0
    %1588 = vmatpush1.msra.mxu0 0.0
    %1589 = vmatprep.subr.mxu0 0.0
    %1590 = vmatpush1.msra.mxu0 0.0
    %1591 = vmatprep.subr.mxu0 0.0
    %1592 = vmatpush1.msra.mxu0 0.0
    %1593 = vmatprep.subr.mxu0 0.0
    %1594 = vmatpush1.msra.mxu0 0.0
    %1595 = vmatprep.subr.mxu0 0.0
    %1596 = vmatpush1.msra.mxu0 0.0
    %1597 = vmatprep.mubr.f32.mxu0 0.0
    %1598 = vmatmul.mubr.f32.gmra.mrb[0].mxu0 %v1524
    %v1599 = vpop.f32.mrb[0].mxu0
    %v1600 = vadd.f32 0.0, %v1599
    %v1601 = vpop.f32.mrb[0].mxu0
    %1602 = vmatprep.mubr.f32.mxu0 0.0
    %1603 = vmatmul.mubr.f32.gmra.mrb[0].mxu0 %v1527
    %v1604 = vpop.f32.mrb[0].mxu0
    %v1605 = vadd.f32 0.0, %v1604
    %v1606 = vpop.f32.mrb[0].mxu0
    %1607 = vmatprep.mubr.f32.mxu0 0.0
    %1608 = vmatmul.mubr.f32.gmra.mrb[0].mxu0 %v1529
    %v1609 = vpop.f32.mrb[0].mxu0
    %v1610 = vadd.f32 0.0, %v1609
    %v1611 = vpop.f32.mrb[0].mxu0
    %1612 = vmatprep.mubr.f32.mxu0 0.0
    %1613 = vmatmul.mubr.f32.gmra.mrb[0].mxu0 %v1531
    %v1614 = vpop.f32.mrb[0].mxu0
    %v1615 = vadd.f32 0.0, %v1614
    %v1616 = vpop.f32.mrb[0].mxu0
    %1617 = vdwg.mxu0
    %v1618 = vsel %vm505, %v1501, 0
    %v1621 = vsel %vm505, %v1514, 0
    %v1623 = vsel %vm505, %v1512, 0
    %v1625 = vsel %vm505, %v1511, 0
    %1627 = vmatprep.subr.mxu0 0.0
    %1628 = vmatpush1.msra.mxu0 %v82
    %1629 = vmatprep.subr.mxu0 0.0
    %1630 = vmatpush1.msra.mxu0 %v83
    %1631 = vmatprep.subr.mxu0 0.0
    %1632 = vmatpush1.msra.mxu0 %v84
    %1633 = vmatprep.subr.mxu0 0.0
    %1634 = vmatpush1.msra.mxu0 %v85
    %1635 = vmatprep.subr.mxu0 0.0
    %1636 = vmatpush1.msra.mxu0 0.0
    %1637 = vmatprep.subr.mxu0 0.0
    %1638 = vmatpush1.msra.mxu0 0.0
    %1639 = vmatprep.subr.mxu0 0.0
    %1640 = vmatpush1.msra.mxu0 0.0
    %1641 = vmatprep.subr.mxu0 0.0
    %1642 = vmatpush1.msra.mxu0 0.0
    %1643 = vmatprep.subr.mxu0 0.0
    %1644 = vmatpush1.msra.mxu0 0.0
    %1645 = vmatprep.subr.mxu0 0.0
    %1646 = vmatpush1.msra.mxu0 0.0
    %1647 = vmatprep.subr.mxu0 0.0
    %1648 = vmatpush1.msra.mxu0 0.0
    %1649 = vmatprep.subr.mxu0 0.0
    %1650 = vmatpush1.msra.mxu0 0.0
    %1651 = vmatprep.subr.mxu0 0.0
    %1652 = vmatpush1.msra.mxu0 0.0
    %1653 = vmatprep.subr.mxu0 0.0
    %1654 = vmatpush1.msra.mxu0 0.0
    %1655 = vmatprep.subr.mxu0 0.0
    %1656 = vmatpush1.msra.mxu0 0.0
    %1657 = vmatprep.subr.mxu0 0.0
    %1658 = vmatpush1.msra.mxu0 0.0
    %1659 = vmatprep.subr.mxu0 0.0
    %1660 = vmatpush1.msra.mxu0 0.0
    %1661 = vmatprep.subr.mxu0 0.0
    %1662 = vmatpush1.msra.mxu0 0.0
    %1663 = vmatprep.subr.mxu0 0.0
    %1664 = vmatpush1.msra.mxu0 0.0
    %1665 = vmatprep.subr.mxu0 0.0
    %1666 = vmatpush1.msra.mxu0 0.0
    %1667 = vmatprep.subr.mxu0 0.0
    %1668 = vmatpush1.msra.mxu0 0.0
    %1669 = vmatprep.subr.mxu0 0.0
    %1670 = vmatpush1.msra.mxu0 0.0
    %1671 = vmatprep.subr.mxu0 0.0
    %1672 = vmatpush1.msra.mxu0 0.0
    %1673 = vmatprep.subr.mxu0 0.0
    %1674 = vmatpush1.msra.mxu0 0.0
    %1675 = vmatprep.subr.mxu0 0.0
    %1676 = vmatpush1.msra.mxu0 0.0
    %1677 = vmatprep.subr.mxu0 0.0
    %1678 = vmatpush1.msra.mxu0 0.0
    %1679 = vmatprep.subr.mxu0 0.0
    %1680 = vmatpush1.msra.mxu0 0.0
    %1681 = vmatprep.subr.mxu0 0.0
    %1682 = vmatpush1.msra.mxu0 0.0
    %1683 = vmatprep.subr.mxu0 0.0
    %1684 = vmatpush1.msra.mxu0 0.0
    %1685 = vmatprep.subr.mxu0 0.0
    %1686 = vmatpush1.msra.mxu0 0.0
    %1687 = vmatprep.subr.mxu0 0.0
    %1688 = vmatpush1.msra.mxu0 0.0
    %1689 = vmatprep.subr.mxu0 0.0
    %1690 = vmatpush1.msra.mxu0 0.0
    %1691 = vmatprep.mubr.f32.mxu0 0.0
    %1692 = vmatmul.mubr.f32.gmra.mrb[0].mxu0 %v1618
    %v1693 = vpop.f32.mrb[0].mxu0
    %v1694 = vadd.f32 %v1600, %v1693
    %v1695 = vpop.f32.mrb[0].mxu0
    %1696 = vmatprep.mubr.f32.mxu0 0.0
    %1697 = vmatmul.mubr.f32.gmra.mrb[0].mxu0 %v1621
    %v1698 = vpop.f32.mrb[0].mxu0
    %v1699 = vadd.f32 %v1605, %v1698
    %v1700 = vpop.f32.mrb[0].mxu0
    %1701 = vmatprep.mubr.f32.mxu0 0.0
    %1702 = vmatmul.mubr.f32.gmra.mrb[0].mxu0 %v1623
    %v1703 = vpop.f32.mrb[0].mxu0
    %v1704 = vadd.f32 %v1610, %v1703
    %v1705 = vpop.f32.mrb[0].mxu0
    %1706 = vmatprep.mubr.f32.mxu0 0.0
    %1707 = vmatmul.mubr.f32.gmra.mrb[0].mxu0 %v1625
    %v1708 = vpop.f32.mrb[0].mxu0
    %v1709 = vadd.f32 %v1615, %v1708
    %v1710 = vpop.f32.mrb[0].mxu0
    %1711 = vdwg.mxu0
    %v1712 = vadd.f32 %v1694, %v698
    %v1713 = vadd.f32 %v1699, %v698
    %v1714 = vadd.f32 %v1704, %v698
    %v1715 = vadd.f32 %v1709, %v698
    %v1720 = vrot.slane %v1712, 1
    %v1721 = vrot.slane %v1713, 1
    %v1722 = vsel %vm325, %v1720, %v1721
    %v1723 = vrot.slane %v1714, 1
    %v1724 = vsel %vm325, %v1721, %v1723
    %v1725 = vrot.slane %v1715, 1
    %v1726 = vsel %vm325, %v1723, %v1725
    %v1731 = vmax.f32 %v1712, %v1722
    %v1732 = vmax.f32 %v1713, %v1724
    %v1733 = vmax.f32 %v1714, %v1726
    %v1734 = vmax.f32 %v1715, %v1725
    %v1736 = vsel %vm370, %v1734, 0
    %1738 = vmatprep.subr.mxu0 0.0
    %1739 = vmatpush1.msra.mxu0 %v1731
    %1740 = vmatprep.subr.mxu0 0.0
    %1741 = vmatpush1.msra.mxu0 %v1732
    %1742 = vmatprep.subr.mxu0 0.0
    %1743 = vmatpush1.msra.mxu0 %v1733
    %1744 = vmatprep.subr.mxu0 0.0
    %1745 = vmatpush1.msra.mxu0 %v1736
    %1746 = vmatprep.subr.mxu0 0.0
    %1747 = vmatpush1.msra.mxu0 0.0
    %1748 = vmatprep.subr.mxu0 0.0
    %1749 = vmatpush1.msra.mxu0 0.0
    %1750 = vmatprep.subr.mxu0 0.0
    %1751 = vmatpush1.msra.mxu0 0.0
    %1752 = vmatprep.subr.mxu0 0.0
    %1753 = vmatpush1.msra.mxu0 0.0
    %1754 = vmatprep.subr.mxu0 0.0
    %1755 = vmatpush1.msra.mxu0 0.0
    %1756 = vmatprep.subr.mxu0 0.0
    %1757 = vmatpush1.msra.mxu0 0.0
    %1758 = vmatprep.subr.mxu0 0.0
    %1759 = vmatpush1.msra.mxu0 0.0
    %1760 = vmatprep.subr.mxu0 0.0
    %1761 = vmatpush1.msra.mxu0 0.0
    %1762 = vmatprep.subr.mxu0 0.0
    %1763 = vmatpush1.msra.mxu0 0.0
    %1764 = vmatprep.subr.mxu0 0.0
    %1765 = vmatpush1.msra.mxu0 0.0
    %1766 = vmatprep.subr.mxu0 0.0
    %1767 = vmatpush1.msra.mxu0 0.0
    %1768 = vmatprep.subr.mxu0 0.0
    %1769 = vmatpush1.msra.mxu0 0.0
    %1770 = vmatprep.subr.mxu0 0.0
    %1771 = vmatpush1.msra.mxu0 0.0
    %1772 = vmatprep.subr.mxu0 0.0
    %1773 = vmatpush1.msra.mxu0 0.0
    %1774 = vmatprep.subr.mxu0 0.0
    %1775 = vmatpush1.msra.mxu0 0.0
    %1776 = vmatprep.subr.mxu0 0.0
    %1777 = vmatpush1.msra.mxu0 0.0
    %1778 = vmatprep.subr.mxu0 0.0
    %1779 = vmatpush1.msra.mxu0 0.0
    %1780 = vmatprep.subr.mxu0 0.0
    %1781 = vmatpush1.msra.mxu0 0.0
    %1782 = vmatprep.subr.mxu0 0.0
    %1783 = vmatpush1.msra.mxu0 0.0
    %1784 = vmatprep.subr.mxu0 0.0
    %1785 = vmatpush1.msra.mxu0 0.0
    %1786 = vmatprep.subr.mxu0 0.0
    %1787 = vmatpush1.msra.mxu0 0.0
    %1788 = vmatprep.subr.mxu0 0.0
    %1789 = vmatpush1.msra.mxu0 0.0
    %1790 = vmatprep.subr.mxu0 0.0
    %1791 = vmatpush1.msra.mxu0 0.0
    %1792 = vmatprep.subr.mxu0 0.0
    %1793 = vmatpush1.msra.mxu0 0.0
    %1794 = vmatprep.subr.mxu0 0.0
    %1795 = vmatpush1.msra.mxu0 0.0
    %1796 = vmatprep.subr.mxu0 0.0
    %1797 = vmatpush1.msra.mxu0 0.0
    %1798 = vmatprep.subr.mxu0 0.0
    %1799 = vmatpush1.msra.mxu0 0.0
    %1800 = vmatprep.subr.mxu0 0.0
    %1801 = vmatpush1.msra.mxu0 0.0
    %1802 = vmatprep.mubr.f32.mxu0 0.0
    %1803 = vmatmul.mubr.f32.gmra.mrb[0].mxu0 %v724
    %v1804 = vpop.f32.mrb[0].mxu0
    %v1805 = vadd.f32 0.0, %v1804
    %v1806 = vpop.f32.mrb[0].mxu0
    %1807 = vmatprep.mubr.f32.mxu0 0.0
    %1808 = vmatmul.mubr.f32.gmra.mrb[0].mxu0 %v726
    %v1809 = vpop.f32.mrb[0].mxu0
    %v1810 = vadd.f32 0.0, %v1809
    %v1811 = vpop.f32.mrb[0].mxu0
    %1812 = vdwg.mxu0
    %v1813 = vmul.f32 %v810, %v815
    %v1814 = vmul.f32 %v810, %v816
    %v1815 = vadd.f32 %v1813, %v1805
    %v1816 = vadd.f32 %v1814, %v1810
    %v1817 = vmul.f32 %v821, %v806
    %v1818 = vmul.f32 %v822, %v806
    %v1819 = vsub.f32 %v1815, %v1817
    %v1820 = vsub.f32 %v1816, %v1818
    %vm1821 = vcmp.gt.f32.partialorder %v1819, %v806
    %vm1822 = vcmp.gt.f32.partialorder %v1820, %v806
    %v1823 = vsel %vm1821, 1, 0
    %v1824 = vsel %vm1822, 1, 0
    %v1825 = vcvt.s32.f32 %v1823
    %v1826 = vcvt.s32.f32 %v1824
    %v1829 = vrot.slane %v1825, 1
    %v1830 = vrot.slane %v1826, 1
    %v1831 = vsel %vm325, %v1829, %v1830
    %v1834 = vsel %vm307, %v1825, %v1831
    %v1836 = vrot.slane %v1826, 2
    %v1838 = vsel %vm307, %v1829, %v1836
    %1839 = vmatprep.subr.mxu0 %v123
    %1840 = vmatpush1.msra.mxu0 %v122
    %1841 = vmatprep.subr.mxu0 %v125
    %1842 = vmatpush1.msra.mxu0 %v124
    %1843 = vmatprep.subr.mxu0 %v127
    %1844 = vmatpush1.msra.mxu0 %v126
    %1845 = vmatprep.subr.mxu0 %v129
    %1846 = vmatpush1.msra.mxu0 %v128
    %1847 = vmatprep.subr.mxu0 %v131
    %1848 = vmatpush1.msra.mxu0 %v130
    %1849 = vmatprep.subr.mxu0 %v133
    %1850 = vmatpush1.msra.mxu0 %v132
    %1851 = vmatprep.subr.mxu0 %v135
    %1852 = vmatpush1.msra.mxu0 %v134
    %1853 = vmatprep.subr.mxu0 %v137
    %1854 = vmatpush1.msra.mxu0 %v136
    %1855 = vmatprep.subr.mxu0 %v139
    %1856 = vmatpush1.msra.mxu0 %v138
    %1857 = vmatprep.subr.mxu0 %v141
    %1858 = vmatpush1.msra.mxu0 %v140
    %1859 = vmatprep.subr.mxu0 %v143
    %1860 = vmatpush1.msra.mxu0 %v142
    %1861 = vmatprep.subr.mxu0 %v145
    %1862 = vmatpush1.msra.mxu0 %v144
    %1863 = vmatprep.subr.mxu0 %v147
    %1864 = vmatpush1.msra.mxu0 %v146
    %1865 = vmatprep.subr.mxu0 %v149
    %1866 = vmatpush1.msra.mxu0 %v148
    %1867 = vmatprep.subr.mxu0 %v151
    %1868 = vmatpush1.msra.mxu0 %v150
    %1869 = vmatprep.subr.mxu0 %v153
    %1870 = vmatpush1.msra.mxu0 %v152
    %1871 = vmatprep.subr.mxu0 0.0
    %1872 = vmatpush1.msra.mxu0 0.0
    %1873 = vmatprep.subr.mxu0 0.0
    %1874 = vmatpush1.msra.mxu0 0.0
    %1875 = vmatprep.subr.mxu0 0.0
    %1876 = vmatpush1.msra.mxu0 0.0
    %1877 = vmatprep.subr.mxu0 0.0
    %1878 = vmatpush1.msra.mxu0 0.0
    %1879 = vmatprep.subr.mxu0 0.0
    %1880 = vmatpush1.msra.mxu0 0.0
    %1881 = vmatprep.subr.mxu0 0.0
    %1882 = vmatpush1.msra.mxu0 0.0
    %1883 = vmatprep.subr.mxu0 0.0
    %1884 = vmatpush1.msra.mxu0 0.0
    %1885 = vmatprep.subr.mxu0 0.0
    %1886 = vmatpush1.msra.mxu0 0.0
    %1887 = vmatprep.subr.mxu0 0.0
    %1888 = vmatpush1.msra.mxu0 0.0
    %1889 = vmatprep.subr.mxu0 0.0
    %1890 = vmatpush1.msra.mxu0 0.0
    %1891 = vmatprep.subr.mxu0 0.0
    %1892 = vmatpush1.msra.mxu0 0.0
    %1893 = vmatprep.subr.mxu0 0.0
    %1894 = vmatpush1.msra.mxu0 0.0
    %1895 = vmatprep.subr.mxu0 0.0
    %1896 = vmatpush1.msra.mxu0 0.0
    %1897 = vmatprep.subr.mxu0 0.0
    %1898 = vmatpush1.msra.mxu0 0.0
    %1899 = vmatprep.subr.mxu0 0.0
    %1900 = vmatpush1.msra.mxu0 0.0
    %1901 = vmatprep.subr.mxu0 0.0
    %1902 = vmatpush1.msra.mxu0 0.0
    %1903 = vmatprep.mubr.f32.mxu0 0.0
    %1904 = vmatmul.mubr.f32.gmra.mrb[0].mxu0 %v1838
    %v1905 = vpop.f32.mrb[0].mxu0
    %v1906 = vadd.f32 0.0, %v1905
    %v1907 = vpop.f32.mrb[0].mxu0
    %v1908 = vadd.f32 0.0, %v1907
    %1909 = vmatprep.mubr.f32.mxu0 0.0
    %1910 = vmatmul.mubr.f32.gmra.mrb[0].mxu0 %v1836
    %v1911 = vpop.f32.mrb[0].mxu0
    %v1912 = vadd.f32 0.0, %v1911
    %v1913 = vpop.f32.mrb[0].mxu0
    %v1914 = vadd.f32 0.0, %v1913
    %1915 = vdwg.mxu0
    %1916 = vmatprep.subr.mxu0 %v91
    %1917 = vmatpush1.msra.mxu0 %v90
    %1918 = vmatprep.subr.mxu0 %v93
    %1919 = vmatpush1.msra.mxu0 %v92
    %1920 = vmatprep.subr.mxu0 %v95
    %1921 = vmatpush1.msra.mxu0 %v94
    %1922 = vmatprep.subr.mxu0 %v97
    %1923 = vmatpush1.msra.mxu0 %v96
    %1924 = vmatprep.subr.mxu0 %v99
    %1925 = vmatpush1.msra.mxu0 %v98
    %1926 = vmatprep.subr.mxu0 %v101
    %1927 = vmatpush1.msra.mxu0 %v100
    %1928 = vmatprep.subr.mxu0 %v103
    %1929 = vmatpush1.msra.mxu0 %v102
    %1930 = vmatprep.subr.mxu0 %v105
    %1931 = vmatpush1.msra.mxu0 %v104
    %1932 = vmatprep.subr.mxu0 %v107
    %1933 = vmatpush1.msra.mxu0 %v106
    %1934 = vmatprep.subr.mxu0 %v109
    %1935 = vmatpush1.msra.mxu0 %v108
    %1936 = vmatprep.subr.mxu0 %v111
    %1937 = vmatpush1.msra.mxu0 %v110
    %1938 = vmatprep.subr.mxu0 %v113
    %1939 = vmatpush1.msra.mxu0 %v112
    %1940 = vmatprep.subr.mxu0 %v115
    %1941 = vmatpush1.msra.mxu0 %v114
    %1942 = vmatprep.subr.mxu0 %v117
    %1943 = vmatpush1.msra.mxu0 %v116
    %1944 = vmatprep.subr.mxu0 %v119
    %1945 = vmatpush1.msra.mxu0 %v118
    %1946 = vmatprep.subr.mxu0 %v121
    %1947 = vmatpush1.msra.mxu0 %v120
    %1948 = vmatprep.subr.mxu0 0.0
    %1949 = vmatpush1.msra.mxu0 0.0
    %1950 = vmatprep.subr.mxu0 0.0
    %1951 = vmatpush1.msra.mxu0 0.0
    %1952 = vmatprep.subr.mxu0 0.0
    %1953 = vmatpush1.msra.mxu0 0.0
    %1954 = vmatprep.subr.mxu0 0.0
    %1955 = vmatpush1.msra.mxu0 0.0
    %1956 = vmatprep.subr.mxu0 0.0
    %1957 = vmatpush1.msra.mxu0 0.0
    %1958 = vmatprep.subr.mxu0 0.0
    %1959 = vmatpush1.msra.mxu0 0.0
    %1960 = vmatprep.subr.mxu0 0.0
    %1961 = vmatpush1.msra.mxu0 0.0
    %1962 = vmatprep.subr.mxu0 0.0
    %1963 = vmatpush1.msra.mxu0 0.0
    %1964 = vmatprep.subr.mxu0 0.0
    %1965 = vmatpush1.msra.mxu0 0.0
    %1966 = vmatprep.subr.mxu0 0.0
    %1967 = vmatpush1.msra.mxu0 0.0
    %1968 = vmatprep.subr.mxu0 0.0
    %1969 = vmatpush1.msra.mxu0 0.0
    %1970 = vmatprep.subr.mxu0 0.0
    %1971 = vmatpush1.msra.mxu0 0.0
    %1972 = vmatprep.subr.mxu0 0.0
    %1973 = vmatpush1.msra.mxu0 0.0
    %1974 = vmatprep.subr.mxu0 0.0
    %1975 = vmatpush1.msra.mxu0 0.0
    %1976 = vmatprep.subr.mxu0 0.0
    %1977 = vmatpush1.msra.mxu0 0.0
    %1978 = vmatprep.subr.mxu0 0.0
    %1979 = vmatpush1.msra.mxu0 0.0
    %1980 = vmatprep.mubr.f32.mxu0 0.0
    %1981 = vmatmul.mubr.f32.gmra.mrb[0].mxu0 %v1834
    %v1982 = vpop.f32.mrb[0].mxu0
    %v1983 = vadd.f32 %v1906, %v1982
    %v1984 = vpop.f32.mrb[0].mxu0
    %v1985 = vadd.f32 %v1908, %v1984
    %1986 = vmatprep.mubr.f32.mxu0 0.0
    %1987 = vmatmul.mubr.f32.gmra.mrb[0].mxu0 %v1830
    %v1988 = vpop.f32.mrb[0].mxu0
    %v1989 = vadd.f32 %v1912, %v1988
    %v1990 = vpop.f32.mrb[0].mxu0
    %v1991 = vadd.f32 %v1914, %v1990
    %1992 = vdwg.mxu0
    %v1993 = vadd.f32 %v1983, %v993
    %v1994 = vadd.f32 %v1985, %v997
    %v1995 = vadd.f32 %v1989, %v993
    %v1996 = vadd.f32 %v1991, %v997
    %v2001 = vrot.slane %v1993, 1
    %v2002 = vrot.slane %v1995, 1
    %v2003 = vsel %vm325, %v2001, %v2002
    %v2004 = vrot.slane %v1994, 1
    %v2005 = vrot.slane %v1996, 1
    %v2006 = vsel %vm325, %v2004, %v2005
    %v2011 = vmax.f32 %v1993, %v2003
    %v2012 = vmax.f32 %v1994, %v2006
    %v2013 = vmax.f32 %v1995, %v2002
    %v2014 = vmax.f32 %v1996, %v2005
    %v2016 = vsel %vm370, %v2013, 0
    %v2019 = vsel %vm370, %v2014, 0
    %2021 = vmatprep.subr.mxu0 %v2012
    %2022 = vmatpush1.msra.mxu0 %v2011
    %2023 = vmatprep.subr.mxu0 %v2019
    %2024 = vmatpush1.msra.mxu0 %v2016
    %2025 = vmatprep.subr.mxu0 0.0
    %2026 = vmatpush1.msra.mxu0 0.0
    %2027 = vmatprep.subr.mxu0 0.0
    %2028 = vmatpush1.msra.mxu0 0.0
    %2029 = vmatprep.subr.mxu0 0.0
    %2030 = vmatpush1.msra.mxu0 0.0
    %2031 = vmatprep.subr.mxu0 0.0
    %2032 = vmatpush1.msra.mxu0 0.0
    %2033 = vmatprep.subr.mxu0 0.0
    %2034 = vmatpush1.msra.mxu0 0.0
    %2035 = vmatprep.subr.mxu0 0.0
    %2036 = vmatpush1.msra.mxu0 0.0
    %2037 = vmatprep.subr.mxu0 0.0
    %2038 = vmatpush1.msra.mxu0 0.0
    %2039 = vmatprep.subr.mxu0 0.0
    %2040 = vmatpush1.msra.mxu0 0.0
    %2041 = vmatprep.subr.mxu0 0.0
    %2042 = vmatpush1.msra.mxu0 0.0
    %2043 = vmatprep.subr.mxu0 0.0
    %2044 = vmatpush1.msra.mxu0 0.0
    %2045 = vmatprep.subr.mxu0 0.0
    %2046 = vmatpush1.msra.mxu0 0.0
    %2047 = vmatprep.subr.mxu0 0.0
    %2048 = vmatpush1.msra.mxu0 0.0
    %2049 = vmatprep.subr.mxu0 0.0
    %2050 = vmatpush1.msra.mxu0 0.0
    %2051 = vmatprep.subr.mxu0 0.0
    %2052 = vmatpush1.msra.mxu0 0.0
    %2053 = vmatprep.subr.mxu0 0.0
    %2054 = vmatpush1.msra.mxu0 0.0
    %2055 = vmatprep.subr.mxu0 0.0
    %2056 = vmatpush1.msra.mxu0 0.0
    %2057 = vmatprep.subr.mxu0 0.0
    %2058 = vmatpush1.msra.mxu0 0.0
    %2059 = vmatprep.subr.mxu0 0.0
    %2060 = vmatpush1.msra.mxu0 0.0
    %2061 = vmatprep.subr.mxu0 0.0
    %2062 = vmatpush1.msra.mxu0 0.0
    %2063 = vmatprep.subr.mxu0 0.0
    %2064 = vmatpush1.msra.mxu0 0.0
    %2065 = vmatprep.subr.mxu0 0.0
    %2066 = vmatpush1.msra.mxu0 0.0
    %2067 = vmatprep.subr.mxu0 0.0
    %2068 = vmatpush1.msra.mxu0 0.0
    %2069 = vmatprep.subr.mxu0 0.0
    %2070 = vmatpush1.msra.mxu0 0.0
    %2071 = vmatprep.subr.mxu0 0.0
    %2072 = vmatpush1.msra.mxu0 0.0
    %2073 = vmatprep.subr.mxu0 0.0
    %2074 = vmatpush1.msra.mxu0 0.0
    %2075 = vmatprep.subr.mxu0 0.0
    %2076 = vmatpush1.msra.mxu0 0.0
    %2077 = vmatprep.subr.mxu0 0.0
    %2078 = vmatpush1.msra.mxu0 0.0
    %2079 = vmatprep.subr.mxu0 0.0
    %2080 = vmatpush1.msra.mxu0 0.0
    %2081 = vmatprep.subr.mxu0 0.0
    %2082 = vmatpush1.msra.mxu0 0.0
    %2083 = vmatprep.subr.mxu0 0.0
    %2084 = vmatpush1.msra.mxu0 0.0
    %2085 = vmatprep.mubr.f32.mxu0 0.0
    %2086 = vmatmul.mubr.f32.gmra.mrb[0].mxu0 %v1023
    %v2087 = vpop.f32.mrb[0].mxu0
    %v2088 = vadd.f32 0.0, %v2087
    %v2089 = vpop.f32.mrb[0].mxu0
    %v2090 = vadd.f32 0.0, %v2089
    %2091 = vdwg.mxu0
    %v2092 = vmul.f32 %v1106, %v1111
    %v2093 = vmul.f32 %v1106, %v1112
    %v2094 = vadd.f32 %v2092, %v2088
    %v2095 = vadd.f32 %v2093, %v2090
    %v2096 = vmul.f32 %v1117, %v1102
    %v2097 = vmul.f32 %v1118, %v1102
    %v2098 = vsub.f32 %v2094, %v2096
    %v2099 = vsub.f32 %v2095, %v2097
    %vm2100 = vcmp.gt.f32.partialorder %v2098, %v1102
    %vm2101 = vcmp.gt.f32.partialorder %v2099, %v1102
    %v2102 = vsel %vm2100, 1, 0
    %v2103 = vsel %vm2101, 1, 0
    %v2104 = vcvt.s32.f32 %v2102
    %v2105 = vcvt.s32.f32 %v2103
    %v2108 = vrot.slane %v2104, 2
    %v2109 = vrot.slane %v2105, 2
    %v2112 = vsel %vm1125, %v2104, %v2108
    %v2113 = vsel %vm1125, %v2105, %v2109
    %v2114 = vld [vmem:[%s8] sm:$0xff]
    %v2115 = vld [vmem:[%s8 + $0x8] sm:$0xff]
    %v2116 = vld [vmem:[%s8 + $0x10] sm:$0xff]
    %v2117 = vld [vmem:[%s8 + $0x18] sm:$0xff]
    %v2118 = vld [vmem:[%s8 + $0x20] sm:$0xff]
    %v2119 = vld [vmem:[%s8 + $0x28] sm:$0xff]
    %v2120 = vld [vmem:[%s8 + $0x30] sm:$0xff]
    %v2121 = vld [vmem:[%s8 + $0x38] sm:$0xff]
    %v2122 = vld [vmem:[%s8 + $0x40] sm:$0xff]
    %v2123 = vld [vmem:[%s8 + $0x48] sm:$0xff]
    %v2124 = vld [vmem:[%s8 + $0x50] sm:$0xff]
    %v2125 = vld [vmem:[%s8 + $0x58] sm:$0xff]
    %v2126 = vld [vmem:[%s8 + $0x60] sm:$0xff]
    %v2127 = vld [vmem:[%s8 + $0x68] sm:$0xff]
    %v2128 = vld [vmem:[%s8 + $0x70] sm:$0xff]
    %v2129 = vld [vmem:[%s8 + $0x78] sm:$0xff]
    %v2130 = vld [vmem:[%s8 + $0x80] sm:$0xff]
    %v2131 = vld [vmem:[%s8 + $0x88] sm:$0xff]
    %v2132 = vld [vmem:[%s8 + $0x90] sm:$0xff]
    %v2133 = vld [vmem:[%s8 + $0x98] sm:$0xff]
    %v2134 = vld [vmem:[%s8 + $0xa0] sm:$0xff]
    %v2135 = vld [vmem:[%s8 + $0xa8] sm:$0xff]
    %v2136 = vld [vmem:[%s8 + $0xb0] sm:$0xff]
    %v2137 = vld [vmem:[%s8 + $0xb8] sm:$0xff]
    %v2138 = vld [vmem:[%s8 + $0xc0] sm:$0xff]
    %v2139 = vld [vmem:[%s8 + $0xc8] sm:$0xff]
    %v2140 = vld [vmem:[%s8 + $0xd0] sm:$0xff]
    %v2141 = vld [vmem:[%s8 + $0xd8] sm:$0xff]
    %v2142 = vld [vmem:[%s8 + $0xe0] sm:$0xff]
    %v2143 = vld [vmem:[%s8 + $0xe8] sm:$0xff]
    %v2144 = vld [vmem:[%s8 + $0xf0] sm:$0xff]
    %v2145 = vld [vmem:[%s8 + $0xf8] sm:$0xff]
    %2146 = vmatprep.subr.mxu0 0.0
    %2147 = vmatpush1.msra.mxu0 %v2114
    %2148 = vmatprep.subr.mxu0 0.0
    %2149 = vmatpush1.msra.mxu0 %v2115
    %2150 = vmatprep.subr.mxu0 0.0
    %2151 = vmatpush1.msra.mxu0 %v2116
    %2152 = vmatprep.subr.mxu0 0.0
    %2153 = vmatpush1.msra.mxu0 %v2117
    %2154 = vmatprep.subr.mxu0 0.0
    %2155 = vmatpush1.msra.mxu0 %v2118
    %2156 = vmatprep.subr.mxu0 0.0
    %2157 = vmatpush1.msra.mxu0 %v2119
    %2158 = vmatprep.subr.mxu0 0.0
    %2159 = vmatpush1.msra.mxu0 %v2120
    %2160 = vmatprep.subr.mxu0 0.0
    %2161 = vmatpush1.msra.mxu0 %v2121
    %2162 = vmatprep.subr.mxu0 0.0
    %2163 = vmatpush1.msra.mxu0 %v2122
    %2164 = vmatprep.subr.mxu0 0.0
    %2165 = vmatpush1.msra.mxu0 %v2123
    %2166 = vmatprep.subr.mxu0 0.0
    %2167 = vmatpush1.msra.mxu0 %v2124
    %2168 = vmatprep.subr.mxu0 0.0
    %2169 = vmatpush1.msra.mxu0 %v2125
    %2170 = vmatprep.subr.mxu0 0.0
    %2171 = vmatpush1.msra.mxu0 %v2126
    %2172 = vmatprep.subr.mxu0 0.0
    %2173 = vmatpush1.msra.mxu0 %v2127
    %2174 = vmatprep.subr.mxu0 0.0
    %2175 = vmatpush1.msra.mxu0 %v2128
    %2176 = vmatprep.subr.mxu0 0.0
    %2177 = vmatpush1.msra.mxu0 %v2129
    %2178 = vmatprep.subr.mxu0 0.0
    %2179 = vmatpush1.msra.mxu0 %v2130
    %2180 = vmatprep.subr.mxu0 0.0
    %2181 = vmatpush1.msra.mxu0 %v2131
    %2182 = vmatprep.subr.mxu0 0.0
    %2183 = vmatpush1.msra.mxu0 %v2132
    %2184 = vmatprep.subr.mxu0 0.0
    %2185 = vmatpush1.msra.mxu0 %v2133
    %2186 = vmatprep.subr.mxu0 0.0
    %2187 = vmatpush1.msra.mxu0 %v2134
    %2188 = vmatprep.subr.mxu0 0.0
    %2189 = vmatpush1.msra.mxu0 %v2135
    %2190 = vmatprep.subr.mxu0 0.0
    %2191 = vmatpush1.msra.mxu0 %v2136
    %2192 = vmatprep.subr.mxu0 0.0
    %2193 = vmatpush1.msra.mxu0 %v2137
    %2194 = vmatprep.subr.mxu0 0.0
    %2195 = vmatpush1.msra.mxu0 %v2138
    %2196 = vmatprep.subr.mxu0 0.0
    %2197 = vmatpush1.msra.mxu0 %v2139
    %2198 = vmatprep.subr.mxu0 0.0
    %2199 = vmatpush1.msra.mxu0 %v2140
    %2200 = vmatprep.subr.mxu0 0.0
    %2201 = vmatpush1.msra.mxu0 %v2141
    %2202 = vmatprep.subr.mxu0 0.0
    %2203 = vmatpush1.msra.mxu0 %v2142
    %2204 = vmatprep.subr.mxu0 0.0
    %2205 = vmatpush1.msra.mxu0 %v2143
    %2206 = vmatprep.subr.mxu0 0.0
    %2207 = vmatpush1.msra.mxu0 %v2144
    %2208 = vmatprep.subr.mxu0 0.0
    %2209 = vmatpush1.msra.mxu0 %v2145
    %2210 = vmatprep.mubr.f32.mxu0 %v2113
    %2211 = vmatmul.mubr.f32.gmra.mrb[0].mxu0 %v2112
    %v2212 = vpop.f32.mrb[0].mxu0
    %v2213 = vadd.f32 0.0, %v2212
    %v2214 = vpop.f32.mrb[0].mxu0
    %2215 = vdwg.mxu0
    %v2216 = vadd.f32 %v1234, %v2213
    %v2217 = vrot.slane %v2104, 1
    %v2218 = vrot.slane %v2105, 1
    %v2221 = vrot.slane %v2104, 3
    %v2222 = vrot.slane %v2105, 3
    %v2225 = vsel %vm1125, %v2217, %v2221
    %v2226 = vsel %vm1125, %v2218, %v2222
    %v2227 = vld [vmem:[%s1247] sm:$0xff]
    %v2228 = vld [vmem:[%s1247 + $0x8] sm:$0xff]
    %v2229 = vld [vmem:[%s1247 + $0x10] sm:$0xff]
    %v2230 = vld [vmem:[%s1247 + $0x18] sm:$0xff]
    %v2231 = vld [vmem:[%s1247 + $0x20] sm:$0xff]
    %v2232 = vld [vmem:[%s1247 + $0x28] sm:$0xff]
    %v2233 = vld [vmem:[%s1247 + $0x30] sm:$0xff]
    %v2234 = vld [vmem:[%s1247 + $0x38] sm:$0xff]
    %v2235 = vld [vmem:[%s1247 + $0x40] sm:$0xff]
    %v2236 = vld [vmem:[%s1247 + $0x48] sm:$0xff]
    %v2237 = vld [vmem:[%s1247 + $0x50] sm:$0xff]
    %v2238 = vld [vmem:[%s1247 + $0x58] sm:$0xff]
    %v2239 = vld [vmem:[%s1247 + $0x60] sm:$0xff]
    %v2240 = vld [vmem:[%s1247 + $0x68] sm:$0xff]
    %v2241 = vld [vmem:[%s1247 + $0x70] sm:$0xff]
    %v2242 = vld [vmem:[%s1247 + $0x78] sm:$0xff]
    %v2243 = vld [vmem:[%s1247 + $0x80] sm:$0xff]
    %v2244 = vld [vmem:[%s1247 + $0x88] sm:$0xff]
    %v2245 = vld [vmem:[%s1247 + $0x90] sm:$0xff]
    %v2246 = vld [vmem:[%s1247 + $0x98] sm:$0xff]
    %v2247 = vld [vmem:[%s1247 + $0xa0] sm:$0xff]
    %v2248 = vld [vmem:[%s1247 + $0xa8] sm:$0xff]
    %v2249 = vld [vmem:[%s1247 + $0xb0] sm:$0xff]
    %v2250 = vld [vmem:[%s1247 + $0xb8] sm:$0xff]
    %v2251 = vld [vmem:[%s1247 + $0xc0] sm:$0xff]
    %v2252 = vld [vmem:[%s1247 + $0xc8] sm:$0xff]
    %v2253 = vld [vmem:[%s1247 + $0xd0] sm:$0xff]
    %v2254 = vld [vmem:[%s1247 + $0xd8] sm:$0xff]
    %v2255 = vld [vmem:[%s1247 + $0xe0] sm:$0xff]
    %v2256 = vld [vmem:[%s1247 + $0xe8] sm:$0xff]
    %v2257 = vld [vmem:[%s1247 + $0xf0] sm:$0xff]
    %v2258 = vld [vmem:[%s1247 + $0xf8] sm:$0xff]
    %2259 = vmatprep.subr.mxu0 0.0
    %2260 = vmatpush1.msra.mxu0 %v2227
    %2261 = vmatprep.subr.mxu0 0.0
    %2262 = vmatpush1.msra.mxu0 %v2228
    %2263 = vmatprep.subr.mxu0 0.0
    %2264 = vmatpush1.msra.mxu0 %v2229
    %2265 = vmatprep.subr.mxu0 0.0
    %2266 = vmatpush1.msra.mxu0 %v2230
    %2267 = vmatprep.subr.mxu0 0.0
    %2268 = vmatpush1.msra.mxu0 %v2231
    %2269 = vmatprep.subr.mxu0 0.0
    %2270 = vmatpush1.msra.mxu0 %v2232
    %2271 = vmatprep.subr.mxu0 0.0
    %2272 = vmatpush1.msra.mxu0 %v2233
    %2273 = vmatprep.subr.mxu0 0.0
    %2274 = vmatpush1.msra.mxu0 %v2234
    %2275 = vmatprep.subr.mxu0 0.0
    %2276 = vmatpush1.msra.mxu0 %v2235
    %2277 = vmatprep.subr.mxu0 0.0
    %2278 = vmatpush1.msra.mxu0 %v2236
    %2279 = vmatprep.subr.mxu0 0.0
    %2280 = vmatpush1.msra.mxu0 %v2237
    %2281 = vmatprep.subr.mxu0 0.0
    %2282 = vmatpush1.msra.mxu0 %v2238
    %2283 = vmatprep.subr.mxu0 0.0
    %2284 = vmatpush1.msra.mxu0 %v2239
    %2285 = vmatprep.subr.mxu0 0.0
    %2286 = vmatpush1.msra.mxu0 %v2240
    %2287 = vmatprep.subr.mxu0 0.0
    %2288 = vmatpush1.msra.mxu0 %v2241
    %2289 = vmatprep.subr.mxu0 0.0
    %2290 = vmatpush1.msra.mxu0 %v2242
    %2291 = vmatprep.subr.mxu0 0.0
    %2292 = vmatpush1.msra.mxu0 %v2243
    %2293 = vmatprep.subr.mxu0 0.0
    %2294 = vmatpush1.msra.mxu0 %v2244
    %2295 = vmatprep.subr.mxu0 0.0
    %2296 = vmatpush1.msra.mxu0 %v2245
    %2297 = vmatprep.subr.mxu0 0.0
    %2298 = vmatpush1.msra.mxu0 %v2246
    %2299 = vmatprep.subr.mxu0 0.0
    %2300 = vmatpush1.msra.mxu0 %v2247
    %2301 = vmatprep.subr.mxu0 0.0
    %2302 = vmatpush1.msra.mxu0 %v2248
    %2303 = vmatprep.subr.mxu0 0.0
    %2304 = vmatpush1.msra.mxu0 %v2249
    %2305 = vmatprep.subr.mxu0 0.0
    %2306 = vmatpush1.msra.mxu0 %v2250
    %2307 = vmatprep.subr.mxu0 0.0
    %2308 = vmatpush1.msra.mxu0 %v2251
    %2309 = vmatprep.subr.mxu0 0.0
    %2310 = vmatpush1.msra.mxu0 %v2252
    %2311 = vmatprep.subr.mxu0 0.0
    %2312 = vmatpush1.msra.mxu0 %v2253
    %2313 = vmatprep.subr.mxu0 0.0
    %2314 = vmatpush1.msra.mxu0 %v2254
    %2315 = vmatprep.subr.mxu0 0.0
    %2316 = vmatpush1.msra.mxu0 %v2255
    %2317 = vmatprep.subr.mxu0 0.0
    %2318 = vmatpush1.msra.mxu0 %v2256
    %2319 = vmatprep.subr.mxu0 0.0
    %2320 = vmatpush1.msra.mxu0 %v2257
    %2321 = vmatprep.subr.mxu0 0.0
    %2322 = vmatpush1.msra.mxu0 %v2258
    %2323 = vmatprep.mubr.f32.mxu0 %v2226
    %2324 = vmatmul.mubr.f32.gmra.mrb[0].mxu0 %v2225
    %v2325 = vpop.f32.mrb[0].mxu0
    %v2326 = vadd.f32 0.0, %v2325
    %v2327 = vpop.f32.mrb[0].mxu0
    %2328 = vdwg.mxu0
    %v2329 = vadd.f32 %v2216, %v2326
    %v2330 = vrot.slane %v2104, 4
    %v2331 = vrot.slane %v2105, 4
    %v2334 = vsel %vm1125, %v2108, %v2330
    %v2335 = vsel %vm1125, %v2109, %v2331
    %v2336 = vld [vmem:[%s1357] sm:$0xff]
    %v2337 = vld [vmem:[%s1357 + $0x8] sm:$0xff]
    %v2338 = vld [vmem:[%s1357 + $0x10] sm:$0xff]
    %v2339 = vld [vmem:[%s1357 + $0x18] sm:$0xff]
    %v2340 = vld [vmem:[%s1357 + $0x20] sm:$0xff]
    %v2341 = vld [vmem:[%s1357 + $0x28] sm:$0xff]
    %v2342 = vld [vmem:[%s1357 + $0x30] sm:$0xff]
    %v2343 = vld [vmem:[%s1357 + $0x38] sm:$0xff]
    %v2344 = vld [vmem:[%s1357 + $0x40] sm:$0xff]
    %v2345 = vld [vmem:[%s1357 + $0x48] sm:$0xff]
    %v2346 = vld [vmem:[%s1357 + $0x50] sm:$0xff]
    %v2347 = vld [vmem:[%s1357 + $0x58] sm:$0xff]
    %v2348 = vld [vmem:[%s1357 + $0x60] sm:$0xff]
    %v2349 = vld [vmem:[%s1357 + $0x68] sm:$0xff]
    %v2350 = vld [vmem:[%s1357 + $0x70] sm:$0xff]
    %v2351 = vld [vmem:[%s1357 + $0x78] sm:$0xff]
    %v2352 = vld [vmem:[%s1357 + $0x80] sm:$0xff]
    %v2353 = vld [vmem:[%s1357 + $0x88] sm:$0xff]
    %v2354 = vld [vmem:[%s1357 + $0x90] sm:$0xff]
    %v2355 = vld [vmem:[%s1357 + $0x98] sm:$0xff]
    %v2356 = vld [vmem:[%s1357 + $0xa0] sm:$0xff]
    %v2357 = vld [vmem:[%s1357 + $0xa8] sm:$0xff]
    %v2358 = vld [vmem:[%s1357 + $0xb0] sm:$0xff]
    %v2359 = vld [vmem:[%s1357 + $0xb8] sm:$0xff]
    %v2360 = vld [vmem:[%s1357 + $0xc0] sm:$0xff]
    %v2361 = vld [vmem:[%s1357 + $0xc8] sm:$0xff]
    %v2362 = vld [vmem:[%s1357 + $0xd0] sm:$0xff]
    %v2363 = vld [vmem:[%s1357 + $0xd8] sm:$0xff]
    %v2364 = vld [vmem:[%s1357 + $0xe0] sm:$0xff]
    %v2365 = vld [vmem:[%s1357 + $0xe8] sm:$0xff]
    %v2366 = vld [vmem:[%s1357 + $0xf0] sm:$0xff]
    %v2367 = vld [vmem:[%s1357 + $0xf8] sm:$0xff]
    %2368 = vmatprep.subr.mxu0 0.0
    %2369 = vmatpush1.msra.mxu0 %v2336
    %2370 = vmatprep.subr.mxu0 0.0
    %2371 = vmatpush1.msra.mxu0 %v2337
    %2372 = vmatprep.subr.mxu0 0.0
    %2373 = vmatpush1.msra.mxu0 %v2338
    %2374 = vmatprep.subr.mxu0 0.0
    %2375 = vmatpush1.msra.mxu0 %v2339
    %2376 = vmatprep.subr.mxu0 0.0
    %2377 = vmatpush1.msra.mxu0 %v2340
    %2378 = vmatprep.subr.mxu0 0.0
    %2379 = vmatpush1.msra.mxu0 %v2341
    %2380 = vmatprep.subr.mxu0 0.0
    %2381 = vmatpush1.msra.mxu0 %v2342
    %2382 = vmatprep.subr.mxu0 0.0
    %2383 = vmatpush1.msra.mxu0 %v2343
    %2384 = vmatprep.subr.mxu0 0.0
    %2385 = vmatpush1.msra.mxu0 %v2344
    %2386 = vmatprep.subr.mxu0 0.0
    %2387 = vmatpush1.msra.mxu0 %v2345
    %2388 = vmatprep.subr.mxu0 0.0
    %2389 = vmatpush1.msra.mxu0 %v2346
    %2390 = vmatprep.subr.mxu0 0.0
    %2391 = vmatpush1.msra.mxu0 %v2347
    %2392 = vmatprep.subr.mxu0 0.0
    %2393 = vmatpush1.msra.mxu0 %v2348
    %2394 = vmatprep.subr.mxu0 0.0
    %2395 = vmatpush1.msra.mxu0 %v2349
    %2396 = vmatprep.subr.mxu0 0.0
    %2397 = vmatpush1.msra.mxu0 %v2350
    %2398 = vmatprep.subr.mxu0 0.0
    %2399 = vmatpush1.msra.mxu0 %v2351
    %2400 = vmatprep.subr.mxu0 0.0
    %2401 = vmatpush1.msra.mxu0 %v2352
    %2402 = vmatprep.subr.mxu0 0.0
    %2403 = vmatpush1.msra.mxu0 %v2353
    %2404 = vmatprep.subr.mxu0 0.0
    %2405 = vmatpush1.msra.mxu0 %v2354
    %2406 = vmatprep.subr.mxu0 0.0
    %2407 = vmatpush1.msra.mxu0 %v2355
    %2408 = vmatprep.subr.mxu0 0.0
    %2409 = vmatpush1.msra.mxu0 %v2356
    %2410 = vmatprep.subr.mxu0 0.0
    %2411 = vmatpush1.msra.mxu0 %v2357
    %2412 = vmatprep.subr.mxu0 0.0
    %2413 = vmatpush1.msra.mxu0 %v2358
    %2414 = vmatprep.subr.mxu0 0.0
    %2415 = vmatpush1.msra.mxu0 %v2359
    %2416 = vmatprep.subr.mxu0 0.0
    %2417 = vmatpush1.msra.mxu0 %v2360
    %2418 = vmatprep.subr.mxu0 0.0
    %2419 = vmatpush1.msra.mxu0 %v2361
    %2420 = vmatprep.subr.mxu0 0.0
    %2421 = vmatpush1.msra.mxu0 %v2362
    %2422 = vmatprep.subr.mxu0 0.0
    %2423 = vmatpush1.msra.mxu0 %v2363
    %2424 = vmatprep.subr.mxu0 0.0
    %2425 = vmatpush1.msra.mxu0 %v2364
    %2426 = vmatprep.subr.mxu0 0.0
    %2427 = vmatpush1.msra.mxu0 %v2365
    %2428 = vmatprep.subr.mxu0 0.0
    %2429 = vmatpush1.msra.mxu0 %v2366
    %2430 = vmatprep.subr.mxu0 0.0
    %2431 = vmatpush1.msra.mxu0 %v2367
    %2432 = vmatprep.mubr.f32.mxu0 %v2335
    %2433 = vmatmul.mubr.f32.gmra.mrb[0].mxu0 %v2334
    %v2434 = vpop.f32.mrb[0].mxu0
    %v2435 = vadd.f32 0.0, %v2434
    %v2436 = vpop.f32.mrb[0].mxu0
    %2437 = vdwg.mxu0
    %v2438 = vadd.f32 %v2329, %v2435
    %v2439 = vmul.f32 %v1465, %v1469
    %v2440 = vadd.f32 %v2439, %v2438
    %v2441 = vmul.f32 %v1472, %v1461
    %v2442 = vsub.f32 %v2440, %v2441
    %vm2443 = vcmp.gt.f32.partialorder %v2442, %v1461
    %v2444 = vsel %vm2443, 1, 0
    %v2445 = vcvt.s32.f32 %v2444
    %s2446 = scalar_lea.vmem %s10, 2
    %2447 = vst.msk [vmem:[%s2446] sm:$0x3] %vm1473, %v2438
    %s2448 = scalar_lea.vmem %s11, 2
    %2449 = vst.msk [vmem:[%s2448] sm:$0x3] %vm1473, %v2445
    %s2450 = scalar_lea.vmem %s12, 2
    %2451 = vst.msk [vmem:[%s2450] sm:$0x3] %vm1473, %v2442
    %v2452 = vmul.f32 %v463, %v1489
    %v2453 = vmul.f32 %v463, %v1490
    %v2454 = vmul.f32 %v463, %v1491
    %v2455 = vmul.f32 %v463, %v1492
    %v2456 = vadd.f32 %v2452, %v441
    %v2457 = vadd.f32 %v2453, %v446
    %v2458 = vadd.f32 %v2454, %v451
    %v2459 = vadd.f32 %v2455, %v456
    %v2460 = vmul.f32 %v1501, %v459
    %v2461 = vmul.f32 %v1502, %v459
    %v2462 = vmul.f32 %v1503, %v459
    %v2463 = vmul.f32 %v1504, %v459
    %v2464 = vsub.f32 %v2456, %v2460
    %v2465 = vsub.f32 %v2457, %v2461
    %v2466 = vsub.f32 %v2458, %v2462
    %v2467 = vsub.f32 %v2459, %v2463
    %vm2468 = vcmp.gt.f32.partialorder %v2464, %v459
    %vm2469 = vcmp.gt.f32.partialorder %v2465, %v459
    %vm2470 = vcmp.gt.f32.partialorder %v2466, %v459
    %vm2471 = vcmp.gt.f32.partialorder %v2467, %v459
    %v2472 = vsel %vm2468, 1, 0
    %v2473 = vsel %vm2469, 1, 0
    %v2474 = vsel %vm2470, 1, 0
    %v2475 = vsel %vm2471, 1, 0
    %v2476 = vcvt.s32.f32 %v2472
    %v2477 = vcvt.s32.f32 %v2473
    %v2478 = vcvt.s32.f32 %v2474
    %v2479 = vcvt.s32.f32 %v2475
    %v2483 = vrot.slane %v2477, 1
    %v2484 = vrot.slane %v2478, 1
    %v2485 = vsel %vm325, %v2483, %v2484
    %v2486 = vrot.slane %v2479, 1
    %v2487 = vsel %vm325, %v2484, %v2486
    %v2489 = vsel %vm307, %v2477, %v2485
    %v2491 = vrot.slane %v2476, 1
    %v2492 = vsel %vm325, %v2491, %v2483
    %v2494 = vrot.slane %v2478, 2
    %v2495 = vrot.slane %v2479, 2
    %v2496 = vsel %vm307, %v2494, %v2495
    %v2498 = vsel %vm307, %v2483, %v2494
    %v2499 = vsel %vm505, %v2492, 0
    %v2502 = vsel %vm505, %v2498, 0
    %v2504 = vsel %vm505, %v2496, 0
    %v2506 = vsel %vm505, %v2495, 0
    %2508 = vmatprep.subr.mxu0 0.0
    %2509 = vmatpush1.msra.mxu0 %v86
    %2510 = vmatprep.subr.mxu0 0.0
    %2511 = vmatpush1.msra.mxu0 %v87
    %2512 = vmatprep.subr.mxu0 0.0
    %2513 = vmatpush1.msra.mxu0 %v88
    %2514 = vmatprep.subr.mxu0 0.0
    %2515 = vmatpush1.msra.mxu0 %v89
    %2516 = vmatprep.subr.mxu0 0.0
    %2517 = vmatpush1.msra.mxu0 0.0
    %2518 = vmatprep.subr.mxu0 0.0
    %2519 = vmatpush1.msra.mxu0 0.0
    %2520 = vmatprep.subr.mxu0 0.0
    %2521 = vmatpush1.msra.mxu0 0.0
    %2522 = vmatprep.subr.mxu0 0.0
    %2523 = vmatpush1.msra.mxu0 0.0
    %2524 = vmatprep.subr.mxu0 0.0
    %2525 = vmatpush1.msra.mxu0 0.0
    %2526 = vmatprep.subr.mxu0 0.0
    %2527 = vmatpush1.msra.mxu0 0.0
    %2528 = vmatprep.subr.mxu0 0.0
    %2529 = vmatpush1.msra.mxu0 0.0
    %2530 = vmatprep.subr.mxu0 0.0
    %2531 = vmatpush1.msra.mxu0 0.0
    %2532 = vmatprep.subr.mxu0 0.0
    %2533 = vmatpush1.msra.mxu0 0.0
    %2534 = vmatprep.subr.mxu0 0.0
    %2535 = vmatpush1.msra.mxu0 0.0
    %2536 = vmatprep.subr.mxu0 0.0
    %2537 = vmatpush1.msra.mxu0 0.0
    %2538 = vmatprep.subr.mxu0 0.0
    %2539 = vmatpush1.msra.mxu0 0.0
    %2540 = vmatprep.subr.mxu0 0.0
    %2541 = vmatpush1.msra.mxu0 0.0
    %2542 = vmatprep.subr.mxu0 0.0
    %2543 = vmatpush1.msra.mxu0 0.0
    %2544 = vmatprep.subr.mxu0 0.0
    %2545 = vmatpush1.msra.mxu0 0.0
    %2546 = vmatprep.subr.mxu0 0.0
    %2547 = vmatpush1.msra.mxu0 0.0
    %2548 = vmatprep.subr.mxu0 0.0
    %2549 = vmatpush1.msra.mxu0 0.0
    %2550 = vmatprep.subr.mxu0 0.0
    %2551 = vmatpush1.msra.mxu0 0.0
    %2552 = vmatprep.subr.mxu0 0.0
    %2553 = vmatpush1.msra.mxu0 0.0
    %2554 = vmatprep.subr.mxu0 0.0
    %2555 = vmatpush1.msra.mxu0 0.0
    %2556 = vmatprep.subr.mxu0 0.0
    %2557 = vmatpush1.msra.mxu0 0.0
    %2558 = vmatprep.subr.mxu0 0.0
    %2559 = vmatpush1.msra.mxu0 0.0
    %2560 = vmatprep.subr.mxu0 0.0
    %2561 = vmatpush1.msra.mxu0 0.0
    %2562 = vmatprep.subr.mxu0 0.0
    %2563 = vmatpush1.msra.mxu0 0.0
    %2564 = vmatprep.subr.mxu0 0.0
    %2565 = vmatpush1.msra.mxu0 0.0
    %2566 = vmatprep.subr.mxu0 0.0
    %2567 = vmatpush1.msra.mxu0 0.0
    %2568 = vmatprep.subr.mxu0 0.0
    %2569 = vmatpush1.msra.mxu0 0.0
    %2570 = vmatprep.subr.mxu0 0.0
    %2571 = vmatpush1.msra.mxu0 0.0
    %2572 = vmatprep.mubr.f32.mxu0 0.0
    %2573 = vmatmul.mubr.f32.gmra.mrb[0].mxu0 %v2499
    %v2574 = vpop.f32.mrb[0].mxu0
    %v2575 = vadd.f32 0.0, %v2574
    %v2576 = vpop.f32.mrb[0].mxu0
    %2577 = vmatprep.mubr.f32.mxu0 0.0
    %2578 = vmatmul.mubr.f32.gmra.mrb[0].mxu0 %v2502
    %v2579 = vpop.f32.mrb[0].mxu0
    %v2580 = vadd.f32 0.0, %v2579
    %v2581 = vpop.f32.mrb[0].mxu0
    %2582 = vmatprep.mubr.f32.mxu0 0.0
    %2583 = vmatmul.mubr.f32.gmra.mrb[0].mxu0 %v2504
    %v2584 = vpop.f32.mrb[0].mxu0
    %v2585 = vadd.f32 0.0, %v2584
    %v2586 = vpop.f32.mrb[0].mxu0
    %2587 = vmatprep.mubr.f32.mxu0 0.0
    %2588 = vmatmul.mubr.f32.gmra.mrb[0].mxu0 %v2506
    %v2589 = vpop.f32.mrb[0].mxu0
    %v2590 = vadd.f32 0.0, %v2589
    %v2591 = vpop.f32.mrb[0].mxu0
    %2592 = vdwg.mxu0
    %v2593 = vsel %vm505, %v2476, 0
    %v2596 = vsel %vm505, %v2489, 0
    %v2598 = vsel %vm505, %v2487, 0
    %v2600 = vsel %vm505, %v2486, 0
    %2602 = vmatprep.subr.mxu0 0.0
    %2603 = vmatpush1.msra.mxu0 %v82
    %2604 = vmatprep.subr.mxu0 0.0
    %2605 = vmatpush1.msra.mxu0 %v83
    %2606 = vmatprep.subr.mxu0 0.0
    %2607 = vmatpush1.msra.mxu0 %v84
    %2608 = vmatprep.subr.mxu0 0.0
    %2609 = vmatpush1.msra.mxu0 %v85
    %2610 = vmatprep.subr.mxu0 0.0
    %2611 = vmatpush1.msra.mxu0 0.0
    %2612 = vmatprep.subr.mxu0 0.0
    %2613 = vmatpush1.msra.mxu0 0.0
    %2614 = vmatprep.subr.mxu0 0.0
    %2615 = vmatpush1.msra.mxu0 0.0
    %2616 = vmatprep.subr.mxu0 0.0
    %2617 = vmatpush1.msra.mxu0 0.0
    %2618 = vmatprep.subr.mxu0 0.0
    %2619 = vmatpush1.msra.mxu0 0.0
    %2620 = vmatprep.subr.mxu0 0.0
    %2621 = vmatpush1.msra.mxu0 0.0
    %2622 = vmatprep.subr.mxu0 0.0
    %2623 = vmatpush1.msra.mxu0 0.0
    %2624 = vmatprep.subr.mxu0 0.0
    %2625 = vmatpush1.msra.mxu0 0.0
    %2626 = vmatprep.subr.mxu0 0.0
    %2627 = vmatpush1.msra.mxu0 0.0
    %2628 = vmatprep.subr.mxu0 0.0
    %2629 = vmatpush1.msra.mxu0 0.0
    %2630 = vmatprep.subr.mxu0 0.0
    %2631 = vmatpush1.msra.mxu0 0.0
    %2632 = vmatprep.subr.mxu0 0.0
    %2633 = vmatpush1.msra.mxu0 0.0
    %2634 = vmatprep.subr.mxu0 0.0
    %2635 = vmatpush1.msra.mxu0 0.0
    %2636 = vmatprep.subr.mxu0 0.0
    %2637 = vmatpush1.msra.mxu0 0.0
    %2638 = vmatprep.subr.mxu0 0.0
    %2639 = vmatpush1.msra.mxu0 0.0
    %2640 = vmatprep.subr.mxu0 0.0
    %2641 = vmatpush1.msra.mxu0 0.0
    %2642 = vmatprep.subr.mxu0 0.0
    %2643 = vmatpush1.msra.mxu0 0.0
    %2644 = vmatprep.subr.mxu0 0.0
    %2645 = vmatpush1.msra.mxu0 0.0
    %2646 = vmatprep.subr.mxu0 0.0
    %2647 = vmatpush1.msra.mxu0 0.0
    %2648 = vmatprep.subr.mxu0 0.0
    %2649 = vmatpush1.msra.mxu0 0.0
    %2650 = vmatprep.subr.mxu0 0.0
    %2651 = vmatpush1.msra.mxu0 0.0
    %2652 = vmatprep.subr.mxu0 0.0
    %2653 = vmatpush1.msra.mxu0 0.0
    %2654 = vmatprep.subr.mxu0 0.0
    %2655 = vmatpush1.msra.mxu0 0.0
    %2656 = vmatprep.subr.mxu0 0.0
    %2657 = vmatpush1.msra.mxu0 0.0
    %2658 = vmatprep.subr.mxu0 0.0
    %2659 = vmatpush1.msra.mxu0 0.0
    %2660 = vmatprep.subr.mxu0 0.0
    %2661 = vmatpush1.msra.mxu0 0.0
    %2662 = vmatprep.subr.mxu0 0.0
    %2663 = vmatpush1.msra.mxu0 0.0
    %2664 = vmatprep.subr.mxu0 0.0
    %2665 = vmatpush1.msra.mxu0 0.0
    %2666 = vmatprep.mubr.f32.mxu0 0.0
    %2667 = vmatmul.mubr.f32.gmra.mrb[0].mxu0 %v2593
    %v2668 = vpop.f32.mrb[0].mxu0
    %v2669 = vadd.f32 %v2575, %v2668
    %v2670 = vpop.f32.mrb[0].mxu0
    %2671 = vmatprep.mubr.f32.mxu0 0.0
    %2672 = vmatmul.mubr.f32.gmra.mrb[0].mxu0 %v2596
    %v2673 = vpop.f32.mrb[0].mxu0
    %v2674 = vadd.f32 %v2580, %v2673
    %v2675 = vpop.f32.mrb[0].mxu0
    %2676 = vmatprep.mubr.f32.mxu0 0.0
    %2677 = vmatmul.mubr.f32.gmra.mrb[0].mxu0 %v2598
    %v2678 = vpop.f32.mrb[0].mxu0
    %v2679 = vadd.f32 %v2585, %v2678
    %v2680 = vpop.f32.mrb[0].mxu0
    %2681 = vmatprep.mubr.f32.mxu0 0.0
    %2682 = vmatmul.mubr.f32.gmra.mrb[0].mxu0 %v2600
    %v2683 = vpop.f32.mrb[0].mxu0
    %v2684 = vadd.f32 %v2590, %v2683
    %v2685 = vpop.f32.mrb[0].mxu0
    %2686 = vdwg.mxu0
    %v2687 = vadd.f32 %v2669, %v698
    %v2688 = vadd.f32 %v2674, %v698
    %v2689 = vadd.f32 %v2679, %v698
    %v2690 = vadd.f32 %v2684, %v698
    %v2695 = vrot.slane %v2687, 1
    %v2696 = vrot.slane %v2688, 1
    %v2697 = vsel %vm325, %v2695, %v2696
    %v2698 = vrot.slane %v2689, 1
    %v2699 = vsel %vm325, %v2696, %v2698
    %v2700 = vrot.slane %v2690, 1
    %v2701 = vsel %vm325, %v2698, %v2700
    %v2706 = vmax.f32 %v2687, %v2697
    %v2707 = vmax.f32 %v2688, %v2699
    %v2708 = vmax.f32 %v2689, %v2701
    %v2709 = vmax.f32 %v2690, %v2700
    %v2711 = vsel %vm370, %v2709, 0
    %2713 = vmatprep.subr.mxu0 0.0
    %2714 = vmatpush1.msra.mxu0 %v2706
    %2715 = vmatprep.subr.mxu0 0.0
    %2716 = vmatpush1.msra.mxu0 %v2707
    %2717 = vmatprep.subr.mxu0 0.0
    %2718 = vmatpush1.msra.mxu0 %v2708
    %2719 = vmatprep.subr.mxu0 0.0
    %2720 = vmatpush1.msra.mxu0 %v2711
    %2721 = vmatprep.subr.mxu0 0.0
    %2722 = vmatpush1.msra.mxu0 0.0
    %2723 = vmatprep.subr.mxu0 0.0
    %2724 = vmatpush1.msra.mxu0 0.0
    %2725 = vmatprep.subr.mxu0 0.0
    %2726 = vmatpush1.msra.mxu0 0.0
    %2727 = vmatprep.subr.mxu0 0.0
    %2728 = vmatpush1.msra.mxu0 0.0
    %2729 = vmatprep.subr.mxu0 0.0
    %2730 = vmatpush1.msra.mxu0 0.0
    %2731 = vmatprep.subr.mxu0 0.0
    %2732 = vmatpush1.msra.mxu0 0.0
    %2733 = vmatprep.subr.mxu0 0.0
    %2734 = vmatpush1.msra.mxu0 0.0
    %2735 = vmatprep.subr.mxu0 0.0
    %2736 = vmatpush1.msra.mxu0 0.0
    %2737 = vmatprep.subr.mxu0 0.0
    %2738 = vmatpush1.msra.mxu0 0.0
    %2739 = vmatprep.subr.mxu0 0.0
    %2740 = vmatpush1.msra.mxu0 0.0
    %2741 = vmatprep.subr.mxu0 0.0
    %2742 = vmatpush1.msra.mxu0 0.0
    %2743 = vmatprep.subr.mxu0 0.0
    %2744 = vmatpush1.msra.mxu0 0.0
    %2745 = vmatprep.subr.mxu0 0.0
    %2746 = vmatpush1.msra.mxu0 0.0
    %2747 = vmatprep.subr.mxu0 0.0
    %2748 = vmatpush1.msra.mxu0 0.0
    %2749 = vmatprep.subr.mxu0 0.0
    %2750 = vmatpush1.msra.mxu0 0.0
    %2751 = vmatprep.subr.mxu0 0.0
    %2752 = vmatpush1.msra.mxu0 0.0
    %2753 = vmatprep.subr.mxu0 0.0
    %2754 = vmatpush1.msra.mxu0 0.0
    %2755 = vmatprep.subr.mxu0 0.0
    %2756 = vmatpush1.msra.mxu0 0.0
    %2757 = vmatprep.subr.mxu0 0.0
    %2758 = vmatpush1.msra.mxu0 0.0
    %2759 = vmatprep.subr.mxu0 0.0
    %2760 = vmatpush1.msra.mxu0 0.0
    %2761 = vmatprep.subr.mxu0 0.0
    %2762 = vmatpush1.msra.mxu0 0.0
    %2763 = vmatprep.subr.mxu0 0.0
    %2764 = vmatpush1.msra.mxu0 0.0
    %2765 = vmatprep.subr.mxu0 0.0
    %2766 = vmatpush1.msra.mxu0 0.0
    %2767 = vmatprep.subr.mxu0 0.0
    %2768 = vmatpush1.msra.mxu0 0.0
    %2769 = vmatprep.subr.mxu0 0.0
    %2770 = vmatpush1.msra.mxu0 0.0
    %2771 = vmatprep.subr.mxu0 0.0
    %2772 = vmatpush1.msra.mxu0 0.0
    %2773 = vmatprep.subr.mxu0 0.0
    %2774 = vmatpush1.msra.mxu0 0.0
    %2775 = vmatprep.subr.mxu0 0.0
    %2776 = vmatpush1.msra.mxu0 0.0
    %2777 = vmatprep.mubr.f32.mxu0 0.0
    %2778 = vmatmul.mubr.f32.gmra.mrb[0].mxu0 %v724
    %v2779 = vpop.f32.mrb[0].mxu0
    %v2780 = vadd.f32 0.0, %v2779
    %v2781 = vpop.f32.mrb[0].mxu0
    %2782 = vmatprep.mubr.f32.mxu0 0.0
    %2783 = vmatmul.mubr.f32.gmra.mrb[0].mxu0 %v726
    %v2784 = vpop.f32.mrb[0].mxu0
    %v2785 = vadd.f32 0.0, %v2784
    %v2786 = vpop.f32.mrb[0].mxu0
    %2787 = vdwg.mxu0
    %v2788 = vmul.f32 %v810, %v1819
    %v2789 = vmul.f32 %v810, %v1820
    %v2790 = vadd.f32 %v2788, %v2780
    %v2791 = vadd.f32 %v2789, %v2785
    %v2792 = vmul.f32 %v1825, %v806
    %v2793 = vmul.f32 %v1826, %v806
    %v2794 = vsub.f32 %v2790, %v2792
    %v2795 = vsub.f32 %v2791, %v2793
    %vm2796 = vcmp.gt.f32.partialorder %v2794, %v806
    %vm2797 = vcmp.gt.f32.partialorder %v2795, %v806
    %v2798 = vsel %vm2796, 1, 0
    %v2799 = vsel %vm2797, 1, 0
    %v2800 = vcvt.s32.f32 %v2798
    %v2801 = vcvt.s32.f32 %v2799
    %v2804 = vrot.slane %v2800, 1
    %v2805 = vrot.slane %v2801, 1
    %v2806 = vsel %vm325, %v2804, %v2805
    %v2809 = vsel %vm307, %v2800, %v2806
    %v2811 = vrot.slane %v2801, 2
    %v2813 = vsel %vm307, %v2804, %v2811
    %2814 = vmatprep.subr.mxu0 %v123
    %2815 = vmatpush1.msra.mxu0 %v122
    %2816 = vmatprep.subr.mxu0 %v125
    %2817 = vmatpush1.msra.mxu0 %v124
    %2818 = vmatprep.subr.mxu0 %v127
    %2819 = vmatpush1.msra.mxu0 %v126
    %2820 = vmatprep.subr.mxu0 %v129
    %2821 = vmatpush1.msra.mxu0 %v128
    %2822 = vmatprep.subr.mxu0 %v131
    %2823 = vmatpush1.msra.mxu0 %v130
    %2824 = vmatprep.subr.mxu0 %v133
    %2825 = vmatpush1.msra.mxu0 %v132
    %2826 = vmatprep.subr.mxu0 %v135
    %2827 = vmatpush1.msra.mxu0 %v134
    %2828 = vmatprep.subr.mxu0 %v137
    %2829 = vmatpush1.msra.mxu0 %v136
    %2830 = vmatprep.subr.mxu0 %v139
    %2831 = vmatpush1.msra.mxu0 %v138
    %2832 = vmatprep.subr.mxu0 %v141
    %2833 = vmatpush1.msra.mxu0 %v140
    %2834 = vmatprep.subr.mxu0 %v143
    %2835 = vmatpush1.msra.mxu0 %v142
    %2836 = vmatprep.subr.mxu0 %v145
    %2837 = vmatpush1.msra.mxu0 %v144
    %2838 = vmatprep.subr.mxu0 %v147
    %2839 = vmatpush1.msra.mxu0 %v146
    %2840 = vmatprep.subr.mxu0 %v149
    %2841 = vmatpush1.msra.mxu0 %v148
    %2842 = vmatprep.subr.mxu0 %v151
    %2843 = vmatpush1.msra.mxu0 %v150
    %2844 = vmatprep.subr.mxu0 %v153
    %2845 = vmatpush1.msra.mxu0 %v152
    %2846 = vmatprep.subr.mxu0 0.0
    %2847 = vmatpush1.msra.mxu0 0.0
    %2848 = vmatprep.subr.mxu0 0.0
    %2849 = vmatpush1.msra.mxu0 0.0
    %2850 = vmatprep.subr.mxu0 0.0
    %2851 = vmatpush1.msra.mxu0 0.0
    %2852 = vmatprep.subr.mxu0 0.0
    %2853 = vmatpush1.msra.mxu0 0.0
    %2854 = vmatprep.subr.mxu0 0.0
    %2855 = vmatpush1.msra.mxu0 0.0
    %2856 = vmatprep.subr.mxu0 0.0
    %2857 = vmatpush1.msra.mxu0 0.0
    %2858 = vmatprep.subr.mxu0 0.0
    %2859 = vmatpush1.msra.mxu0 0.0
    %2860 = vmatprep.subr.mxu0 0.0
    %2861 = vmatpush1.msra.mxu0 0.0
    %2862 = vmatprep.subr.mxu0 0.0
    %2863 = vmatpush1.msra.mxu0 0.0
    %2864 = vmatprep.subr.mxu0 0.0
    %2865 = vmatpush1.msra.mxu0 0.0
    %2866 = vmatprep.subr.mxu0 0.0
    %2867 = vmatpush1.msra.mxu0 0.0
    %2868 = vmatprep.subr.mxu0 0.0
    %2869 = vmatpush1.msra.mxu0 0.0
    %2870 = vmatprep.subr.mxu0 0.0
    %2871 = vmatpush1.msra.mxu0 0.0
    %2872 = vmatprep.subr.mxu0 0.0
    %2873 = vmatpush1.msra.mxu0 0.0
    %2874 = vmatprep.subr.mxu0 0.0
    %2875 = vmatpush1.msra.mxu0 0.0
    %2876 = vmatprep.subr.mxu0 0.0
    %2877 = vmatpush1.msra.mxu0 0.0
    %2878 = vmatprep.mubr.f32.mxu0 0.0
    %2879 = vmatmul.mubr.f32.gmra.mrb[0].mxu0 %v2813
    %v2880 = vpop.f32.mrb[0].mxu0
    %v2881 = vadd.f32 0.0, %v2880
    %v2882 = vpop.f32.mrb[0].mxu0
    %v2883 = vadd.f32 0.0, %v2882
    %2884 = vmatprep.mubr.f32.mxu0 0.0
    %2885 = vmatmul.mubr.f32.gmra.mrb[0].mxu0 %v2811
    %v2886 = vpop.f32.mrb[0].mxu0
    %v2887 = vadd.f32 0.0, %v2886
    %v2888 = vpop.f32.mrb[0].mxu0
    %v2889 = vadd.f32 0.0, %v2888
    %2890 = vdwg.mxu0
    %2891 = vmatprep.subr.mxu0 %v91
    %2892 = vmatpush1.msra.mxu0 %v90
    %2893 = vmatprep.subr.mxu0 %v93
    %2894 = vmatpush1.msra.mxu0 %v92
    %2895 = vmatprep.subr.mxu0 %v95
    %2896 = vmatpush1.msra.mxu0 %v94
    %2897 = vmatprep.subr.mxu0 %v97
    %2898 = vmatpush1.msra.mxu0 %v96
    %2899 = vmatprep.subr.mxu0 %v99
    %2900 = vmatpush1.msra.mxu0 %v98
    %2901 = vmatprep.subr.mxu0 %v101
    %2902 = vmatpush1.msra.mxu0 %v100
    %2903 = vmatprep.subr.mxu0 %v103
    %2904 = vmatpush1.msra.mxu0 %v102
    %2905 = vmatprep.subr.mxu0 %v105
    %2906 = vmatpush1.msra.mxu0 %v104
    %2907 = vmatprep.subr.mxu0 %v107
    %2908 = vmatpush1.msra.mxu0 %v106
    %2909 = vmatprep.subr.mxu0 %v109
    %2910 = vmatpush1.msra.mxu0 %v108
    %2911 = vmatprep.subr.mxu0 %v111
    %2912 = vmatpush1.msra.mxu0 %v110
    %2913 = vmatprep.subr.mxu0 %v113
    %2914 = vmatpush1.msra.mxu0 %v112
    %2915 = vmatprep.subr.mxu0 %v115
    %2916 = vmatpush1.msra.mxu0 %v114
    %2917 = vmatprep.subr.mxu0 %v117
    %2918 = vmatpush1.msra.mxu0 %v116
    %2919 = vmatprep.subr.mxu0 %v119
    %2920 = vmatpush1.msra.mxu0 %v118
    %2921 = vmatprep.subr.mxu0 %v121
    %2922 = vmatpush1.msra.mxu0 %v120
    %2923 = vmatprep.subr.mxu0 0.0
    %2924 = vmatpush1.msra.mxu0 0.0
    %2925 = vmatprep.subr.mxu0 0.0
    %2926 = vmatpush1.msra.mxu0 0.0
    %2927 = vmatprep.subr.mxu0 0.0
    %2928 = vmatpush1.msra.mxu0 0.0
    %2929 = vmatprep.subr.mxu0 0.0
    %2930 = vmatpush1.msra.mxu0 0.0
    %2931 = vmatprep.subr.mxu0 0.0
    %2932 = vmatpush1.msra.mxu0 0.0
    %2933 = vmatprep.subr.mxu0 0.0
    %2934 = vmatpush1.msra.mxu0 0.0
    %2935 = vmatprep.subr.mxu0 0.0
    %2936 = vmatpush1.msra.mxu0 0.0
    %2937 = vmatprep.subr.mxu0 0.0
    %2938 = vmatpush1.msra.mxu0 0.0
    %2939 = vmatprep.subr.mxu0 0.0
    %2940 = vmatpush1.msra.mxu0 0.0
    %2941 = vmatprep.subr.mxu0 0.0
    %2942 = vmatpush1.msra.mxu0 0.0
    %2943 = vmatprep.subr.mxu0 0.0
    %2944 = vmatpush1.msra.mxu0 0.0
    %2945 = vmatprep.subr.mxu0 0.0
    %2946 = vmatpush1.msra.mxu0 0.0
    %2947 = vmatprep.subr.mxu0 0.0
    %2948 = vmatpush1.msra.mxu0 0.0
    %2949 = vmatprep.subr.mxu0 0.0
    %2950 = vmatpush1.msra.mxu0 0.0
    %2951 = vmatprep.subr.mxu0 0.0
    %2952 = vmatpush1.msra.mxu0 0.0
    %2953 = vmatprep.subr.mxu0 0.0
    %2954 = vmatpush1.msra.mxu0 0.0
    %2955 = vmatprep.mubr.f32.mxu0 0.0
    %2956 = vmatmul.mubr.f32.gmra.mrb[0].mxu0 %v2809
    %v2957 = vpop.f32.mrb[0].mxu0
    %v2958 = vadd.f32 %v2881, %v2957
    %v2959 = vpop.f32.mrb[0].mxu0
    %v2960 = vadd.f32 %v2883, %v2959
    %2961 = vmatprep.mubr.f32.mxu0 0.0
    %2962 = vmatmul.mubr.f32.gmra.mrb[0].mxu0 %v2805
    %v2963 = vpop.f32.mrb[0].mxu0
    %v2964 = vadd.f32 %v2887, %v2963
    %v2965 = vpop.f32.mrb[0].mxu0
    %v2966 = vadd.f32 %v2889, %v2965
    %2967 = vdwg.mxu0
    %v2968 = vadd.f32 %v2958, %v993
    %v2969 = vadd.f32 %v2960, %v997
    %v2970 = vadd.f32 %v2964, %v993
    %v2971 = vadd.f32 %v2966, %v997
    %v2976 = vrot.slane %v2968, 1
    %v2977 = vrot.slane %v2970, 1
    %v2978 = vsel %vm325, %v2976, %v2977
    %v2979 = vrot.slane %v2969, 1
    %v2980 = vrot.slane %v2971, 1
    %v2981 = vsel %vm325, %v2979, %v2980
    %v2986 = vmax.f32 %v2968, %v2978
    %v2987 = vmax.f32 %v2969, %v2981
    %v2988 = vmax.f32 %v2970, %v2977
    %v2989 = vmax.f32 %v2971, %v2980
    %v2991 = vsel %vm370, %v2988, 0
    %v2994 = vsel %vm370, %v2989, 0
    %2996 = vmatprep.subr.mxu0 %v2987
    %2997 = vmatpush1.msra.mxu0 %v2986
    %2998 = vmatprep.subr.mxu0 %v2994
    %2999 = vmatpush1.msra.mxu0 %v2991
    %3000 = vmatprep.subr.mxu0 0.0
    %3001 = vmatpush1.msra.mxu0 0.0
    %3002 = vmatprep.subr.mxu0 0.0
    %3003 = vmatpush1.msra.mxu0 0.0
    %3004 = vmatprep.subr.mxu0 0.0
    %3005 = vmatpush1.msra.mxu0 0.0
    %3006 = vmatprep.subr.mxu0 0.0
    %3007 = vmatpush1.msra.mxu0 0.0
    %3008 = vmatprep.subr.mxu0 0.0
    %3009 = vmatpush1.msra.mxu0 0.0
    %3010 = vmatprep.subr.mxu0 0.0
    %3011 = vmatpush1.msra.mxu0 0.0
    %3012 = vmatprep.subr.mxu0 0.0
    %3013 = vmatpush1.msra.mxu0 0.0
    %3014 = vmatprep.subr.mxu0 0.0
    %3015 = vmatpush1.msra.mxu0 0.0
    %3016 = vmatprep.subr.mxu0 0.0
    %3017 = vmatpush1.msra.mxu0 0.0
    %3018 = vmatprep.subr.mxu0 0.0
    %3019 = vmatpush1.msra.mxu0 0.0
    %3020 = vmatprep.subr.mxu0 0.0
    %3021 = vmatpush1.msra.mxu0 0.0
    %3022 = vmatprep.subr.mxu0 0.0
    %3023 = vmatpush1.msra.mxu0 0.0
    %3024 = vmatprep.subr.mxu0 0.0
    %3025 = vmatpush1.msra.mxu0 0.0
    %3026 = vmatprep.subr.mxu0 0.0
    %3027 = vmatpush1.msra.mxu0 0.0
    %3028 = vmatprep.subr.mxu0 0.0
    %3029 = vmatpush1.msra.mxu0 0.0
    %3030 = vmatprep.subr.mxu0 0.0
    %3031 = vmatpush1.msra.mxu0 0.0
    %3032 = vmatprep.subr.mxu0 0.0
    %3033 = vmatpush1.msra.mxu0 0.0
    %3034 = vmatprep.subr.mxu0 0.0
    %3035 = vmatpush1.msra.mxu0 0.0
    %3036 = vmatprep.subr.mxu0 0.0
    %3037 = vmatpush1.msra.mxu0 0.0
    %3038 = vmatprep.subr.mxu0 0.0
    %3039 = vmatpush1.msra.mxu0 0.0
    %3040 = vmatprep.subr.mxu0 0.0
    %3041 = vmatpush1.msra.mxu0 0.0
    %3042 = vmatprep.subr.mxu0 0.0
    %3043 = vmatpush1.msra.mxu0 0.0
    %3044 = vmatprep.subr.mxu0 0.0
    %3045 = vmatpush1.msra.mxu0 0.0
    %3046 = vmatprep.subr.mxu0 0.0
    %3047 = vmatpush1.msra.mxu0 0.0
    %3048 = vmatprep.subr.mxu0 0.0
    %3049 = vmatpush1.msra.mxu0 0.0
    %3050 = vmatprep.subr.mxu0 0.0
    %3051 = vmatpush1.msra.mxu0 0.0
    %3052 = vmatprep.subr.mxu0 0.0
    %3053 = vmatpush1.msra.mxu0 0.0
    %3054 = vmatprep.subr.mxu0 0.0
    %3055 = vmatpush1.msra.mxu0 0.0
    %3056 = vmatprep.subr.mxu0 0.0
    %3057 = vmatpush1.msra.mxu0 0.0
    %3058 = vmatprep.subr.mxu0 0.0
    %3059 = vmatpush1.msra.mxu0 0.0
    %3060 = vmatprep.mubr.f32.mxu0 0.0
    %3061 = vmatmul.mubr.f32.gmra.mrb[0].mxu0 %v1023
    %v3062 = vpop.f32.mrb[0].mxu0
    %v3063 = vadd.f32 0.0, %v3062
    %v3064 = vpop.f32.mrb[0].mxu0
    %v3065 = vadd.f32 0.0, %v3064
    %3066 = vdwg.mxu0
    %v3067 = vmul.f32 %v1106, %v2098
    %v3068 = vmul.f32 %v1106, %v2099
    %v3069 = vadd.f32 %v3067, %v3063
    %v3070 = vadd.f32 %v3068, %v3065
    %v3071 = vmul.f32 %v2104, %v1102
    %v3072 = vmul.f32 %v2105, %v1102
    %v3073 = vsub.f32 %v3069, %v3071
    %v3074 = vsub.f32 %v3070, %v3072
    %vm3075 = vcmp.gt.f32.partialorder %v3073, %v1102
    %vm3076 = vcmp.gt.f32.partialorder %v3074, %v1102
    %v3077 = vsel %vm3075, 1, 0
    %v3078 = vsel %vm3076, 1, 0
    %v3079 = vcvt.s32.f32 %v3077
    %v3080 = vcvt.s32.f32 %v3078
    %v3083 = vrot.slane %v3079, 2
    %v3084 = vrot.slane %v3080, 2
    %v3087 = vsel %vm1125, %v3079, %v3083
    %v3088 = vsel %vm1125, %v3080, %v3084
    %v3089 = vld [vmem:[%s8] sm:$0xff]
    %v3090 = vld [vmem:[%s8 + $0x8] sm:$0xff]
    %v3091 = vld [vmem:[%s8 + $0x10] sm:$0xff]
    %v3092 = vld [vmem:[%s8 + $0x18] sm:$0xff]
    %v3093 = vld [vmem:[%s8 + $0x20] sm:$0xff]
    %v3094 = vld [vmem:[%s8 + $0x28] sm:$0xff]
    %v3095 = vld [vmem:[%s8 + $0x30] sm:$0xff]
    %v3096 = vld [vmem:[%s8 + $0x38] sm:$0xff]
    %v3097 = vld [vmem:[%s8 + $0x40] sm:$0xff]
    %v3098 = vld [vmem:[%s8 + $0x48] sm:$0xff]
    %v3099 = vld [vmem:[%s8 + $0x50] sm:$0xff]
    %v3100 = vld [vmem:[%s8 + $0x58] sm:$0xff]
    %v3101 = vld [vmem:[%s8 + $0x60] sm:$0xff]
    %v3102 = vld [vmem:[%s8 + $0x68] sm:$0xff]
    %v3103 = vld [vmem:[%s8 + $0x70] sm:$0xff]
    %v3104 = vld [vmem:[%s8 + $0x78] sm:$0xff]
    %v3105 = vld [vmem:[%s8 + $0x80] sm:$0xff]
    %v3106 = vld [vmem:[%s8 + $0x88] sm:$0xff]
    %v3107 = vld [vmem:[%s8 + $0x90] sm:$0xff]
    %v3108 = vld [vmem:[%s8 + $0x98] sm:$0xff]
    %v3109 = vld [vmem:[%s8 + $0xa0] sm:$0xff]
    %v3110 = vld [vmem:[%s8 + $0xa8] sm:$0xff]
    %v3111 = vld [vmem:[%s8 + $0xb0] sm:$0xff]
    %v3112 = vld [vmem:[%s8 + $0xb8] sm:$0xff]
    %v3113 = vld [vmem:[%s8 + $0xc0] sm:$0xff]
    %v3114 = vld [vmem:[%s8 + $0xc8] sm:$0xff]
    %v3115 = vld [vmem:[%s8 + $0xd0] sm:$0xff]
    %v3116 = vld [vmem:[%s8 + $0xd8] sm:$0xff]
    %v3117 = vld [vmem:[%s8 + $0xe0] sm:$0xff]
    %v3118 = vld [vmem:[%s8 + $0xe8] sm:$0xff]
    %v3119 = vld [vmem:[%s8 + $0xf0] sm:$0xff]
    %v3120 = vld [vmem:[%s8 + $0xf8] sm:$0xff]
    %3121 = vmatprep.subr.mxu0 0.0
    %3122 = vmatpush1.msra.mxu0 %v3089
    %3123 = vmatprep.subr.mxu0 0.0
    %3124 = vmatpush1.msra.mxu0 %v3090
    %3125 = vmatprep.subr.mxu0 0.0
    %3126 = vmatpush1.msra.mxu0 %v3091
    %3127 = vmatprep.subr.mxu0 0.0
    %3128 = vmatpush1.msra.mxu0 %v3092
    %3129 = vmatprep.subr.mxu0 0.0
    %3130 = vmatpush1.msra.mxu0 %v3093
    %3131 = vmatprep.subr.mxu0 0.0
    %3132 = vmatpush1.msra.mxu0 %v3094
    %3133 = vmatprep.subr.mxu0 0.0
    %3134 = vmatpush1.msra.mxu0 %v3095
    %3135 = vmatprep.subr.mxu0 0.0
    %3136 = vmatpush1.msra.mxu0 %v3096
    %3137 = vmatprep.subr.mxu0 0.0
    %3138 = vmatpush1.msra.mxu0 %v3097
    %3139 = vmatprep.subr.mxu0 0.0
    %3140 = vmatpush1.msra.mxu0 %v3098
    %3141 = vmatprep.subr.mxu0 0.0
    %3142 = vmatpush1.msra.mxu0 %v3099
    %3143 = vmatprep.subr.mxu0 0.0
    %3144 = vmatpush1.msra.mxu0 %v3100
    %3145 = vmatprep.subr.mxu0 0.0
    %3146 = vmatpush1.msra.mxu0 %v3101
    %3147 = vmatprep.subr.mxu0 0.0
    %3148 = vmatpush1.msra.mxu0 %v3102
    %3149 = vmatprep.subr.mxu0 0.0
    %3150 = vmatpush1.msra.mxu0 %v3103
    %3151 = vmatprep.subr.mxu0 0.0
    %3152 = vmatpush1.msra.mxu0 %v3104
    %3153 = vmatprep.subr.mxu0 0.0
    %3154 = vmatpush1.msra.mxu0 %v3105
    %3155 = vmatprep.subr.mxu0 0.0
    %3156 = vmatpush1.msra.mxu0 %v3106
    %3157 = vmatprep.subr.mxu0 0.0
    %3158 = vmatpush1.msra.mxu0 %v3107
    %3159 = vmatprep.subr.mxu0 0.0
    %3160 = vmatpush1.msra.mxu0 %v3108
    %3161 = vmatprep.subr.mxu0 0.0
    %3162 = vmatpush1.msra.mxu0 %v3109
    %3163 = vmatprep.subr.mxu0 0.0
    %3164 = vmatpush1.msra.mxu0 %v3110
    %3165 = vmatprep.subr.mxu0 0.0
    %3166 = vmatpush1.msra.mxu0 %v3111
    %3167 = vmatprep.subr.mxu0 0.0
    %3168 = vmatpush1.msra.mxu0 %v3112
    %3169 = vmatprep.subr.mxu0 0.0
    %3170 = vmatpush1.msra.mxu0 %v3113
    %3171 = vmatprep.subr.mxu0 0.0
    %3172 = vmatpush1.msra.mxu0 %v3114
    %3173 = vmatprep.subr.mxu0 0.0
    %3174 = vmatpush1.msra.mxu0 %v3115
    %3175 = vmatprep.subr.mxu0 0.0
    %3176 = vmatpush1.msra.mxu0 %v3116
    %3177 = vmatprep.subr.mxu0 0.0
    %3178 = vmatpush1.msra.mxu0 %v3117
    %3179 = vmatprep.subr.mxu0 0.0
    %3180 = vmatpush1.msra.mxu0 %v3118
    %3181 = vmatprep.subr.mxu0 0.0
    %3182 = vmatpush1.msra.mxu0 %v3119
    %3183 = vmatprep.subr.mxu0 0.0
    %3184 = vmatpush1.msra.mxu0 %v3120
    %3185 = vmatprep.mubr.f32.mxu0 %v3088
    %3186 = vmatmul.mubr.f32.gmra.mrb[0].mxu0 %v3087
    %v3187 = vpop.f32.mrb[0].mxu0
    %v3188 = vadd.f32 0.0, %v3187
    %v3189 = vpop.f32.mrb[0].mxu0
    %3190 = vdwg.mxu0
    %v3191 = vadd.f32 %v1234, %v3188
    %v3192 = vrot.slane %v3079, 1
    %v3193 = vrot.slane %v3080, 1
    %v3196 = vrot.slane %v3079, 3
    %v3197 = vrot.slane %v3080, 3
    %v3200 = vsel %vm1125, %v3192, %v3196
    %v3201 = vsel %vm1125, %v3193, %v3197
    %v3202 = vld [vmem:[%s1247] sm:$0xff]
    %v3203 = vld [vmem:[%s1247 + $0x8] sm:$0xff]
    %v3204 = vld [vmem:[%s1247 + $0x10] sm:$0xff]
    %v3205 = vld [vmem:[%s1247 + $0x18] sm:$0xff]
    %v3206 = vld [vmem:[%s1247 + $0x20] sm:$0xff]
    %v3207 = vld [vmem:[%s1247 + $0x28] sm:$0xff]
    %v3208 = vld [vmem:[%s1247 + $0x30] sm:$0xff]
    %v3209 = vld [vmem:[%s1247 + $0x38] sm:$0xff]
    %v3210 = vld [vmem:[%s1247 + $0x40] sm:$0xff]
    %v3211 = vld [vmem:[%s1247 + $0x48] sm:$0xff]
    %v3212 = vld [vmem:[%s1247 + $0x50] sm:$0xff]
    %v3213 = vld [vmem:[%s1247 + $0x58] sm:$0xff]
    %v3214 = vld [vmem:[%s1247 + $0x60] sm:$0xff]
    %v3215 = vld [vmem:[%s1247 + $0x68] sm:$0xff]
    %v3216 = vld [vmem:[%s1247 + $0x70] sm:$0xff]
    %v3217 = vld [vmem:[%s1247 + $0x78] sm:$0xff]
    %v3218 = vld [vmem:[%s1247 + $0x80] sm:$0xff]
    %v3219 = vld [vmem:[%s1247 + $0x88] sm:$0xff]
    %v3220 = vld [vmem:[%s1247 + $0x90] sm:$0xff]
    %v3221 = vld [vmem:[%s1247 + $0x98] sm:$0xff]
    %v3222 = vld [vmem:[%s1247 + $0xa0] sm:$0xff]
    %v3223 = vld [vmem:[%s1247 + $0xa8] sm:$0xff]
    %v3224 = vld [vmem:[%s1247 + $0xb0] sm:$0xff]
    %v3225 = vld [vmem:[%s1247 + $0xb8] sm:$0xff]
    %v3226 = vld [vmem:[%s1247 + $0xc0] sm:$0xff]
    %v3227 = vld [vmem:[%s1247 + $0xc8] sm:$0xff]
    %v3228 = vld [vmem:[%s1247 + $0xd0] sm:$0xff]
    %v3229 = vld [vmem:[%s1247 + $0xd8] sm:$0xff]
    %v3230 = vld [vmem:[%s1247 + $0xe0] sm:$0xff]
    %v3231 = vld [vmem:[%s1247 + $0xe8] sm:$0xff]
    %v3232 = vld [vmem:[%s1247 + $0xf0] sm:$0xff]
    %v3233 = vld [vmem:[%s1247 + $0xf8] sm:$0xff]
    %3234 = vmatprep.subr.mxu0 0.0
    %3235 = vmatpush1.msra.mxu0 %v3202
    %3236 = vmatprep.subr.mxu0 0.0
    %3237 = vmatpush1.msra.mxu0 %v3203
    %3238 = vmatprep.subr.mxu0 0.0
    %3239 = vmatpush1.msra.mxu0 %v3204
    %3240 = vmatprep.subr.mxu0 0.0
    %3241 = vmatpush1.msra.mxu0 %v3205
    %3242 = vmatprep.subr.mxu0 0.0
    %3243 = vmatpush1.msra.mxu0 %v3206
    %3244 = vmatprep.subr.mxu0 0.0
    %3245 = vmatpush1.msra.mxu0 %v3207
    %3246 = vmatprep.subr.mxu0 0.0
    %3247 = vmatpush1.msra.mxu0 %v3208
    %3248 = vmatprep.subr.mxu0 0.0
    %3249 = vmatpush1.msra.mxu0 %v3209
    %3250 = vmatprep.subr.mxu0 0.0
    %3251 = vmatpush1.msra.mxu0 %v3210
    %3252 = vmatprep.subr.mxu0 0.0
    %3253 = vmatpush1.msra.mxu0 %v3211
    %3254 = vmatprep.subr.mxu0 0.0
    %3255 = vmatpush1.msra.mxu0 %v3212
    %3256 = vmatprep.subr.mxu0 0.0
    %3257 = vmatpush1.msra.mxu0 %v3213
    %3258 = vmatprep.subr.mxu0 0.0
    %3259 = vmatpush1.msra.mxu0 %v3214
    %3260 = vmatprep.subr.mxu0 0.0
    %3261 = vmatpush1.msra.mxu0 %v3215
    %3262 = vmatprep.subr.mxu0 0.0
    %3263 = vmatpush1.msra.mxu0 %v3216
    %3264 = vmatprep.subr.mxu0 0.0
    %3265 = vmatpush1.msra.mxu0 %v3217
    %3266 = vmatprep.subr.mxu0 0.0
    %3267 = vmatpush1.msra.mxu0 %v3218
    %3268 = vmatprep.subr.mxu0 0.0
    %3269 = vmatpush1.msra.mxu0 %v3219
    %3270 = vmatprep.subr.mxu0 0.0
    %3271 = vmatpush1.msra.mxu0 %v3220
    %3272 = vmatprep.subr.mxu0 0.0
    %3273 = vmatpush1.msra.mxu0 %v3221
    %3274 = vmatprep.subr.mxu0 0.0
    %3275 = vmatpush1.msra.mxu0 %v3222
    %3276 = vmatprep.subr.mxu0 0.0
    %3277 = vmatpush1.msra.mxu0 %v3223
    %3278 = vmatprep.subr.mxu0 0.0
    %3279 = vmatpush1.msra.mxu0 %v3224
    %3280 = vmatprep.subr.mxu0 0.0
    %3281 = vmatpush1.msra.mxu0 %v3225
    %3282 = vmatprep.subr.mxu0 0.0
    %3283 = vmatpush1.msra.mxu0 %v3226
    %3284 = vmatprep.subr.mxu0 0.0
    %3285 = vmatpush1.msra.mxu0 %v3227
    %3286 = vmatprep.subr.mxu0 0.0
    %3287 = vmatpush1.msra.mxu0 %v3228
    %3288 = vmatprep.subr.mxu0 0.0
    %3289 = vmatpush1.msra.mxu0 %v3229
    %3290 = vmatprep.subr.mxu0 0.0
    %3291 = vmatpush1.msra.mxu0 %v3230
    %3292 = vmatprep.subr.mxu0 0.0
    %3293 = vmatpush1.msra.mxu0 %v3231
    %3294 = vmatprep.subr.mxu0 0.0
    %3295 = vmatpush1.msra.mxu0 %v3232
    %3296 = vmatprep.subr.mxu0 0.0
    %3297 = vmatpush1.msra.mxu0 %v3233
    %3298 = vmatprep.mubr.f32.mxu0 %v3201
    %3299 = vmatmul.mubr.f32.gmra.mrb[0].mxu0 %v3200
    %v3300 = vpop.f32.mrb[0].mxu0
    %v3301 = vadd.f32 0.0, %v3300
    %v3302 = vpop.f32.mrb[0].mxu0
    %3303 = vdwg.mxu0
    %v3304 = vadd.f32 %v3191, %v3301
    %v3305 = vrot.slane %v3079, 4
    %v3306 = vrot.slane %v3080, 4
    %v3309 = vsel %vm1125, %v3083, %v3305
    %v3310 = vsel %vm1125, %v3084, %v3306
    %v3311 = vld [vmem:[%s1357] sm:$0xff]
    %v3312 = vld [vmem:[%s1357 + $0x8] sm:$0xff]
    %v3313 = vld [vmem:[%s1357 + $0x10] sm:$0xff]
    %v3314 = vld [vmem:[%s1357 + $0x18] sm:$0xff]
    %v3315 = vld [vmem:[%s1357 + $0x20] sm:$0xff]
    %v3316 = vld [vmem:[%s1357 + $0x28] sm:$0xff]
    %v3317 = vld [vmem:[%s1357 + $0x30] sm:$0xff]
    %v3318 = vld [vmem:[%s1357 + $0x38] sm:$0xff]
    %v3319 = vld [vmem:[%s1357 + $0x40] sm:$0xff]
    %v3320 = vld [vmem:[%s1357 + $0x48] sm:$0xff]
    %v3321 = vld [vmem:[%s1357 + $0x50] sm:$0xff]
    %v3322 = vld [vmem:[%s1357 + $0x58] sm:$0xff]
    %v3323 = vld [vmem:[%s1357 + $0x60] sm:$0xff]
    %v3324 = vld [vmem:[%s1357 + $0x68] sm:$0xff]
    %v3325 = vld [vmem:[%s1357 + $0x70] sm:$0xff]
    %v3326 = vld [vmem:[%s1357 + $0x78] sm:$0xff]
    %v3327 = vld [vmem:[%s1357 + $0x80] sm:$0xff]
    %v3328 = vld [vmem:[%s1357 + $0x88] sm:$0xff]
    %v3329 = vld [vmem:[%s1357 + $0x90] sm:$0xff]
    %v3330 = vld [vmem:[%s1357 + $0x98] sm:$0xff]
    %v3331 = vld [vmem:[%s1357 + $0xa0] sm:$0xff]
    %v3332 = vld [vmem:[%s1357 + $0xa8] sm:$0xff]
    %v3333 = vld [vmem:[%s1357 + $0xb0] sm:$0xff]
    %v3334 = vld [vmem:[%s1357 + $0xb8] sm:$0xff]
    %v3335 = vld [vmem:[%s1357 + $0xc0] sm:$0xff]
    %v3336 = vld [vmem:[%s1357 + $0xc8] sm:$0xff]
    %v3337 = vld [vmem:[%s1357 + $0xd0] sm:$0xff]
    %v3338 = vld [vmem:[%s1357 + $0xd8] sm:$0xff]
    %v3339 = vld [vmem:[%s1357 + $0xe0] sm:$0xff]
    %v3340 = vld [vmem:[%s1357 + $0xe8] sm:$0xff]
    %v3341 = vld [vmem:[%s1357 + $0xf0] sm:$0xff]
    %v3342 = vld [vmem:[%s1357 + $0xf8] sm:$0xff]
    %3343 = vmatprep.subr.mxu0 0.0
    %3344 = vmatpush1.msra.mxu0 %v3311
    %3345 = vmatprep.subr.mxu0 0.0
    %3346 = vmatpush1.msra.mxu0 %v3312
    %3347 = vmatprep.subr.mxu0 0.0
    %3348 = vmatpush1.msra.mxu0 %v3313
    %3349 = vmatprep.subr.mxu0 0.0
    %3350 = vmatpush1.msra.mxu0 %v3314
    %3351 = vmatprep.subr.mxu0 0.0
    %3352 = vmatpush1.msra.mxu0 %v3315
    %3353 = vmatprep.subr.mxu0 0.0
    %3354 = vmatpush1.msra.mxu0 %v3316
    %3355 = vmatprep.subr.mxu0 0.0
    %3356 = vmatpush1.msra.mxu0 %v3317
    %3357 = vmatprep.subr.mxu0 0.0
    %3358 = vmatpush1.msra.mxu0 %v3318
    %3359 = vmatprep.subr.mxu0 0.0
    %3360 = vmatpush1.msra.mxu0 %v3319
    %3361 = vmatprep.subr.mxu0 0.0
    %3362 = vmatpush1.msra.mxu0 %v3320
    %3363 = vmatprep.subr.mxu0 0.0
    %3364 = vmatpush1.msra.mxu0 %v3321
    %3365 = vmatprep.subr.mxu0 0.0
    %3366 = vmatpush1.msra.mxu0 %v3322
    %3367 = vmatprep.subr.mxu0 0.0
    %3368 = vmatpush1.msra.mxu0 %v3323
    %3369 = vmatprep.subr.mxu0 0.0
    %3370 = vmatpush1.msra.mxu0 %v3324
    %3371 = vmatprep.subr.mxu0 0.0
    %3372 = vmatpush1.msra.mxu0 %v3325
    %3373 = vmatprep.subr.mxu0 0.0
    %3374 = vmatpush1.msra.mxu0 %v3326
    %3375 = vmatprep.subr.mxu0 0.0
    %3376 = vmatpush1.msra.mxu0 %v3327
    %3377 = vmatprep.subr.mxu0 0.0
    %3378 = vmatpush1.msra.mxu0 %v3328
    %3379 = vmatprep.subr.mxu0 0.0
    %3380 = vmatpush1.msra.mxu0 %v3329
    %3381 = vmatprep.subr.mxu0 0.0
    %3382 = vmatpush1.msra.mxu0 %v3330
    %3383 = vmatprep.subr.mxu0 0.0
    %3384 = vmatpush1.msra.mxu0 %v3331
    %3385 = vmatprep.subr.mxu0 0.0
    %3386 = vmatpush1.msra.mxu0 %v3332
    %3387 = vmatprep.subr.mxu0 0.0
    %3388 = vmatpush1.msra.mxu0 %v3333
    %3389 = vmatprep.subr.mxu0 0.0
    %3390 = vmatpush1.msra.mxu0 %v3334
    %3391 = vmatprep.subr.mxu0 0.0
    %3392 = vmatpush1.msra.mxu0 %v3335
    %3393 = vmatprep.subr.mxu0 0.0
    %3394 = vmatpush1.msra.mxu0 %v3336
    %3395 = vmatprep.subr.mxu0 0.0
    %3396 = vmatpush1.msra.mxu0 %v3337
    %3397 = vmatprep.subr.mxu0 0.0
    %3398 = vmatpush1.msra.mxu0 %v3338
    %3399 = vmatprep.subr.mxu0 0.0
    %3400 = vmatpush1.msra.mxu0 %v3339
    %3401 = vmatprep.subr.mxu0 0.0
    %3402 = vmatpush1.msra.mxu0 %v3340
    %3403 = vmatprep.subr.mxu0 0.0
    %3404 = vmatpush1.msra.mxu0 %v3341
    %3405 = vmatprep.subr.mxu0 0.0
    %3406 = vmatpush1.msra.mxu0 %v3342
    %3407 = vmatprep.mubr.f32.mxu0 %v3310
    %3408 = vmatmul.mubr.f32.gmra.mrb[0].mxu0 %v3309
    %v3409 = vpop.f32.mrb[0].mxu0
    %v3410 = vadd.f32 0.0, %v3409
    %v3411 = vpop.f32.mrb[0].mxu0
    %3412 = vdwg.mxu0
    %v3413 = vadd.f32 %v3304, %v3410
    %v3414 = vmul.f32 %v1465, %v2442
    %v3415 = vadd.f32 %v3414, %v3413
    %v3416 = vmul.f32 %v2445, %v1461
    %v3417 = vsub.f32 %v3415, %v3416
    %vm3418 = vcmp.gt.f32.partialorder %v3417, %v1461
    %v3419 = vsel %vm3418, 1, 0
    %v3420 = vcvt.s32.f32 %v3419
    %s3421 = scalar_lea.vmem %s10, 4
    %3422 = vst.msk [vmem:[%s3421] sm:$0x3] %vm1473, %v3413
    %s3423 = scalar_lea.vmem %s11, 4
    %3424 = vst.msk [vmem:[%s3423] sm:$0x3] %vm1473, %v3420
    %s3425 = scalar_lea.vmem %s12, 4
    %3426 = vst.msk [vmem:[%s3425] sm:$0x3] %vm1473, %v3417
    %v3427 = vmul.f32 %v463, %v2464
    %v3428 = vmul.f32 %v463, %v2465
    %v3429 = vmul.f32 %v463, %v2466
    %v3430 = vmul.f32 %v463, %v2467
    %v3431 = vadd.f32 %v3427, %v441
    %v3432 = vadd.f32 %v3428, %v446
    %v3433 = vadd.f32 %v3429, %v451
    %v3434 = vadd.f32 %v3430, %v456
    %v3435 = vmul.f32 %v2476, %v459
    %v3436 = vmul.f32 %v2477, %v459
    %v3437 = vmul.f32 %v2478, %v459
    %v3438 = vmul.f32 %v2479, %v459
    %v3439 = vsub.f32 %v3431, %v3435
    %v3440 = vsub.f32 %v3432, %v3436
    %v3441 = vsub.f32 %v3433, %v3437
    %v3442 = vsub.f32 %v3434, %v3438
    %vm3443 = vcmp.gt.f32.partialorder %v3439, %v459
    %vm3444 = vcmp.gt.f32.partialorder %v3440, %v459
    %vm3445 = vcmp.gt.f32.partialorder %v3441, %v459
    %vm3446 = vcmp.gt.f32.partialorder %v3442, %v459
    %v3447 = vsel %vm3443, 1, 0
    %v3448 = vsel %vm3444, 1, 0
    %v3449 = vsel %vm3445, 1, 0
    %v3450 = vsel %vm3446, 1, 0
    %v3451 = vcvt.s32.f32 %v3447
    %v3452 = vcvt.s32.f32 %v3448
    %v3453 = vcvt.s32.f32 %v3449
    %v3454 = vcvt.s32.f32 %v3450
    %v3458 = vrot.slane %v3452, 1
    %v3459 = vrot.slane %v3453, 1
    %v3460 = vsel %vm325, %v3458, %v3459
    %v3461 = vrot.slane %v3454, 1
    %v3462 = vsel %vm325, %v3459, %v3461
    %v3464 = vsel %vm307, %v3452, %v3460
    %v3466 = vrot.slane %v3451, 1
    %v3467 = vsel %vm325, %v3466, %v3458
    %v3469 = vrot.slane %v3453, 2
    %v3470 = vrot.slane %v3454, 2
    %v3471 = vsel %vm307, %v3469, %v3470
    %v3473 = vsel %vm307, %v3458, %v3469
    %v3474 = vsel %vm505, %v3467, 0
    %v3477 = vsel %vm505, %v3473, 0
    %v3479 = vsel %vm505, %v3471, 0
    %v3481 = vsel %vm505, %v3470, 0
    %3483 = vmatprep.subr.mxu0 0.0
    %3484 = vmatpush1.msra.mxu0 %v86
    %3485 = vmatprep.subr.mxu0 0.0
    %3486 = vmatpush1.msra.mxu0 %v87
    %3487 = vmatprep.subr.mxu0 0.0
    %3488 = vmatpush1.msra.mxu0 %v88
    %3489 = vmatprep.subr.mxu0 0.0
    %3490 = vmatpush1.msra.mxu0 %v89
    %3491 = vmatprep.subr.mxu0 0.0
    %3492 = vmatpush1.msra.mxu0 0.0
    %3493 = vmatprep.subr.mxu0 0.0
    %3494 = vmatpush1.msra.mxu0 0.0
    %3495 = vmatprep.subr.mxu0 0.0
    %3496 = vmatpush1.msra.mxu0 0.0
    %3497 = vmatprep.subr.mxu0 0.0
    %3498 = vmatpush1.msra.mxu0 0.0
    %3499 = vmatprep.subr.mxu0 0.0
    %3500 = vmatpush1.msra.mxu0 0.0
    %3501 = vmatprep.subr.mxu0 0.0
    %3502 = vmatpush1.msra.mxu0 0.0
    %3503 = vmatprep.subr.mxu0 0.0
    %3504 = vmatpush1.msra.mxu0 0.0
    %3505 = vmatprep.subr.mxu0 0.0
    %3506 = vmatpush1.msra.mxu0 0.0
    %3507 = vmatprep.subr.mxu0 0.0
    %3508 = vmatpush1.msra.mxu0 0.0
    %3509 = vmatprep.subr.mxu0 0.0
    %3510 = vmatpush1.msra.mxu0 0.0
    %3511 = vmatprep.subr.mxu0 0.0
    %3512 = vmatpush1.msra.mxu0 0.0
    %3513 = vmatprep.subr.mxu0 0.0
    %3514 = vmatpush1.msra.mxu0 0.0
    %3515 = vmatprep.subr.mxu0 0.0
    %3516 = vmatpush1.msra.mxu0 0.0
    %3517 = vmatprep.subr.mxu0 0.0
    %3518 = vmatpush1.msra.mxu0 0.0
    %3519 = vmatprep.subr.mxu0 0.0
    %3520 = vmatpush1.msra.mxu0 0.0
    %3521 = vmatprep.subr.mxu0 0.0
    %3522 = vmatpush1.msra.mxu0 0.0
    %3523 = vmatprep.subr.mxu0 0.0
    %3524 = vmatpush1.msra.mxu0 0.0
    %3525 = vmatprep.subr.mxu0 0.0
    %3526 = vmatpush1.msra.mxu0 0.0
    %3527 = vmatprep.subr.mxu0 0.0
    %3528 = vmatpush1.msra.mxu0 0.0
    %3529 = vmatprep.subr.mxu0 0.0
    %3530 = vmatpush1.msra.mxu0 0.0
    %3531 = vmatprep.subr.mxu0 0.0
    %3532 = vmatpush1.msra.mxu0 0.0
    %3533 = vmatprep.subr.mxu0 0.0
    %3534 = vmatpush1.msra.mxu0 0.0
    %3535 = vmatprep.subr.mxu0 0.0
    %3536 = vmatpush1.msra.mxu0 0.0
    %3537 = vmatprep.subr.mxu0 0.0
    %3538 = vmatpush1.msra.mxu0 0.0
    %3539 = vmatprep.subr.mxu0 0.0
    %3540 = vmatpush1.msra.mxu0 0.0
    %3541 = vmatprep.subr.mxu0 0.0
    %3542 = vmatpush1.msra.mxu0 0.0
    %3543 = vmatprep.subr.mxu0 0.0
    %3544 = vmatpush1.msra.mxu0 0.0
    %3545 = vmatprep.subr.mxu0 0.0
    %3546 = vmatpush1.msra.mxu0 0.0
    %3547 = vmatprep.mubr.f32.mxu0 0.0
    %3548 = vmatmul.mubr.f32.gmra.mrb[0].mxu0 %v3474
    %v3549 = vpop.f32.mrb[0].mxu0
    %v3550 = vadd.f32 0.0, %v3549
    %v3551 = vpop.f32.mrb[0].mxu0
    %3552 = vmatprep.mubr.f32.mxu0 0.0
    %3553 = vmatmul.mubr.f32.gmra.mrb[0].mxu0 %v3477
    %v3554 = vpop.f32.mrb[0].mxu0
    %v3555 = vadd.f32 0.0, %v3554
    %v3556 = vpop.f32.mrb[0].mxu0
    %3557 = vmatprep.mubr.f32.mxu0 0.0
    %3558 = vmatmul.mubr.f32.gmra.mrb[0].mxu0 %v3479
    %v3559 = vpop.f32.mrb[0].mxu0
    %v3560 = vadd.f32 0.0, %v3559
    %v3561 = vpop.f32.mrb[0].mxu0
    %3562 = vmatprep.mubr.f32.mxu0 0.0
    %3563 = vmatmul.mubr.f32.gmra.mrb[0].mxu0 %v3481
    %v3564 = vpop.f32.mrb[0].mxu0
    %v3565 = vadd.f32 0.0, %v3564
    %v3566 = vpop.f32.mrb[0].mxu0
    %3567 = vdwg.mxu0
    %v3568 = vsel %vm505, %v3451, 0
    %v3571 = vsel %vm505, %v3464, 0
    %v3573 = vsel %vm505, %v3462, 0
    %v3575 = vsel %vm505, %v3461, 0
    %3577 = vmatprep.subr.mxu0 0.0
    %3578 = vmatpush1.msra.mxu0 %v82
    %3579 = vmatprep.subr.mxu0 0.0
    %3580 = vmatpush1.msra.mxu0 %v83
    %3581 = vmatprep.subr.mxu0 0.0
    %3582 = vmatpush1.msra.mxu0 %v84
    %3583 = vmatprep.subr.mxu0 0.0
    %3584 = vmatpush1.msra.mxu0 %v85
    %3585 = vmatprep.subr.mxu0 0.0
    %3586 = vmatpush1.msra.mxu0 0.0
    %3587 = vmatprep.subr.mxu0 0.0
    %3588 = vmatpush1.msra.mxu0 0.0
    %3589 = vmatprep.subr.mxu0 0.0
    %3590 = vmatpush1.msra.mxu0 0.0
    %3591 = vmatprep.subr.mxu0 0.0
    %3592 = vmatpush1.msra.mxu0 0.0
    %3593 = vmatprep.subr.mxu0 0.0
    %3594 = vmatpush1.msra.mxu0 0.0
    %3595 = vmatprep.subr.mxu0 0.0
    %3596 = vmatpush1.msra.mxu0 0.0
    %3597 = vmatprep.subr.mxu0 0.0
    %3598 = vmatpush1.msra.mxu0 0.0
    %3599 = vmatprep.subr.mxu0 0.0
    %3600 = vmatpush1.msra.mxu0 0.0
    %3601 = vmatprep.subr.mxu0 0.0
    %3602 = vmatpush1.msra.mxu0 0.0
    %3603 = vmatprep.subr.mxu0 0.0
    %3604 = vmatpush1.msra.mxu0 0.0
    %3605 = vmatprep.subr.mxu0 0.0
    %3606 = vmatpush1.msra.mxu0 0.0
    %3607 = vmatprep.subr.mxu0 0.0
    %3608 = vmatpush1.msra.mxu0 0.0
    %3609 = vmatprep.subr.mxu0 0.0
    %3610 = vmatpush1.msra.mxu0 0.0
    %3611 = vmatprep.subr.mxu0 0.0
    %3612 = vmatpush1.msra.mxu0 0.0
    %3613 = vmatprep.subr.mxu0 0.0
    %3614 = vmatpush1.msra.mxu0 0.0
    %3615 = vmatprep.subr.mxu0 0.0
    %3616 = vmatpush1.msra.mxu0 0.0
    %3617 = vmatprep.subr.mxu0 0.0
    %3618 = vmatpush1.msra.mxu0 0.0
    %3619 = vmatprep.subr.mxu0 0.0
    %3620 = vmatpush1.msra.mxu0 0.0
    %3621 = vmatprep.subr.mxu0 0.0
    %3622 = vmatpush1.msra.mxu0 0.0
    %3623 = vmatprep.subr.mxu0 0.0
    %3624 = vmatpush1.msra.mxu0 0.0
    %3625 = vmatprep.subr.mxu0 0.0
    %3626 = vmatpush1.msra.mxu0 0.0
    %3627 = vmatprep.subr.mxu0 0.0
    %3628 = vmatpush1.msra.mxu0 0.0
    %3629 = vmatprep.subr.mxu0 0.0
    %3630 = vmatpush1.msra.mxu0 0.0
    %3631 = vmatprep.subr.mxu0 0.0
    %3632 = vmatpush1.msra.mxu0 0.0
    %3633 = vmatprep.subr.mxu0 0.0
    %3634 = vmatpush1.msra.mxu0 0.0
    %3635 = vmatprep.subr.mxu0 0.0
    %3636 = vmatpush1.msra.mxu0 0.0
    %3637 = vmatprep.subr.mxu0 0.0
    %3638 = vmatpush1.msra.mxu0 0.0
    %3639 = vmatprep.subr.mxu0 0.0
    %3640 = vmatpush1.msra.mxu0 0.0
    %3641 = vmatprep.mubr.f32.mxu0 0.0
    %3642 = vmatmul.mubr.f32.gmra.mrb[0].mxu0 %v3568
    %v3643 = vpop.f32.mrb[0].mxu0
    %v3644 = vadd.f32 %v3550, %v3643
    %v3645 = vpop.f32.mrb[0].mxu0
    %3646 = vmatprep.mubr.f32.mxu0 0.0
    %3647 = vmatmul.mubr.f32.gmra.mrb[0].mxu0 %v3571
    %v3648 = vpop.f32.mrb[0].mxu0
    %v3649 = vadd.f32 %v3555, %v3648
    %v3650 = vpop.f32.mrb[0].mxu0
    %3651 = vmatprep.mubr.f32.mxu0 0.0
    %3652 = vmatmul.mubr.f32.gmra.mrb[0].mxu0 %v3573
    %v3653 = vpop.f32.mrb[0].mxu0
    %v3654 = vadd.f32 %v3560, %v3653
    %v3655 = vpop.f32.mrb[0].mxu0
    %3656 = vmatprep.mubr.f32.mxu0 0.0
    %3657 = vmatmul.mubr.f32.gmra.mrb[0].mxu0 %v3575
    %v3658 = vpop.f32.mrb[0].mxu0
    %v3659 = vadd.f32 %v3565, %v3658
    %v3660 = vpop.f32.mrb[0].mxu0
    %3661 = vdwg.mxu0
    %v3662 = vadd.f32 %v3644, %v698
    %v3663 = vadd.f32 %v3649, %v698
    %v3664 = vadd.f32 %v3654, %v698
    %v3665 = vadd.f32 %v3659, %v698
    %v3670 = vrot.slane %v3662, 1
    %v3671 = vrot.slane %v3663, 1
    %v3672 = vsel %vm325, %v3670, %v3671
    %v3673 = vrot.slane %v3664, 1
    %v3674 = vsel %vm325, %v3671, %v3673
    %v3675 = vrot.slane %v3665, 1
    %v3676 = vsel %vm325, %v3673, %v3675
    %v3681 = vmax.f32 %v3662, %v3672
    %v3682 = vmax.f32 %v3663, %v3674
    %v3683 = vmax.f32 %v3664, %v3676
    %v3684 = vmax.f32 %v3665, %v3675
    %v3686 = vsel %vm370, %v3684, 0
    %3688 = vmatprep.subr.mxu0 0.0
    %3689 = vmatpush1.msra.mxu0 %v3681
    %3690 = vmatprep.subr.mxu0 0.0
    %3691 = vmatpush1.msra.mxu0 %v3682
    %3692 = vmatprep.subr.mxu0 0.0
    %3693 = vmatpush1.msra.mxu0 %v3683
    %3694 = vmatprep.subr.mxu0 0.0
    %3695 = vmatpush1.msra.mxu0 %v3686
    %3696 = vmatprep.subr.mxu0 0.0
    %3697 = vmatpush1.msra.mxu0 0.0
    %3698 = vmatprep.subr.mxu0 0.0
    %3699 = vmatpush1.msra.mxu0 0.0
    %3700 = vmatprep.subr.mxu0 0.0
    %3701 = vmatpush1.msra.mxu0 0.0
    %3702 = vmatprep.subr.mxu0 0.0
    %3703 = vmatpush1.msra.mxu0 0.0
    %3704 = vmatprep.subr.mxu0 0.0
    %3705 = vmatpush1.msra.mxu0 0.0
    %3706 = vmatprep.subr.mxu0 0.0
    %3707 = vmatpush1.msra.mxu0 0.0
    %3708 = vmatprep.subr.mxu0 0.0
    %3709 = vmatpush1.msra.mxu0 0.0
    %3710 = vmatprep.subr.mxu0 0.0
    %3711 = vmatpush1.msra.mxu0 0.0
    %3712 = vmatprep.subr.mxu0 0.0
    %3713 = vmatpush1.msra.mxu0 0.0
    %3714 = vmatprep.subr.mxu0 0.0
    %3715 = vmatpush1.msra.mxu0 0.0
    %3716 = vmatprep.subr.mxu0 0.0
    %3717 = vmatpush1.msra.mxu0 0.0
    %3718 = vmatprep.subr.mxu0 0.0
    %3719 = vmatpush1.msra.mxu0 0.0
    %3720 = vmatprep.subr.mxu0 0.0
    %3721 = vmatpush1.msra.mxu0 0.0
    %3722 = vmatprep.subr.mxu0 0.0
    %3723 = vmatpush1.msra.mxu0 0.0
    %3724 = vmatprep.subr.mxu0 0.0
    %3725 = vmatpush1.msra.mxu0 0.0
    %3726 = vmatprep.subr.mxu0 0.0
    %3727 = vmatpush1.msra.mxu0 0.0
    %3728 = vmatprep.subr.mxu0 0.0
    %3729 = vmatpush1.msra.mxu0 0.0
    %3730 = vmatprep.subr.mxu0 0.0
    %3731 = vmatpush1.msra.mxu0 0.0
    %3732 = vmatprep.subr.mxu0 0.0
    %3733 = vmatpush1.msra.mxu0 0.0
    %3734 = vmatprep.subr.mxu0 0.0
    %3735 = vmatpush1.msra.mxu0 0.0
    %3736 = vmatprep.subr.mxu0 0.0
    %3737 = vmatpush1.msra.mxu0 0.0
    %3738 = vmatprep.subr.mxu0 0.0
    %3739 = vmatpush1.msra.mxu0 0.0
    %3740 = vmatprep.subr.mxu0 0.0
    %3741 = vmatpush1.msra.mxu0 0.0
    %3742 = vmatprep.subr.mxu0 0.0
    %3743 = vmatpush1.msra.mxu0 0.0
    %3744 = vmatprep.subr.mxu0 0.0
    %3745 = vmatpush1.msra.mxu0 0.0
    %3746 = vmatprep.subr.mxu0 0.0
    %3747 = vmatpush1.msra.mxu0 0.0
    %3748 = vmatprep.subr.mxu0 0.0
    %3749 = vmatpush1.msra.mxu0 0.0
    %3750 = vmatprep.subr.mxu0 0.0
    %3751 = vmatpush1.msra.mxu0 0.0
    %3752 = vmatprep.mubr.f32.mxu0 0.0
    %3753 = vmatmul.mubr.f32.gmra.mrb[0].mxu0 %v724
    %v3754 = vpop.f32.mrb[0].mxu0
    %v3755 = vadd.f32 0.0, %v3754
    %v3756 = vpop.f32.mrb[0].mxu0
    %3757 = vmatprep.mubr.f32.mxu0 0.0
    %3758 = vmatmul.mubr.f32.gmra.mrb[0].mxu0 %v726
    %v3759 = vpop.f32.mrb[0].mxu0
    %v3760 = vadd.f32 0.0, %v3759
    %v3761 = vpop.f32.mrb[0].mxu0
    %3762 = vdwg.mxu0
    %v3763 = vmul.f32 %v810, %v2794
    %v3764 = vmul.f32 %v810, %v2795
    %v3765 = vadd.f32 %v3763, %v3755
    %v3766 = vadd.f32 %v3764, %v3760
    %v3767 = vmul.f32 %v2800, %v806
    %v3768 = vmul.f32 %v2801, %v806
    %v3769 = vsub.f32 %v3765, %v3767
    %v3770 = vsub.f32 %v3766, %v3768
    %vm3771 = vcmp.gt.f32.partialorder %v3769, %v806
    %vm3772 = vcmp.gt.f32.partialorder %v3770, %v806
    %v3773 = vsel %vm3771, 1, 0
    %v3774 = vsel %vm3772, 1, 0
    %v3775 = vcvt.s32.f32 %v3773
    %v3776 = vcvt.s32.f32 %v3774
    %v3779 = vrot.slane %v3775, 1
    %v3780 = vrot.slane %v3776, 1
    %v3781 = vsel %vm325, %v3779, %v3780
    %v3784 = vsel %vm307, %v3775, %v3781
    %v3786 = vrot.slane %v3776, 2
    %v3788 = vsel %vm307, %v3779, %v3786
    %3789 = vmatprep.subr.mxu0 %v123
    %3790 = vmatpush1.msra.mxu0 %v122
    %3791 = vmatprep.subr.mxu0 %v125
    %3792 = vmatpush1.msra.mxu0 %v124
    %3793 = vmatprep.subr.mxu0 %v127
    %3794 = vmatpush1.msra.mxu0 %v126
    %3795 = vmatprep.subr.mxu0 %v129
    %3796 = vmatpush1.msra.mxu0 %v128
    %3797 = vmatprep.subr.mxu0 %v131
    %3798 = vmatpush1.msra.mxu0 %v130
    %3799 = vmatprep.subr.mxu0 %v133
    %3800 = vmatpush1.msra.mxu0 %v132
    %3801 = vmatprep.subr.mxu0 %v135
    %3802 = vmatpush1.msra.mxu0 %v134
    %3803 = vmatprep.subr.mxu0 %v137
    %3804 = vmatpush1.msra.mxu0 %v136
    %3805 = vmatprep.subr.mxu0 %v139
    %3806 = vmatpush1.msra.mxu0 %v138
    %3807 = vmatprep.subr.mxu0 %v141
    %3808 = vmatpush1.msra.mxu0 %v140
    %3809 = vmatprep.subr.mxu0 %v143
    %3810 = vmatpush1.msra.mxu0 %v142
    %3811 = vmatprep.subr.mxu0 %v145
    %3812 = vmatpush1.msra.mxu0 %v144
    %3813 = vmatprep.subr.mxu0 %v147
    %3814 = vmatpush1.msra.mxu0 %v146
    %3815 = vmatprep.subr.mxu0 %v149
    %3816 = vmatpush1.msra.mxu0 %v148
    %3817 = vmatprep.subr.mxu0 %v151
    %3818 = vmatpush1.msra.mxu0 %v150
    %3819 = vmatprep.subr.mxu0 %v153
    %3820 = vmatpush1.msra.mxu0 %v152
    %3821 = vmatprep.subr.mxu0 0.0
    %3822 = vmatpush1.msra.mxu0 0.0
    %3823 = vmatprep.subr.mxu0 0.0
    %3824 = vmatpush1.msra.mxu0 0.0
    %3825 = vmatprep.subr.mxu0 0.0
    %3826 = vmatpush1.msra.mxu0 0.0
    %3827 = vmatprep.subr.mxu0 0.0
    %3828 = vmatpush1.msra.mxu0 0.0
    %3829 = vmatprep.subr.mxu0 0.0
    %3830 = vmatpush1.msra.mxu0 0.0
    %3831 = vmatprep.subr.mxu0 0.0
    %3832 = vmatpush1.msra.mxu0 0.0
    %3833 = vmatprep.subr.mxu0 0.0
    %3834 = vmatpush1.msra.mxu0 0.0
    %3835 = vmatprep.subr.mxu0 0.0
    %3836 = vmatpush1.msra.mxu0 0.0
    %3837 = vmatprep.subr.mxu0 0.0
    %3838 = vmatpush1.msra.mxu0 0.0
    %3839 = vmatprep.subr.mxu0 0.0
    %3840 = vmatpush1.msra.mxu0 0.0
    %3841 = vmatprep.subr.mxu0 0.0
    %3842 = vmatpush1.msra.mxu0 0.0
    %3843 = vmatprep.subr.mxu0 0.0
    %3844 = vmatpush1.msra.mxu0 0.0
    %3845 = vmatprep.subr.mxu0 0.0
    %3846 = vmatpush1.msra.mxu0 0.0
    %3847 = vmatprep.subr.mxu0 0.0
    %3848 = vmatpush1.msra.mxu0 0.0
    %3849 = vmatprep.subr.mxu0 0.0
    %3850 = vmatpush1.msra.mxu0 0.0
    %3851 = vmatprep.subr.mxu0 0.0
    %3852 = vmatpush1.msra.mxu0 0.0
    %3853 = vmatprep.mubr.f32.mxu0 0.0
    %3854 = vmatmul.mubr.f32.gmra.mrb[0].mxu0 %v3788
    %v3855 = vpop.f32.mrb[0].mxu0
    %v3856 = vadd.f32 0.0, %v3855
    %v3857 = vpop.f32.mrb[0].mxu0
    %v3858 = vadd.f32 0.0, %v3857
    %3859 = vmatprep.mubr.f32.mxu0 0.0
    %3860 = vmatmul.mubr.f32.gmra.mrb[0].mxu0 %v3786
    %v3861 = vpop.f32.mrb[0].mxu0
    %v3862 = vadd.f32 0.0, %v3861
    %v3863 = vpop.f32.mrb[0].mxu0
    %v3864 = vadd.f32 0.0, %v3863
    %3865 = vdwg.mxu0
    %3866 = vmatprep.subr.mxu0 %v91
    %3867 = vmatpush1.msra.mxu0 %v90
    %3868 = vmatprep.subr.mxu0 %v93
    %3869 = vmatpush1.msra.mxu0 %v92
    %3870 = vmatprep.subr.mxu0 %v95
    %3871 = vmatpush1.msra.mxu0 %v94
    %3872 = vmatprep.subr.mxu0 %v97
    %3873 = vmatpush1.msra.mxu0 %v96
    %3874 = vmatprep.subr.mxu0 %v99
    %3875 = vmatpush1.msra.mxu0 %v98
    %3876 = vmatprep.subr.mxu0 %v101
    %3877 = vmatpush1.msra.mxu0 %v100
    %3878 = vmatprep.subr.mxu0 %v103
    %3879 = vmatpush1.msra.mxu0 %v102
    %3880 = vmatprep.subr.mxu0 %v105
    %3881 = vmatpush1.msra.mxu0 %v104
    %3882 = vmatprep.subr.mxu0 %v107
    %3883 = vmatpush1.msra.mxu0 %v106
    %3884 = vmatprep.subr.mxu0 %v109
    %3885 = vmatpush1.msra.mxu0 %v108
    %3886 = vmatprep.subr.mxu0 %v111
    %3887 = vmatpush1.msra.mxu0 %v110
    %3888 = vmatprep.subr.mxu0 %v113
    %3889 = vmatpush1.msra.mxu0 %v112
    %3890 = vmatprep.subr.mxu0 %v115
    %3891 = vmatpush1.msra.mxu0 %v114
    %3892 = vmatprep.subr.mxu0 %v117
    %3893 = vmatpush1.msra.mxu0 %v116
    %3894 = vmatprep.subr.mxu0 %v119
    %3895 = vmatpush1.msra.mxu0 %v118
    %3896 = vmatprep.subr.mxu0 %v121
    %3897 = vmatpush1.msra.mxu0 %v120
    %3898 = vmatprep.subr.mxu0 0.0
    %3899 = vmatpush1.msra.mxu0 0.0
    %3900 = vmatprep.subr.mxu0 0.0
    %3901 = vmatpush1.msra.mxu0 0.0
    %3902 = vmatprep.subr.mxu0 0.0
    %3903 = vmatpush1.msra.mxu0 0.0
    %3904 = vmatprep.subr.mxu0 0.0
    %3905 = vmatpush1.msra.mxu0 0.0
    %3906 = vmatprep.subr.mxu0 0.0
    %3907 = vmatpush1.msra.mxu0 0.0
    %3908 = vmatprep.subr.mxu0 0.0
    %3909 = vmatpush1.msra.mxu0 0.0
    %3910 = vmatprep.subr.mxu0 0.0
    %3911 = vmatpush1.msra.mxu0 0.0
    %3912 = vmatprep.subr.mxu0 0.0
    %3913 = vmatpush1.msra.mxu0 0.0
    %3914 = vmatprep.subr.mxu0 0.0
    %3915 = vmatpush1.msra.mxu0 0.0
    %3916 = vmatprep.subr.mxu0 0.0
    %3917 = vmatpush1.msra.mxu0 0.0
    %3918 = vmatprep.subr.mxu0 0.0
    %3919 = vmatpush1.msra.mxu0 0.0
    %3920 = vmatprep.subr.mxu0 0.0
    %3921 = vmatpush1.msra.mxu0 0.0
    %3922 = vmatprep.subr.mxu0 0.0
    %3923 = vmatpush1.msra.mxu0 0.0
    %3924 = vmatprep.subr.mxu0 0.0
    %3925 = vmatpush1.msra.mxu0 0.0
    %3926 = vmatprep.subr.mxu0 0.0
    %3927 = vmatpush1.msra.mxu0 0.0
    %3928 = vmatprep.subr.mxu0 0.0
    %3929 = vmatpush1.msra.mxu0 0.0
    %3930 = vmatprep.mubr.f32.mxu0 0.0
    %3931 = vmatmul.mubr.f32.gmra.mrb[0].mxu0 %v3784
    %v3932 = vpop.f32.mrb[0].mxu0
    %v3933 = vadd.f32 %v3856, %v3932
    %v3934 = vpop.f32.mrb[0].mxu0
    %v3935 = vadd.f32 %v3858, %v3934
    %3936 = vmatprep.mubr.f32.mxu0 0.0
    %3937 = vmatmul.mubr.f32.gmra.mrb[0].mxu0 %v3780
    %v3938 = vpop.f32.mrb[0].mxu0
    %v3939 = vadd.f32 %v3862, %v3938
    %v3940 = vpop.f32.mrb[0].mxu0
    %v3941 = vadd.f32 %v3864, %v3940
    %3942 = vdwg.mxu0
    %v3943 = vadd.f32 %v3933, %v993
    %v3944 = vadd.f32 %v3935, %v997
    %v3945 = vadd.f32 %v3939, %v993
    %v3946 = vadd.f32 %v3941, %v997
    %v3951 = vrot.slane %v3943, 1
    %v3952 = vrot.slane %v3945, 1
    %v3953 = vsel %vm325, %v3951, %v3952
    %v3954 = vrot.slane %v3944, 1
    %v3955 = vrot.slane %v3946, 1
    %v3956 = vsel %vm325, %v3954, %v3955
    %v3961 = vmax.f32 %v3943, %v3953
    %v3962 = vmax.f32 %v3944, %v3956
    %v3963 = vmax.f32 %v3945, %v3952
    %v3964 = vmax.f32 %v3946, %v3955
    %v3966 = vsel %vm370, %v3963, 0
    %v3969 = vsel %vm370, %v3964, 0
    %3971 = vmatprep.subr.mxu0 %v3962
    %3972 = vmatpush1.msra.mxu0 %v3961
    %3973 = vmatprep.subr.mxu0 %v3969
    %3974 = vmatpush1.msra.mxu0 %v3966
    %3975 = vmatprep.subr.mxu0 0.0
    %3976 = vmatpush1.msra.mxu0 0.0
    %3977 = vmatprep.subr.mxu0 0.0
    %3978 = vmatpush1.msra.mxu0 0.0
    %3979 = vmatprep.subr.mxu0 0.0
    %3980 = vmatpush1.msra.mxu0 0.0
    %3981 = vmatprep.subr.mxu0 0.0
    %3982 = vmatpush1.msra.mxu0 0.0
    %3983 = vmatprep.subr.mxu0 0.0
    %3984 = vmatpush1.msra.mxu0 0.0
    %3985 = vmatprep.subr.mxu0 0.0
    %3986 = vmatpush1.msra.mxu0 0.0
    %3987 = vmatprep.subr.mxu0 0.0
    %3988 = vmatpush1.msra.mxu0 0.0
    %3989 = vmatprep.subr.mxu0 0.0
    %3990 = vmatpush1.msra.mxu0 0.0
    %3991 = vmatprep.subr.mxu0 0.0
    %3992 = vmatpush1.msra.mxu0 0.0
    %3993 = vmatprep.subr.mxu0 0.0
    %3994 = vmatpush1.msra.mxu0 0.0
    %3995 = vmatprep.subr.mxu0 0.0
    %3996 = vmatpush1.msra.mxu0 0.0
    %3997 = vmatprep.subr.mxu0 0.0
    %3998 = vmatpush1.msra.mxu0 0.0
    %3999 = vmatprep.subr.mxu0 0.0
    %4000 = vmatpush1.msra.mxu0 0.0
    %4001 = vmatprep.subr.mxu0 0.0
    %4002 = vmatpush1.msra.mxu0 0.0
    %4003 = vmatprep.subr.mxu0 0.0
    %4004 = vmatpush1.msra.mxu0 0.0
    %4005 = vmatprep.subr.mxu0 0.0
    %4006 = vmatpush1.msra.mxu0 0.0
    %4007 = vmatprep.subr.mxu0 0.0
    %4008 = vmatpush1.msra.mxu0 0.0
    %4009 = vmatprep.subr.mxu0 0.0
    %4010 = vmatpush1.msra.mxu0 0.0
    %4011 = vmatprep.subr.mxu0 0.0
    %4012 = vmatpush1.msra.mxu0 0.0
    %4013 = vmatprep.subr.mxu0 0.0
    %4014 = vmatpush1.msra.mxu0 0.0
    %4015 = vmatprep.subr.mxu0 0.0
    %4016 = vmatpush1.msra.mxu0 0.0
    %4017 = vmatprep.subr.mxu0 0.0
    %4018 = vmatpush1.msra.mxu0 0.0
    %4019 = vmatprep.subr.mxu0 0.0
    %4020 = vmatpush1.msra.mxu0 0.0
    %4021 = vmatprep.subr.mxu0 0.0
    %4022 = vmatpush1.msra.mxu0 0.0
    %4023 = vmatprep.subr.mxu0 0.0
    %4024 = vmatpush1.msra.mxu0 0.0
    %4025 = vmatprep.subr.mxu0 0.0
    %4026 = vmatpush1.msra.mxu0 0.0
    %4027 = vmatprep.subr.mxu0 0.0
    %4028 = vmatpush1.msra.mxu0 0.0
    %4029 = vmatprep.subr.mxu0 0.0
    %4030 = vmatpush1.msra.mxu0 0.0
    %4031 = vmatprep.subr.mxu0 0.0
    %4032 = vmatpush1.msra.mxu0 0.0
    %4033 = vmatprep.subr.mxu0 0.0
    %4034 = vmatpush1.msra.mxu0 0.0
    %4035 = vmatprep.mubr.f32.mxu0 0.0
    %4036 = vmatmul.mubr.f32.gmra.mrb[0].mxu0 %v1023
    %v4037 = vpop.f32.mrb[0].mxu0
    %v4038 = vadd.f32 0.0, %v4037
    %v4039 = vpop.f32.mrb[0].mxu0
    %v4040 = vadd.f32 0.0, %v4039
    %4041 = vdwg.mxu0
    %v4042 = vmul.f32 %v1106, %v3073
    %v4043 = vmul.f32 %v1106, %v3074
    %v4044 = vadd.f32 %v4042, %v4038
    %v4045 = vadd.f32 %v4043, %v4040
    %v4046 = vmul.f32 %v3079, %v1102
    %v4047 = vmul.f32 %v3080, %v1102
    %v4048 = vsub.f32 %v4044, %v4046
    %v4049 = vsub.f32 %v4045, %v4047
    %vm4050 = vcmp.gt.f32.partialorder %v4048, %v1102
    %vm4051 = vcmp.gt.f32.partialorder %v4049, %v1102
    %v4052 = vsel %vm4050, 1, 0
    %v4053 = vsel %vm4051, 1, 0
    %v4054 = vcvt.s32.f32 %v4052
    %v4055 = vcvt.s32.f32 %v4053
    %v4058 = vrot.slane %v4054, 2
    %v4059 = vrot.slane %v4055, 2
    %v4062 = vsel %vm1125, %v4054, %v4058
    %v4063 = vsel %vm1125, %v4055, %v4059
    %v4064 = vld [vmem:[%s8] sm:$0xff]
    %v4065 = vld [vmem:[%s8 + $0x8] sm:$0xff]
    %v4066 = vld [vmem:[%s8 + $0x10] sm:$0xff]
    %v4067 = vld [vmem:[%s8 + $0x18] sm:$0xff]
    %v4068 = vld [vmem:[%s8 + $0x20] sm:$0xff]
    %v4069 = vld [vmem:[%s8 + $0x28] sm:$0xff]
    %v4070 = vld [vmem:[%s8 + $0x30] sm:$0xff]
    %v4071 = vld [vmem:[%s8 + $0x38] sm:$0xff]
    %v4072 = vld [vmem:[%s8 + $0x40] sm:$0xff]
    %v4073 = vld [vmem:[%s8 + $0x48] sm:$0xff]
    %v4074 = vld [vmem:[%s8 + $0x50] sm:$0xff]
    %v4075 = vld [vmem:[%s8 + $0x58] sm:$0xff]
    %v4076 = vld [vmem:[%s8 + $0x60] sm:$0xff]
    %v4077 = vld [vmem:[%s8 + $0x68] sm:$0xff]
    %v4078 = vld [vmem:[%s8 + $0x70] sm:$0xff]
    %v4079 = vld [vmem:[%s8 + $0x78] sm:$0xff]
    %v4080 = vld [vmem:[%s8 + $0x80] sm:$0xff]
    %v4081 = vld [vmem:[%s8 + $0x88] sm:$0xff]
    %v4082 = vld [vmem:[%s8 + $0x90] sm:$0xff]
    %v4083 = vld [vmem:[%s8 + $0x98] sm:$0xff]
    %v4084 = vld [vmem:[%s8 + $0xa0] sm:$0xff]
    %v4085 = vld [vmem:[%s8 + $0xa8] sm:$0xff]
    %v4086 = vld [vmem:[%s8 + $0xb0] sm:$0xff]
    %v4087 = vld [vmem:[%s8 + $0xb8] sm:$0xff]
    %v4088 = vld [vmem:[%s8 + $0xc0] sm:$0xff]
    %v4089 = vld [vmem:[%s8 + $0xc8] sm:$0xff]
    %v4090 = vld [vmem:[%s8 + $0xd0] sm:$0xff]
    %v4091 = vld [vmem:[%s8 + $0xd8] sm:$0xff]
    %v4092 = vld [vmem:[%s8 + $0xe0] sm:$0xff]
    %v4093 = vld [vmem:[%s8 + $0xe8] sm:$0xff]
    %v4094 = vld [vmem:[%s8 + $0xf0] sm:$0xff]
    %v4095 = vld [vmem:[%s8 + $0xf8] sm:$0xff]
    %4096 = vmatprep.subr.mxu0 0.0
    %4097 = vmatpush1.msra.mxu0 %v4064
    %4098 = vmatprep.subr.mxu0 0.0
    %4099 = vmatpush1.msra.mxu0 %v4065
    %4100 = vmatprep.subr.mxu0 0.0
    %4101 = vmatpush1.msra.mxu0 %v4066
    %4102 = vmatprep.subr.mxu0 0.0
    %4103 = vmatpush1.msra.mxu0 %v4067
    %4104 = vmatprep.subr.mxu0 0.0
    %4105 = vmatpush1.msra.mxu0 %v4068
    %4106 = vmatprep.subr.mxu0 0.0
    %4107 = vmatpush1.msra.mxu0 %v4069
    %4108 = vmatprep.subr.mxu0 0.0
    %4109 = vmatpush1.msra.mxu0 %v4070
    %4110 = vmatprep.subr.mxu0 0.0
    %4111 = vmatpush1.msra.mxu0 %v4071
    %4112 = vmatprep.subr.mxu0 0.0
    %4113 = vmatpush1.msra.mxu0 %v4072
    %4114 = vmatprep.subr.mxu0 0.0
    %4115 = vmatpush1.msra.mxu0 %v4073
    %4116 = vmatprep.subr.mxu0 0.0
    %4117 = vmatpush1.msra.mxu0 %v4074
    %4118 = vmatprep.subr.mxu0 0.0
    %4119 = vmatpush1.msra.mxu0 %v4075
    %4120 = vmatprep.subr.mxu0 0.0
    %4121 = vmatpush1.msra.mxu0 %v4076
    %4122 = vmatprep.subr.mxu0 0.0
    %4123 = vmatpush1.msra.mxu0 %v4077
    %4124 = vmatprep.subr.mxu0 0.0
    %4125 = vmatpush1.msra.mxu0 %v4078
    %4126 = vmatprep.subr.mxu0 0.0
    %4127 = vmatpush1.msra.mxu0 %v4079
    %4128 = vmatprep.subr.mxu0 0.0
    %4129 = vmatpush1.msra.mxu0 %v4080
    %4130 = vmatprep.subr.mxu0 0.0
    %4131 = vmatpush1.msra.mxu0 %v4081
    %4132 = vmatprep.subr.mxu0 0.0
    %4133 = vmatpush1.msra.mxu0 %v4082
    %4134 = vmatprep.subr.mxu0 0.0
    %4135 = vmatpush1.msra.mxu0 %v4083
    %4136 = vmatprep.subr.mxu0 0.0
    %4137 = vmatpush1.msra.mxu0 %v4084
    %4138 = vmatprep.subr.mxu0 0.0
    %4139 = vmatpush1.msra.mxu0 %v4085
    %4140 = vmatprep.subr.mxu0 0.0
    %4141 = vmatpush1.msra.mxu0 %v4086
    %4142 = vmatprep.subr.mxu0 0.0
    %4143 = vmatpush1.msra.mxu0 %v4087
    %4144 = vmatprep.subr.mxu0 0.0
    %4145 = vmatpush1.msra.mxu0 %v4088
    %4146 = vmatprep.subr.mxu0 0.0
    %4147 = vmatpush1.msra.mxu0 %v4089
    %4148 = vmatprep.subr.mxu0 0.0
    %4149 = vmatpush1.msra.mxu0 %v4090
    %4150 = vmatprep.subr.mxu0 0.0
    %4151 = vmatpush1.msra.mxu0 %v4091
    %4152 = vmatprep.subr.mxu0 0.0
    %4153 = vmatpush1.msra.mxu0 %v4092
    %4154 = vmatprep.subr.mxu0 0.0
    %4155 = vmatpush1.msra.mxu0 %v4093
    %4156 = vmatprep.subr.mxu0 0.0
    %4157 = vmatpush1.msra.mxu0 %v4094
    %4158 = vmatprep.subr.mxu0 0.0
    %4159 = vmatpush1.msra.mxu0 %v4095
    %4160 = vmatprep.mubr.f32.mxu0 %v4063
    %4161 = vmatmul.mubr.f32.gmra.mrb[0].mxu0 %v4062
    %v4162 = vpop.f32.mrb[0].mxu0
    %v4163 = vadd.f32 0.0, %v4162
    %v4164 = vpop.f32.mrb[0].mxu0
    %4165 = vdwg.mxu0
    %v4166 = vadd.f32 %v1234, %v4163
    %v4167 = vrot.slane %v4054, 1
    %v4168 = vrot.slane %v4055, 1
    %v4171 = vrot.slane %v4054, 3
    %v4172 = vrot.slane %v4055, 3
    %v4175 = vsel %vm1125, %v4167, %v4171
    %v4176 = vsel %vm1125, %v4168, %v4172
    %v4177 = vld [vmem:[%s1247] sm:$0xff]
    %v4178 = vld [vmem:[%s1247 + $0x8] sm:$0xff]
    %v4179 = vld [vmem:[%s1247 + $0x10] sm:$0xff]
    %v4180 = vld [vmem:[%s1247 + $0x18] sm:$0xff]
    %v4181 = vld [vmem:[%s1247 + $0x20] sm:$0xff]
    %v4182 = vld [vmem:[%s1247 + $0x28] sm:$0xff]
    %v4183 = vld [vmem:[%s1247 + $0x30] sm:$0xff]
    %v4184 = vld [vmem:[%s1247 + $0x38] sm:$0xff]
    %v4185 = vld [vmem:[%s1247 + $0x40] sm:$0xff]
    %v4186 = vld [vmem:[%s1247 + $0x48] sm:$0xff]
    %v4187 = vld [vmem:[%s1247 + $0x50] sm:$0xff]
    %v4188 = vld [vmem:[%s1247 + $0x58] sm:$0xff]
    %v4189 = vld [vmem:[%s1247 + $0x60] sm:$0xff]
    %v4190 = vld [vmem:[%s1247 + $0x68] sm:$0xff]
    %v4191 = vld [vmem:[%s1247 + $0x70] sm:$0xff]
    %v4192 = vld [vmem:[%s1247 + $0x78] sm:$0xff]
    %v4193 = vld [vmem:[%s1247 + $0x80] sm:$0xff]
    %v4194 = vld [vmem:[%s1247 + $0x88] sm:$0xff]
    %v4195 = vld [vmem:[%s1247 + $0x90] sm:$0xff]
    %v4196 = vld [vmem:[%s1247 + $0x98] sm:$0xff]
    %v4197 = vld [vmem:[%s1247 + $0xa0] sm:$0xff]
    %v4198 = vld [vmem:[%s1247 + $0xa8] sm:$0xff]
    %v4199 = vld [vmem:[%s1247 + $0xb0] sm:$0xff]
    %v4200 = vld [vmem:[%s1247 + $0xb8] sm:$0xff]
    %v4201 = vld [vmem:[%s1247 + $0xc0] sm:$0xff]
    %v4202 = vld [vmem:[%s1247 + $0xc8] sm:$0xff]
    %v4203 = vld [vmem:[%s1247 + $0xd0] sm:$0xff]
    %v4204 = vld [vmem:[%s1247 + $0xd8] sm:$0xff]
    %v4205 = vld [vmem:[%s1247 + $0xe0] sm:$0xff]
    %v4206 = vld [vmem:[%s1247 + $0xe8] sm:$0xff]
    %v4207 = vld [vmem:[%s1247 + $0xf0] sm:$0xff]
    %v4208 = vld [vmem:[%s1247 + $0xf8] sm:$0xff]
    %4209 = vmatprep.subr.mxu0 0.0
    %4210 = vmatpush1.msra.mxu0 %v4177
    %4211 = vmatprep.subr.mxu0 0.0
    %4212 = vmatpush1.msra.mxu0 %v4178
    %4213 = vmatprep.subr.mxu0 0.0
    %4214 = vmatpush1.msra.mxu0 %v4179
    %4215 = vmatprep.subr.mxu0 0.0
    %4216 = vmatpush1.msra.mxu0 %v4180
    %4217 = vmatprep.subr.mxu0 0.0
    %4218 = vmatpush1.msra.mxu0 %v4181
    %4219 = vmatprep.subr.mxu0 0.0
    %4220 = vmatpush1.msra.mxu0 %v4182
    %4221 = vmatprep.subr.mxu0 0.0
    %4222 = vmatpush1.msra.mxu0 %v4183
    %4223 = vmatprep.subr.mxu0 0.0
    %4224 = vmatpush1.msra.mxu0 %v4184
    %4225 = vmatprep.subr.mxu0 0.0
    %4226 = vmatpush1.msra.mxu0 %v4185
    %4227 = vmatprep.subr.mxu0 0.0
    %4228 = vmatpush1.msra.mxu0 %v4186
    %4229 = vmatprep.subr.mxu0 0.0
    %4230 = vmatpush1.msra.mxu0 %v4187
    %4231 = vmatprep.subr.mxu0 0.0
    %4232 = vmatpush1.msra.mxu0 %v4188
    %4233 = vmatprep.subr.mxu0 0.0
    %4234 = vmatpush1.msra.mxu0 %v4189
    %4235 = vmatprep.subr.mxu0 0.0
    %4236 = vmatpush1.msra.mxu0 %v4190
    %4237 = vmatprep.subr.mxu0 0.0
    %4238 = vmatpush1.msra.mxu0 %v4191
    %4239 = vmatprep.subr.mxu0 0.0
    %4240 = vmatpush1.msra.mxu0 %v4192
    %4241 = vmatprep.subr.mxu0 0.0
    %4242 = vmatpush1.msra.mxu0 %v4193
    %4243 = vmatprep.subr.mxu0 0.0
    %4244 = vmatpush1.msra.mxu0 %v4194
    %4245 = vmatprep.subr.mxu0 0.0
    %4246 = vmatpush1.msra.mxu0 %v4195
    %4247 = vmatprep.subr.mxu0 0.0
    %4248 = vmatpush1.msra.mxu0 %v4196
    %4249 = vmatprep.subr.mxu0 0.0
    %4250 = vmatpush1.msra.mxu0 %v4197
    %4251 = vmatprep.subr.mxu0 0.0
    %4252 = vmatpush1.msra.mxu0 %v4198
    %4253 = vmatprep.subr.mxu0 0.0
    %4254 = vmatpush1.msra.mxu0 %v4199
    %4255 = vmatprep.subr.mxu0 0.0
    %4256 = vmatpush1.msra.mxu0 %v4200
    %4257 = vmatprep.subr.mxu0 0.0
    %4258 = vmatpush1.msra.mxu0 %v4201
    %4259 = vmatprep.subr.mxu0 0.0
    %4260 = vmatpush1.msra.mxu0 %v4202
    %4261 = vmatprep.subr.mxu0 0.0
    %4262 = vmatpush1.msra.mxu0 %v4203
    %4263 = vmatprep.subr.mxu0 0.0
    %4264 = vmatpush1.msra.mxu0 %v4204
    %4265 = vmatprep.subr.mxu0 0.0
    %4266 = vmatpush1.msra.mxu0 %v4205
    %4267 = vmatprep.subr.mxu0 0.0
    %4268 = vmatpush1.msra.mxu0 %v4206
    %4269 = vmatprep.subr.mxu0 0.0
    %4270 = vmatpush1.msra.mxu0 %v4207
    %4271 = vmatprep.subr.mxu0 0.0
    %4272 = vmatpush1.msra.mxu0 %v4208
    %4273 = vmatprep.mubr.f32.mxu0 %v4176
    %4274 = vmatmul.mubr.f32.gmra.mrb[0].mxu0 %v4175
    %v4275 = vpop.f32.mrb[0].mxu0
    %v4276 = vadd.f32 0.0, %v4275
    %v4277 = vpop.f32.mrb[0].mxu0
    %4278 = vdwg.mxu0
    %v4279 = vadd.f32 %v4166, %v4276
    %v4280 = vrot.slane %v4054, 4
    %v4281 = vrot.slane %v4055, 4
    %v4284 = vsel %vm1125, %v4058, %v4280
    %v4285 = vsel %vm1125, %v4059, %v4281
    %v4286 = vld [vmem:[%s1357] sm:$0xff]
    %v4287 = vld [vmem:[%s1357 + $0x8] sm:$0xff]
    %v4288 = vld [vmem:[%s1357 + $0x10] sm:$0xff]
    %v4289 = vld [vmem:[%s1357 + $0x18] sm:$0xff]
    %v4290 = vld [vmem:[%s1357 + $0x20] sm:$0xff]
    %v4291 = vld [vmem:[%s1357 + $0x28] sm:$0xff]
    %v4292 = vld [vmem:[%s1357 + $0x30] sm:$0xff]
    %v4293 = vld [vmem:[%s1357 + $0x38] sm:$0xff]
    %v4294 = vld [vmem:[%s1357 + $0x40] sm:$0xff]
    %v4295 = vld [vmem:[%s1357 + $0x48] sm:$0xff]
    %v4296 = vld [vmem:[%s1357 + $0x50] sm:$0xff]
    %v4297 = vld [vmem:[%s1357 + $0x58] sm:$0xff]
    %v4298 = vld [vmem:[%s1357 + $0x60] sm:$0xff]
    %v4299 = vld [vmem:[%s1357 + $0x68] sm:$0xff]
    %v4300 = vld [vmem:[%s1357 + $0x70] sm:$0xff]
    %v4301 = vld [vmem:[%s1357 + $0x78] sm:$0xff]
    %v4302 = vld [vmem:[%s1357 + $0x80] sm:$0xff]
    %v4303 = vld [vmem:[%s1357 + $0x88] sm:$0xff]
    %v4304 = vld [vmem:[%s1357 + $0x90] sm:$0xff]
    %v4305 = vld [vmem:[%s1357 + $0x98] sm:$0xff]
    %v4306 = vld [vmem:[%s1357 + $0xa0] sm:$0xff]
    %v4307 = vld [vmem:[%s1357 + $0xa8] sm:$0xff]
    %v4308 = vld [vmem:[%s1357 + $0xb0] sm:$0xff]
    %v4309 = vld [vmem:[%s1357 + $0xb8] sm:$0xff]
    %v4310 = vld [vmem:[%s1357 + $0xc0] sm:$0xff]
    %v4311 = vld [vmem:[%s1357 + $0xc8] sm:$0xff]
    %v4312 = vld [vmem:[%s1357 + $0xd0] sm:$0xff]
    %v4313 = vld [vmem:[%s1357 + $0xd8] sm:$0xff]
    %v4314 = vld [vmem:[%s1357 + $0xe0] sm:$0xff]
    %v4315 = vld [vmem:[%s1357 + $0xe8] sm:$0xff]
    %v4316 = vld [vmem:[%s1357 + $0xf0] sm:$0xff]
    %v4317 = vld [vmem:[%s1357 + $0xf8] sm:$0xff]
    %4318 = vmatprep.subr.mxu0 0.0
    %4319 = vmatpush1.msra.mxu0 %v4286
    %4320 = vmatprep.subr.mxu0 0.0
    %4321 = vmatpush1.msra.mxu0 %v4287
    %4322 = vmatprep.subr.mxu0 0.0
    %4323 = vmatpush1.msra.mxu0 %v4288
    %4324 = vmatprep.subr.mxu0 0.0
    %4325 = vmatpush1.msra.mxu0 %v4289
    %4326 = vmatprep.subr.mxu0 0.0
    %4327 = vmatpush1.msra.mxu0 %v4290
    %4328 = vmatprep.subr.mxu0 0.0
    %4329 = vmatpush1.msra.mxu0 %v4291
    %4330 = vmatprep.subr.mxu0 0.0
    %4331 = vmatpush1.msra.mxu0 %v4292
    %4332 = vmatprep.subr.mxu0 0.0
    %4333 = vmatpush1.msra.mxu0 %v4293
    %4334 = vmatprep.subr.mxu0 0.0
    %4335 = vmatpush1.msra.mxu0 %v4294
    %4336 = vmatprep.subr.mxu0 0.0
    %4337 = vmatpush1.msra.mxu0 %v4295
    %4338 = vmatprep.subr.mxu0 0.0
    %4339 = vmatpush1.msra.mxu0 %v4296
    %4340 = vmatprep.subr.mxu0 0.0
    %4341 = vmatpush1.msra.mxu0 %v4297
    %4342 = vmatprep.subr.mxu0 0.0
    %4343 = vmatpush1.msra.mxu0 %v4298
    %4344 = vmatprep.subr.mxu0 0.0
    %4345 = vmatpush1.msra.mxu0 %v4299
    %4346 = vmatprep.subr.mxu0 0.0
    %4347 = vmatpush1.msra.mxu0 %v4300
    %4348 = vmatprep.subr.mxu0 0.0
    %4349 = vmatpush1.msra.mxu0 %v4301
    %4350 = vmatprep.subr.mxu0 0.0
    %4351 = vmatpush1.msra.mxu0 %v4302
    %4352 = vmatprep.subr.mxu0 0.0
    %4353 = vmatpush1.msra.mxu0 %v4303
    %4354 = vmatprep.subr.mxu0 0.0
    %4355 = vmatpush1.msra.mxu0 %v4304
    %4356 = vmatprep.subr.mxu0 0.0
    %4357 = vmatpush1.msra.mxu0 %v4305
    %4358 = vmatprep.subr.mxu0 0.0
    %4359 = vmatpush1.msra.mxu0 %v4306
    %4360 = vmatprep.subr.mxu0 0.0
    %4361 = vmatpush1.msra.mxu0 %v4307
    %4362 = vmatprep.subr.mxu0 0.0
    %4363 = vmatpush1.msra.mxu0 %v4308
    %4364 = vmatprep.subr.mxu0 0.0
    %4365 = vmatpush1.msra.mxu0 %v4309
    %4366 = vmatprep.subr.mxu0 0.0
    %4367 = vmatpush1.msra.mxu0 %v4310
    %4368 = vmatprep.subr.mxu0 0.0
    %4369 = vmatpush1.msra.mxu0 %v4311
    %4370 = vmatprep.subr.mxu0 0.0
    %4371 = vmatpush1.msra.mxu0 %v4312
    %4372 = vmatprep.subr.mxu0 0.0
    %4373 = vmatpush1.msra.mxu0 %v4313
    %4374 = vmatprep.subr.mxu0 0.0
    %4375 = vmatpush1.msra.mxu0 %v4314
    %4376 = vmatprep.subr.mxu0 0.0
    %4377 = vmatpush1.msra.mxu0 %v4315
    %4378 = vmatprep.subr.mxu0 0.0
    %4379 = vmatpush1.msra.mxu0 %v4316
    %4380 = vmatprep.subr.mxu0 0.0
    %4381 = vmatpush1.msra.mxu0 %v4317
    %4382 = vmatprep.mubr.f32.mxu0 %v4285
    %4383 = vmatmul.mubr.f32.gmra.mrb[0].mxu0 %v4284
    %v4384 = vpop.f32.mrb[0].mxu0
    %v4385 = vadd.f32 0.0, %v4384
    %v4386 = vpop.f32.mrb[0].mxu0
    %4387 = vdwg.mxu0
    %v4388 = vadd.f32 %v4279, %v4385
    %v4389 = vmul.f32 %v1465, %v3417
    %v4390 = vadd.f32 %v4389, %v4388
    %v4391 = vmul.f32 %v3420, %v1461
    %v4392 = vsub.f32 %v4390, %v4391
    %vm4393 = vcmp.gt.f32.partialorder %v4392, %v1461
    %v4394 = vsel %vm4393, 1, 0
    %v4395 = vcvt.s32.f32 %v4394
    %s4396 = scalar_lea.vmem %s10, 6
    %4397 = vst.msk [vmem:[%s4396] sm:$0x3] %vm1473, %v4388
    %s4398 = scalar_lea.vmem %s11, 6
    %4399 = vst.msk [vmem:[%s4398] sm:$0x3] %vm1473, %v4395
    %s4400 = scalar_lea.vmem %s12, 6
    %4401 = vst.msk [vmem:[%s4400] sm:$0x3] %vm1473, %v4392
    %v4402 = vmul.f32 %v463, %v3439
    %v4403 = vmul.f32 %v463, %v3440
    %v4404 = vmul.f32 %v463, %v3441
    %v4405 = vmul.f32 %v463, %v3442
    %v4406 = vadd.f32 %v4402, %v441
    %v4407 = vadd.f32 %v4403, %v446
    %v4408 = vadd.f32 %v4404, %v451
    %v4409 = vadd.f32 %v4405, %v456
    %v4410 = vmul.f32 %v3451, %v459
    %v4411 = vmul.f32 %v3452, %v459
    %v4412 = vmul.f32 %v3453, %v459
    %v4413 = vmul.f32 %v3454, %v459
    %v4414 = vsub.f32 %v4406, %v4410
    %v4415 = vsub.f32 %v4407, %v4411
    %v4416 = vsub.f32 %v4408, %v4412
    %v4417 = vsub.f32 %v4409, %v4413
    %vm4418 = vcmp.gt.f32.partialorder %v4414, %v459
    %vm4419 = vcmp.gt.f32.partialorder %v4415, %v459
    %vm4420 = vcmp.gt.f32.partialorder %v4416, %v459
    %vm4421 = vcmp.gt.f32.partialorder %v4417, %v459
    %v4422 = vsel %vm4418, 1, 0
    %v4423 = vsel %vm4419, 1, 0
    %v4424 = vsel %vm4420, 1, 0
    %v4425 = vsel %vm4421, 1, 0
    %v4426 = vcvt.s32.f32 %v4422
    %v4427 = vcvt.s32.f32 %v4423
    %v4428 = vcvt.s32.f32 %v4424
    %v4429 = vcvt.s32.f32 %v4425
    %v4433 = vrot.slane %v4427, 1
    %v4434 = vrot.slane %v4428, 1
    %v4435 = vsel %vm325, %v4433, %v4434
    %v4436 = vrot.slane %v4429, 1
    %v4437 = vsel %vm325, %v4434, %v4436
    %v4439 = vsel %vm307, %v4427, %v4435
    %v4441 = vrot.slane %v4426, 1
    %v4442 = vsel %vm325, %v4441, %v4433
    %v4444 = vrot.slane %v4428, 2
    %v4445 = vrot.slane %v4429, 2
    %v4446 = vsel %vm307, %v4444, %v4445
    %v4448 = vsel %vm307, %v4433, %v4444
    %v4449 = vsel %vm505, %v4442, 0
    %v4452 = vsel %vm505, %v4448, 0
    %v4454 = vsel %vm505, %v4446, 0
    %v4456 = vsel %vm505, %v4445, 0
    %4458 = vmatprep.subr.mxu0 0.0
    %4459 = vmatpush1.msra.mxu0 %v86
    %4460 = vmatprep.subr.mxu0 0.0
    %4461 = vmatpush1.msra.mxu0 %v87
    %4462 = vmatprep.subr.mxu0 0.0
    %4463 = vmatpush1.msra.mxu0 %v88
    %4464 = vmatprep.subr.mxu0 0.0
    %4465 = vmatpush1.msra.mxu0 %v89
    %4466 = vmatprep.subr.mxu0 0.0
    %4467 = vmatpush1.msra.mxu0 0.0
    %4468 = vmatprep.subr.mxu0 0.0
    %4469 = vmatpush1.msra.mxu0 0.0
    %4470 = vmatprep.subr.mxu0 0.0
    %4471 = vmatpush1.msra.mxu0 0.0
    %4472 = vmatprep.subr.mxu0 0.0
    %4473 = vmatpush1.msra.mxu0 0.0
    %4474 = vmatprep.subr.mxu0 0.0
    %4475 = vmatpush1.msra.mxu0 0.0
    %4476 = vmatprep.subr.mxu0 0.0
    %4477 = vmatpush1.msra.mxu0 0.0
    %4478 = vmatprep.subr.mxu0 0.0
    %4479 = vmatpush1.msra.mxu0 0.0
    %4480 = vmatprep.subr.mxu0 0.0
    %4481 = vmatpush1.msra.mxu0 0.0
    %4482 = vmatprep.subr.mxu0 0.0
    %4483 = vmatpush1.msra.mxu0 0.0
    %4484 = vmatprep.subr.mxu0 0.0
    %4485 = vmatpush1.msra.mxu0 0.0
    %4486 = vmatprep.subr.mxu0 0.0
    %4487 = vmatpush1.msra.mxu0 0.0
    %4488 = vmatprep.subr.mxu0 0.0
    %4489 = vmatpush1.msra.mxu0 0.0
    %4490 = vmatprep.subr.mxu0 0.0
    %4491 = vmatpush1.msra.mxu0 0.0
    %4492 = vmatprep.subr.mxu0 0.0
    %4493 = vmatpush1.msra.mxu0 0.0
    %4494 = vmatprep.subr.mxu0 0.0
    %4495 = vmatpush1.msra.mxu0 0.0
    %4496 = vmatprep.subr.mxu0 0.0
    %4497 = vmatpush1.msra.mxu0 0.0
    %4498 = vmatprep.subr.mxu0 0.0
    %4499 = vmatpush1.msra.mxu0 0.0
    %4500 = vmatprep.subr.mxu0 0.0
    %4501 = vmatpush1.msra.mxu0 0.0
    %4502 = vmatprep.subr.mxu0 0.0
    %4503 = vmatpush1.msra.mxu0 0.0
    %4504 = vmatprep.subr.mxu0 0.0
    %4505 = vmatpush1.msra.mxu0 0.0
    %4506 = vmatprep.subr.mxu0 0.0
    %4507 = vmatpush1.msra.mxu0 0.0
    %4508 = vmatprep.subr.mxu0 0.0
    %4509 = vmatpush1.msra.mxu0 0.0
    %4510 = vmatprep.subr.mxu0 0.0
    %4511 = vmatpush1.msra.mxu0 0.0
    %4512 = vmatprep.subr.mxu0 0.0
    %4513 = vmatpush1.msra.mxu0 0.0
    %4514 = vmatprep.subr.mxu0 0.0
    %4515 = vmatpush1.msra.mxu0 0.0
    %4516 = vmatprep.subr.mxu0 0.0
    %4517 = vmatpush1.msra.mxu0 0.0
    %4518 = vmatprep.subr.mxu0 0.0
    %4519 = vmatpush1.msra.mxu0 0.0
    %4520 = vmatprep.subr.mxu0 0.0
    %4521 = vmatpush1.msra.mxu0 0.0
    %4522 = vmatprep.mubr.f32.mxu0 0.0
    %4523 = vmatmul.mubr.f32.gmra.mrb[0].mxu0 %v4449
    %v4524 = vpop.f32.mrb[0].mxu0
    %v4525 = vadd.f32 0.0, %v4524
    %v4526 = vpop.f32.mrb[0].mxu0
    %4527 = vmatprep.mubr.f32.mxu0 0.0
    %4528 = vmatmul.mubr.f32.gmra.mrb[0].mxu0 %v4452
    %v4529 = vpop.f32.mrb[0].mxu0
    %v4530 = vadd.f32 0.0, %v4529
    %v4531 = vpop.f32.mrb[0].mxu0
    %4532 = vmatprep.mubr.f32.mxu0 0.0
    %4533 = vmatmul.mubr.f32.gmra.mrb[0].mxu0 %v4454
    %v4534 = vpop.f32.mrb[0].mxu0
    %v4535 = vadd.f32 0.0, %v4534
    %v4536 = vpop.f32.mrb[0].mxu0
    %4537 = vmatprep.mubr.f32.mxu0 0.0
    %4538 = vmatmul.mubr.f32.gmra.mrb[0].mxu0 %v4456
    %v4539 = vpop.f32.mrb[0].mxu0
    %v4540 = vadd.f32 0.0, %v4539
    %v4541 = vpop.f32.mrb[0].mxu0
    %4542 = vdwg.mxu0
    %v4543 = vsel %vm505, %v4426, 0
    %v4546 = vsel %vm505, %v4439, 0
    %v4548 = vsel %vm505, %v4437, 0
    %v4550 = vsel %vm505, %v4436, 0
    %4552 = vmatprep.subr.mxu0 0.0
    %4553 = vmatpush1.msra.mxu0 %v82
    %4554 = vmatprep.subr.mxu0 0.0
    %4555 = vmatpush1.msra.mxu0 %v83
    %4556 = vmatprep.subr.mxu0 0.0
    %4557 = vmatpush1.msra.mxu0 %v84
    %4558 = vmatprep.subr.mxu0 0.0
    %4559 = vmatpush1.msra.mxu0 %v85
    %4560 = vmatprep.subr.mxu0 0.0
    %4561 = vmatpush1.msra.mxu0 0.0
    %4562 = vmatprep.subr.mxu0 0.0
    %4563 = vmatpush1.msra.mxu0 0.0
    %4564 = vmatprep.subr.mxu0 0.0
    %4565 = vmatpush1.msra.mxu0 0.0
    %4566 = vmatprep.subr.mxu0 0.0
    %4567 = vmatpush1.msra.mxu0 0.0
    %4568 = vmatprep.subr.mxu0 0.0
    %4569 = vmatpush1.msra.mxu0 0.0
    %4570 = vmatprep.subr.mxu0 0.0
    %4571 = vmatpush1.msra.mxu0 0.0
    %4572 = vmatprep.subr.mxu0 0.0
    %4573 = vmatpush1.msra.mxu0 0.0
    %4574 = vmatprep.subr.mxu0 0.0
    %4575 = vmatpush1.msra.mxu0 0.0
    %4576 = vmatprep.subr.mxu0 0.0
    %4577 = vmatpush1.msra.mxu0 0.0
    %4578 = vmatprep.subr.mxu0 0.0
    %4579 = vmatpush1.msra.mxu0 0.0
    %4580 = vmatprep.subr.mxu0 0.0
    %4581 = vmatpush1.msra.mxu0 0.0
    %4582 = vmatprep.subr.mxu0 0.0
    %4583 = vmatpush1.msra.mxu0 0.0
    %4584 = vmatprep.subr.mxu0 0.0
    %4585 = vmatpush1.msra.mxu0 0.0
    %4586 = vmatprep.subr.mxu0 0.0
    %4587 = vmatpush1.msra.mxu0 0.0
    %4588 = vmatprep.subr.mxu0 0.0
    %4589 = vmatpush1.msra.mxu0 0.0
    %4590 = vmatprep.subr.mxu0 0.0
    %4591 = vmatpush1.msra.mxu0 0.0
    %4592 = vmatprep.subr.mxu0 0.0
    %4593 = vmatpush1.msra.mxu0 0.0
    %4594 = vmatprep.subr.mxu0 0.0
    %4595 = vmatpush1.msra.mxu0 0.0
    %4596 = vmatprep.subr.mxu0 0.0
    %4597 = vmatpush1.msra.mxu0 0.0
    %4598 = vmatprep.subr.mxu0 0.0
    %4599 = vmatpush1.msra.mxu0 0.0
    %4600 = vmatprep.subr.mxu0 0.0
    %4601 = vmatpush1.msra.mxu0 0.0
    %4602 = vmatprep.subr.mxu0 0.0
    %4603 = vmatpush1.msra.mxu0 0.0
    %4604 = vmatprep.subr.mxu0 0.0
    %4605 = vmatpush1.msra.mxu0 0.0
    %4606 = vmatprep.subr.mxu0 0.0
    %4607 = vmatpush1.msra.mxu0 0.0
    %4608 = vmatprep.subr.mxu0 0.0
    %4609 = vmatpush1.msra.mxu0 0.0
    %4610 = vmatprep.subr.mxu0 0.0
    %4611 = vmatpush1.msra.mxu0 0.0
    %4612 = vmatprep.subr.mxu0 0.0
    %4613 = vmatpush1.msra.mxu0 0.0
    %4614 = vmatprep.subr.mxu0 0.0
    %4615 = vmatpush1.msra.mxu0 0.0
    %4616 = vmatprep.mubr.f32.mxu0 0.0
    %4617 = vmatmul.mubr.f32.gmra.mrb[0].mxu0 %v4543
    %v4618 = vpop.f32.mrb[0].mxu0
    %v4619 = vadd.f32 %v4525, %v4618
    %v4620 = vpop.f32.mrb[0].mxu0
    %4621 = vmatprep.mubr.f32.mxu0 0.0
    %4622 = vmatmul.mubr.f32.gmra.mrb[0].mxu0 %v4546
    %v4623 = vpop.f32.mrb[0].mxu0
    %v4624 = vadd.f32 %v4530, %v4623
    %v4625 = vpop.f32.mrb[0].mxu0
    %4626 = vmatprep.mubr.f32.mxu0 0.0
    %4627 = vmatmul.mubr.f32.gmra.mrb[0].mxu0 %v4548
    %v4628 = vpop.f32.mrb[0].mxu0
    %v4629 = vadd.f32 %v4535, %v4628
    %v4630 = vpop.f32.mrb[0].mxu0
    %4631 = vmatprep.mubr.f32.mxu0 0.0
    %4632 = vmatmul.mubr.f32.gmra.mrb[0].mxu0 %v4550
    %v4633 = vpop.f32.mrb[0].mxu0
    %v4634 = vadd.f32 %v4540, %v4633
    %v4635 = vpop.f32.mrb[0].mxu0
    %4636 = vdwg.mxu0
    %v4637 = vadd.f32 %v4619, %v698
    %v4638 = vadd.f32 %v4624, %v698
    %v4639 = vadd.f32 %v4629, %v698
    %v4640 = vadd.f32 %v4634, %v698
    %v4645 = vrot.slane %v4637, 1
    %v4646 = vrot.slane %v4638, 1
    %v4647 = vsel %vm325, %v4645, %v4646
    %v4648 = vrot.slane %v4639, 1
    %v4649 = vsel %vm325, %v4646, %v4648
    %v4650 = vrot.slane %v4640, 1
    %v4651 = vsel %vm325, %v4648, %v4650
    %v4656 = vmax.f32 %v4637, %v4647
    %v4657 = vmax.f32 %v4638, %v4649
    %v4658 = vmax.f32 %v4639, %v4651
    %v4659 = vmax.f32 %v4640, %v4650
    %v4661 = vsel %vm370, %v4659, 0
    %4663 = vmatprep.subr.mxu0 0.0
    %4664 = vmatpush1.msra.mxu0 %v4656
    %4665 = vmatprep.subr.mxu0 0.0
    %4666 = vmatpush1.msra.mxu0 %v4657
    %4667 = vmatprep.subr.mxu0 0.0
    %4668 = vmatpush1.msra.mxu0 %v4658
    %4669 = vmatprep.subr.mxu0 0.0
    %4670 = vmatpush1.msra.mxu0 %v4661
    %4671 = vmatprep.subr.mxu0 0.0
    %4672 = vmatpush1.msra.mxu0 0.0
    %4673 = vmatprep.subr.mxu0 0.0
    %4674 = vmatpush1.msra.mxu0 0.0
    %4675 = vmatprep.subr.mxu0 0.0
    %4676 = vmatpush1.msra.mxu0 0.0
    %4677 = vmatprep.subr.mxu0 0.0
    %4678 = vmatpush1.msra.mxu0 0.0
    %4679 = vmatprep.subr.mxu0 0.0
    %4680 = vmatpush1.msra.mxu0 0.0
    %4681 = vmatprep.subr.mxu0 0.0
    %4682 = vmatpush1.msra.mxu0 0.0
    %4683 = vmatprep.subr.mxu0 0.0
    %4684 = vmatpush1.msra.mxu0 0.0
    %4685 = vmatprep.subr.mxu0 0.0
    %4686 = vmatpush1.msra.mxu0 0.0
    %4687 = vmatprep.subr.mxu0 0.0
    %4688 = vmatpush1.msra.mxu0 0.0
    %4689 = vmatprep.subr.mxu0 0.0
    %4690 = vmatpush1.msra.mxu0 0.0
    %4691 = vmatprep.subr.mxu0 0.0
    %4692 = vmatpush1.msra.mxu0 0.0
    %4693 = vmatprep.subr.mxu0 0.0
    %4694 = vmatpush1.msra.mxu0 0.0
    %4695 = vmatprep.subr.mxu0 0.0
    %4696 = vmatpush1.msra.mxu0 0.0
    %4697 = vmatprep.subr.mxu0 0.0
    %4698 = vmatpush1.msra.mxu0 0.0
    %4699 = vmatprep.subr.mxu0 0.0
    %4700 = vmatpush1.msra.mxu0 0.0
    %4701 = vmatprep.subr.mxu0 0.0
    %4702 = vmatpush1.msra.mxu0 0.0
    %4703 = vmatprep.subr.mxu0 0.0
    %4704 = vmatpush1.msra.mxu0 0.0
    %4705 = vmatprep.subr.mxu0 0.0
    %4706 = vmatpush1.msra.mxu0 0.0
    %4707 = vmatprep.subr.mxu0 0.0
    %4708 = vmatpush1.msra.mxu0 0.0
    %4709 = vmatprep.subr.mxu0 0.0
    %4710 = vmatpush1.msra.mxu0 0.0
    %4711 = vmatprep.subr.mxu0 0.0
    %4712 = vmatpush1.msra.mxu0 0.0
    %4713 = vmatprep.subr.mxu0 0.0
    %4714 = vmatpush1.msra.mxu0 0.0
    %4715 = vmatprep.subr.mxu0 0.0
    %4716 = vmatpush1.msra.mxu0 0.0
    %4717 = vmatprep.subr.mxu0 0.0
    %4718 = vmatpush1.msra.mxu0 0.0
    %4719 = vmatprep.subr.mxu0 0.0
    %4720 = vmatpush1.msra.mxu0 0.0
    %4721 = vmatprep.subr.mxu0 0.0
    %4722 = vmatpush1.msra.mxu0 0.0
    %4723 = vmatprep.subr.mxu0 0.0
    %4724 = vmatpush1.msra.mxu0 0.0
    %4725 = vmatprep.subr.mxu0 0.0
    %4726 = vmatpush1.msra.mxu0 0.0
    %4727 = vmatprep.mubr.f32.mxu0 0.0
    %4728 = vmatmul.mubr.f32.gmra.mrb[0].mxu0 %v724
    %v4729 = vpop.f32.mrb[0].mxu0
    %v4730 = vadd.f32 0.0, %v4729
    %v4731 = vpop.f32.mrb[0].mxu0
    %4732 = vmatprep.mubr.f32.mxu0 0.0
    %4733 = vmatmul.mubr.f32.gmra.mrb[0].mxu0 %v726
    %v4734 = vpop.f32.mrb[0].mxu0
    %v4735 = vadd.f32 0.0, %v4734
    %v4736 = vpop.f32.mrb[0].mxu0
    %4737 = vdwg.mxu0
    %v4738 = vmul.f32 %v810, %v3769
    %v4739 = vmul.f32 %v810, %v3770
    %v4740 = vadd.f32 %v4738, %v4730
    %v4741 = vadd.f32 %v4739, %v4735
    %v4742 = vmul.f32 %v3775, %v806
    %v4743 = vmul.f32 %v3776, %v806
    %v4744 = vsub.f32 %v4740, %v4742
    %v4745 = vsub.f32 %v4741, %v4743
    %vm4746 = vcmp.gt.f32.partialorder %v4744, %v806
    %vm4747 = vcmp.gt.f32.partialorder %v4745, %v806
    %v4748 = vsel %vm4746, 1, 0
    %v4749 = vsel %vm4747, 1, 0
    %v4750 = vcvt.s32.f32 %v4748
    %v4751 = vcvt.s32.f32 %v4749
    %v4754 = vrot.slane %v4750, 1
    %v4755 = vrot.slane %v4751, 1
    %v4756 = vsel %vm325, %v4754, %v4755
    %v4759 = vsel %vm307, %v4750, %v4756
    %v4761 = vrot.slane %v4751, 2
    %v4763 = vsel %vm307, %v4754, %v4761
    %4764 = vmatprep.subr.mxu0 %v123
    %4765 = vmatpush1.msra.mxu0 %v122
    %4766 = vmatprep.subr.mxu0 %v125
    %4767 = vmatpush1.msra.mxu0 %v124
    %4768 = vmatprep.subr.mxu0 %v127
    %4769 = vmatpush1.msra.mxu0 %v126
    %4770 = vmatprep.subr.mxu0 %v129
    %4771 = vmatpush1.msra.mxu0 %v128
    %4772 = vmatprep.subr.mxu0 %v131
    %4773 = vmatpush1.msra.mxu0 %v130
    %4774 = vmatprep.subr.mxu0 %v133
    %4775 = vmatpush1.msra.mxu0 %v132
    %4776 = vmatprep.subr.mxu0 %v135
    %4777 = vmatpush1.msra.mxu0 %v134
    %4778 = vmatprep.subr.mxu0 %v137
    %4779 = vmatpush1.msra.mxu0 %v136
    %4780 = vmatprep.subr.mxu0 %v139
    %4781 = vmatpush1.msra.mxu0 %v138
    %4782 = vmatprep.subr.mxu0 %v141
    %4783 = vmatpush1.msra.mxu0 %v140
    %4784 = vmatprep.subr.mxu0 %v143
    %4785 = vmatpush1.msra.mxu0 %v142
    %4786 = vmatprep.subr.mxu0 %v145
    %4787 = vmatpush1.msra.mxu0 %v144
    %4788 = vmatprep.subr.mxu0 %v147
    %4789 = vmatpush1.msra.mxu0 %v146
    %4790 = vmatprep.subr.mxu0 %v149
    %4791 = vmatpush1.msra.mxu0 %v148
    %4792 = vmatprep.subr.mxu0 %v151
    %4793 = vmatpush1.msra.mxu0 %v150
    %4794 = vmatprep.subr.mxu0 %v153
    %4795 = vmatpush1.msra.mxu0 %v152
    %4796 = vmatprep.subr.mxu0 0.0
    %4797 = vmatpush1.msra.mxu0 0.0
    %4798 = vmatprep.subr.mxu0 0.0
    %4799 = vmatpush1.msra.mxu0 0.0
    %4800 = vmatprep.subr.mxu0 0.0
    %4801 = vmatpush1.msra.mxu0 0.0
    %4802 = vmatprep.subr.mxu0 0.0
    %4803 = vmatpush1.msra.mxu0 0.0
    %4804 = vmatprep.subr.mxu0 0.0
    %4805 = vmatpush1.msra.mxu0 0.0
    %4806 = vmatprep.subr.mxu0 0.0
    %4807 = vmatpush1.msra.mxu0 0.0
    %4808 = vmatprep.subr.mxu0 0.0
    %4809 = vmatpush1.msra.mxu0 0.0
    %4810 = vmatprep.subr.mxu0 0.0
    %4811 = vmatpush1.msra.mxu0 0.0
    %4812 = vmatprep.subr.mxu0 0.0
    %4813 = vmatpush1.msra.mxu0 0.0
    %4814 = vmatprep.subr.mxu0 0.0
    %4815 = vmatpush1.msra.mxu0 0.0
    %4816 = vmatprep.subr.mxu0 0.0
    %4817 = vmatpush1.msra.mxu0 0.0
    %4818 = vmatprep.subr.mxu0 0.0
    %4819 = vmatpush1.msra.mxu0 0.0
    %4820 = vmatprep.subr.mxu0 0.0
    %4821 = vmatpush1.msra.mxu0 0.0
    %4822 = vmatprep.subr.mxu0 0.0
    %4823 = vmatpush1.msra.mxu0 0.0
    %4824 = vmatprep.subr.mxu0 0.0
    %4825 = vmatpush1.msra.mxu0 0.0
    %4826 = vmatprep.subr.mxu0 0.0
    %4827 = vmatpush1.msra.mxu0 0.0
    %4828 = vmatprep.mubr.f32.mxu0 0.0
    %4829 = vmatmul.mubr.f32.gmra.mrb[0].mxu0 %v4763
    %v4830 = vpop.f32.mrb[0].mxu0
    %v4831 = vadd.f32 0.0, %v4830
    %v4832 = vpop.f32.mrb[0].mxu0
    %v4833 = vadd.f32 0.0, %v4832
    %4834 = vmatprep.mubr.f32.mxu0 0.0
    %4835 = vmatmul.mubr.f32.gmra.mrb[0].mxu0 %v4761
    %v4836 = vpop.f32.mrb[0].mxu0
    %v4837 = vadd.f32 0.0, %v4836
    %v4838 = vpop.f32.mrb[0].mxu0
    %v4839 = vadd.f32 0.0, %v4838
    %4840 = vdwg.mxu0
    %4841 = vmatprep.subr.mxu0 %v91
    %4842 = vmatpush1.msra.mxu0 %v90
    %4843 = vmatprep.subr.mxu0 %v93
    %4844 = vmatpush1.msra.mxu0 %v92
    %4845 = vmatprep.subr.mxu0 %v95
    %4846 = vmatpush1.msra.mxu0 %v94
    %4847 = vmatprep.subr.mxu0 %v97
    %4848 = vmatpush1.msra.mxu0 %v96
    %4849 = vmatprep.subr.mxu0 %v99
    %4850 = vmatpush1.msra.mxu0 %v98
    %4851 = vmatprep.subr.mxu0 %v101
    %4852 = vmatpush1.msra.mxu0 %v100
    %4853 = vmatprep.subr.mxu0 %v103
    %4854 = vmatpush1.msra.mxu0 %v102
    %4855 = vmatprep.subr.mxu0 %v105
    %4856 = vmatpush1.msra.mxu0 %v104
    %4857 = vmatprep.subr.mxu0 %v107
    %4858 = vmatpush1.msra.mxu0 %v106
    %4859 = vmatprep.subr.mxu0 %v109
    %4860 = vmatpush1.msra.mxu0 %v108
    %4861 = vmatprep.subr.mxu0 %v111
    %4862 = vmatpush1.msra.mxu0 %v110
    %4863 = vmatprep.subr.mxu0 %v113
    %4864 = vmatpush1.msra.mxu0 %v112
    %4865 = vmatprep.subr.mxu0 %v115
    %4866 = vmatpush1.msra.mxu0 %v114
    %4867 = vmatprep.subr.mxu0 %v117
    %4868 = vmatpush1.msra.mxu0 %v116
    %4869 = vmatprep.subr.mxu0 %v119
    %4870 = vmatpush1.msra.mxu0 %v118
    %4871 = vmatprep.subr.mxu0 %v121
    %4872 = vmatpush1.msra.mxu0 %v120
    %4873 = vmatprep.subr.mxu0 0.0
    %4874 = vmatpush1.msra.mxu0 0.0
    %4875 = vmatprep.subr.mxu0 0.0
    %4876 = vmatpush1.msra.mxu0 0.0
    %4877 = vmatprep.subr.mxu0 0.0
    %4878 = vmatpush1.msra.mxu0 0.0
    %4879 = vmatprep.subr.mxu0 0.0
    %4880 = vmatpush1.msra.mxu0 0.0
    %4881 = vmatprep.subr.mxu0 0.0
    %4882 = vmatpush1.msra.mxu0 0.0
    %4883 = vmatprep.subr.mxu0 0.0
    %4884 = vmatpush1.msra.mxu0 0.0
    %4885 = vmatprep.subr.mxu0 0.0
    %4886 = vmatpush1.msra.mxu0 0.0
    %4887 = vmatprep.subr.mxu0 0.0
    %4888 = vmatpush1.msra.mxu0 0.0
    %4889 = vmatprep.subr.mxu0 0.0
    %4890 = vmatpush1.msra.mxu0 0.0
    %4891 = vmatprep.subr.mxu0 0.0
    %4892 = vmatpush1.msra.mxu0 0.0
    %4893 = vmatprep.subr.mxu0 0.0
    %4894 = vmatpush1.msra.mxu0 0.0
    %4895 = vmatprep.subr.mxu0 0.0
    %4896 = vmatpush1.msra.mxu0 0.0
    %4897 = vmatprep.subr.mxu0 0.0
    %4898 = vmatpush1.msra.mxu0 0.0
    %4899 = vmatprep.subr.mxu0 0.0
    %4900 = vmatpush1.msra.mxu0 0.0
    %4901 = vmatprep.subr.mxu0 0.0
    %4902 = vmatpush1.msra.mxu0 0.0
    %4903 = vmatprep.subr.mxu0 0.0
    %4904 = vmatpush1.msra.mxu0 0.0
    %4905 = vmatprep.mubr.f32.mxu0 0.0
    %4906 = vmatmul.mubr.f32.gmra.mrb[0].mxu0 %v4759
    %v4907 = vpop.f32.mrb[0].mxu0
    %v4908 = vadd.f32 %v4831, %v4907
    %v4909 = vpop.f32.mrb[0].mxu0
    %v4910 = vadd.f32 %v4833, %v4909
    %4911 = vmatprep.mubr.f32.mxu0 0.0
    %4912 = vmatmul.mubr.f32.gmra.mrb[0].mxu0 %v4755
    %v4913 = vpop.f32.mrb[0].mxu0
    %v4914 = vadd.f32 %v4837, %v4913
    %v4915 = vpop.f32.mrb[0].mxu0
    %v4916 = vadd.f32 %v4839, %v4915
    %4917 = vdwg.mxu0
    %v4918 = vadd.f32 %v4908, %v993
    %v4919 = vadd.f32 %v4910, %v997
    %v4920 = vadd.f32 %v4914, %v993
    %v4921 = vadd.f32 %v4916, %v997
    %v4926 = vrot.slane %v4918, 1
    %v4927 = vrot.slane %v4920, 1
    %v4928 = vsel %vm325, %v4926, %v4927
    %v4929 = vrot.slane %v4919, 1
    %v4930 = vrot.slane %v4921, 1
    %v4931 = vsel %vm325, %v4929, %v4930
    %v4936 = vmax.f32 %v4918, %v4928
    %v4937 = vmax.f32 %v4919, %v4931
    %v4938 = vmax.f32 %v4920, %v4927
    %v4939 = vmax.f32 %v4921, %v4930
    %v4941 = vsel %vm370, %v4938, 0
    %v4944 = vsel %vm370, %v4939, 0
    %4946 = vmatprep.subr.mxu0 %v4937
    %4947 = vmatpush1.msra.mxu0 %v4936
    %4948 = vmatprep.subr.mxu0 %v4944
    %4949 = vmatpush1.msra.mxu0 %v4941
    %4950 = vmatprep.subr.mxu0 0.0
    %4951 = vmatpush1.msra.mxu0 0.0
    %4952 = vmatprep.subr.mxu0 0.0
    %4953 = vmatpush1.msra.mxu0 0.0
    %4954 = vmatprep.subr.mxu0 0.0
    %4955 = vmatpush1.msra.mxu0 0.0
    %4956 = vmatprep.subr.mxu0 0.0
    %4957 = vmatpush1.msra.mxu0 0.0
    %4958 = vmatprep.subr.mxu0 0.0
    %4959 = vmatpush1.msra.mxu0 0.0
    %4960 = vmatprep.subr.mxu0 0.0
    %4961 = vmatpush1.msra.mxu0 0.0
    %4962 = vmatprep.subr.mxu0 0.0
    %4963 = vmatpush1.msra.mxu0 0.0
    %4964 = vmatprep.subr.mxu0 0.0
    %4965 = vmatpush1.msra.mxu0 0.0
    %4966 = vmatprep.subr.mxu0 0.0
    %4967 = vmatpush1.msra.mxu0 0.0
    %4968 = vmatprep.subr.mxu0 0.0
    %4969 = vmatpush1.msra.mxu0 0.0
    %4970 = vmatprep.subr.mxu0 0.0
    %4971 = vmatpush1.msra.mxu0 0.0
    %4972 = vmatprep.subr.mxu0 0.0
    %4973 = vmatpush1.msra.mxu0 0.0
    %4974 = vmatprep.subr.mxu0 0.0
    %4975 = vmatpush1.msra.mxu0 0.0
    %4976 = vmatprep.subr.mxu0 0.0
    %4977 = vmatpush1.msra.mxu0 0.0
    %4978 = vmatprep.subr.mxu0 0.0
    %4979 = vmatpush1.msra.mxu0 0.0
    %4980 = vmatprep.subr.mxu0 0.0
    %4981 = vmatpush1.msra.mxu0 0.0
    %4982 = vmatprep.subr.mxu0 0.0
    %4983 = vmatpush1.msra.mxu0 0.0
    %4984 = vmatprep.subr.mxu0 0.0
    %4985 = vmatpush1.msra.mxu0 0.0
    %4986 = vmatprep.subr.mxu0 0.0
    %4987 = vmatpush1.msra.mxu0 0.0
    %4988 = vmatprep.subr.mxu0 0.0
    %4989 = vmatpush1.msra.mxu0 0.0
    %4990 = vmatprep.subr.mxu0 0.0
    %4991 = vmatpush1.msra.mxu0 0.0
    %4992 = vmatprep.subr.mxu0 0.0
    %4993 = vmatpush1.msra.mxu0 0.0
    %4994 = vmatprep.subr.mxu0 0.0
    %4995 = vmatpush1.msra.mxu0 0.0
    %4996 = vmatprep.subr.mxu0 0.0
    %4997 = vmatpush1.msra.mxu0 0.0
    %4998 = vmatprep.subr.mxu0 0.0
    %4999 = vmatpush1.msra.mxu0 0.0
    %5000 = vmatprep.subr.mxu0 0.0
    %5001 = vmatpush1.msra.mxu0 0.0
    %5002 = vmatprep.subr.mxu0 0.0
    %5003 = vmatpush1.msra.mxu0 0.0
    %5004 = vmatprep.subr.mxu0 0.0
    %5005 = vmatpush1.msra.mxu0 0.0
    %5006 = vmatprep.subr.mxu0 0.0
    %5007 = vmatpush1.msra.mxu0 0.0
    %5008 = vmatprep.subr.mxu0 0.0
    %5009 = vmatpush1.msra.mxu0 0.0
    %5010 = vmatprep.mubr.f32.mxu0 0.0
    %5011 = vmatmul.mubr.f32.gmra.mrb[0].mxu0 %v1023
    %v5012 = vpop.f32.mrb[0].mxu0
    %v5013 = vadd.f32 0.0, %v5012
    %v5014 = vpop.f32.mrb[0].mxu0
    %v5015 = vadd.f32 0.0, %v5014
    %5016 = vdwg.mxu0
    %v5017 = vmul.f32 %v1106, %v4048
    %v5018 = vmul.f32 %v1106, %v4049
    %v5019 = vadd.f32 %v5017, %v5013
    %v5020 = vadd.f32 %v5018, %v5015
    %v5021 = vmul.f32 %v4054, %v1102
    %v5022 = vmul.f32 %v4055, %v1102
    %v5023 = vsub.f32 %v5019, %v5021
    %v5024 = vsub.f32 %v5020, %v5022
    %vm5025 = vcmp.gt.f32.partialorder %v5023, %v1102
    %vm5026 = vcmp.gt.f32.partialorder %v5024, %v1102
    %v5027 = vsel %vm5025, 1, 0
    %v5028 = vsel %vm5026, 1, 0
    %v5029 = vcvt.s32.f32 %v5027
    %v5030 = vcvt.s32.f32 %v5028
    %v5033 = vrot.slane %v5029, 2
    %v5034 = vrot.slane %v5030, 2
    %v5037 = vsel %vm1125, %v5029, %v5033
    %v5038 = vsel %vm1125, %v5030, %v5034
    %v5039 = vld [vmem:[%s8] sm:$0xff]
    %v5040 = vld [vmem:[%s8 + $0x8] sm:$0xff]
    %v5041 = vld [vmem:[%s8 + $0x10] sm:$0xff]
    %v5042 = vld [vmem:[%s8 + $0x18] sm:$0xff]
    %v5043 = vld [vmem:[%s8 + $0x20] sm:$0xff]
    %v5044 = vld [vmem:[%s8 + $0x28] sm:$0xff]
    %v5045 = vld [vmem:[%s8 + $0x30] sm:$0xff]
    %v5046 = vld [vmem:[%s8 + $0x38] sm:$0xff]
    %v5047 = vld [vmem:[%s8 + $0x40] sm:$0xff]
    %v5048 = vld [vmem:[%s8 + $0x48] sm:$0xff]
    %v5049 = vld [vmem:[%s8 + $0x50] sm:$0xff]
    %v5050 = vld [vmem:[%s8 + $0x58] sm:$0xff]
    %v5051 = vld [vmem:[%s8 + $0x60] sm:$0xff]
    %v5052 = vld [vmem:[%s8 + $0x68] sm:$0xff]
    %v5053 = vld [vmem:[%s8 + $0x70] sm:$0xff]
    %v5054 = vld [vmem:[%s8 + $0x78] sm:$0xff]
    %v5055 = vld [vmem:[%s8 + $0x80] sm:$0xff]
    %v5056 = vld [vmem:[%s8 + $0x88] sm:$0xff]
    %v5057 = vld [vmem:[%s8 + $0x90] sm:$0xff]
    %v5058 = vld [vmem:[%s8 + $0x98] sm:$0xff]
    %v5059 = vld [vmem:[%s8 + $0xa0] sm:$0xff]
    %v5060 = vld [vmem:[%s8 + $0xa8] sm:$0xff]
    %v5061 = vld [vmem:[%s8 + $0xb0] sm:$0xff]
    %v5062 = vld [vmem:[%s8 + $0xb8] sm:$0xff]
    %v5063 = vld [vmem:[%s8 + $0xc0] sm:$0xff]
    %v5064 = vld [vmem:[%s8 + $0xc8] sm:$0xff]
    %v5065 = vld [vmem:[%s8 + $0xd0] sm:$0xff]
    %v5066 = vld [vmem:[%s8 + $0xd8] sm:$0xff]
    %v5067 = vld [vmem:[%s8 + $0xe0] sm:$0xff]
    %v5068 = vld [vmem:[%s8 + $0xe8] sm:$0xff]
    %v5069 = vld [vmem:[%s8 + $0xf0] sm:$0xff]
    %v5070 = vld [vmem:[%s8 + $0xf8] sm:$0xff]
    %5071 = vmatprep.subr.mxu0 0.0
    %5072 = vmatpush1.msra.mxu0 %v5039
    %5073 = vmatprep.subr.mxu0 0.0
    %5074 = vmatpush1.msra.mxu0 %v5040
    %5075 = vmatprep.subr.mxu0 0.0
    %5076 = vmatpush1.msra.mxu0 %v5041
    %5077 = vmatprep.subr.mxu0 0.0
    %5078 = vmatpush1.msra.mxu0 %v5042
    %5079 = vmatprep.subr.mxu0 0.0
    %5080 = vmatpush1.msra.mxu0 %v5043
    %5081 = vmatprep.subr.mxu0 0.0
    %5082 = vmatpush1.msra.mxu0 %v5044
    %5083 = vmatprep.subr.mxu0 0.0
    %5084 = vmatpush1.msra.mxu0 %v5045
    %5085 = vmatprep.subr.mxu0 0.0
    %5086 = vmatpush1.msra.mxu0 %v5046
    %5087 = vmatprep.subr.mxu0 0.0
    %5088 = vmatpush1.msra.mxu0 %v5047
    %5089 = vmatprep.subr.mxu0 0.0
    %5090 = vmatpush1.msra.mxu0 %v5048
    %5091 = vmatprep.subr.mxu0 0.0
    %5092 = vmatpush1.msra.mxu0 %v5049
    %5093 = vmatprep.subr.mxu0 0.0
    %5094 = vmatpush1.msra.mxu0 %v5050
    %5095 = vmatprep.subr.mxu0 0.0
    %5096 = vmatpush1.msra.mxu0 %v5051
    %5097 = vmatprep.subr.mxu0 0.0
    %5098 = vmatpush1.msra.mxu0 %v5052
    %5099 = vmatprep.subr.mxu0 0.0
    %5100 = vmatpush1.msra.mxu0 %v5053
    %5101 = vmatprep.subr.mxu0 0.0
    %5102 = vmatpush1.msra.mxu0 %v5054
    %5103 = vmatprep.subr.mxu0 0.0
    %5104 = vmatpush1.msra.mxu0 %v5055
    %5105 = vmatprep.subr.mxu0 0.0
    %5106 = vmatpush1.msra.mxu0 %v5056
    %5107 = vmatprep.subr.mxu0 0.0
    %5108 = vmatpush1.msra.mxu0 %v5057
    %5109 = vmatprep.subr.mxu0 0.0
    %5110 = vmatpush1.msra.mxu0 %v5058
    %5111 = vmatprep.subr.mxu0 0.0
    %5112 = vmatpush1.msra.mxu0 %v5059
    %5113 = vmatprep.subr.mxu0 0.0
    %5114 = vmatpush1.msra.mxu0 %v5060
    %5115 = vmatprep.subr.mxu0 0.0
    %5116 = vmatpush1.msra.mxu0 %v5061
    %5117 = vmatprep.subr.mxu0 0.0
    %5118 = vmatpush1.msra.mxu0 %v5062
    %5119 = vmatprep.subr.mxu0 0.0
    %5120 = vmatpush1.msra.mxu0 %v5063
    %5121 = vmatprep.subr.mxu0 0.0
    %5122 = vmatpush1.msra.mxu0 %v5064
    %5123 = vmatprep.subr.mxu0 0.0
    %5124 = vmatpush1.msra.mxu0 %v5065
    %5125 = vmatprep.subr.mxu0 0.0
    %5126 = vmatpush1.msra.mxu0 %v5066
    %5127 = vmatprep.subr.mxu0 0.0
    %5128 = vmatpush1.msra.mxu0 %v5067
    %5129 = vmatprep.subr.mxu0 0.0
    %5130 = vmatpush1.msra.mxu0 %v5068
    %5131 = vmatprep.subr.mxu0 0.0
    %5132 = vmatpush1.msra.mxu0 %v5069
    %5133 = vmatprep.subr.mxu0 0.0
    %5134 = vmatpush1.msra.mxu0 %v5070
    %5135 = vmatprep.mubr.f32.mxu0 %v5038
    %5136 = vmatmul.mubr.f32.gmra.mrb[0].mxu0 %v5037
    %v5137 = vpop.f32.mrb[0].mxu0
    %v5138 = vadd.f32 0.0, %v5137
    %v5139 = vpop.f32.mrb[0].mxu0
    %5140 = vdwg.mxu0
    %v5141 = vadd.f32 %v1234, %v5138
    %v5142 = vrot.slane %v5029, 1
    %v5143 = vrot.slane %v5030, 1
    %v5146 = vrot.slane %v5029, 3
    %v5147 = vrot.slane %v5030, 3
    %v5150 = vsel %vm1125, %v5142, %v5146
    %v5151 = vsel %vm1125, %v5143, %v5147
    %v5152 = vld [vmem:[%s1247] sm:$0xff]
    %v5153 = vld [vmem:[%s1247 + $0x8] sm:$0xff]
    %v5154 = vld [vmem:[%s1247 + $0x10] sm:$0xff]
    %v5155 = vld [vmem:[%s1247 + $0x18] sm:$0xff]
    %v5156 = vld [vmem:[%s1247 + $0x20] sm:$0xff]
    %v5157 = vld [vmem:[%s1247 + $0x28] sm:$0xff]
    %v5158 = vld [vmem:[%s1247 + $0x30] sm:$0xff]
    %v5159 = vld [vmem:[%s1247 + $0x38] sm:$0xff]
    %v5160 = vld [vmem:[%s1247 + $0x40] sm:$0xff]
    %v5161 = vld [vmem:[%s1247 + $0x48] sm:$0xff]
    %v5162 = vld [vmem:[%s1247 + $0x50] sm:$0xff]
    %v5163 = vld [vmem:[%s1247 + $0x58] sm:$0xff]
    %v5164 = vld [vmem:[%s1247 + $0x60] sm:$0xff]
    %v5165 = vld [vmem:[%s1247 + $0x68] sm:$0xff]
    %v5166 = vld [vmem:[%s1247 + $0x70] sm:$0xff]
    %v5167 = vld [vmem:[%s1247 + $0x78] sm:$0xff]
    %v5168 = vld [vmem:[%s1247 + $0x80] sm:$0xff]
    %v5169 = vld [vmem:[%s1247 + $0x88] sm:$0xff]
    %v5170 = vld [vmem:[%s1247 + $0x90] sm:$0xff]
    %v5171 = vld [vmem:[%s1247 + $0x98] sm:$0xff]
    %v5172 = vld [vmem:[%s1247 + $0xa0] sm:$0xff]
    %v5173 = vld [vmem:[%s1247 + $0xa8] sm:$0xff]
    %v5174 = vld [vmem:[%s1247 + $0xb0] sm:$0xff]
    %v5175 = vld [vmem:[%s1247 + $0xb8] sm:$0xff]
    %v5176 = vld [vmem:[%s1247 + $0xc0] sm:$0xff]
    %v5177 = vld [vmem:[%s1247 + $0xc8] sm:$0xff]
    %v5178 = vld [vmem:[%s1247 + $0xd0] sm:$0xff]
    %v5179 = vld [vmem:[%s1247 + $0xd8] sm:$0xff]
    %v5180 = vld [vmem:[%s1247 + $0xe0] sm:$0xff]
    %v5181 = vld [vmem:[%s1247 + $0xe8] sm:$0xff]
    %v5182 = vld [vmem:[%s1247 + $0xf0] sm:$0xff]
    %v5183 = vld [vmem:[%s1247 + $0xf8] sm:$0xff]
    %5184 = vmatprep.subr.mxu0 0.0
    %5185 = vmatpush1.msra.mxu0 %v5152
    %5186 = vmatprep.subr.mxu0 0.0
    %5187 = vmatpush1.msra.mxu0 %v5153
    %5188 = vmatprep.subr.mxu0 0.0
    %5189 = vmatpush1.msra.mxu0 %v5154
    %5190 = vmatprep.subr.mxu0 0.0
    %5191 = vmatpush1.msra.mxu0 %v5155
    %5192 = vmatprep.subr.mxu0 0.0
    %5193 = vmatpush1.msra.mxu0 %v5156
    %5194 = vmatprep.subr.mxu0 0.0
    %5195 = vmatpush1.msra.mxu0 %v5157
    %5196 = vmatprep.subr.mxu0 0.0
    %5197 = vmatpush1.msra.mxu0 %v5158
    %5198 = vmatprep.subr.mxu0 0.0
    %5199 = vmatpush1.msra.mxu0 %v5159
    %5200 = vmatprep.subr.mxu0 0.0
    %5201 = vmatpush1.msra.mxu0 %v5160
    %5202 = vmatprep.subr.mxu0 0.0
    %5203 = vmatpush1.msra.mxu0 %v5161
    %5204 = vmatprep.subr.mxu0 0.0
    %5205 = vmatpush1.msra.mxu0 %v5162
    %5206 = vmatprep.subr.mxu0 0.0
    %5207 = vmatpush1.msra.mxu0 %v5163
    %5208 = vmatprep.subr.mxu0 0.0
    %5209 = vmatpush1.msra.mxu0 %v5164
    %5210 = vmatprep.subr.mxu0 0.0
    %5211 = vmatpush1.msra.mxu0 %v5165
    %5212 = vmatprep.subr.mxu0 0.0
    %5213 = vmatpush1.msra.mxu0 %v5166
    %5214 = vmatprep.subr.mxu0 0.0
    %5215 = vmatpush1.msra.mxu0 %v5167
    %5216 = vmatprep.subr.mxu0 0.0
    %5217 = vmatpush1.msra.mxu0 %v5168
    %5218 = vmatprep.subr.mxu0 0.0
    %5219 = vmatpush1.msra.mxu0 %v5169
    %5220 = vmatprep.subr.mxu0 0.0
    %5221 = vmatpush1.msra.mxu0 %v5170
    %5222 = vmatprep.subr.mxu0 0.0
    %5223 = vmatpush1.msra.mxu0 %v5171
    %5224 = vmatprep.subr.mxu0 0.0
    %5225 = vmatpush1.msra.mxu0 %v5172
    %5226 = vmatprep.subr.mxu0 0.0
    %5227 = vmatpush1.msra.mxu0 %v5173
    %5228 = vmatprep.subr.mxu0 0.0
    %5229 = vmatpush1.msra.mxu0 %v5174
    %5230 = vmatprep.subr.mxu0 0.0
    %5231 = vmatpush1.msra.mxu0 %v5175
    %5232 = vmatprep.subr.mxu0 0.0
    %5233 = vmatpush1.msra.mxu0 %v5176
    %5234 = vmatprep.subr.mxu0 0.0
    %5235 = vmatpush1.msra.mxu0 %v5177
    %5236 = vmatprep.subr.mxu0 0.0
    %5237 = vmatpush1.msra.mxu0 %v5178
    %5238 = vmatprep.subr.mxu0 0.0
    %5239 = vmatpush1.msra.mxu0 %v5179
    %5240 = vmatprep.subr.mxu0 0.0
    %5241 = vmatpush1.msra.mxu0 %v5180
    %5242 = vmatprep.subr.mxu0 0.0
    %5243 = vmatpush1.msra.mxu0 %v5181
    %5244 = vmatprep.subr.mxu0 0.0
    %5245 = vmatpush1.msra.mxu0 %v5182
    %5246 = vmatprep.subr.mxu0 0.0
    %5247 = vmatpush1.msra.mxu0 %v5183
    %5248 = vmatprep.mubr.f32.mxu0 %v5151
    %5249 = vmatmul.mubr.f32.gmra.mrb[0].mxu0 %v5150
    %v5250 = vpop.f32.mrb[0].mxu0
    %v5251 = vadd.f32 0.0, %v5250
    %v5252 = vpop.f32.mrb[0].mxu0
    %5253 = vdwg.mxu0
    %v5254 = vadd.f32 %v5141, %v5251
    %v5255 = vrot.slane %v5029, 4
    %v5256 = vrot.slane %v5030, 4
    %v5259 = vsel %vm1125, %v5033, %v5255
    %v5260 = vsel %vm1125, %v5034, %v5256
    %v5261 = vld [vmem:[%s1357] sm:$0xff]
    %v5262 = vld [vmem:[%s1357 + $0x8] sm:$0xff]
    %v5263 = vld [vmem:[%s1357 + $0x10] sm:$0xff]
    %v5264 = vld [vmem:[%s1357 + $0x18] sm:$0xff]
    %v5265 = vld [vmem:[%s1357 + $0x20] sm:$0xff]
    %v5266 = vld [vmem:[%s1357 + $0x28] sm:$0xff]
    %v5267 = vld [vmem:[%s1357 + $0x30] sm:$0xff]
    %v5268 = vld [vmem:[%s1357 + $0x38] sm:$0xff]
    %v5269 = vld [vmem:[%s1357 + $0x40] sm:$0xff]
    %v5270 = vld [vmem:[%s1357 + $0x48] sm:$0xff]
    %v5271 = vld [vmem:[%s1357 + $0x50] sm:$0xff]
    %v5272 = vld [vmem:[%s1357 + $0x58] sm:$0xff]
    %v5273 = vld [vmem:[%s1357 + $0x60] sm:$0xff]
    %v5274 = vld [vmem:[%s1357 + $0x68] sm:$0xff]
    %v5275 = vld [vmem:[%s1357 + $0x70] sm:$0xff]
    %v5276 = vld [vmem:[%s1357 + $0x78] sm:$0xff]
    %v5277 = vld [vmem:[%s1357 + $0x80] sm:$0xff]
    %v5278 = vld [vmem:[%s1357 + $0x88] sm:$0xff]
    %v5279 = vld [vmem:[%s1357 + $0x90] sm:$0xff]
    %v5280 = vld [vmem:[%s1357 + $0x98] sm:$0xff]
    %v5281 = vld [vmem:[%s1357 + $0xa0] sm:$0xff]
    %v5282 = vld [vmem:[%s1357 + $0xa8] sm:$0xff]
    %v5283 = vld [vmem:[%s1357 + $0xb0] sm:$0xff]
    %v5284 = vld [vmem:[%s1357 + $0xb8] sm:$0xff]
    %v5285 = vld [vmem:[%s1357 + $0xc0] sm:$0xff]
    %v5286 = vld [vmem:[%s1357 + $0xc8] sm:$0xff]
    %v5287 = vld [vmem:[%s1357 + $0xd0] sm:$0xff]
    %v5288 = vld [vmem:[%s1357 + $0xd8] sm:$0xff]
    %v5289 = vld [vmem:[%s1357 + $0xe0] sm:$0xff]
    %v5290 = vld [vmem:[%s1357 + $0xe8] sm:$0xff]
    %v5291 = vld [vmem:[%s1357 + $0xf0] sm:$0xff]
    %v5292 = vld [vmem:[%s1357 + $0xf8] sm:$0xff]
    %5293 = vmatprep.subr.mxu0 0.0
    %5294 = vmatpush1.msra.mxu0 %v5261
    %5295 = vmatprep.subr.mxu0 0.0
    %5296 = vmatpush1.msra.mxu0 %v5262
    %5297 = vmatprep.subr.mxu0 0.0
    %5298 = vmatpush1.msra.mxu0 %v5263
    %5299 = vmatprep.subr.mxu0 0.0
    %5300 = vmatpush1.msra.mxu0 %v5264
    %5301 = vmatprep.subr.mxu0 0.0
    %5302 = vmatpush1.msra.mxu0 %v5265
    %5303 = vmatprep.subr.mxu0 0.0
    %5304 = vmatpush1.msra.mxu0 %v5266
    %5305 = vmatprep.subr.mxu0 0.0
    %5306 = vmatpush1.msra.mxu0 %v5267
    %5307 = vmatprep.subr.mxu0 0.0
    %5308 = vmatpush1.msra.mxu0 %v5268
    %5309 = vmatprep.subr.mxu0 0.0
    %5310 = vmatpush1.msra.mxu0 %v5269
    %5311 = vmatprep.subr.mxu0 0.0
    %5312 = vmatpush1.msra.mxu0 %v5270
    %5313 = vmatprep.subr.mxu0 0.0
    %5314 = vmatpush1.msra.mxu0 %v5271
    %5315 = vmatprep.subr.mxu0 0.0
    %5316 = vmatpush1.msra.mxu0 %v5272
    %5317 = vmatprep.subr.mxu0 0.0
    %5318 = vmatpush1.msra.mxu0 %v5273
    %5319 = vmatprep.subr.mxu0 0.0
    %5320 = vmatpush1.msra.mxu0 %v5274
    %5321 = vmatprep.subr.mxu0 0.0
    %5322 = vmatpush1.msra.mxu0 %v5275
    %5323 = vmatprep.subr.mxu0 0.0
    %5324 = vmatpush1.msra.mxu0 %v5276
    %5325 = vmatprep.subr.mxu0 0.0
    %5326 = vmatpush1.msra.mxu0 %v5277
    %5327 = vmatprep.subr.mxu0 0.0
    %5328 = vmatpush1.msra.mxu0 %v5278
    %5329 = vmatprep.subr.mxu0 0.0
    %5330 = vmatpush1.msra.mxu0 %v5279
    %5331 = vmatprep.subr.mxu0 0.0
    %5332 = vmatpush1.msra.mxu0 %v5280
    %5333 = vmatprep.subr.mxu0 0.0
    %5334 = vmatpush1.msra.mxu0 %v5281
    %5335 = vmatprep.subr.mxu0 0.0
    %5336 = vmatpush1.msra.mxu0 %v5282
    %5337 = vmatprep.subr.mxu0 0.0
    %5338 = vmatpush1.msra.mxu0 %v5283
    %5339 = vmatprep.subr.mxu0 0.0
    %5340 = vmatpush1.msra.mxu0 %v5284
    %5341 = vmatprep.subr.mxu0 0.0
    %5342 = vmatpush1.msra.mxu0 %v5285
    %5343 = vmatprep.subr.mxu0 0.0
    %5344 = vmatpush1.msra.mxu0 %v5286
    %5345 = vmatprep.subr.mxu0 0.0
    %5346 = vmatpush1.msra.mxu0 %v5287
    %5347 = vmatprep.subr.mxu0 0.0
    %5348 = vmatpush1.msra.mxu0 %v5288
    %5349 = vmatprep.subr.mxu0 0.0
    %5350 = vmatpush1.msra.mxu0 %v5289
    %5351 = vmatprep.subr.mxu0 0.0
    %5352 = vmatpush1.msra.mxu0 %v5290
    %5353 = vmatprep.subr.mxu0 0.0
    %5354 = vmatpush1.msra.mxu0 %v5291
    %5355 = vmatprep.subr.mxu0 0.0
    %5356 = vmatpush1.msra.mxu0 %v5292
    %5357 = vmatprep.mubr.f32.mxu0 %v5260
    %5358 = vmatmul.mubr.f32.gmra.mrb[0].mxu0 %v5259
    %v5359 = vpop.f32.mrb[0].mxu0
    %v5360 = vadd.f32 0.0, %v5359
    %v5361 = vpop.f32.mrb[0].mxu0
    %5362 = vdwg.mxu0
    %v5363 = vadd.f32 %v5254, %v5360
    %v5364 = vmul.f32 %v1465, %v4392
    %v5365 = vadd.f32 %v5364, %v5363
    %v5366 = vmul.f32 %v4395, %v1461
    %v5367 = vsub.f32 %v5365, %v5366
    %vm5368 = vcmp.gt.f32.partialorder %v5367, %v1461
    %v5369 = vsel %vm5368, 1, 0
    %v5370 = vcvt.s32.f32 %v5369
    %s5371 = scalar_lea.vmem %s10, 8
    %5372 = vst.msk [vmem:[%s5371] sm:$0x3] %vm1473, %v5363
    %s5373 = scalar_lea.vmem %s11, 8
    %5374 = vst.msk [vmem:[%s5373] sm:$0x3] %vm1473, %v5370
    %s5375 = scalar_lea.vmem %s12, 8
    %5376 = vst.msk [vmem:[%s5375] sm:$0x3] %vm1473, %v5367
    // Predicated region
    $region46: #{tpu_custom_call.1} parent=1 // pred_check
      _
    $region47: #{tpu_custom_call.1} parent=1 // pred_check_branch
      %5378 = sbr.rel (0) target = $region49
    $region48: #{tpu_custom_call.1} parent=1 // pred_region
      _
    $region49: #{tpu_custom_call.1} parent=1 // pred_fallthru
      _
    // Predicated region
    $region50: #{tpu_custom_call.1} parent=1 // pred_check
      _
    $region51: #{tpu_custom_call.1} parent=1 // pred_check_branch
      %5380 = sbr.rel (0) target = $region53
    $region52: #{tpu_custom_call.1} parent=1 // pred_region
      _
    $region53: #{tpu_custom_call.1} parent=1 // pred_fallthru
      _
    // Predicated region
    $region54: #{tpu_custom_call.1} parent=1 // pred_check
      _
    $region55: #{tpu_custom_call.1} parent=1 // pred_check_branch
      %5382 = sbr.rel (0) target = $region57
    $region56: #{tpu_custom_call.1} parent=1 // pred_region
      _
    $region57: #{tpu_custom_call.1} parent=1 // pred_fallthru
      _
    // Predicated region
    $region58: #{tpu_custom_call.1} parent=1 // pred_check
      _
    $region59: #{tpu_custom_call.1} parent=1 // pred_check_branch
      %5384 = sbr.rel (0) target = $region61
    $region60: #{tpu_custom_call.1} parent=1 // pred_region
      _
    $region61: #{tpu_custom_call.1} parent=1 // pred_fallthru
      _
    // Predicated region
    $region62: #{tpu_custom_call.1} parent=1 // pred_check
      _
    $region63: #{tpu_custom_call.1} parent=1 // pred_check_branch
      %5386 = sbr.rel (0) target = $region65
    $region64: #{tpu_custom_call.1} parent=1 // pred_region
      _
    $region65: #{tpu_custom_call.1} parent=1 // pred_fallthru
      _
    // Predicated region
    $region66: #{tpu_custom_call.1} parent=1 // pred_check
      _
    $region67: #{tpu_custom_call.1} parent=1 // pred_check_branch
      %5388 = sbr.rel (0) target = $region69
    $region68: #{tpu_custom_call.1} parent=1 // pred_region
      _
    $region69: #{tpu_custom_call.1} parent=1 // pred_fallthru
      _
    %5389 = vsyncpa [#allocation3], 1

</llo_original>
